<compile_context>
chip_gen: v6e
topology: v6e:2x2x1
jax: 0.10.0
libtpu: 0.0.40
codegen_flags: <defaults>
</compile_context>

<pallas_src>
import functools
import math

import numpy as np
import jax
import jax.numpy as jnp
from jax.experimental import pallas as pl
from jax.experimental.pallas import tpu as pltpu


# ----------------------------------------------------------------------------
# Compiler params (generation-aware VMEM limit, megacore-friendly semantics)
# ----------------------------------------------------------------------------
def _compiler_params(n_grid_axes):
    try:
        cap = int(pltpu.get_tpu_info().vmem_capacity_bytes)
    except Exception:
        cap = 64 * 1024 * 1024
    limit = min(cap * 3 // 4, 96 * 1024 * 1024)   # leave headroom for double buffering
    return pltpu.CompilerParams(
        dimension_semantics=("parallel",) * n_grid_axes,
        vmem_limit_bytes=int(limit),
    )


# ----------------------------------------------------------------------------
# Pallas kernels
# ----------------------------------------------------------------------------
def _styled_conv3x3_kernel(x_ref, w_ref, nz_ref, b_ref, o_ref, *, wp, m):
    """Fused styled 3x3 conv:
       out = leaky_relu(sum_{taps} shift(x) @ W_eff[tap] + noise + bias, 0.2) * sqrt(2)

    x_ref : (1, Hp*Wp, Cin)  bf16   padded, flattened image (per batch element)
                                    Hp = H+3 (1 top + 2 bottom pad rows so all tap slices fit)
    w_ref : (1, 9, Cin, TC)  bf16   per-batch folded weight (modulation+demodulation baked in)
    nz_ref: (1, M, 1)        f32    noise_weight * noise, laid out in padded-column order
    b_ref : (1, TC)          f32    FusedLeakyReLU bias
    o_ref : (1, M, TC)       f32    output rows in padded-column order (columns >= W are junk)
    """
    tc = o_ref.shape[-1]
    acc = jnp.zeros((m, tc), jnp.float32)
    for tap in range(9):
        dy, dx = tap // 3, tap % 3
        off = dy * wp + dx                       # static offset into the flattened padded image
        xs = x_ref[0, pl.ds(off, m), :]          # (M, Cin) bf16
        wt = w_ref[0, tap]                       # (Cin, TC) bf16
        acc = acc + jnp.dot(xs, wt, preferred_element_type=jnp.float32)
    z = acc + nz_ref[0] + b_ref[...]
    y = jnp.where(z >= 0.0, z, 0.2 * z) * math.sqrt(2.0)
    o_ref[0] = y.astype(o_ref.dtype)


def _to_rgb_kernel(x_ref, w_ref, b_ref, o_ref):
    """ToRGB: 1x1 modulated conv (no demodulation) + bias.
    x_ref: (1, H*W, Cin) bf16, w_ref: (1, Cin, 3) bf16, b_ref: (1, 3) f32, o_ref: (1, H*W, 3) f32.
    """
    y = jnp.dot(x_ref[0], w_ref[0], preferred_element_type=jnp.float32)
    o_ref[0] = (y + b_ref[...]).astype(o_ref.dtype)


# ----------------------------------------------------------------------------
# Plain-JAX glue: blur upsample (upfirdn2d up=2), modulation / weight folding
# ----------------------------------------------------------------------------
def _make_blur_kernel(factor=2):
    k = np.array([1.0, 3.0, 3.0, 1.0], np.float32)
    k = np.outer(k, k)
    k = k / k.sum()
    return k * (factor ** 2)                      # numpy constant (folded at trace time)


def _upsample2x_blur(x_nhwc, kernel4x4):
    """upfirdn2d(x, make_kernel([1,3,3,1])*4, up=2, down=1, pad=(2,1)) — tiny fixed FIR, JAX glue."""
    n, h, w, c = x_nhwc.shape
    up = jnp.zeros((n, h, 2, w, 2, c), x_nhwc.dtype)
    up = up.at[:, :, 0, :, 0, :].set(x_nhwc)
    up = up.reshape(n, 2 * h, 2 * w, c)
    up = jnp.pad(up, ((0, 0), (2, 1), (2, 1), (0, 0)))
    kf = kernel4x4[::-1, ::-1]                    # conv (not correlation) as in upfirdn2d_native
    out = jnp.zeros((n, 2 * h, 2 * w, c), jnp.float32)
    for i in range(4):
        for j in range(4):
            out = out + float(kf[i, j]) * up[:, i:i + 2 * h, j:j + 2 * w, :]
    return out


def _modulation(style, mod_w, mod_b, scale):
    s = jnp.dot(style, mod_w.T, precision=jax.lax.Precision.HIGHEST) + mod_b   # (B, Cin)
    return scale * s


def _fold_conv_weights(conv_p, style, demodulate):
    """Fold modulation (per batch, per Cin) and demodulation (per Cout) into the conv weight.
    Returns (B, k*k, Cin, Cout) effective weights."""
    w = conv_p["weight"]                            # (Cout, Cin, k, k)
    cout, cin, kh, kw = w.shape
    scale = 1.0 / math.sqrt(cin * kh * kw)
    mod = _modulation(style, conv_p["mod_w"], conv_p["mod_b"], scale)           # (B, Cin)
    w_hwio = jnp.transpose(w, (2, 3, 1, 0))                                     # (k, k, Cin, Cout)
    w_eff = mod[:, None, None, :, None] * w_hwio[None]                          # (B, k, k, Cin, Cout)
    if demodulate:
        si = conv_p["style_inv"].reshape(1, cin, 1, 1)
        d = jax.lax.rsqrt(jnp.sum((scale * si * w) ** 2, axis=(1, 2, 3)) + 1e-8)  # (Cout,)
        w_eff = w_eff * d[None, None, None, None, :]
    return w_eff.reshape(style.shape[0], kh * kw, cin, cout)


# ----------------------------------------------------------------------------
# Pallas wrappers
# ----------------------------------------------------------------------------
def _styled_conv3x3_call(x_nhwc, w_eff, noise_scaled, act_bias):
    n, h, w, cin = x_nhwc.shape
    cout = w_eff.shape[-1]
    wp = w + 2                                     # padded width
    hp = h + 3                                     # 1 top + 2 bottom pad rows (extra row keeps
                                                   # every flattened tap slice in bounds)
    m = h * wp                                     # output rows in padded-column order
    flat = hp * wp

    xp = jnp.pad(x_nhwc, ((0, 0), (1, 2), (1, 1), (0, 0)))          # (n, h+3, w+2, cin)
    xp = xp.astype(jnp.bfloat16).reshape(n, flat, cin)
    nz = jnp.pad(noise_scaled, ((0, 0), (0, 0), (0, wp - w), (0, 0)))
    nz = nz.reshape(n, m, 1).astype(jnp.float32)
    wq = w_eff.astype(jnp.bfloat16)                # (B, 9, Cin, Cout)
    b2 = act_bias.reshape(1, cout).astype(jnp.float32)

    tc = 128 if cout % 128 == 0 else cout          # lane-dense Cout tiles when possible
    grid = (n, cout // tc)

    out2 = pl.pallas_call(
        functools.partial(_styled_conv3x3_kernel, wp=wp, m=m),
        out_shape=jax.ShapeDtypeStruct((n, m, cout), jnp.float32),
        grid=grid,
        in_specs=[
            pl.BlockSpec((1, flat, cin), lambda b, c: (b, 0, 0)),
            pl.BlockSpec((1, 9, cin, tc), lambda b, c: (b, 0, 0, c)),
            pl.BlockSpec((1, m, 1), lambda b, c: (b, 0, 0)),
            pl.BlockSpec((1, tc), lambda b, c: (0, c)),
        ],
        out_specs=pl.BlockSpec((1, m, tc), lambda b, c: (b, 0, c)),
        compiler_params=_compiler_params(2),
    )(xp, wq, nz, b2)

    return out2.reshape(n, h, wp, cout)[:, :, :w, :]     # crop the padded columns


def _styled_conv_layer(x_nhwc, layer_p, style, noise_nhwc1, upsample, blur_k):
    if upsample:
        x_nhwc = _upsample2x_blur(x_nhwc, blur_k)
    w_eff = _fold_conv_weights(layer_p["conv"], style, demodulate=True)
    noise_scaled = layer_p["noise_w"] * noise_nhwc1
    return _styled_conv3x3_call(x_nhwc, w_eff, noise_scaled, layer_p["act_bias"])


def _to_rgb_call(hidden_nhwc, rgb_p, style):
    n, h, w, cin = hidden_nhwc.shape
    w_eff = _fold_conv_weights(rgb_p["conv"], style, demodulate=False)      # (B, 1, Cin, 3)
    w_eff = w_eff.reshape(n, cin, 3).astype(jnp.bfloat16)
    x2 = hidden_nhwc.reshape(n, h * w, cin).astype(jnp.bfloat16)
    b2 = rgb_p["bias"].reshape(1, 3).astype(jnp.float32)

    out = pl.pallas_call(
        _to_rgb_kernel,
        out_shape=jax.ShapeDtypeStruct((n, h * w, 3), jnp.float32),
        grid=(n,),
        in_specs=[
            pl.BlockSpec((1, h * w, cin), lambda b: (b, 0, 0)),
            pl.BlockSpec((1, cin, 3), lambda b: (b, 0, 0)),
            pl.BlockSpec((1, 3), lambda b: (0, 0)),
        ],
        out_specs=pl.BlockSpec((1, h * w, 3), lambda b: (b, 0, 0)),
        compiler_params=_compiler_params(1),
    )(x2, w_eff, b2)
    return out.reshape(n, h, w, 3)


# ----------------------------------------------------------------------------
# SynthesisBlock forward (Pallas path)
# ----------------------------------------------------------------------------
def synthesis_block_forward(params, hidden_nchw, style, noise1_nchw, noise2_nchw):
    blur_k = _make_blur_kernel(2)
    x = jnp.transpose(hidden_nchw, (0, 2, 3, 1)).astype(jnp.float32)       # NCHW -> NHWC
    n1 = jnp.transpose(noise1_nchw, (0, 2, 3, 1)).astype(jnp.float32)
    n2 = jnp.transpose(noise2_nchw, (0, 2, 3, 1)).astype(jnp.float32)

    s1 = style if style.ndim == 2 else style[:, 0, :]
    s2 = style if style.ndim == 2 else style[:, 1, :]
    s3 = style if style.ndim == 2 else style[:, 2, :]

    x = _styled_conv_layer(x, params["conv1"], s1, n1, upsample=True, blur_k=blur_k)
    x = _styled_conv_layer(x, params["conv2"], s2, n2, upsample=False, blur_k=blur_k)
    rgb = _to_rgb_call(x, params["to_rgb"], s3)

    return jnp.transpose(x, (0, 3, 1, 2)), jnp.transpose(rgb, (0, 3, 1, 2))


# ----------------------------------------------------------------------------
# Pure-JAX reference (follows the PyTorch ops literally, f32) for a sanity check
# ----------------------------------------------------------------------------
def _ref_modulated_conv(x_nhwc, conv_p, style, demodulate):
    w = conv_p["weight"]
    cout, cin, kh, kw = w.shape
    scale = 1.0 / math.sqrt(cin * kh * kw)
    mod = _modulation(style, conv_p["mod_w"], conv_p["mod_b"], scale)      # (B, Cin)
    xm = x_nhwc * mod[:, None, None, :]
    w_hwio = jnp.transpose(w, (2, 3, 1, 0))
    pad = kh // 2
    y = jax.lax.conv_general_dilated(
        xm, w_hwio, window_strides=(1, 1),
        padding=((pad, pad), (pad, pad)),
        dimension_numbers=("NHWC", "HWIO", "NHWC"),
        precision=jax.lax.Precision.HIGHEST)
    if demodulate:
        si = conv_p["style_inv"].reshape(1, cin, 1, 1)
        d = jax.lax.rsqrt(jnp.sum((scale * si * w) ** 2, axis=(1, 2, 3)) + 1e-8)
        y = y * d[None, None, None, :]
    return y


def reference_forward(params, hidden_nchw, style, noise1_nchw, noise2_nchw):
    blur_k = _make_blur_kernel(2)
    x = jnp.transpose(hidden_nchw, (0, 2, 3, 1)).astype(jnp.float32)
    n1 = jnp.transpose(noise1_nchw, (0, 2, 3, 1)).astype(jnp.float32)
    n2 = jnp.transpose(noise2_nchw, (0, 2, 3, 1)).astype(jnp.float32)
    sty = lambda i: style if style.ndim == 2 else style[:, i, :]
    sqrt2 = math.sqrt(2.0)

    def styled(xin, layer_p, st, nz, upsample):
        if upsample:
            xin = _upsample2x_blur(xin, blur_k)
        y = _ref_modulated_conv(xin, layer_p["conv"], st, demodulate=True)
        y = y + layer_p["noise_w"] * nz
        y = y + layer_p["act_bias"][None, None, None, :]
        return jnp.where(y >= 0.0, y, 0.2 * y) * sqrt2

    x = styled(x, params["conv1"], sty(0), n1, True)
    x = styled(x, params["conv2"], sty(1), n2, False)
    rgb = _ref_modulated_conv(x, params["to_rgb"]["conv"], sty(2), demodulate=False)
    rgb = rgb + params["to_rgb"]["bias"][None, None, None, :]
    return jnp.transpose(x, (0, 3, 1, 2)), jnp.transpose(rgb, (0, 3, 1, 2))


# ----------------------------------------------------------------------------
# Deterministic parameter init (no pretrained checkpoint).
# NOTE: PyTorch inits noise weight / activation biases to zero; small random values are used here
#       so the fused noise/bias epilogue is actually exercised by the check.
# ----------------------------------------------------------------------------
def init_params(key, cin, cout, style_dim):
    ks = jax.random.split(key, 12)

    def modconv(k, ci, co, ksz):
        k1, k2, k3 = jax.random.split(k, 3)
        return dict(
            weight=jax.random.normal(k1, (co, ci, ksz, ksz), jnp.float32),
            mod_w=jax.random.normal(k2, (ci, style_dim), jnp.float32) / np.sqrt(style_dim),
            mod_b=jnp.ones((ci,), jnp.float32),                    # modulation.bias.fill_(1.0)
            style_inv=jax.random.normal(k3, (1, 1, ci, 1, 1), jnp.float32),
        )

    return dict(
        conv1=dict(conv=modconv(ks[0], cin, cout, 3),
                   noise_w=0.1 * jax.random.normal(ks[1], (), jnp.float32),
                   act_bias=0.1 * jax.random.normal(ks[2], (cout,), jnp.float32)),
        conv2=dict(conv=modconv(ks[3], cout, cout, 3),
                   noise_w=0.1 * jax.random.normal(ks[4], (), jnp.float32),
                   act_bias=0.1 * jax.random.normal(ks[5], (cout,), jnp.float32)),
        to_rgb=dict(conv=modconv(ks[6], cout, 3, 1),
                    bias=0.1 * jax.random.normal(ks[7], (3,), jnp.float32)),
    )


if __name__ == "__main__":
    key = jax.random.PRNGKey(0)
    k_hid, k_sty, k_n1, k_n2, k_par = jax.random.split(key, 5)

    B, C_IN, C_OUT, STYLE_DIM, H, W = 2, 8, 16, 32, 8, 8
    hidden = jax.random.normal(k_hid, (B, C_IN, H, W), jnp.float32)          # NCHW
    style = jax.random.normal(k_sty, (B, STYLE_DIM), jnp.float32)
    noise1 = jax.random.normal(k_n1, (B, 1, 2 * H, 2 * W), jnp.float32)      # post-upsample res
    noise2 = jax.random.normal(k_n2, (B, 1, 2 * H, 2 * W), jnp.float32)
    params = init_params(k_par, C_IN, C_OUT, STYLE_DIM)

    fwd = jax.jit(synthesis_block_forward)
    hid_out, rgb_out = fwd(params, hidden, style, noise1, noise2)
    jax.block_until_ready((hid_out, rgb_out))

    ref_hid, ref_rgb = jax.jit(reference_forward)(params, hidden, style, noise1, noise2)
    np.testing.assert_allclose(np.asarray(hid_out), np.asarray(ref_hid), rtol=5e-2, atol=5e-2)
    np.testing.assert_allclose(np.asarray(rgb_out), np.asarray(ref_rgb), rtol=5e-2, atol=5e-2)

    print("KERNEL_OK")
</pallas_src>

<mosaic_0001>
module attributes {stable_mosaic.version = 11 : i64} {
  func.func @_styled_conv3x3_kernel(%arg0: i32, %arg1: i32, %arg2: memref<1x342x8xbf16, #tpu.memory_space<vmem>>, %arg3: memref<1x9x8x16xbf16, #tpu.memory_space<vmem>>, %arg4: memref<1x288x1xf32, #tpu.memory_space<vmem>>, %arg5: memref<1x16xf32, #tpu.memory_space<vmem>>, %arg6: memref<1x288x16xf32, #tpu.memory_space<vmem>>) attributes {dimension_semantics = [#tpu.dimension_semantics<parallel>, #tpu.dimension_semantics<parallel>], iteration_bounds = array<i64: 2, 1>, scalar_prefetch = 0 : i64, scratch_operands = 0 : i64, tpu.core_type = #tpu.core_type<tc>, window_params = [{transform_indices = @transform_0, window_bounds = array<i64: 1, 342, 8>}, {transform_indices = @transform_1, window_bounds = array<i64: 1, 9, 8, 16>}, {transform_indices = @transform_2, window_bounds = array<i64: 1, 288, 1>}, {transform_indices = @transform_3, window_bounds = array<i64: 1, 16>}, {transform_indices = @transform_4, window_bounds = array<i64: 1, 288, 16>}]} {
    %cst = arith.constant 0.000000e+00 : f32
    %0 = vector.broadcast %cst : f32 to vector<288x16xf32>
    %c0 = arith.constant 0 : index
    %c0_0 = arith.constant 0 : index
    %c0_1 = arith.constant 0 : index
    %1 = vector.load %arg2[%c0, %c0_0, %c0_1] : memref<1x342x8xbf16, #tpu.memory_space<vmem>>, vector<1x288x8xbf16>
    %2 = vector.shape_cast %1 : vector<1x288x8xbf16> to vector<288x8xbf16>
    %c0_2 = arith.constant 0 : index
    %c0_3 = arith.constant 0 : index
    %c0_4 = arith.constant 0 : index
    %c0_5 = arith.constant 0 : index
    %3 = vector.load %arg3[%c0_2, %c0_3, %c0_4, %c0_5] : memref<1x9x8x16xbf16, #tpu.memory_space<vmem>>, vector<1x1x8x16xbf16>
    %4 = vector.shape_cast %3 : vector<1x1x8x16xbf16> to vector<8x16xbf16>
    %cst_6 = arith.constant dense<0.000000e+00> : vector<288x16xf32>
    %5 = tpu.matmul %2, %4, %cst_6 {dimension_numbers = #tpu.dot_dimension_numbers<[1], [0], [0], [1], [0, 0, 1, 1], [], []>} : vector<288x8xbf16>, vector<8x16xbf16>, vector<288x16xf32> -> vector<288x16xf32>
    %6 = arith.addf %0, %5 : vector<288x16xf32>
    %c0_7 = arith.constant 0 : index
    %c1 = arith.constant 1 : index
    %c0_8 = arith.constant 0 : index
    %7 = vector.load %arg2[%c0_7, %c1, %c0_8] : memref<1x342x8xbf16, #tpu.memory_space<vmem>>, vector<1x288x8xbf16>
    %8 = vector.shape_cast %7 : vector<1x288x8xbf16> to vector<288x8xbf16>
    %c0_9 = arith.constant 0 : index
    %c1_10 = arith.constant 1 : index
    %c0_11 = arith.constant 0 : index
    %c0_12 = arith.constant 0 : index
    %9 = vector.load %arg3[%c0_9, %c1_10, %c0_11, %c0_12] : memref<1x9x8x16xbf16, #tpu.memory_space<vmem>>, vector<1x1x8x16xbf16>
    %10 = vector.shape_cast %9 : vector<1x1x8x16xbf16> to vector<8x16xbf16>
    %cst_13 = arith.constant dense<0.000000e+00> : vector<288x16xf32>
    %11 = tpu.matmul %8, %10, %cst_13 {dimension_numbers = #tpu.dot_dimension_numbers<[1], [0], [0], [1], [0, 0, 1, 1], [], []>} : vector<288x8xbf16>, vector<8x16xbf16>, vector<288x16xf32> -> vector<288x16xf32>
    %12 = arith.addf %6, %11 : vector<288x16xf32>
    %c0_14 = arith.constant 0 : index
    %c2 = arith.constant 2 : index
    %c0_15 = arith.constant 0 : index
    %13 = vector.load %arg2[%c0_14, %c2, %c0_15] : memref<1x342x8xbf16, #tpu.memory_space<vmem>>, vector<1x288x8xbf16>
    %14 = vector.shape_cast %13 : vector<1x288x8xbf16> to vector<288x8xbf16>
    %c0_16 = arith.constant 0 : index
    %c2_17 = arith.constant 2 : index
    %c0_18 = arith.constant 0 : index
    %c0_19 = arith.constant 0 : index
    %15 = vector.load %arg3[%c0_16, %c2_17, %c0_18, %c0_19] : memref<1x9x8x16xbf16, #tpu.memory_space<vmem>>, vector<1x1x8x16xbf16>
    %16 = vector.shape_cast %15 : vector<1x1x8x16xbf16> to vector<8x16xbf16>
    %cst_20 = arith.constant dense<0.000000e+00> : vector<288x16xf32>
    %17 = tpu.matmul %14, %16, %cst_20 {dimension_numbers = #tpu.dot_dimension_numbers<[1], [0], [0], [1], [0, 0, 1, 1], [], []>} : vector<288x8xbf16>, vector<8x16xbf16>, vector<288x16xf32> -> vector<288x16xf32>
    %18 = arith.addf %12, %17 : vector<288x16xf32>
    %c0_21 = arith.constant 0 : index
    %c18 = arith.constant 18 : index
    %c0_22 = arith.constant 0 : index
    %19 = vector.load %arg2[%c0_21, %c18, %c0_22] : memref<1x342x8xbf16, #tpu.memory_space<vmem>>, vector<1x288x8xbf16>
    %20 = vector.shape_cast %19 : vector<1x288x8xbf16> to vector<288x8xbf16>
    %c0_23 = arith.constant 0 : index
    %c3 = arith.constant 3 : index
    %c0_24 = arith.constant 0 : index
    %c0_25 = arith.constant 0 : index
    %21 = vector.load %arg3[%c0_23, %c3, %c0_24, %c0_25] : memref<1x9x8x16xbf16, #tpu.memory_space<vmem>>, vector<1x1x8x16xbf16>
    %22 = vector.shape_cast %21 : vector<1x1x8x16xbf16> to vector<8x16xbf16>
    %cst_26 = arith.constant dense<0.000000e+00> : vector<288x16xf32>
    %23 = tpu.matmul %20, %22, %cst_26 {dimension_numbers = #tpu.dot_dimension_numbers<[1], [0], [0], [1], [0, 0, 1, 1], [], []>} : vector<288x8xbf16>, vector<8x16xbf16>, vector<288x16xf32> -> vector<288x16xf32>
    %24 = arith.addf %18, %23 : vector<288x16xf32>
    %c0_27 = arith.constant 0 : index
    %c19 = arith.constant 19 : index
    %c0_28 = arith.constant 0 : index
    %25 = vector.load %arg2[%c0_27, %c19, %c0_28] : memref<1x342x8xbf16, #tpu.memory_space<vmem>>, vector<1x288x8xbf16>
    %26 = vector.shape_cast %25 : vector<1x288x8xbf16> to vector<288x8xbf16>
    %c0_29 = arith.constant 0 : index
    %c4 = arith.constant 4 : index
    %c0_30 = arith.constant 0 : index
    %c0_31 = arith.constant 0 : index
    %27 = vector.load %arg3[%c0_29, %c4, %c0_30, %c0_31] : memref<1x9x8x16xbf16, #tpu.memory_space<vmem>>, vector<1x1x8x16xbf16>
    %28 = vector.shape_cast %27 : vector<1x1x8x16xbf16> to vector<8x16xbf16>
    %cst_32 = arith.constant dense<0.000000e+00> : vector<288x16xf32>
    %29 = tpu.matmul %26, %28, %cst_32 {dimension_numbers = #tpu.dot_dimension_numbers<[1], [0], [0], [1], [0, 0, 1, 1], [], []>} : vector<288x8xbf16>, vector<8x16xbf16>, vector<288x16xf32> -> vector<288x16xf32>
    %30 = arith.addf %24, %29 : vector<288x16xf32>
    %c0_33 = arith.constant 0 : index
    %c20 = arith.constant 20 : index
    %c0_34 = arith.constant 0 : index
    %31 = vector.load %arg2[%c0_33, %c20, %c0_34] : memref<1x342x8xbf16, #tpu.memory_space<vmem>>, vector<1x288x8xbf16>
    %32 = vector.shape_cast %31 : vector<1x288x8xbf16> to vector<288x8xbf16>
    %c0_35 = arith.constant 0 : index
    %c5 = arith.constant 5 : index
    %c0_36 = arith.constant 0 : index
    %c0_37 = arith.constant 0 : index
    %33 = vector.load %arg3[%c0_35, %c5, %c0_36, %c0_37] : memref<1x9x8x16xbf16, #tpu.memory_space<vmem>>, vector<1x1x8x16xbf16>
    %34 = vector.shape_cast %33 : vector<1x1x8x16xbf16> to vector<8x16xbf16>
    %cst_38 = arith.constant dense<0.000000e+00> : vector<288x16xf32>
    %35 = tpu.matmul %32, %34, %cst_38 {dimension_numbers = #tpu.dot_dimension_numbers<[1], [0], [0], [1], [0, 0, 1, 1], [], []>} : vector<288x8xbf16>, vector<8x16xbf16>, vector<288x16xf32> -> vector<288x16xf32>
    %36 = arith.addf %30, %35 : vector<288x16xf32>
    %c0_39 = arith.constant 0 : index
    %c36 = arith.constant 36 : index
    %c0_40 = arith.constant 0 : index
    %37 = vector.load %arg2[%c0_39, %c36, %c0_40] : memref<1x342x8xbf16, #tpu.memory_space<vmem>>, vector<1x288x8xbf16>
    %38 = vector.shape_cast %37 : vector<1x288x8xbf16> to vector<288x8xbf16>
    %c0_41 = arith.constant 0 : index
    %c6 = arith.constant 6 : index
    %c0_42 = arith.constant 0 : index
    %c0_43 = arith.constant 0 : index
    %39 = vector.load %arg3[%c0_41, %c6, %c0_42, %c0_43] : memref<1x9x8x16xbf16, #tpu.memory_space<vmem>>, vector<1x1x8x16xbf16>
    %40 = vector.shape_cast %39 : vector<1x1x8x16xbf16> to vector<8x16xbf16>
    %cst_44 = arith.constant dense<0.000000e+00> : vector<288x16xf32>
    %41 = tpu.matmul %38, %40, %cst_44 {dimension_numbers = #tpu.dot_dimension_numbers<[1], [0], [0], [1], [0, 0, 1, 1], [], []>} : vector<288x8xbf16>, vector<8x16xbf16>, vector<288x16xf32> -> vector<288x16xf32>
    %42 = arith.addf %36, %41 : vector<288x16xf32>
    %c0_45 = arith.constant 0 : index
    %c37 = arith.constant 37 : index
    %c0_46 = arith.constant 0 : index
    %43 = vector.load %arg2[%c0_45, %c37, %c0_46] : memref<1x342x8xbf16, #tpu.memory_space<vmem>>, vector<1x288x8xbf16>
    %44 = vector.shape_cast %43 : vector<1x288x8xbf16> to vector<288x8xbf16>
    %c0_47 = arith.constant 0 : index
    %c7 = arith.constant 7 : index
    %c0_48 = arith.constant 0 : index
    %c0_49 = arith.constant 0 : index
    %45 = vector.load %arg3[%c0_47, %c7, %c0_48, %c0_49] : memref<1x9x8x16xbf16, #tpu.memory_space<vmem>>, vector<1x1x8x16xbf16>
    %46 = vector.shape_cast %45 : vector<1x1x8x16xbf16> to vector<8x16xbf16>
    %cst_50 = arith.constant dense<0.000000e+00> : vector<288x16xf32>
    %47 = tpu.matmul %44, %46, %cst_50 {dimension_numbers = #tpu.dot_dimension_numbers<[1], [0], [0], [1], [0, 0, 1, 1], [], []>} : vector<288x8xbf16>, vector<8x16xbf16>, vector<288x16xf32> -> vector<288x16xf32>
    %48 = arith.addf %42, %47 : vector<288x16xf32>
    %c0_51 = arith.constant 0 : index
    %c38 = arith.constant 38 : index
    %c0_52 = arith.constant 0 : index
    %49 = vector.load %arg2[%c0_51, %c38, %c0_52] : memref<1x342x8xbf16, #tpu.memory_space<vmem>>, vector<1x288x8xbf16>
    %50 = vector.shape_cast %49 : vector<1x288x8xbf16> to vector<288x8xbf16>
    %c0_53 = arith.constant 0 : index
    %c8 = arith.constant 8 : index
    %c0_54 = arith.constant 0 : index
    %c0_55 = arith.constant 0 : index
    %51 = vector.load %arg3[%c0_53, %c8, %c0_54, %c0_55] : memref<1x9x8x16xbf16, #tpu.memory_space<vmem>>, vector<1x1x8x16xbf16>
    %52 = vector.shape_cast %51 : vector<1x1x8x16xbf16> to vector<8x16xbf16>
    %cst_56 = arith.constant dense<0.000000e+00> : vector<288x16xf32>
    %53 = tpu.matmul %50, %52, %cst_56 {dimension_numbers = #tpu.dot_dimension_numbers<[1], [0], [0], [1], [0, 0, 1, 1], [], []>} : vector<288x8xbf16>, vector<8x16xbf16>, vector<288x16xf32> -> vector<288x16xf32>
    %54 = arith.addf %48, %53 : vector<288x16xf32>
    %c0_57 = arith.constant 0 : index
    %c0_58 = arith.constant 0 : index
    %c0_59 = arith.constant 0 : index
    %55 = vector.load %arg4[%c0_57, %c0_58, %c0_59] : memref<1x288x1xf32, #tpu.memory_space<vmem>>, vector<1x288x1xf32>
    %56 = vector.shape_cast %55 : vector<1x288x1xf32> to vector<288x1xf32>
    %57 = vector.broadcast %56 : vector<288x1xf32> to vector<288x16xf32>
    %58 = arith.addf %54, %57 : vector<288x16xf32>
    %c0_60 = arith.constant 0 : index
    %c0_61 = arith.constant 0 : index
    %59 = vector.load %arg5[%c0_60, %c0_61] : memref<1x16xf32, #tpu.memory_space<vmem>>, vector<1x16xf32>
    %60 = vector.broadcast %59 : vector<1x16xf32> to vector<288x16xf32>
    %61 = arith.addf %58, %60 : vector<288x16xf32>
    %cst_62 = arith.constant 0.000000e+00 : f32
    %62 = vector.broadcast %cst_62 : f32 to vector<288x16xf32>
    %63 = arith.cmpf oge, %61, %62 : vector<288x16xf32>
    %cst_63 = arith.constant 2.000000e-01 : f32
    %64 = vector.broadcast %cst_63 : f32 to vector<288x16xf32>
    %65 = arith.mulf %64, %61 : vector<288x16xf32>
    %66 = arith.select %63, %61, %65 : vector<288x16xi1>, vector<288x16xf32>
    %cst_64 = arith.constant 1.41421354 : f32
    %67 = vector.broadcast %cst_64 : f32 to vector<288x16xf32>
    %68 = arith.mulf %66, %67 : vector<288x16xf32>
    %c0_65 = arith.constant 0 : index
    %c0_66 = arith.constant 0 : index
    %c0_67 = arith.constant 0 : index
    %69 = vector.load %arg6[%c0_65, %c0_66, %c0_67] : memref<1x288x16xf32, #tpu.memory_space<vmem>>, vector<1x288x16xf32>
    %70 = vector.shape_cast %69 : vector<1x288x16xf32> to vector<288x16xf32>
    %71 = vector.shape_cast %68 : vector<288x16xf32> to vector<1x288x16xf32>
    tpu.vector_store %arg6[%c0_65, %c0_66, %c0_67], %71 {strides = array<i32>} : memref<1x288x16xf32, #tpu.memory_space<vmem>>, vector<1x288x16xf32>,
    return
  }
  func.func @transform_0(%arg0: i32, %arg1: i32) -> (i32, i32, i32) {
    %c0_i32 = arith.constant 0 : i32
    %c0_i32_0 = arith.constant 0 : i32
    %c0_i32_1 = arith.constant 0 : i32
    return %arg0, %c0_i32, %c0_i32_0 : i32, i32, i32
  }
  func.func @transform_1(%arg0: i32, %arg1: i32) -> (i32, i32, i32, i32) {
    %c0_i32 = arith.constant 0 : i32
    %c0_i32_0 = arith.constant 0 : i32
    %c0_i32_1 = arith.constant 0 : i32
    return %arg0, %c0_i32, %c0_i32_0, %arg1 : i32, i32, i32, i32
  }
  func.func @transform_2(%arg0: i32, %arg1: i32) -> (i32, i32, i32) {
    %c0_i32 = arith.constant 0 : i32
    %c0_i32_0 = arith.constant 0 : i32
    %c0_i32_1 = arith.constant 0 : i32
    return %arg0, %c0_i32, %c0_i32_0 : i32, i32, i32
  }
  func.func @transform_3(%arg0: i32, %arg1: i32) -> (i32, i32) {
    %c0_i32 = arith.constant 0 : i32
    %c0_i32_0 = arith.constant 0 : i32
    return %c0_i32, %arg1 : i32, i32
  }
  func.func @transform_4(%arg0: i32, %arg1: i32) -> (i32, i32, i32) {
    %c0_i32 = arith.constant 0 : i32
    %c0_i32_0 = arith.constant 0 : i32
    return %arg0, %c0_i32, %arg1 : i32, i32, i32
  }
}

module attributes {stable_mosaic.version = 11 : i64} {
  func.func @_styled_conv3x3_kernel(%arg0: i32, %arg1: i32, %arg2: memref<1x342x16xbf16, #tpu.memory_space<vmem>>, %arg3: memref<1x9x16x16xbf16, #tpu.memory_space<vmem>>, %arg4: memref<1x288x1xf32, #tpu.memory_space<vmem>>, %arg5: memref<1x16xf32, #tpu.memory_space<vmem>>, %arg6: memref<1x288x16xf32, #tpu.memory_space<vmem>>) attributes {dimension_semantics = [#tpu.dimension_semantics<parallel>, #tpu.dimension_semantics<parallel>], iteration_bounds = array<i64: 2, 1>, scalar_prefetch = 0 : i64, scratch_operands = 0 : i64, tpu.core_type = #tpu.core_type<tc>, window_params = [{transform_indices = @transform_0, window_bounds = array<i64: 1, 342, 16>}, {transform_indices = @transform_1, window_bounds = array<i64: 1, 9, 16, 16>}, {transform_indices = @transform_2, window_bounds = array<i64: 1, 288, 1>}, {transform_indices = @transform_3, window_bounds = array<i64: 1, 16>}, {transform_indices = @transform_4, window_bounds = array<i64: 1, 288, 16>}]} {
    %cst = arith.constant 0.000000e+00 : f32
    %0 = vector.broadcast %cst : f32 to vector<288x16xf32>
    %c0 = arith.constant 0 : index
    %c0_0 = arith.constant 0 : index
    %c0_1 = arith.constant 0 : index
    %1 = vector.load %arg2[%c0, %c0_0, %c0_1] : memref<1x342x16xbf16, #tpu.memory_space<vmem>>, vector<1x288x16xbf16>
    %2 = vector.shape_cast %1 : vector<1x288x16xbf16> to vector<288x16xbf16>
    %c0_2 = arith.constant 0 : index
    %c0_3 = arith.constant 0 : index
    %c0_4 = arith.constant 0 : index
    %c0_5 = arith.constant 0 : index
    %3 = vector.load %arg3[%c0_2, %c0_3, %c0_4, %c0_5] : memref<1x9x16x16xbf16, #tpu.memory_space<vmem>>, vector<1x1x16x16xbf16>
    %4 = vector.shape_cast %3 : vector<1x1x16x16xbf16> to vector<16x16xbf16>
    %cst_6 = arith.constant dense<0.000000e+00> : vector<288x16xf32>
    %5 = tpu.matmul %2, %4, %cst_6 {dimension_numbers = #tpu.dot_dimension_numbers<[1], [0], [0], [1], [0, 0, 1, 1], [], []>} : vector<288x16xbf16>, vector<16x16xbf16>, vector<288x16xf32> -> vector<288x16xf32>
    %6 = arith.addf %0, %5 : vector<288x16xf32>
    %c0_7 = arith.constant 0 : index
    %c1 = arith.constant 1 : index
    %c0_8 = arith.constant 0 : index
    %7 = vector.load %arg2[%c0_7, %c1, %c0_8] : memref<1x342x16xbf16, #tpu.memory_space<vmem>>, vector<1x288x16xbf16>
    %8 = vector.shape_cast %7 : vector<1x288x16xbf16> to vector<288x16xbf16>
    %c0_9 = arith.constant 0 : index
    %c1_10 = arith.constant 1 : index
    %c0_11 = arith.constant 0 : index
    %c0_12 = arith.constant 0 : index
    %9 = vector.load %arg3[%c0_9, %c1_10, %c0_11, %c0_12] : memref<1x9x16x16xbf16, #tpu.memory_space<vmem>>, vector<1x1x16x16xbf16>
    %10 = vector.shape_cast %9 : vector<1x1x16x16xbf16> to vector<16x16xbf16>
    %cst_13 = arith.constant dense<0.000000e+00> : vector<288x16xf32>
    %11 = tpu.matmul %8, %10, %cst_13 {dimension_numbers = #tpu.dot_dimension_numbers<[1], [0], [0], [1], [0, 0, 1, 1], [], []>} : vector<288x16xbf16>, vector<16x16xbf16>, vector<288x16xf32> -> vector<288x16xf32>
    %12 = arith.addf %6, %11 : vector<288x16xf32>
    %c0_14 = arith.constant 0 : index
    %c2 = arith.constant 2 : index
    %c0_15 = arith.constant 0 : index
    %13 = vector.load %arg2[%c0_14, %c2, %c0_15] : memref<1x342x16xbf16, #tpu.memory_space<vmem>>, vector<1x288x16xbf16>
    %14 = vector.shape_cast %13 : vector<1x288x16xbf16> to vector<288x16xbf16>
    %c0_16 = arith.constant 0 : index
    %c2_17 = arith.constant 2 : index
    %c0_18 = arith.constant 0 : index
    %c0_19 = arith.constant 0 : index
    %15 = vector.load %arg3[%c0_16, %c2_17, %c0_18, %c0_19] : memref<1x9x16x16xbf16, #tpu.memory_space<vmem>>, vector<1x1x16x16xbf16>
    %16 = vector.shape_cast %15 : vector<1x1x16x16xbf16> to vector<16x16xbf16>
    %cst_20 = arith.constant dense<0.000000e+00> : vector<288x16xf32>
    %17 = tpu.matmul %14, %16, %cst_20 {dimension_numbers = #tpu.dot_dimension_numbers<[1], [0], [0], [1], [0, 0, 1, 1], [], []>} : vector<288x16xbf16>, vector<16x16xbf16>, vector<288x16xf32> -> vector<288x16xf32>
    %18 = arith.addf %12, %17 : vector<288x16xf32>
    %c0_21 = arith.constant 0 : index
    %c18 = arith.constant 18 : index
    %c0_22 = arith.constant 0 : index
    %19 = vector.load %arg2[%c0_21, %c18, %c0_22] : memref<1x342x16xbf16, #tpu.memory_space<vmem>>, vector<1x288x16xbf16>
    %20 = vector.shape_cast %19 : vector<1x288x16xbf16> to vector<288x16xbf16>
    %c0_23 = arith.constant 0 : index
    %c3 = arith.constant 3 : index
    %c0_24 = arith.constant 0 : index
    %c0_25 = arith.constant 0 : index
    %21 = vector.load %arg3[%c0_23, %c3, %c0_24, %c0_25] : memref<1x9x16x16xbf16, #tpu.memory_space<vmem>>, vector<1x1x16x16xbf16>
    %22 = vector.shape_cast %21 : vector<1x1x16x16xbf16> to vector<16x16xbf16>
    %cst_26 = arith.constant dense<0.000000e+00> : vector<288x16xf32>
    %23 = tpu.matmul %20, %22, %cst_26 {dimension_numbers = #tpu.dot_dimension_numbers<[1], [0], [0], [1], [0, 0, 1, 1], [], []>} : vector<288x16xbf16>, vector<16x16xbf16>, vector<288x16xf32> -> vector<288x16xf32>
    %24 = arith.addf %18, %23 : vector<288x16xf32>
    %c0_27 = arith.constant 0 : index
    %c19 = arith.constant 19 : index
    %c0_28 = arith.constant 0 : index
    %25 = vector.load %arg2[%c0_27, %c19, %c0_28] : memref<1x342x16xbf16, #tpu.memory_space<vmem>>, vector<1x288x16xbf16>
    %26 = vector.shape_cast %25 : vector<1x288x16xbf16> to vector<288x16xbf16>
    %c0_29 = arith.constant 0 : index
    %c4 = arith.constant 4 : index
    %c0_30 = arith.constant 0 : index
    %c0_31 = arith.constant 0 : index
    %27 = vector.load %arg3[%c0_29, %c4, %c0_30, %c0_31] : memref<1x9x16x16xbf16, #tpu.memory_space<vmem>>, vector<1x1x16x16xbf16>
    %28 = vector.shape_cast %27 : vector<1x1x16x16xbf16> to vector<16x16xbf16>
    %cst_32 = arith.constant dense<0.000000e+00> : vector<288x16xf32>
    %29 = tpu.matmul %26, %28, %cst_32 {dimension_numbers = #tpu.dot_dimension_numbers<[1], [0], [0], [1], [0, 0, 1, 1], [], []>} : vector<288x16xbf16>, vector<16x16xbf16>, vector<288x16xf32> -> vector<288x16xf32>
    %30 = arith.addf %24, %29 : vector<288x16xf32>
    %c0_33 = arith.constant 0 : index
    %c20 = arith.constant 20 : index
    %c0_34 = arith.constant 0 : index
    %31 = vector.load %arg2[%c0_33, %c20, %c0_34] : memref<1x342x16xbf16, #tpu.memory_space<vmem>>, vector<1x288x16xbf16>
    %32 = vector.shape_cast %31 : vector<1x288x16xbf16> to vector<288x16xbf16>
    %c0_35 = arith.constant 0 : index
    %c5 = arith.constant 5 : index
    %c0_36 = arith.constant 0 : index
    %c0_37 = arith.constant 0 : index
    %33 = vector.load %arg3[%c0_35, %c5, %c0_36, %c0_37] : memref<1x9x16x16xbf16, #tpu.memory_space<vmem>>, vector<1x1x16x16xbf16>
    %34 = vector.shape_cast %33 : vector<1x1x16x16xbf16> to vector<16x16xbf16>
    %cst_38 = arith.constant dense<0.000000e+00> : vector<288x16xf32>
    %35 = tpu.matmul %32, %34, %cst_38 {dimension_numbers = #tpu.dot_dimension_numbers<[1], [0], [0], [1], [0, 0, 1, 1], [], []>} : vector<288x16xbf16>, vector<16x16xbf16>, vector<288x16xf32> -> vector<288x16xf32>
    %36 = arith.addf %30, %35 : vector<288x16xf32>
    %c0_39 = arith.constant 0 : index
    %c36 = arith.constant 36 : index
    %c0_40 = arith.constant 0 : index
    %37 = vector.load %arg2[%c0_39, %c36, %c0_40] : memref<1x342x16xbf16, #tpu.memory_space<vmem>>, vector<1x288x16xbf16>
    %38 = vector.shape_cast %37 : vector<1x288x16xbf16> to vector<288x16xbf16>
    %c0_41 = arith.constant 0 : index
    %c6 = arith.constant 6 : index
    %c0_42 = arith.constant 0 : index
    %c0_43 = arith.constant 0 : index
    %39 = vector.load %arg3[%c0_41, %c6, %c0_42, %c0_43] : memref<1x9x16x16xbf16, #tpu.memory_space<vmem>>, vector<1x1x16x16xbf16>
    %40 = vector.shape_cast %39 : vector<1x1x16x16xbf16> to vector<16x16xbf16>
    %cst_44 = arith.constant dense<0.000000e+00> : vector<288x16xf32>
    %41 = tpu.matmul %38, %40, %cst_44 {dimension_numbers = #tpu.dot_dimension_numbers<[1], [0], [0], [1], [0, 0, 1, 1], [], []>} : vector<288x16xbf16>, vector<16x16xbf16>, vector<288x16xf32> -> vector<288x16xf32>
    %42 = arith.addf %36, %41 : vector<288x16xf32>
    %c0_45 = arith.constant 0 : index
    %c37 = arith.constant 37 : index
    %c0_46 = arith.constant 0 : index
    %43 = vector.load %arg2[%c0_45, %c37, %c0_46] : memref<1x342x16xbf16, #tpu.memory_space<vmem>>, vector<1x288x16xbf16>
    %44 = vector.shape_cast %43 : vector<1x288x16xbf16> to vector<288x16xbf16>
    %c0_47 = arith.constant 0 : index
    %c7 = arith.constant 7 : index
    %c0_48 = arith.constant 0 : index
    %c0_49 = arith.constant 0 : index
    %45 = vector.load %arg3[%c0_47, %c7, %c0_48, %c0_49] : memref<1x9x16x16xbf16, #tpu.memory_space<vmem>>, vector<1x1x16x16xbf16>
    %46 = vector.shape_cast %45 : vector<1x1x16x16xbf16> to vector<16x16xbf16>
    %cst_50 = arith.constant dense<0.000000e+00> : vector<288x16xf32>
    %47 = tpu.matmul %44, %46, %cst_50 {dimension_numbers = #tpu.dot_dimension_numbers<[1], [0], [0], [1], [0, 0, 1, 1], [], []>} : vector<288x16xbf16>, vector<16x16xbf16>, vector<288x16xf32> -> vector<288x16xf32>
    %48 = arith.addf %42, %47 : vector<288x16xf32>
    %c0_51 = arith.constant 0 : index
    %c38 = arith.constant 38 : index
    %c0_52 = arith.constant 0 : index
    %49 = vector.load %arg2[%c0_51, %c38, %c0_52] : memref<1x342x16xbf16, #tpu.memory_space<vmem>>, vector<1x288x16xbf16>
    %50 = vector.shape_cast %49 : vector<1x288x16xbf16> to vector<288x16xbf16>
    %c0_53 = arith.constant 0 : index
    %c8 = arith.constant 8 : index
    %c0_54 = arith.constant 0 : index
    %c0_55 = arith.constant 0 : index
    %51 = vector.load %arg3[%c0_53, %c8, %c0_54, %c0_55] : memref<1x9x16x16xbf16, #tpu.memory_space<vmem>>, vector<1x1x16x16xbf16>
    %52 = vector.shape_cast %51 : vector<1x1x16x16xbf16> to vector<16x16xbf16>
    %cst_56 = arith.constant dense<0.000000e+00> : vector<288x16xf32>
    %53 = tpu.matmul %50, %52, %cst_56 {dimension_numbers = #tpu.dot_dimension_numbers<[1], [0], [0], [1], [0, 0, 1, 1], [], []>} : vector<288x16xbf16>, vector<16x16xbf16>, vector<288x16xf32> -> vector<288x16xf32>
    %54 = arith.addf %48, %53 : vector<288x16xf32>
    %c0_57 = arith.constant 0 : index
    %c0_58 = arith.constant 0 : index
    %c0_59 = arith.constant 0 : index
    %55 = vector.load %arg4[%c0_57, %c0_58, %c0_59] : memref<1x288x1xf32, #tpu.memory_space<vmem>>, vector<1x288x1xf32>
    %56 = vector.shape_cast %55 : vector<1x288x1xf32> to vector<288x1xf32>
    %57 = vector.broadcast %56 : vector<288x1xf32> to vector<288x16xf32>
    %58 = arith.addf %54, %57 : vector<288x16xf32>
    %c0_60 = arith.constant 0 : index
    %c0_61 = arith.constant 0 : index
    %59 = vector.load %arg5[%c0_60, %c0_61] : memref<1x16xf32, #tpu.memory_space<vmem>>, vector<1x16xf32>
    %60 = vector.broadcast %59 : vector<1x16xf32> to vector<288x16xf32>
    %61 = arith.addf %58, %60 : vector<288x16xf32>
    %cst_62 = arith.constant 0.000000e+00 : f32
    %62 = vector.broadcast %cst_62 : f32 to vector<288x16xf32>
    %63 = arith.cmpf oge, %61, %62 : vector<288x16xf32>
    %cst_63 = arith.constant 2.000000e-01 : f32
    %64 = vector.broadcast %cst_63 : f32 to vector<288x16xf32>
    %65 = arith.mulf %64, %61 : vector<288x16xf32>
    %66 = arith.select %63, %61, %65 : vector<288x16xi1>, vector<288x16xf32>
    %cst_64 = arith.constant 1.41421354 : f32
    %67 = vector.broadcast %cst_64 : f32 to vector<288x16xf32>
    %68 = arith.mulf %66, %67 : vector<288x16xf32>
    %c0_65 = arith.constant 0 : index
    %c0_66 = arith.constant 0 : index
    %c0_67 = arith.constant 0 : index
    %69 = vector.load %arg6[%c0_65, %c0_66, %c0_67] : memref<1x288x16xf32, #tpu.memory_space<vmem>>, vector<1x288x16xf32>
    %70 = vector.shape_cast %69 : vector<1x288x16xf32> to vector<288x16xf32>
    %71 = vector.shape_cast %68 : vector<288x16xf32> to vector<1x288x16xf32>
    tpu.vector_store %arg6[%c0_65, %c0_66, %c0_67], %71 {strides = array<i32>} : memref<1x288x16xf32, #tpu.memory_space<vmem>>, vector<1x288x16xf32>,
    return
  }
  func.func @transform_0(%arg0: i32, %arg1: i32) -> (i32, i32, i32) {
    %c0_i32 = arith.constant 0 : i32
    %c0_i32_0 = arith.constant 0 : i32
    %c0_i32_1 = arith.constant 0 : i32
    return %arg0, %c0_i32, %c0_i32_0 : i32, i32, i32
  }
  func.func @transform_1(%arg0: i32, %arg1: i32) -> (i32, i32, i32, i32) {
    %c0_i32 = arith.constant 0 : i32
    %c0_i32_0 = arith.constant 0 : i32
    %c0_i32_1 = arith.constant 0 : i32
    return %arg0, %c0_i32, %c0_i32_0, %arg1 : i32, i32, i32, i32
  }
  func.func @transform_2(%arg0: i32, %arg1: i32) -> (i32, i32, i32) {
    %c0_i32 = arith.constant 0 : i32
    %c0_i32_0 = arith.constant 0 : i32
    %c0_i32_1 = arith.constant 0 : i32
    return %arg0, %c0_i32, %c0_i32_0 : i32, i32, i32
  }
  func.func @transform_3(%arg0: i32, %arg1: i32) -> (i32, i32) {
    %c0_i32 = arith.constant 0 : i32
    %c0_i32_0 = arith.constant 0 : i32
    return %c0_i32, %arg1 : i32, i32
  }
  func.func @transform_4(%arg0: i32, %arg1: i32) -> (i32, i32, i32) {
    %c0_i32 = arith.constant 0 : i32
    %c0_i32_0 = arith.constant 0 : i32
    return %arg0, %c0_i32, %arg1 : i32, i32, i32
  }
}

module attributes {stable_mosaic.version = 11 : i64} {
  func.func @_to_rgb_kernel(%arg0: i32, %arg1: memref<1x256x16xbf16, #tpu.memory_space<vmem>>, %arg2: memref<1x16x3xbf16, #tpu.memory_space<vmem>>, %arg3: memref<1x3xf32, #tpu.memory_space<vmem>>, %arg4: memref<1x256x3xf32, #tpu.memory_space<vmem>>) attributes {dimension_semantics = [#tpu.dimension_semantics<parallel>], iteration_bounds = array<i64: 2>, scalar_prefetch = 0 : i64, scratch_operands = 0 : i64, tpu.core_type = #tpu.core_type<tc>, window_params = [{transform_indices = @transform_0, window_bounds = array<i64: 1, 256, 16>}, {transform_indices = @transform_1, window_bounds = array<i64: 1, 16, 3>}, {pipeline_mode = #tpu.pipeline_mode<synchronous>, transform_indices = @transform_2, window_bounds = array<i64: 1, 3>}, {transform_indices = @transform_3, window_bounds = array<i64: 1, 256, 3>}]} {
    %c0 = arith.constant 0 : index
    %c0_0 = arith.constant 0 : index
    %c0_1 = arith.constant 0 : index
    %0 = vector.load %arg1[%c0, %c0_0, %c0_1] : memref<1x256x16xbf16, #tpu.memory_space<vmem>>, vector<1x256x16xbf16>
    %1 = vector.shape_cast %0 : vector<1x256x16xbf16> to vector<256x16xbf16>
    %c0_2 = arith.constant 0 : index
    %c0_3 = arith.constant 0 : index
    %c0_4 = arith.constant 0 : index
    %2 = vector.load %arg2[%c0_2, %c0_3, %c0_4] : memref<1x16x3xbf16, #tpu.memory_space<vmem>>, vector<1x16x3xbf16>
    %3 = vector.shape_cast %2 : vector<1x16x3xbf16> to vector<16x3xbf16>
    %cst = arith.constant dense<0.000000e+00> : vector<256x3xf32>
    %4 = tpu.matmul %1, %3, %cst {dimension_numbers = #tpu.dot_dimension_numbers<[1], [0], [0], [1], [0, 0, 1, 1], [], []>} : vector<256x16xbf16>, vector<16x3xbf16>, vector<256x3xf32> -> vector<256x3xf32>
    %c0_5 = arith.constant 0 : index
    %c0_6 = arith.constant 0 : index
    %5 = vector.load %arg3[%c0_5, %c0_6] : memref<1x3xf32, #tpu.memory_space<vmem>>, vector<1x3xf32>
    %6 = vector.broadcast %5 : vector<1x3xf32> to vector<256x3xf32>
    %7 = arith.addf %4, %6 : vector<256x3xf32>
    %c0_7 = arith.constant 0 : index
    %c0_8 = arith.constant 0 : index
    %c0_9 = arith.constant 0 : index
    %8 = vector.load %arg4[%c0_7, %c0_8, %c0_9] : memref<1x256x3xf32, #tpu.memory_space<vmem>>, vector<1x256x3xf32>
    %9 = vector.shape_cast %8 : vector<1x256x3xf32> to vector<256x3xf32>
    %10 = vector.shape_cast %7 : vector<256x3xf32> to vector<1x256x3xf32>
    tpu.vector_store %arg4[%c0_7, %c0_8, %c0_9], %10 {strides = array<i32>} : memref<1x256x3xf32, #tpu.memory_space<vmem>>, vector<1x256x3xf32>,
    return
  }
  func.func @transform_0(%arg0: i32) -> (i32, i32, i32) {
    %c0_i32 = arith.constant 0 : i32
    %c0_i32_0 = arith.constant 0 : i32
    %c0_i32_1 = arith.constant 0 : i32
    return %arg0, %c0_i32, %c0_i32_0 : i32, i32, i32
  }
  func.func @transform_1(%arg0: i32) -> (i32, i32, i32) {
    %c0_i32 = arith.constant 0 : i32
    %c0_i32_0 = arith.constant 0 : i32
    %c0_i32_1 = arith.constant 0 : i32
    return %arg0, %c0_i32, %c0_i32_0 : i32, i32, i32
  }
  func.func @transform_2(%arg0: i32) -> (i32, i32) {
    %c0_i32 = arith.constant 0 : i32
    %c0_i32_0 = arith.constant 0 : i32
    %c0_i32_1 = arith.constant 0 : i32
    return %c0_i32, %c0_i32_0 : i32, i32
  }
  func.func @transform_3(%arg0: i32) -> (i32, i32, i32) {
    %c0_i32 = arith.constant 0 : i32
    %c0_i32_0 = arith.constant 0 : i32
    %c0_i32_1 = arith.constant 0 : i32
    return %arg0, %c0_i32, %c0_i32_0 : i32, i32, i32
  }
}

</mosaic_0001>

<llo_original>
// kernel: synthesis_block_forward.3
$region0: #{synthesis_block_forward.3}
  #allocation0 [shape = 'u32[]', space=smem, size = 0x4, offset = 0x4, fixed_abs, tag = 'smem constant byte address 0x4 - core index']
  #allocation1 [shape = 'u32[144,128]{1,0:T(1,128)}', space=vmem, size = 0x12000, scoped, tag = 'internal scratch']
  %s0 = inlined_call_operand.vmem [shape: bf16[2,342,8], index: 0, kind: input, shape index: {}]
  %s1 = inlined_call_operand.vmem [shape: bf16[2,9,8,16], index: 1, kind: input, shape index: {}]
  %s2 = inlined_call_operand.vmem [shape: f32[2,288,1], index: 2, kind: input, shape index: {}]
  %s3 = inlined_call_operand.vmem [shape: f32[1,16], index: 3, kind: input, shape index: {}]
  %s4 = inlined_call_operand.vmem [shape: f32[2,288,16], index: 4, kind: output, shape index: {}]
  %s5 = sld [smem:[#allocation0]]
  $region49: #{synthesis_block_forward.3} parent=0
    _
  %s7 = ssub.s32 1, %s5
  %s8 = scalar_select 0, %s7, %s5
  loop: start=0, step=1, limit=4
  $region2: #{synthesis_block_forward.3} parent=0 // loop_pre_header
    _
  $region3: #{synthesis_block_forward.3} parent=0 // loop_header
    %s10 = sphi 0, %s14
    %p11 = scmp.ge.s32.totalorder %s10, 4
    %s17 = sphi 0, %s29
    %s18 = sphi 0, %s25
    %s19 = sphi 0, %s17
    %s20 = sphi 0, %s18
    %s21 = sphi 0, %s19
    %s22 = sphi 0, %s20
    %s32 = sphi 0, %s34
    %s35 = sphi 0, %s32
    %s36 = sphi 0, %s35
    %s52 = sphi 0, %s36
    %s60 = sphi 0, %s62
    %s63 = sphi 0, %s60
    %s64 = sphi 0, %s63
    %s80 = sphi 0, %s64
    %s86 = sphi 0, %s88
    %s89 = sphi 0, %s86
    %s90 = sphi 0, %s89
    %s106 = sphi 0, %s90
    %s112 = sphi 0, %s114
    %s115 = sphi 0, %s112
    %s116 = sphi 0, %s115
    %s132 = sphi 0, %s116
    %s140 = sphi 0, %s142
    %s143 = sphi 0, %s140
    %s144 = sphi 0, %s143
    %s160 = sphi 0, %s144
  $region4: #{synthesis_block_forward.3} parent=0 // loop_header_branch
    %13 = sbr.rel (%p11) target = $region8
  $region5: #{synthesis_block_forward.3} parent=0 // loop_body
    %s15 = ssub.s32 %s10, 1
    %s16 = ssub.s32 %s10, 2
    %s23 = sadd.s32 1, %s18
    %p24 = scmp.ge.s32.totalorder %s23, 1
    %s25 = scalar_select %p24, 0, %s23
    %s26 = sadd.s32 1, %s17
    %s27 = scalar_select %p24, %s26, %s17
    %p28 = scmp.ge.s32.totalorder %s27, 2
    %s29 = scalar_select %p28, 0, %s27
    %s30 = ssub.s32 %s17, %s29
    %p31 = scmp.eq.s32.totalorder %s30, 0
    %s33 = sadd.s32 %s32, 1
    %s34 = scalar_select %p31, %s32, %s33
    %p37 = pneg %p31
    %p38 = scmp.eq.s32.totalorder %s10, 1
    %p39 = por %p37, %p38
    %p40 = scmp.ne.s32.totalorder %s32, %s35
    %p41 = scmp.eq.s32.totalorder %s10, 0
    %p42 = por %p40, %p41
    %p43 = scmp.ne.s32.totalorder %s32, %s35
    %p44 = scmp.eq.s32.totalorder %s15, 1
    %p45 = por %p43, %p44
    %p46 = scmp.ne.s32.totalorder %s35, %s36
    %p47 = scmp.eq.s32.totalorder %s15, 0
    %p48 = por %p46, %p47
    %p49 = scmp.ne.s32.totalorder %s35, %s36
    %p50 = scmp.eq.s32.totalorder %s16, 1
    %p51 = por %p49, %p50
    %p53 = scmp.ne.s32.totalorder %s36, %s52
    %p54 = scmp.eq.s32.totalorder %s16, 0
    %p55 = por %p53, %p54
    %s56 = ssub.s32 %s17, %s29
    %s57 = ssub.s32 %s18, %s25
    %s58 = sor.u32 %s56, %s57
    %p59 = scmp.eq.s32.totalorder %s58, 0
    %s61 = sadd.s32 %s60, 1
    %s62 = scalar_select %p59, %s60, %s61
    %p65 = pneg %p59
    %p66 = scmp.eq.s32.totalorder %s10, 1
    %p67 = por %p65, %p66
    %p68 = scmp.ne.s32.totalorder %s60, %s63
    %p69 = scmp.eq.s32.totalorder %s10, 0
    %p70 = por %p68, %p69
    %p71 = scmp.ne.s32.totalorder %s60, %s63
    %p72 = scmp.eq.s32.totalorder %s15, 1
    %p73 = por %p71, %p72
    %p74 = scmp.ne.s32.totalorder %s63, %s64
    %p75 = scmp.eq.s32.totalorder %s15, 0
    %p76 = por %p74, %p75
    %p77 = scmp.ne.s32.totalorder %s63, %s64
    %p78 = scmp.eq.s32.totalorder %s16, 1
    %p79 = por %p77, %p78
    %p81 = scmp.ne.s32.totalorder %s64, %s80
    %p82 = scmp.eq.s32.totalorder %s16, 0
    %p83 = por %p81, %p82
    %s84 = ssub.s32 %s17, %s29
    %p85 = scmp.eq.s32.totalorder %s84, 0
    %s87 = sadd.s32 %s86, 1
    %s88 = scalar_select %p85, %s86, %s87
    %p91 = pneg %p85
    %p92 = scmp.eq.s32.totalorder %s10, 1
    %p93 = por %p91, %p92
    %p94 = scmp.ne.s32.totalorder %s86, %s89
    %p95 = scmp.eq.s32.totalorder %s10, 0
    %p96 = por %p94, %p95
    %p97 = scmp.ne.s32.totalorder %s86, %s89
    %p98 = scmp.eq.s32.totalorder %s15, 1
    %p99 = por %p97, %p98
    %p100 = scmp.ne.s32.totalorder %s89, %s90
    %p101 = scmp.eq.s32.totalorder %s15, 0
    %p102 = por %p100, %p101
    %p103 = scmp.ne.s32.totalorder %s89, %s90
    %p104 = scmp.eq.s32.totalorder %s16, 1
    %p105 = por %p103, %p104
    %p107 = scmp.ne.s32.totalorder %s90, %s106
    %p108 = scmp.eq.s32.totalorder %s16, 0
    %p109 = por %p107, %p108
    %s110 = ssub.s32 %s18, %s25
    %p111 = scmp.eq.s32.totalorder %s110, 0
    %s113 = sadd.s32 %s112, 1
    %s114 = scalar_select %p111, %s112, %s113
    %p117 = pneg %p111
    %p118 = scmp.eq.s32.totalorder %s10, 1
    %p119 = por %p117, %p118
    %p120 = scmp.ne.s32.totalorder %s112, %s115
    %p121 = scmp.eq.s32.totalorder %s10, 0
    %p122 = por %p120, %p121
    %p123 = scmp.ne.s32.totalorder %s112, %s115
    %p124 = scmp.eq.s32.totalorder %s15, 1
    %p125 = por %p123, %p124
    %p126 = scmp.ne.s32.totalorder %s115, %s116
    %p127 = scmp.eq.s32.totalorder %s15, 0
    %p128 = por %p126, %p127
    %p129 = scmp.ne.s32.totalorder %s115, %s116
    %p130 = scmp.eq.s32.totalorder %s16, 1
    %p131 = por %p129, %p130
    %p133 = scmp.ne.s32.totalorder %s116, %s132
    %p134 = scmp.eq.s32.totalorder %s16, 0
    %p135 = por %p133, %p134
    %s136 = ssub.s32 %s17, %s29
    %s137 = ssub.s32 %s18, %s25
    %s138 = sor.u32 %s136, %s137
    %p139 = scmp.eq.s32.totalorder %s138, 0
    %s141 = sadd.s32 %s140, 1
    %s142 = scalar_select %p139, %s140, %s141
    %p145 = pneg %p139
    %p146 = scmp.eq.s32.totalorder %s10, 1
    %p147 = por %p145, %p146
    %p148 = scmp.ne.s32.totalorder %s140, %s143
    %p149 = scmp.eq.s32.totalorder %s10, 0
    %p150 = por %p148, %p149
    %p151 = scmp.ne.s32.totalorder %s140, %s143
    %p152 = scmp.eq.s32.totalorder %s15, 1
    %p153 = por %p151, %p152
    %p154 = scmp.ne.s32.totalorder %s143, %s144
    %p155 = scmp.eq.s32.totalorder %s15, 0
    %p156 = por %p154, %p155
    %p157 = scmp.ne.s32.totalorder %s143, %s144
    %p158 = scmp.eq.s32.totalorder %s16, 1
    %p159 = por %p157, %p158
    %p161 = scmp.ne.s32.totalorder %s144, %s160
    %p162 = scmp.eq.s32.totalorder %s16, 0
    %p163 = por %p161, %p162
    %p164 = scmp.le.s32.totalorder 1, %s10
    %p165 = scmp.lt.s32.totalorder %s10, 3
    %p166 = pnand %p164, %p165
    %p167 = pneg %p166
    // Predicated region
    $region9: #{synthesis_block_forward.3} parent=5 // pred_check
      _
    $region10: #{synthesis_block_forward.3} parent=5 // pred_check_branch
      %169 = sbr.rel (%p166) target = $region12
    $region11: #{synthesis_block_forward.3} parent=5 // pred_region
      %s170 = ssub.s32 %s10, 1
      // Predicated region
      $region13: #{synthesis_block_forward.3} parent=11 // pred_check
        %p171 = pneg %p128
      $region14: #{synthesis_block_forward.3} parent=11 // pred_check_branch
        %173 = sbr.rel (%p171) target = $region16
      $region15: #{synthesis_block_forward.3} parent=11 // pred_region
        %p174 = scmp.lt.s32.totalorder %s20, 0
        %s175 = scalar_select %p174, %s20, 0
        %s176 = scalar_lea.vmem %s3, %s175
      $region16: #{synthesis_block_forward.3} parent=11 // pred_fallthru
        _
    $region12: #{synthesis_block_forward.3} parent=5 // pred_fallthru
      _
    %p177 = scmp.lt.s32.totalorder %s10, 2
    // Predicated region
    $region17: #{synthesis_block_forward.3} parent=5 // pred_check
      %p178 = pneg %p177
    $region18: #{synthesis_block_forward.3} parent=5 // pred_check_branch
      %180 = sbr.rel (%p178) target = $region20
    $region19: #{synthesis_block_forward.3} parent=5 // pred_region
      // Predicated region
      $region21: #{synthesis_block_forward.3} parent=19 // pred_check
        %p181 = pneg %p42
      $region22: #{synthesis_block_forward.3} parent=19 // pred_check_branch
        %183 = sbr.rel (%p181) target = $region24
      $region23: #{synthesis_block_forward.3} parent=19 // pred_region
        %p184 = scmp.lt.s32.totalorder %s17, 1
        %s185 = scalar_select %p184, %s17, 1
        %s186 = smul.addr %s185, 43
        %s187 = smul.addr %s186, 4
        %s188 = scalar_lea.vmem %s0, %s187
      $region24: #{synthesis_block_forward.3} parent=19 // pred_fallthru
        _
      // Predicated region
      $region25: #{synthesis_block_forward.3} parent=19 // pred_check
        %p189 = pneg %p70
      $region26: #{synthesis_block_forward.3} parent=19 // pred_check_branch
        %191 = sbr.rel (%p189) target = $region28
      $region27: #{synthesis_block_forward.3} parent=19 // pred_region
        %p192 = scmp.lt.s32.totalorder %s17, 1
        %s193 = scalar_select %p192, %s17, 1
        %p194 = scmp.lt.s32.totalorder %s18, 0
        %s195 = scalar_select %p194, %s18, 0
        %s196 = smul.addr %s193, 9
        %s197 = sadd.s32 %s195, %s196
        %s198 = smul.addr %s197, 4
        %s199 = scalar_lea.vmem %s1, %s198
      $region28: #{synthesis_block_forward.3} parent=19 // pred_fallthru
        _
      // Predicated region
      $region29: #{synthesis_block_forward.3} parent=19 // pred_check
        %p200 = pneg %p96
      $region30: #{synthesis_block_forward.3} parent=19 // pred_check_branch
        %202 = sbr.rel (%p200) target = $region32
      $region31: #{synthesis_block_forward.3} parent=19 // pred_region
        %p203 = scmp.lt.s32.totalorder %s17, 1
        %s204 = scalar_select %p203, %s17, 1
        %s205 = smul.addr %s204, 36
        %s206 = smul.addr %s205, 8
        %s207 = scalar_lea.vmem %s2, %s206
      $region32: #{synthesis_block_forward.3} parent=19 // pred_fallthru
        _
    $region20: #{synthesis_block_forward.3} parent=5 // pred_fallthru
      _
    %p208 = scmp.le.s32.totalorder 1, %s10
    %p209 = scmp.lt.s32.totalorder %s10, 3
    %p210 = pnand %p208, %p209
    %p211 = pneg %p210
    // Predicated region
    $region33: #{synthesis_block_forward.3} parent=5 // pred_check
      _
    $region34: #{synthesis_block_forward.3} parent=5 // pred_check_branch
      %213 = sbr.rel (%p210) target = $region36
    $region35: #{synthesis_block_forward.3} parent=5 // pred_region
      %s214 = ssub.s32 %s10, 1
      %p215 = scmp.lt.s32.totalorder %s19, 1
      %s216 = scalar_select %p215, %s19, 1
      %s217 = smul.addr %s216, 43
      %s218 = smul.addr %s217, 4
      %s219 = scalar_lea.vmem %s0, %s218
      %p220 = pneg %p48
      %p221 = pneg %p45
      %p222 = scmp.lt.s32.totalorder %s19, 1
      %s223 = scalar_select %p222, %s19, 1
      %p224 = scmp.lt.s32.totalorder %s20, 0
      %s225 = scalar_select %p224, %s20, 0
      %s226 = smul.addr %s223, 9
      %s227 = sadd.s32 %s225, %s226
      %s228 = smul.addr %s227, 4
      %s229 = scalar_lea.vmem %s1, %s228
      %p230 = pneg %p76
      %p231 = pneg %p73
      %p232 = scmp.lt.s32.totalorder %s19, 1
      %s233 = scalar_select %p232, %s19, 1
      %s234 = smul.addr %s233, 36
      %s235 = smul.addr %s234, 8
      %s236 = scalar_lea.vmem %s2, %s235
      %p237 = pneg %p102
      %p238 = pneg %p99
      %p239 = scmp.lt.s32.totalorder %s20, 0
      %s240 = scalar_select %p239, %s20, 0
      %s241 = scalar_lea.vmem %s3, %s240
      %p242 = pneg %p128
      %p243 = pneg %p125
      %p244 = pneg %p156
      %p245 = pneg %p153
      %p246 = scmp.lt.s32.totalorder %s19, 1
      %s247 = scalar_select %p246, %s19, 1
      %p248 = scmp.lt.s32.totalorder %s20, 0
      %s249 = scalar_select %p248, %s20, 0
      %s250 = smul.addr %s247, 36
      %s251 = sadd.s32 %s249, %s250
      %s252 = smul.addr %s251, 8
      %s253 = scalar_lea.vmem %s4, %s252
      %p254 = scmp.lt.s32.totalorder %s19, 1
      %s255 = scalar_select %p254, %s19, 1
      %s256 = smul.addr %s255, 43
      %s257 = smul.addr %s256, 4
      %s258 = scalar_lea.vmem %s0, %s257
      %p259 = scmp.lt.s32.totalorder %s19, 1
      %s260 = scalar_select %p259, %s19, 1
      %p261 = scmp.lt.s32.totalorder %s20, 0
      %s262 = scalar_select %p261, %s20, 0
      %s263 = smul.addr %s260, 9
      %s264 = sadd.s32 %s262, %s263
      %s265 = smul.addr %s264, 4
      %s266 = scalar_lea.vmem %s1, %s265
      %p267 = scmp.lt.s32.totalorder %s19, 1
      %s268 = scalar_select %p267, %s19, 1
      %s269 = smul.addr %s268, 36
      %s270 = smul.addr %s269, 8
      %s271 = scalar_lea.vmem %s2, %s270
      %p272 = scmp.lt.s32.totalorder %s20, 0
      %s273 = scalar_select %p272, %s20, 0
      %s274 = scalar_lea.vmem %s3, %s273
      %p275 = scmp.lt.s32.totalorder %s19, 1
      %s276 = scalar_select %p275, %s19, 1
      %p277 = scmp.lt.s32.totalorder %s20, 0
      %s278 = scalar_select %p277, %s20, 0
      %s279 = smul.addr %s276, 36
      %s280 = sadd.s32 %s278, %s279
      %s281 = smul.addr %s280, 8
      %s282 = scalar_lea.vmem %s4, %s281
      %v284 = vld [vmem:[%s258] sm:$0xf]
      %v285 = vld [vmem:[%s258 + $0x4] sm:$0xf]
      %v286 = vld [vmem:[%s258 + $0x8] sm:$0xf]
      %v287 = vld [vmem:[%s258 + $0xc] sm:$0xf]
      %v288 = vld [vmem:[%s258 + $0x10] sm:$0xf]
      %v289 = vld [vmem:[%s258 + $0x14] sm:$0xf]
      %v290 = vld [vmem:[%s258 + $0x18] sm:$0xf]
      %v291 = vld [vmem:[%s258 + $0x1c] sm:$0xf]
      %v292 = vld [vmem:[%s258 + $0x20] sm:$0xf]
      %v293 = vld [vmem:[%s258 + $0x24] sm:$0xf]
      %v294 = vld [vmem:[%s258 + $0x28] sm:$0xf]
      %v295 = vld [vmem:[%s258 + $0x2c] sm:$0xf]
      %v296 = vld [vmem:[%s258 + $0x30] sm:$0xf]
      %v297 = vld [vmem:[%s258 + $0x34] sm:$0xf]
      %v298 = vld [vmem:[%s258 + $0x38] sm:$0xf]
      %v299 = vld [vmem:[%s258 + $0x3c] sm:$0xf]
      %v300 = vld [vmem:[%s258 + $0x40] sm:$0xf]
      %v301 = vld [vmem:[%s258 + $0x44] sm:$0xf]
      %v302 = vld [vmem:[%s258 + $0x48] sm:$0xf]
      %v303 = vld [vmem:[%s258 + $0x4c] sm:$0xf]
      %v304 = vld [vmem:[%s258 + $0x50] sm:$0xf]
      %v305 = vld [vmem:[%s258 + $0x54] sm:$0xf]
      %v306 = vld [vmem:[%s258 + $0x58] sm:$0xf]
      %v307 = vld [vmem:[%s258 + $0x5c] sm:$0xf]
      %v308 = vld [vmem:[%s258 + $0x60] sm:$0xf]
      %v309 = vld [vmem:[%s258 + $0x64] sm:$0xf]
      %v310 = vld [vmem:[%s258 + $0x68] sm:$0xf]
      %v311 = vld [vmem:[%s258 + $0x6c] sm:$0xf]
      %v312 = vld [vmem:[%s258 + $0x70] sm:$0xf]
      %v313 = vld [vmem:[%s258 + $0x74] sm:$0xf]
      %v314 = vld [vmem:[%s258 + $0x78] sm:$0xf]
      %v315 = vld [vmem:[%s258 + $0x7c] sm:$0xf]
      %v316 = vld [vmem:[%s258 + $0x80] sm:$0xf]
      %v317 = vld [vmem:[%s258 + $0x84] sm:$0xf]
      %v318 = vld [vmem:[%s258 + $0x88] sm:$0xf]
      %v319 = vld [vmem:[%s258 + $0x8c] sm:$0xf]
      %v320 = vld [vmem:[%s266] sm:$0xf]
      %v321 = vld [vmem:[%s258 + $0x90] sm:$0x1]
      %s322 = scalar_lea.vmem %s266, 4
      %v323 = vld [vmem:[%s322] sm:$0xf]
      %v361 = vunpack.c.l.b16 %v284
      %v362 = vunpack.c.l.b16 %v285
      %v363 = vunpack.c.l.b16 %v286
      %v364 = vunpack.c.l.b16 %v287
      %v365 = vunpack.c.l.b16 %v288
      %v366 = vunpack.c.l.b16 %v289
      %v367 = vunpack.c.l.b16 %v290
      %v368 = vunpack.c.l.b16 %v291
      %v369 = vunpack.c.l.b16 %v292
      %v370 = vunpack.c.l.b16 %v293
      %v371 = vunpack.c.l.b16 %v294
      %v372 = vunpack.c.l.b16 %v295
      %v373 = vunpack.c.l.b16 %v296
      %v374 = vunpack.c.l.b16 %v297
      %v375 = vunpack.c.l.b16 %v298
      %v376 = vunpack.c.l.b16 %v299
      %v377 = vunpack.c.l.b16 %v300
      %v378 = vunpack.c.l.b16 %v301
      %v379 = vunpack.c.l.b16 %v302
      %v380 = vunpack.c.l.b16 %v303
      %v381 = vunpack.c.l.b16 %v304
      %v382 = vunpack.c.l.b16 %v305
      %v383 = vunpack.c.l.b16 %v306
      %v384 = vunpack.c.l.b16 %v307
      %v385 = vunpack.c.l.b16 %v308
      %v386 = vunpack.c.l.b16 %v309
      %v387 = vunpack.c.l.b16 %v310
      %v388 = vunpack.c.l.b16 %v311
      %v389 = vunpack.c.l.b16 %v312
      %v390 = vunpack.c.l.b16 %v313
      %v391 = vunpack.c.l.b16 %v314
      %v392 = vunpack.c.l.b16 %v315
      %v393 = vunpack.c.l.b16 %v316
      %v394 = vunpack.c.l.b16 %v317
      %v395 = vunpack.c.l.b16 %v318
      %v396 = vunpack.c.l.b16 %v319
      %v397 = vunpack.c.l.b16 %v321
      %v398 = vpack.c.b16 %v362, %v361
      %v399 = vpack.c.b16 %v364, %v363
      %v400 = vpack.c.b16 %v366, %v365
      %v401 = vpack.c.b16 %v368, %v367
      %v402 = vpack.c.b16 %v370, %v369
      %v403 = vpack.c.b16 %v372, %v371
      %v404 = vpack.c.b16 %v374, %v373
      %v405 = vpack.c.b16 %v376, %v375
      %v406 = vpack.c.b16 %v378, %v377
      %v407 = vpack.c.b16 %v380, %v379
      %v408 = vpack.c.b16 %v382, %v381
      %v409 = vpack.c.b16 %v384, %v383
      %v410 = vpack.c.b16 %v386, %v385
      %v411 = vpack.c.b16 %v388, %v387
      %v412 = vpack.c.b16 %v390, %v389
      %v413 = vpack.c.b16 %v392, %v391
      %v414 = vpack.c.b16 %v394, %v393
      %v415 = vpack.c.b16 %v396, %v395
      %v416 = vpack.c.b16 %v397, %v397
      %vm417 = vsmask.f32 7424
      %v419 = vshrl.u32 %v398, 16
      %v421 = vshll.u32 %v398, 16
      %v423 = vrot.slane %v421, 1
      %v424 = vor.u32 %v419, %v423
      %v426 = vshll.u32 %v399, 16
      %v428 = vrot.slane %v426, 1
      %v429 = vsel %vm417, %v424, %v428
      %v430 = vshrl.u32 %v399, 16
      %v432 = vor.u32 %v430, %v428
      %v434 = vshll.u32 %v400, 16
      %v436 = vrot.slane %v434, 1
      %v437 = vsel %vm417, %v432, %v436
      %v438 = vshrl.u32 %v400, 16
      %v440 = vor.u32 %v438, %v436
      %v442 = vshll.u32 %v401, 16
      %v444 = vrot.slane %v442, 1
      %v445 = vsel %vm417, %v440, %v444
      %v446 = vshrl.u32 %v401, 16
      %v448 = vor.u32 %v446, %v444
      %v450 = vshll.u32 %v402, 16
      %v452 = vrot.slane %v450, 1
      %v453 = vsel %vm417, %v448, %v452
      %v454 = vshrl.u32 %v402, 16
      %v456 = vor.u32 %v454, %v452
      %v458 = vshll.u32 %v403, 16
      %v460 = vrot.slane %v458, 1
      %v461 = vsel %vm417, %v456, %v460
      %v462 = vshrl.u32 %v403, 16
      %v464 = vor.u32 %v462, %v460
      %v466 = vshll.u32 %v404, 16
      %v468 = vrot.slane %v466, 1
      %v469 = vsel %vm417, %v464, %v468
      %v470 = vshrl.u32 %v404, 16
      %v472 = vor.u32 %v470, %v468
      %v474 = vshll.u32 %v405, 16
      %v476 = vrot.slane %v474, 1
      %v477 = vsel %vm417, %v472, %v476
      %v478 = vshrl.u32 %v405, 16
      %v480 = vor.u32 %v478, %v476
      %v482 = vshll.u32 %v406, 16
      %v484 = vrot.slane %v482, 1
      %v485 = vsel %vm417, %v480, %v484
      %v486 = vshrl.u32 %v406, 16
      %v488 = vor.u32 %v486, %v484
      %v490 = vshll.u32 %v407, 16
      %v492 = vrot.slane %v490, 1
      %v493 = vsel %vm417, %v488, %v492
      %v494 = vshrl.u32 %v407, 16
      %v496 = vor.u32 %v494, %v492
      %v498 = vshll.u32 %v408, 16
      %v500 = vrot.slane %v498, 1
      %v501 = vsel %vm417, %v496, %v500
      %v502 = vshrl.u32 %v408, 16
      %v504 = vor.u32 %v502, %v500
      %v506 = vshll.u32 %v409, 16
      %v508 = vrot.slane %v506, 1
      %v509 = vsel %vm417, %v504, %v508
      %v510 = vshrl.u32 %v409, 16
      %v512 = vor.u32 %v510, %v508
      %v514 = vshll.u32 %v410, 16
      %v516 = vrot.slane %v514, 1
      %v517 = vsel %vm417, %v512, %v516
      %v518 = vshrl.u32 %v410, 16
      %v520 = vor.u32 %v518, %v516
      %v522 = vshll.u32 %v411, 16
      %v524 = vrot.slane %v522, 1
      %v525 = vsel %vm417, %v520, %v524
      %v526 = vshrl.u32 %v411, 16
      %v528 = vor.u32 %v526, %v524
      %v530 = vshll.u32 %v412, 16
      %v532 = vrot.slane %v530, 1
      %v533 = vsel %vm417, %v528, %v532
      %v534 = vshrl.u32 %v412, 16
      %v536 = vor.u32 %v534, %v532
      %v538 = vshll.u32 %v413, 16
      %v540 = vrot.slane %v538, 1
      %v541 = vsel %vm417, %v536, %v540
      %v542 = vshrl.u32 %v413, 16
      %v544 = vor.u32 %v542, %v540
      %v546 = vshll.u32 %v414, 16
      %v548 = vrot.slane %v546, 1
      %v549 = vsel %vm417, %v544, %v548
      %v550 = vshrl.u32 %v414, 16
      %v552 = vor.u32 %v550, %v548
      %v554 = vshll.u32 %v415, 16
      %v556 = vrot.slane %v554, 1
      %v557 = vsel %vm417, %v552, %v556
      %v558 = vshrl.u32 %v415, 16
      %v560 = vor.u32 %v558, %v556
      %v562 = vshll.u32 %v416, 16
      %v564 = vrot.slane %v562, 1
      %v565 = vsel %vm417, %v560, %v564
      %vm566 = vcmask 64512
      %v568 = vsel %vm566, %v429, 0
      %v571 = vsel %vm566, %v437, 0
      %v574 = vsel %vm566, %v445, 0
      %v577 = vsel %vm566, %v453, 0
      %v580 = vsel %vm566, %v461, 0
      %v583 = vsel %vm566, %v469, 0
      %v586 = vsel %vm566, %v477, 0
      %v589 = vsel %vm566, %v485, 0
      %v592 = vsel %vm566, %v493, 0
      %v595 = vsel %vm566, %v501, 0
      %v598 = vsel %vm566, %v509, 0
      %v601 = vsel %vm566, %v517, 0
      %v604 = vsel %vm566, %v525, 0
      %v607 = vsel %vm566, %v533, 0
      %v610 = vsel %vm566, %v541, 0
      %v613 = vsel %vm566, %v549, 0
      %v616 = vsel %vm566, %v557, 0
      %v619 = vsel %vm566, %v565, 0
      %vm621 = vcmask 1043456
      %v623 = vsel %vm621, %v323, 0
      %625 = vmatprep.subr.bf16.mxu0 0
      %626 = vmatpush1.bf16.msra.mxu0 0
      %627 = vmatprep.subr.bf16.mxu0 0
      %628 = vmatpush1.bf16.msra.mxu0 0
      %629 = vmatprep.subr.bf16.mxu0 0
      %630 = vmatpush1.bf16.msra.mxu0 0
      %631 = vmatprep.subr.bf16.mxu0 0
      %632 = vmatpush1.bf16.msra.mxu0 0
      %633 = vmatprep.subr.bf16.mxu0 0
      %634 = vmatpush1.bf16.msra.mxu0 0
      %635 = vmatprep.subr.bf16.mxu0 0
      %636 = vmatpush1.bf16.msra.mxu0 0
      %637 = vmatprep.subr.bf16.mxu0 0
      %638 = vmatpush1.bf16.msra.mxu0 0
      %639 = vmatprep.subr.bf16.mxu0 0
      %640 = vmatpush1.bf16.msra.mxu0 %v623
      %641 = vmatprep.subr.bf16.mxu0 0
      %642 = vmatpush2.bf16.msra.mxu0 0
      %643 = vmatprep.subr.bf16.mxu0 0
      %644 = vmatpush2.bf16.msra.mxu0 0
      %645 = vmatprep.subr.bf16.mxu0 0
      %646 = vmatpush2.bf16.msra.mxu0 0
      %647 = vmatprep.subr.bf16.mxu0 0
      %648 = vmatpush2.bf16.msra.mxu0 0
      %649 = vmatprep.subr.bf16.mxu0 0
      %650 = vmatpush2.bf16.msra.mxu0 0
      %651 = vmatprep.subr.bf16.mxu0 0
      %652 = vmatpush2.bf16.msra.mxu0 0
      %653 = vmatprep.subr.bf16.mxu0 0
      %654 = vmatpush2.bf16.msra.mxu0 0
      %655 = vmatprep.subr.bf16.mxu0 0
      %656 = vmatpush2.bf16.msra.mxu0 0
      %657 = vmatprep.mubr.bf16.mxu0 0
      %658 = vmatmul.mubr.bf16.gmra.mxu0 %v568
      %v659 = vpop.f32.mrf.mxu0
      %v660 = vadd.f32 0.0, %v659
      %v661 = vpop.f32.mrf.mxu0
      %v662 = vpop.f32.mrf.mxu0
      %v663 = vadd.f32 0.0, %v662
      %v664 = vpop.f32.mrf.mxu0
      %665 = vmatprep.mubr.bf16.mxu0 0
      %666 = vmatmul.mubr.bf16.gmra.mxu0 %v571
      %v667 = vpop.f32.mrf.mxu0
      %v668 = vadd.f32 0.0, %v667
      %v669 = vpop.f32.mrf.mxu0
      %v670 = vpop.f32.mrf.mxu0
      %v671 = vadd.f32 0.0, %v670
      %v672 = vpop.f32.mrf.mxu0
      %673 = vmatprep.mubr.bf16.mxu0 0
      %674 = vmatmul.mubr.bf16.gmra.mxu0 %v574
      %v675 = vpop.f32.mrf.mxu0
      %v676 = vadd.f32 0.0, %v675
      %v677 = vpop.f32.mrf.mxu0
      %v678 = vpop.f32.mrf.mxu0
      %v679 = vadd.f32 0.0, %v678
      %v680 = vpop.f32.mrf.mxu0
      %681 = vmatprep.mubr.bf16.mxu0 0
      %682 = vmatmul.mubr.bf16.gmra.mxu0 %v577
      %v683 = vpop.f32.mrf.mxu0
      %v684 = vadd.f32 0.0, %v683
      %v685 = vpop.f32.mrf.mxu0
      %v686 = vpop.f32.mrf.mxu0
      %v687 = vadd.f32 0.0, %v686
      %v688 = vpop.f32.mrf.mxu0
      %689 = vmatprep.mubr.bf16.mxu0 0
      %690 = vmatmul.mubr.bf16.gmra.mxu0 %v580
      %v691 = vpop.f32.mrf.mxu0
      %v692 = vadd.f32 0.0, %v691
      %v693 = vpop.f32.mrf.mxu0
      %v694 = vpop.f32.mrf.mxu0
      %v695 = vadd.f32 0.0, %v694
      %v696 = vpop.f32.mrf.mxu0
      %697 = vmatprep.mubr.bf16.mxu0 0
      %698 = vmatmul.mubr.bf16.gmra.mxu0 %v583
      %v699 = vpop.f32.mrf.mxu0
      %v700 = vadd.f32 0.0, %v699
      %v701 = vpop.f32.mrf.mxu0
      %v702 = vpop.f32.mrf.mxu0
      %v703 = vadd.f32 0.0, %v702
      %v704 = vpop.f32.mrf.mxu0
      %705 = vmatprep.mubr.bf16.mxu0 0
      %706 = vmatmul.mubr.bf16.gmra.mxu0 %v586
      %v707 = vpop.f32.mrf.mxu0
      %v708 = vadd.f32 0.0, %v707
      %v709 = vpop.f32.mrf.mxu0
      %v710 = vpop.f32.mrf.mxu0
      %v711 = vadd.f32 0.0, %v710
      %v712 = vpop.f32.mrf.mxu0
      %713 = vmatprep.mubr.bf16.mxu0 0
      %714 = vmatmul.mubr.bf16.gmra.mxu0 %v589
      %v715 = vpop.f32.mrf.mxu0
      %v716 = vadd.f32 0.0, %v715
      %v717 = vpop.f32.mrf.mxu0
      %v718 = vpop.f32.mrf.mxu0
      %v719 = vadd.f32 0.0, %v718
      %v720 = vpop.f32.mrf.mxu0
      %721 = vmatprep.mubr.bf16.mxu0 0
      %722 = vmatmul.mubr.bf16.gmra.mxu0 %v592
      %v723 = vpop.f32.mrf.mxu0
      %v724 = vadd.f32 0.0, %v723
      %v725 = vpop.f32.mrf.mxu0
      %v726 = vpop.f32.mrf.mxu0
      %v727 = vadd.f32 0.0, %v726
      %v728 = vpop.f32.mrf.mxu0
      %729 = vmatprep.mubr.bf16.mxu0 0
      %730 = vmatmul.mubr.bf16.gmra.mxu0 %v595
      %v731 = vpop.f32.mrf.mxu0
      %v732 = vadd.f32 0.0, %v731
      %v733 = vpop.f32.mrf.mxu0
      %v734 = vpop.f32.mrf.mxu0
      %v735 = vadd.f32 0.0, %v734
      %v736 = vpop.f32.mrf.mxu0
      %737 = vmatprep.mubr.bf16.mxu0 0
      %738 = vmatmul.mubr.bf16.gmra.mxu0 %v598
      %v739 = vpop.f32.mrf.mxu0
      %v740 = vadd.f32 0.0, %v739
      %v741 = vpop.f32.mrf.mxu0
      %v742 = vpop.f32.mrf.mxu0
      %v743 = vadd.f32 0.0, %v742
      %v744 = vpop.f32.mrf.mxu0
      %745 = vmatprep.mubr.bf16.mxu0 0
      %746 = vmatmul.mubr.bf16.gmra.mxu0 %v601
      %v747 = vpop.f32.mrf.mxu0
      %v748 = vadd.f32 0.0, %v747
      %v749 = vpop.f32.mrf.mxu0
      %v750 = vpop.f32.mrf.mxu0
      %v751 = vadd.f32 0.0, %v750
      %v752 = vpop.f32.mrf.mxu0
      %753 = vmatprep.mubr.bf16.mxu0 0
      %754 = vmatmul.mubr.bf16.gmra.mxu0 %v604
      %v755 = vpop.f32.mrf.mxu0
      %v756 = vadd.f32 0.0, %v755
      %v757 = vpop.f32.mrf.mxu0
      %v758 = vpop.f32.mrf.mxu0
      %v759 = vadd.f32 0.0, %v758
      %v760 = vpop.f32.mrf.mxu0
      %761 = vmatprep.mubr.bf16.mxu0 0
      %762 = vmatmul.mubr.bf16.gmra.mxu0 %v607
      %v763 = vpop.f32.mrf.mxu0
      %v764 = vadd.f32 0.0, %v763
      %v765 = vpop.f32.mrf.mxu0
      %v766 = vpop.f32.mrf.mxu0
      %v767 = vadd.f32 0.0, %v766
      %v768 = vpop.f32.mrf.mxu0
      %769 = vmatprep.mubr.bf16.mxu0 0
      %770 = vmatmul.mubr.bf16.gmra.mxu0 %v610
      %v771 = vpop.f32.mrf.mxu0
      %v772 = vadd.f32 0.0, %v771
      %v773 = vpop.f32.mrf.mxu0
      %v774 = vpop.f32.mrf.mxu0
      %v775 = vadd.f32 0.0, %v774
      %v776 = vpop.f32.mrf.mxu0
      %777 = vmatprep.mubr.bf16.mxu0 0
      %778 = vmatmul.mubr.bf16.gmra.mxu0 %v613
      %v779 = vpop.f32.mrf.mxu0
      %v780 = vadd.f32 0.0, %v779
      %v781 = vpop.f32.mrf.mxu0
      %v782 = vpop.f32.mrf.mxu0
      %v783 = vadd.f32 0.0, %v782
      %v784 = vpop.f32.mrf.mxu0
      %785 = vmatprep.mubr.bf16.mxu0 0
      %786 = vmatmul.mubr.bf16.gmra.mxu0 %v616
      %v787 = vpop.f32.mrf.mxu0
      %v788 = vadd.f32 0.0, %v787
      %v789 = vpop.f32.mrf.mxu0
      %v790 = vpop.f32.mrf.mxu0
      %v791 = vadd.f32 0.0, %v790
      %v792 = vpop.f32.mrf.mxu0
      %793 = vmatprep.mubr.bf16.mxu0 0
      %794 = vmatmul.mubr.bf16.gmra.mxu0 %v619
      %v795 = vpop.f32.mrf.mxu0
      %v796 = vadd.f32 0.0, %v795
      %v797 = vpop.f32.mrf.mxu0
      %v798 = vpop.f32.mrf.mxu0
      %v799 = vadd.f32 0.0, %v798
      %v800 = vpop.f32.mrf.mxu0
      %801 = vdwg.mxu0
      %v802 = vsel %vm566, %v398, 0
      %v804 = vsel %vm566, %v399, 0
      %v806 = vsel %vm566, %v400, 0
      %v808 = vsel %vm566, %v401, 0
      %v810 = vsel %vm566, %v402, 0
      %v812 = vsel %vm566, %v403, 0
      %v814 = vsel %vm566, %v404, 0
      %v816 = vsel %vm566, %v405, 0
      %v818 = vsel %vm566, %v406, 0
      %v820 = vsel %vm566, %v407, 0
      %v822 = vsel %vm566, %v408, 0
      %v824 = vsel %vm566, %v409, 0
      %v826 = vsel %vm566, %v410, 0
      %v828 = vsel %vm566, %v411, 0
      %v830 = vsel %vm566, %v412, 0
      %v832 = vsel %vm566, %v413, 0
      %v834 = vsel %vm566, %v414, 0
      %v836 = vsel %vm566, %v415, 0
      %v839 = vsel %vm621, %v320, 0
      %841 = vmatprep.subr.bf16.mxu0 0
      %842 = vmatpush1.bf16.msra.mxu0 0
      %843 = vmatprep.subr.bf16.mxu0 0
      %844 = vmatpush1.bf16.msra.mxu0 0
      %845 = vmatprep.subr.bf16.mxu0 0
      %846 = vmatpush1.bf16.msra.mxu0 0
      %847 = vmatprep.subr.bf16.mxu0 0
      %848 = vmatpush1.bf16.msra.mxu0 0
      %849 = vmatprep.subr.bf16.mxu0 0
      %850 = vmatpush1.bf16.msra.mxu0 0
      %851 = vmatprep.subr.bf16.mxu0 0
      %852 = vmatpush1.bf16.msra.mxu0 0
      %853 = vmatprep.subr.bf16.mxu0 0
      %854 = vmatpush1.bf16.msra.mxu0 0
      %855 = vmatprep.subr.bf16.mxu0 0
      %856 = vmatpush1.bf16.msra.mxu0 %v839
      %857 = vmatprep.subr.bf16.mxu0 0
      %858 = vmatpush2.bf16.msra.mxu0 0
      %859 = vmatprep.subr.bf16.mxu0 0
      %860 = vmatpush2.bf16.msra.mxu0 0
      %861 = vmatprep.subr.bf16.mxu0 0
      %862 = vmatpush2.bf16.msra.mxu0 0
      %863 = vmatprep.subr.bf16.mxu0 0
      %864 = vmatpush2.bf16.msra.mxu0 0
      %865 = vmatprep.subr.bf16.mxu0 0
      %866 = vmatpush2.bf16.msra.mxu0 0
      %867 = vmatprep.subr.bf16.mxu0 0
      %868 = vmatpush2.bf16.msra.mxu0 0
      %869 = vmatprep.subr.bf16.mxu0 0
      %870 = vmatpush2.bf16.msra.mxu0 0
      %871 = vmatprep.subr.bf16.mxu0 0
      %872 = vmatpush2.bf16.msra.mxu0 0
      %873 = vmatprep.mubr.bf16.mxu0 0
      %874 = vmatmul.mubr.bf16.gmra.mxu0 %v802
      %v875 = vpop.f32.mrf.mxu0
      %v876 = vadd.f32 %v660, %v875
      %v877 = vpop.f32.mrf.mxu0
      %v878 = vpop.f32.mrf.mxu0
      %v879 = vadd.f32 %v663, %v878
      %v880 = vpop.f32.mrf.mxu0
      %881 = vmatprep.mubr.bf16.mxu0 0
      %882 = vmatmul.mubr.bf16.gmra.mxu0 %v804
      %v883 = vpop.f32.mrf.mxu0
      %v884 = vadd.f32 %v668, %v883
      %v885 = vpop.f32.mrf.mxu0
      %v886 = vpop.f32.mrf.mxu0
      %v887 = vadd.f32 %v671, %v886
      %v888 = vpop.f32.mrf.mxu0
      %889 = vmatprep.mubr.bf16.mxu0 0
      %890 = vmatmul.mubr.bf16.gmra.mxu0 %v806
      %v891 = vpop.f32.mrf.mxu0
      %v892 = vadd.f32 %v676, %v891
      %v893 = vpop.f32.mrf.mxu0
      %v894 = vpop.f32.mrf.mxu0
      %v895 = vadd.f32 %v679, %v894
      %v896 = vpop.f32.mrf.mxu0
      %897 = vmatprep.mubr.bf16.mxu0 0
      %898 = vmatmul.mubr.bf16.gmra.mxu0 %v808
      %v899 = vpop.f32.mrf.mxu0
      %v900 = vadd.f32 %v684, %v899
      %v901 = vpop.f32.mrf.mxu0
      %v902 = vpop.f32.mrf.mxu0
      %v903 = vadd.f32 %v687, %v902
      %v904 = vpop.f32.mrf.mxu0
      %905 = vmatprep.mubr.bf16.mxu0 0
      %906 = vmatmul.mubr.bf16.gmra.mxu0 %v810
      %v907 = vpop.f32.mrf.mxu0
      %v908 = vadd.f32 %v692, %v907
      %v909 = vpop.f32.mrf.mxu0
      %v910 = vpop.f32.mrf.mxu0
      %v911 = vadd.f32 %v695, %v910
      %v912 = vpop.f32.mrf.mxu0
      %913 = vmatprep.mubr.bf16.mxu0 0
      %914 = vmatmul.mubr.bf16.gmra.mxu0 %v812
      %v915 = vpop.f32.mrf.mxu0
      %v916 = vadd.f32 %v700, %v915
      %v917 = vpop.f32.mrf.mxu0
      %v918 = vpop.f32.mrf.mxu0
      %v919 = vadd.f32 %v703, %v918
      %v920 = vpop.f32.mrf.mxu0
      %921 = vmatprep.mubr.bf16.mxu0 0
      %922 = vmatmul.mubr.bf16.gmra.mxu0 %v814
      %v923 = vpop.f32.mrf.mxu0
      %v924 = vadd.f32 %v708, %v923
      %v925 = vpop.f32.mrf.mxu0
      %v926 = vpop.f32.mrf.mxu0
      %v927 = vadd.f32 %v711, %v926
      %v928 = vpop.f32.mrf.mxu0
      %929 = vmatprep.mubr.bf16.mxu0 0
      %930 = vmatmul.mubr.bf16.gmra.mxu0 %v816
      %v931 = vpop.f32.mrf.mxu0
      %v932 = vadd.f32 %v716, %v931
      %v933 = vpop.f32.mrf.mxu0
      %v934 = vpop.f32.mrf.mxu0
      %v935 = vadd.f32 %v719, %v934
      %v936 = vpop.f32.mrf.mxu0
      %937 = vmatprep.mubr.bf16.mxu0 0
      %938 = vmatmul.mubr.bf16.gmra.mxu0 %v818
      %v939 = vpop.f32.mrf.mxu0
      %v940 = vadd.f32 %v724, %v939
      %v941 = vpop.f32.mrf.mxu0
      %v942 = vpop.f32.mrf.mxu0
      %v943 = vadd.f32 %v727, %v942
      %v944 = vpop.f32.mrf.mxu0
      %945 = vmatprep.mubr.bf16.mxu0 0
      %946 = vmatmul.mubr.bf16.gmra.mxu0 %v820
      %v947 = vpop.f32.mrf.mxu0
      %v948 = vadd.f32 %v732, %v947
      %v949 = vpop.f32.mrf.mxu0
      %v950 = vpop.f32.mrf.mxu0
      %v951 = vadd.f32 %v735, %v950
      %v952 = vpop.f32.mrf.mxu0
      %953 = vmatprep.mubr.bf16.mxu0 0
      %954 = vmatmul.mubr.bf16.gmra.mxu0 %v822
      %v955 = vpop.f32.mrf.mxu0
      %v956 = vadd.f32 %v740, %v955
      %v957 = vpop.f32.mrf.mxu0
      %v958 = vpop.f32.mrf.mxu0
      %v959 = vadd.f32 %v743, %v958
      %v960 = vpop.f32.mrf.mxu0
      %961 = vmatprep.mubr.bf16.mxu0 0
      %962 = vmatmul.mubr.bf16.gmra.mxu0 %v824
      %v963 = vpop.f32.mrf.mxu0
      %v964 = vadd.f32 %v748, %v963
      %v965 = vpop.f32.mrf.mxu0
      %v966 = vpop.f32.mrf.mxu0
      %v967 = vadd.f32 %v751, %v966
      %v968 = vpop.f32.mrf.mxu0
      %969 = vmatprep.mubr.bf16.mxu0 0
      %970 = vmatmul.mubr.bf16.gmra.mxu0 %v826
      %v971 = vpop.f32.mrf.mxu0
      %v972 = vadd.f32 %v756, %v971
      %v973 = vpop.f32.mrf.mxu0
      %v974 = vpop.f32.mrf.mxu0
      %v975 = vadd.f32 %v759, %v974
      %v976 = vpop.f32.mrf.mxu0
      %977 = vmatprep.mubr.bf16.mxu0 0
      %978 = vmatmul.mubr.bf16.gmra.mxu0 %v828
      %v979 = vpop.f32.mrf.mxu0
      %v980 = vadd.f32 %v764, %v979
      %v981 = vpop.f32.mrf.mxu0
      %v982 = vpop.f32.mrf.mxu0
      %v983 = vadd.f32 %v767, %v982
      %v984 = vpop.f32.mrf.mxu0
      %985 = vmatprep.mubr.bf16.mxu0 0
      %986 = vmatmul.mubr.bf16.gmra.mxu0 %v830
      %v987 = vpop.f32.mrf.mxu0
      %v988 = vadd.f32 %v772, %v987
      %v989 = vpop.f32.mrf.mxu0
      %v990 = vpop.f32.mrf.mxu0
      %v991 = vadd.f32 %v775, %v990
      %v992 = vpop.f32.mrf.mxu0
      %993 = vmatprep.mubr.bf16.mxu0 0
      %994 = vmatmul.mubr.bf16.gmra.mxu0 %v832
      %v995 = vpop.f32.mrf.mxu0
      %v996 = vadd.f32 %v780, %v995
      %v997 = vpop.f32.mrf.mxu0
      %v998 = vpop.f32.mrf.mxu0
      %v999 = vadd.f32 %v783, %v998
      %v1000 = vpop.f32.mrf.mxu0
      %1001 = vmatprep.mubr.bf16.mxu0 0
      %1002 = vmatmul.mubr.bf16.gmra.mxu0 %v834
      %v1003 = vpop.f32.mrf.mxu0
      %v1004 = vadd.f32 %v788, %v1003
      %v1005 = vpop.f32.mrf.mxu0
      %v1006 = vpop.f32.mrf.mxu0
      %v1007 = vadd.f32 %v791, %v1006
      %v1008 = vpop.f32.mrf.mxu0
      %1009 = vmatprep.mubr.bf16.mxu0 0
      %1010 = vmatmul.mubr.bf16.gmra.mxu0 %v836
      %v1011 = vpop.f32.mrf.mxu0
      %v1012 = vadd.f32 %v796, %v1011
      %v1013 = vpop.f32.mrf.mxu0
      %v1014 = vpop.f32.mrf.mxu0
      %v1015 = vadd.f32 %v799, %v1014
      %v1016 = vpop.f32.mrf.mxu0
      %1017 = vdwg.mxu0
      %v1018 = vld [vmem:[%s258] sm:$0xe]
      %s1019 = scalar_lea.vmem %s266, 8
      %v1020 = vld [vmem:[%s1019] sm:$0xf]
      %v1022 = vunpack.c.l.b16 %v1018
      %v1023 = vpack.c.b16 %v362, %v1022
      %vm1024 = vcmask 1046528
      %v1025 = vrot.slane %v1023, 1
      %v1026 = vrot.slane %v399, 1
      %v1027 = vsel %vm1024, %v1025, %v1026
      %v1028 = vrot.slane %v400, 1
      %v1029 = vsel %vm1024, %v1026, %v1028
      %v1030 = vrot.slane %v401, 1
      %v1031 = vsel %vm1024, %v1028, %v1030
      %v1032 = vrot.slane %v402, 1
      %v1033 = vsel %vm1024, %v1030, %v1032
      %v1034 = vrot.slane %v403, 1
      %v1035 = vsel %vm1024, %v1032, %v1034
      %v1036 = vrot.slane %v404, 1
      %v1037 = vsel %vm1024, %v1034, %v1036
      %v1038 = vrot.slane %v405, 1
      %v1039 = vsel %vm1024, %v1036, %v1038
      %v1040 = vrot.slane %v406, 1
      %v1041 = vsel %vm1024, %v1038, %v1040
      %v1042 = vrot.slane %v407, 1
      %v1043 = vsel %vm1024, %v1040, %v1042
      %v1044 = vrot.slane %v408, 1
      %v1045 = vsel %vm1024, %v1042, %v1044
      %v1046 = vrot.slane %v409, 1
      %v1047 = vsel %vm1024, %v1044, %v1046
      %v1048 = vrot.slane %v410, 1
      %v1049 = vsel %vm1024, %v1046, %v1048
      %v1050 = vrot.slane %v411, 1
      %v1051 = vsel %vm1024, %v1048, %v1050
      %v1052 = vrot.slane %v412, 1
      %v1053 = vsel %vm1024, %v1050, %v1052
      %v1054 = vrot.slane %v413, 1
      %v1055 = vsel %vm1024, %v1052, %v1054
      %v1056 = vrot.slane %v414, 1
      %v1057 = vsel %vm1024, %v1054, %v1056
      %v1058 = vrot.slane %v415, 1
      %v1059 = vsel %vm1024, %v1056, %v1058
      %v1060 = vrot.slane %v416, 1
      %v1061 = vsel %vm1024, %v1058, %v1060
      %v1063 = vsel %vm566, %v1027, 0
      %v1066 = vsel %vm566, %v1029, 0
      %v1069 = vsel %vm566, %v1031, 0
      %v1072 = vsel %vm566, %v1033, 0
      %v1075 = vsel %vm566, %v1035, 0
      %v1078 = vsel %vm566, %v1037, 0
      %v1081 = vsel %vm566, %v1039, 0
      %v1084 = vsel %vm566, %v1041, 0
      %v1087 = vsel %vm566, %v1043, 0
      %v1090 = vsel %vm566, %v1045, 0
      %v1093 = vsel %vm566, %v1047, 0
      %v1096 = vsel %vm566, %v1049, 0
      %v1099 = vsel %vm566, %v1051, 0
      %v1102 = vsel %vm566, %v1053, 0
      %v1105 = vsel %vm566, %v1055, 0
      %v1108 = vsel %vm566, %v1057, 0
      %v1111 = vsel %vm566, %v1059, 0
      %v1114 = vsel %vm566, %v1061, 0
      %v1117 = vsel %vm621, %v1020, 0
      %1119 = vmatprep.subr.bf16.mxu0 0
      %1120 = vmatpush1.bf16.msra.mxu0 0
      %1121 = vmatprep.subr.bf16.mxu0 0
      %1122 = vmatpush1.bf16.msra.mxu0 0
      %1123 = vmatprep.subr.bf16.mxu0 0
      %1124 = vmatpush1.bf16.msra.mxu0 0
      %1125 = vmatprep.subr.bf16.mxu0 0
      %1126 = vmatpush1.bf16.msra.mxu0 0
      %1127 = vmatprep.subr.bf16.mxu0 0
      %1128 = vmatpush1.bf16.msra.mxu0 0
      %1129 = vmatprep.subr.bf16.mxu0 0
      %1130 = vmatpush1.bf16.msra.mxu0 0
      %1131 = vmatprep.subr.bf16.mxu0 0
      %1132 = vmatpush1.bf16.msra.mxu0 0
      %1133 = vmatprep.subr.bf16.mxu0 0
      %1134 = vmatpush1.bf16.msra.mxu0 %v1117
      %1135 = vmatprep.subr.bf16.mxu0 0
      %1136 = vmatpush2.bf16.msra.mxu0 0
      %1137 = vmatprep.subr.bf16.mxu0 0
      %1138 = vmatpush2.bf16.msra.mxu0 0
      %1139 = vmatprep.subr.bf16.mxu0 0
      %1140 = vmatpush2.bf16.msra.mxu0 0
      %1141 = vmatprep.subr.bf16.mxu0 0
      %1142 = vmatpush2.bf16.msra.mxu0 0
      %1143 = vmatprep.subr.bf16.mxu0 0
      %1144 = vmatpush2.bf16.msra.mxu0 0
      %1145 = vmatprep.subr.bf16.mxu0 0
      %1146 = vmatpush2.bf16.msra.mxu0 0
      %1147 = vmatprep.subr.bf16.mxu0 0
      %1148 = vmatpush2.bf16.msra.mxu0 0
      %1149 = vmatprep.subr.bf16.mxu0 0
      %1150 = vmatpush2.bf16.msra.mxu0 0
      %1151 = vmatprep.mubr.bf16.mxu0 0
      %1152 = vmatmul.mubr.bf16.gmra.mxu0 %v1063
      %v1153 = vpop.f32.mrf.mxu0
      %v1154 = vadd.f32 0.0, %v1153
      %v1155 = vpop.f32.mrf.mxu0
      %v1156 = vpop.f32.mrf.mxu0
      %v1157 = vadd.f32 0.0, %v1156
      %v1158 = vpop.f32.mrf.mxu0
      %1159 = vmatprep.mubr.bf16.mxu0 0
      %1160 = vmatmul.mubr.bf16.gmra.mxu0 %v1066
      %v1161 = vpop.f32.mrf.mxu0
      %v1162 = vadd.f32 0.0, %v1161
      %v1163 = vpop.f32.mrf.mxu0
      %v1164 = vpop.f32.mrf.mxu0
      %v1165 = vadd.f32 0.0, %v1164
      %v1166 = vpop.f32.mrf.mxu0
      %1167 = vmatprep.mubr.bf16.mxu0 0
      %1168 = vmatmul.mubr.bf16.gmra.mxu0 %v1069
      %v1169 = vpop.f32.mrf.mxu0
      %v1170 = vadd.f32 0.0, %v1169
      %v1171 = vpop.f32.mrf.mxu0
      %v1172 = vpop.f32.mrf.mxu0
      %v1173 = vadd.f32 0.0, %v1172
      %v1174 = vpop.f32.mrf.mxu0
      %1175 = vmatprep.mubr.bf16.mxu0 0
      %1176 = vmatmul.mubr.bf16.gmra.mxu0 %v1072
      %v1177 = vpop.f32.mrf.mxu0
      %v1178 = vadd.f32 0.0, %v1177
      %v1179 = vpop.f32.mrf.mxu0
      %v1180 = vpop.f32.mrf.mxu0
      %v1181 = vadd.f32 0.0, %v1180
      %v1182 = vpop.f32.mrf.mxu0
      %1183 = vmatprep.mubr.bf16.mxu0 0
      %1184 = vmatmul.mubr.bf16.gmra.mxu0 %v1075
      %v1185 = vpop.f32.mrf.mxu0
      %v1186 = vadd.f32 0.0, %v1185
      %v1187 = vpop.f32.mrf.mxu0
      %v1188 = vpop.f32.mrf.mxu0
      %v1189 = vadd.f32 0.0, %v1188
      %v1190 = vpop.f32.mrf.mxu0
      %1191 = vmatprep.mubr.bf16.mxu0 0
      %1192 = vmatmul.mubr.bf16.gmra.mxu0 %v1078
      %v1193 = vpop.f32.mrf.mxu0
      %v1194 = vadd.f32 0.0, %v1193
      %v1195 = vpop.f32.mrf.mxu0
      %v1196 = vpop.f32.mrf.mxu0
      %v1197 = vadd.f32 0.0, %v1196
      %v1198 = vpop.f32.mrf.mxu0
      %1199 = vmatprep.mubr.bf16.mxu0 0
      %1200 = vmatmul.mubr.bf16.gmra.mxu0 %v1081
      %v1201 = vpop.f32.mrf.mxu0
      %v1202 = vadd.f32 0.0, %v1201
      %v1203 = vpop.f32.mrf.mxu0
      %v1204 = vpop.f32.mrf.mxu0
      %v1205 = vadd.f32 0.0, %v1204
      %v1206 = vpop.f32.mrf.mxu0
      %1207 = vmatprep.mubr.bf16.mxu0 0
      %1208 = vmatmul.mubr.bf16.gmra.mxu0 %v1084
      %v1209 = vpop.f32.mrf.mxu0
      %v1210 = vadd.f32 0.0, %v1209
      %v1211 = vpop.f32.mrf.mxu0
      %v1212 = vpop.f32.mrf.mxu0
      %v1213 = vadd.f32 0.0, %v1212
      %v1214 = vpop.f32.mrf.mxu0
      %1215 = vmatprep.mubr.bf16.mxu0 0
      %1216 = vmatmul.mubr.bf16.gmra.mxu0 %v1087
      %v1217 = vpop.f32.mrf.mxu0
      %v1218 = vadd.f32 0.0, %v1217
      %v1219 = vpop.f32.mrf.mxu0
      %v1220 = vpop.f32.mrf.mxu0
      %v1221 = vadd.f32 0.0, %v1220
      %v1222 = vpop.f32.mrf.mxu0
      %1223 = vmatprep.mubr.bf16.mxu0 0
      %1224 = vmatmul.mubr.bf16.gmra.mxu0 %v1090
      %v1225 = vpop.f32.mrf.mxu0
      %v1226 = vadd.f32 0.0, %v1225
      %v1227 = vpop.f32.mrf.mxu0
      %v1228 = vpop.f32.mrf.mxu0
      %v1229 = vadd.f32 0.0, %v1228
      %v1230 = vpop.f32.mrf.mxu0
      %1231 = vmatprep.mubr.bf16.mxu0 0
      %1232 = vmatmul.mubr.bf16.gmra.mxu0 %v1093
      %v1233 = vpop.f32.mrf.mxu0
      %v1234 = vadd.f32 0.0, %v1233
      %v1235 = vpop.f32.mrf.mxu0
      %v1236 = vpop.f32.mrf.mxu0
      %v1237 = vadd.f32 0.0, %v1236
      %v1238 = vpop.f32.mrf.mxu0
      %1239 = vmatprep.mubr.bf16.mxu0 0
      %1240 = vmatmul.mubr.bf16.gmra.mxu0 %v1096
      %v1241 = vpop.f32.mrf.mxu0
      %v1242 = vadd.f32 0.0, %v1241
      %v1243 = vpop.f32.mrf.mxu0
      %v1244 = vpop.f32.mrf.mxu0
      %v1245 = vadd.f32 0.0, %v1244
      %v1246 = vpop.f32.mrf.mxu0
      %1247 = vmatprep.mubr.bf16.mxu0 0
      %1248 = vmatmul.mubr.bf16.gmra.mxu0 %v1099
      %v1249 = vpop.f32.mrf.mxu0
      %v1250 = vadd.f32 0.0, %v1249
      %v1251 = vpop.f32.mrf.mxu0
      %v1252 = vpop.f32.mrf.mxu0
      %v1253 = vadd.f32 0.0, %v1252
      %v1254 = vpop.f32.mrf.mxu0
      %1255 = vmatprep.mubr.bf16.mxu0 0
      %1256 = vmatmul.mubr.bf16.gmra.mxu0 %v1102
      %v1257 = vpop.f32.mrf.mxu0
      %v1258 = vadd.f32 0.0, %v1257
      %v1259 = vpop.f32.mrf.mxu0
      %v1260 = vpop.f32.mrf.mxu0
      %v1261 = vadd.f32 0.0, %v1260
      %v1262 = vpop.f32.mrf.mxu0
      %1263 = vmatprep.mubr.bf16.mxu0 0
      %1264 = vmatmul.mubr.bf16.gmra.mxu0 %v1105
      %v1265 = vpop.f32.mrf.mxu0
      %v1266 = vadd.f32 0.0, %v1265
      %v1267 = vpop.f32.mrf.mxu0
      %v1268 = vpop.f32.mrf.mxu0
      %v1269 = vadd.f32 0.0, %v1268
      %v1270 = vpop.f32.mrf.mxu0
      %1271 = vmatprep.mubr.bf16.mxu0 0
      %1272 = vmatmul.mubr.bf16.gmra.mxu0 %v1108
      %v1273 = vpop.f32.mrf.mxu0
      %v1274 = vadd.f32 0.0, %v1273
      %v1275 = vpop.f32.mrf.mxu0
      %v1276 = vpop.f32.mrf.mxu0
      %v1277 = vadd.f32 0.0, %v1276
      %v1278 = vpop.f32.mrf.mxu0
      %1279 = vmatprep.mubr.bf16.mxu0 0
      %1280 = vmatmul.mubr.bf16.gmra.mxu0 %v1111
      %v1281 = vpop.f32.mrf.mxu0
      %v1282 = vadd.f32 0.0, %v1281
      %v1283 = vpop.f32.mrf.mxu0
      %v1284 = vpop.f32.mrf.mxu0
      %v1285 = vadd.f32 0.0, %v1284
      %v1286 = vpop.f32.mrf.mxu0
      %1287 = vmatprep.mubr.bf16.mxu0 0
      %1288 = vmatmul.mubr.bf16.gmra.mxu0 %v1114
      %v1289 = vpop.f32.mrf.mxu0
      %v1290 = vadd.f32 0.0, %v1289
      %v1291 = vpop.f32.mrf.mxu0
      %v1292 = vpop.f32.mrf.mxu0
      %v1293 = vadd.f32 0.0, %v1292
      %v1294 = vpop.f32.mrf.mxu0
      %1295 = vdwg.mxu0
      %v1296 = vadd.f32 %v876, %v1154
      %v1297 = vadd.f32 %v879, %v1157
      %v1298 = vadd.f32 %v884, %v1162
      %v1299 = vadd.f32 %v887, %v1165
      %v1300 = vadd.f32 %v892, %v1170
      %v1301 = vadd.f32 %v895, %v1173
      %v1302 = vadd.f32 %v900, %v1178
      %v1303 = vadd.f32 %v903, %v1181
      %v1304 = vadd.f32 %v908, %v1186
      %v1305 = vadd.f32 %v911, %v1189
      %v1306 = vadd.f32 %v916, %v1194
      %v1307 = vadd.f32 %v919, %v1197
      %v1308 = vadd.f32 %v924, %v1202
      %v1309 = vadd.f32 %v927, %v1205
      %v1310 = vadd.f32 %v932, %v1210
      %v1311 = vadd.f32 %v935, %v1213
      %v1312 = vadd.f32 %v940, %v1218
      %v1313 = vadd.f32 %v943, %v1221
      %v1314 = vadd.f32 %v948, %v1226
      %v1315 = vadd.f32 %v951, %v1229
      %v1316 = vadd.f32 %v956, %v1234
      %v1317 = vadd.f32 %v959, %v1237
      %v1318 = vadd.f32 %v964, %v1242
      %v1319 = vadd.f32 %v967, %v1245
      %v1320 = vadd.f32 %v972, %v1250
      %v1321 = vadd.f32 %v975, %v1253
      %v1322 = vadd.f32 %v980, %v1258
      %v1323 = vadd.f32 %v983, %v1261
      %v1324 = vadd.f32 %v988, %v1266
      %v1325 = vadd.f32 %v991, %v1269
      %v1326 = vadd.f32 %v996, %v1274
      %v1327 = vadd.f32 %v999, %v1277
      %v1328 = vadd.f32 %v1004, %v1282
      %v1329 = vadd.f32 %v1007, %v1285
      %v1330 = vadd.f32 %v1012, %v1290
      %v1331 = vadd.f32 %v1015, %v1293
      %v1332 = vld [vmem:[%s258 + $0x8] sm:$0xe]
      %v1333 = vld [vmem:[%s258 + $0xc] sm:$0xf]
      %v1334 = vld [vmem:[%s258 + $0x10] sm:$0xf]
      %v1335 = vld [vmem:[%s258 + $0x14] sm:$0xf]
      %v1336 = vld [vmem:[%s258 + $0x18] sm:$0xf]
      %v1337 = vld [vmem:[%s258 + $0x1c] sm:$0xf]
      %v1338 = vld [vmem:[%s258 + $0x20] sm:$0xf]
      %v1339 = vld [vmem:[%s258 + $0x24] sm:$0xf]
      %v1340 = vld [vmem:[%s258 + $0x28] sm:$0xf]
      %v1341 = vld [vmem:[%s258 + $0x2c] sm:$0xf]
      %v1342 = vld [vmem:[%s258 + $0x30] sm:$0xf]
      %v1343 = vld [vmem:[%s258 + $0x34] sm:$0xf]
      %v1344 = vld [vmem:[%s258 + $0x38] sm:$0xf]
      %v1345 = vld [vmem:[%s258 + $0x3c] sm:$0xf]
      %v1346 = vld [vmem:[%s258 + $0x40] sm:$0xf]
      %v1347 = vld [vmem:[%s258 + $0x44] sm:$0xf]
      %v1348 = vld [vmem:[%s258 + $0x48] sm:$0xf]
      %v1349 = vld [vmem:[%s258 + $0x4c] sm:$0xf]
      %v1350 = vld [vmem:[%s258 + $0x50] sm:$0xf]
      %v1351 = vld [vmem:[%s258 + $0x54] sm:$0xf]
      %v1352 = vld [vmem:[%s258 + $0x58] sm:$0xf]
      %v1353 = vld [vmem:[%s258 + $0x5c] sm:$0xf]
      %v1354 = vld [vmem:[%s258 + $0x60] sm:$0xf]
      %v1355 = vld [vmem:[%s258 + $0x64] sm:$0xf]
      %v1356 = vld [vmem:[%s258 + $0x68] sm:$0xf]
      %v1357 = vld [vmem:[%s258 + $0x6c] sm:$0xf]
      %v1358 = vld [vmem:[%s258 + $0x70] sm:$0xf]
      %v1359 = vld [vmem:[%s258 + $0x74] sm:$0xf]
      %v1360 = vld [vmem:[%s258 + $0x78] sm:$0xf]
      %v1361 = vld [vmem:[%s258 + $0x7c] sm:$0xf]
      %v1362 = vld [vmem:[%s258 + $0x80] sm:$0xf]
      %v1363 = vld [vmem:[%s258 + $0x84] sm:$0xf]
      %v1364 = vld [vmem:[%s258 + $0x88] sm:$0xf]
      %v1365 = vld [vmem:[%s258 + $0x8c] sm:$0xf]
      %v1366 = vld [vmem:[%s258 + $0x90] sm:$0xf]
      %v1367 = vld [vmem:[%s258 + $0x94] sm:$0xf]
      %v1368 = vld [vmem:[%s258 + $0x98] sm:$0x1]
      %s1369 = scalar_lea.vmem %s266, 12
      %v1370 = vld [vmem:[%s1369] sm:$0xf]
      %v1408 = vunpack.c.l.b16 %v1332
      %v1409 = vunpack.c.l.b16 %v1333
      %v1410 = vunpack.c.l.b16 %v1334
      %v1411 = vunpack.c.l.b16 %v1335
      %v1412 = vunpack.c.l.b16 %v1336
      %v1413 = vunpack.c.l.b16 %v1337
      %v1414 = vunpack.c.l.b16 %v1338
      %v1415 = vunpack.c.l.b16 %v1339
      %v1416 = vunpack.c.l.b16 %v1340
      %v1417 = vunpack.c.l.b16 %v1341
      %v1418 = vunpack.c.l.b16 %v1342
      %v1419 = vunpack.c.l.b16 %v1343
      %v1420 = vunpack.c.l.b16 %v1344
      %v1421 = vunpack.c.l.b16 %v1345
      %v1422 = vunpack.c.l.b16 %v1346
      %v1423 = vunpack.c.l.b16 %v1347
      %v1424 = vunpack.c.l.b16 %v1348
      %v1425 = vunpack.c.l.b16 %v1349
      %v1426 = vunpack.c.l.b16 %v1350
      %v1427 = vunpack.c.l.b16 %v1351
      %v1428 = vunpack.c.l.b16 %v1352
      %v1429 = vunpack.c.l.b16 %v1353
      %v1430 = vunpack.c.l.b16 %v1354
      %v1431 = vunpack.c.l.b16 %v1355
      %v1432 = vunpack.c.l.b16 %v1356
      %v1433 = vunpack.c.l.b16 %v1357
      %v1434 = vunpack.c.l.b16 %v1358
      %v1435 = vunpack.c.l.b16 %v1359
      %v1436 = vunpack.c.l.b16 %v1360
      %v1437 = vunpack.c.l.b16 %v1361
      %v1438 = vunpack.c.l.b16 %v1362
      %v1439 = vunpack.c.l.b16 %v1363
      %v1440 = vunpack.c.l.b16 %v1364
      %v1441 = vunpack.c.l.b16 %v1365
      %v1442 = vunpack.c.l.b16 %v1366
      %v1443 = vunpack.c.l.b16 %v1367
      %v1444 = vunpack.c.l.b16 %v1368
      %v1445 = vpack.c.b16 %v1409, %v1408
      %v1446 = vpack.c.b16 %v1411, %v1410
      %v1447 = vpack.c.b16 %v1413, %v1412
      %v1448 = vpack.c.b16 %v1415, %v1414
      %v1449 = vpack.c.b16 %v1417, %v1416
      %v1450 = vpack.c.b16 %v1419, %v1418
      %v1451 = vpack.c.b16 %v1421, %v1420
      %v1452 = vpack.c.b16 %v1423, %v1422
      %v1453 = vpack.c.b16 %v1425, %v1424
      %v1454 = vpack.c.b16 %v1427, %v1426
      %v1455 = vpack.c.b16 %v1429, %v1428
      %v1456 = vpack.c.b16 %v1431, %v1430
      %v1457 = vpack.c.b16 %v1433, %v1432
      %v1458 = vpack.c.b16 %v1435, %v1434
      %v1459 = vpack.c.b16 %v1437, %v1436
      %v1460 = vpack.c.b16 %v1439, %v1438
      %v1461 = vpack.c.b16 %v1441, %v1440
      %v1462 = vpack.c.b16 %v1443, %v1442
      %v1463 = vpack.c.b16 %v1444, %v1444
      %v1464 = vrot.slane %v1445, 1
      %v1465 = vrot.slane %v1446, 1
      %v1466 = vsel %vm1024, %v1464, %v1465
      %v1467 = vrot.slane %v1447, 1
      %v1468 = vsel %vm1024, %v1465, %v1467
      %v1469 = vrot.slane %v1448, 1
      %v1470 = vsel %vm1024, %v1467, %v1469
      %v1471 = vrot.slane %v1449, 1
      %v1472 = vsel %vm1024, %v1469, %v1471
      %v1473 = vrot.slane %v1450, 1
      %v1474 = vsel %vm1024, %v1471, %v1473
      %v1475 = vrot.slane %v1451, 1
      %v1476 = vsel %vm1024, %v1473, %v1475
      %v1477 = vrot.slane %v1452, 1
      %v1478 = vsel %vm1024, %v1475, %v1477
      %v1479 = vrot.slane %v1453, 1
      %v1480 = vsel %vm1024, %v1477, %v1479
      %v1481 = vrot.slane %v1454, 1
      %v1482 = vsel %vm1024, %v1479, %v1481
      %v1483 = vrot.slane %v1455, 1
      %v1484 = vsel %vm1024, %v1481, %v1483
      %v1485 = vrot.slane %v1456, 1
      %v1486 = vsel %vm1024, %v1483, %v1485
      %v1487 = vrot.slane %v1457, 1
      %v1488 = vsel %vm1024, %v1485, %v1487
      %v1489 = vrot.slane %v1458, 1
      %v1490 = vsel %vm1024, %v1487, %v1489
      %v1491 = vrot.slane %v1459, 1
      %v1492 = vsel %vm1024, %v1489, %v1491
      %v1493 = vrot.slane %v1460, 1
      %v1494 = vsel %vm1024, %v1491, %v1493
      %v1495 = vrot.slane %v1461, 1
      %v1496 = vsel %vm1024, %v1493, %v1495
      %v1497 = vrot.slane %v1462, 1
      %v1498 = vsel %vm1024, %v1495, %v1497
      %v1499 = vrot.slane %v1463, 1
      %v1500 = vsel %vm1024, %v1497, %v1499
      %v1502 = vsel %vm566, %v1466, 0
      %v1505 = vsel %vm566, %v1468, 0
      %v1508 = vsel %vm566, %v1470, 0
      %v1511 = vsel %vm566, %v1472, 0
      %v1514 = vsel %vm566, %v1474, 0
      %v1517 = vsel %vm566, %v1476, 0
      %v1520 = vsel %vm566, %v1478, 0
      %v1523 = vsel %vm566, %v1480, 0
      %v1526 = vsel %vm566, %v1482, 0
      %v1529 = vsel %vm566, %v1484, 0
      %v1532 = vsel %vm566, %v1486, 0
      %v1535 = vsel %vm566, %v1488, 0
      %v1538 = vsel %vm566, %v1490, 0
      %v1541 = vsel %vm566, %v1492, 0
      %v1544 = vsel %vm566, %v1494, 0
      %v1547 = vsel %vm566, %v1496, 0
      %v1550 = vsel %vm566, %v1498, 0
      %v1553 = vsel %vm566, %v1500, 0
      %v1556 = vsel %vm621, %v1370, 0
      %1558 = vmatprep.subr.bf16.mxu0 0
      %1559 = vmatpush1.bf16.msra.mxu0 0
      %1560 = vmatprep.subr.bf16.mxu0 0
      %1561 = vmatpush1.bf16.msra.mxu0 0
      %1562 = vmatprep.subr.bf16.mxu0 0
      %1563 = vmatpush1.bf16.msra.mxu0 0
      %1564 = vmatprep.subr.bf16.mxu0 0
      %1565 = vmatpush1.bf16.msra.mxu0 0
      %1566 = vmatprep.subr.bf16.mxu0 0
      %1567 = vmatpush1.bf16.msra.mxu0 0
      %1568 = vmatprep.subr.bf16.mxu0 0
      %1569 = vmatpush1.bf16.msra.mxu0 0
      %1570 = vmatprep.subr.bf16.mxu0 0
      %1571 = vmatpush1.bf16.msra.mxu0 0
      %1572 = vmatprep.subr.bf16.mxu0 0
      %1573 = vmatpush1.bf16.msra.mxu0 %v1556
      %1574 = vmatprep.subr.bf16.mxu0 0
      %1575 = vmatpush2.bf16.msra.mxu0 0
      %1576 = vmatprep.subr.bf16.mxu0 0
      %1577 = vmatpush2.bf16.msra.mxu0 0
      %1578 = vmatprep.subr.bf16.mxu0 0
      %1579 = vmatpush2.bf16.msra.mxu0 0
      %1580 = vmatprep.subr.bf16.mxu0 0
      %1581 = vmatpush2.bf16.msra.mxu0 0
      %1582 = vmatprep.subr.bf16.mxu0 0
      %1583 = vmatpush2.bf16.msra.mxu0 0
      %1584 = vmatprep.subr.bf16.mxu0 0
      %1585 = vmatpush2.bf16.msra.mxu0 0
      %1586 = vmatprep.subr.bf16.mxu0 0
      %1587 = vmatpush2.bf16.msra.mxu0 0
      %1588 = vmatprep.subr.bf16.mxu0 0
      %1589 = vmatpush2.bf16.msra.mxu0 0
      %1590 = vmatprep.mubr.bf16.mxu0 0
      %1591 = vmatmul.mubr.bf16.gmra.mxu0 %v1502
      %v1592 = vpop.f32.mrf.mxu0
      %v1593 = vadd.f32 0.0, %v1592
      %v1594 = vpop.f32.mrf.mxu0
      %v1595 = vpop.f32.mrf.mxu0
      %v1596 = vadd.f32 0.0, %v1595
      %v1597 = vpop.f32.mrf.mxu0
      %1598 = vmatprep.mubr.bf16.mxu0 0
      %1599 = vmatmul.mubr.bf16.gmra.mxu0 %v1505
      %v1600 = vpop.f32.mrf.mxu0
      %v1601 = vadd.f32 0.0, %v1600
      %v1602 = vpop.f32.mrf.mxu0
      %v1603 = vpop.f32.mrf.mxu0
      %v1604 = vadd.f32 0.0, %v1603
      %v1605 = vpop.f32.mrf.mxu0
      %1606 = vmatprep.mubr.bf16.mxu0 0
      %1607 = vmatmul.mubr.bf16.gmra.mxu0 %v1508
      %v1608 = vpop.f32.mrf.mxu0
      %v1609 = vadd.f32 0.0, %v1608
      %v1610 = vpop.f32.mrf.mxu0
      %v1611 = vpop.f32.mrf.mxu0
      %v1612 = vadd.f32 0.0, %v1611
      %v1613 = vpop.f32.mrf.mxu0
      %1614 = vmatprep.mubr.bf16.mxu0 0
      %1615 = vmatmul.mubr.bf16.gmra.mxu0 %v1511
      %v1616 = vpop.f32.mrf.mxu0
      %v1617 = vadd.f32 0.0, %v1616
      %v1618 = vpop.f32.mrf.mxu0
      %v1619 = vpop.f32.mrf.mxu0
      %v1620 = vadd.f32 0.0, %v1619
      %v1621 = vpop.f32.mrf.mxu0
      %1622 = vmatprep.mubr.bf16.mxu0 0
      %1623 = vmatmul.mubr.bf16.gmra.mxu0 %v1514
      %v1624 = vpop.f32.mrf.mxu0
      %v1625 = vadd.f32 0.0, %v1624
      %v1626 = vpop.f32.mrf.mxu0
      %v1627 = vpop.f32.mrf.mxu0
      %v1628 = vadd.f32 0.0, %v1627
      %v1629 = vpop.f32.mrf.mxu0
      %1630 = vmatprep.mubr.bf16.mxu0 0
      %1631 = vmatmul.mubr.bf16.gmra.mxu0 %v1517
      %v1632 = vpop.f32.mrf.mxu0
      %v1633 = vadd.f32 0.0, %v1632
      %v1634 = vpop.f32.mrf.mxu0
      %v1635 = vpop.f32.mrf.mxu0
      %v1636 = vadd.f32 0.0, %v1635
      %v1637 = vpop.f32.mrf.mxu0
      %1638 = vmatprep.mubr.bf16.mxu0 0
      %1639 = vmatmul.mubr.bf16.gmra.mxu0 %v1520
      %v1640 = vpop.f32.mrf.mxu0
      %v1641 = vadd.f32 0.0, %v1640
      %v1642 = vpop.f32.mrf.mxu0
      %v1643 = vpop.f32.mrf.mxu0
      %v1644 = vadd.f32 0.0, %v1643
      %v1645 = vpop.f32.mrf.mxu0
      %1646 = vmatprep.mubr.bf16.mxu0 0
      %1647 = vmatmul.mubr.bf16.gmra.mxu0 %v1523
      %v1648 = vpop.f32.mrf.mxu0
      %v1649 = vadd.f32 0.0, %v1648
      %v1650 = vpop.f32.mrf.mxu0
      %v1651 = vpop.f32.mrf.mxu0
      %v1652 = vadd.f32 0.0, %v1651
      %v1653 = vpop.f32.mrf.mxu0
      %1654 = vmatprep.mubr.bf16.mxu0 0
      %1655 = vmatmul.mubr.bf16.gmra.mxu0 %v1526
      %v1656 = vpop.f32.mrf.mxu0
      %v1657 = vadd.f32 0.0, %v1656
      %v1658 = vpop.f32.mrf.mxu0
      %v1659 = vpop.f32.mrf.mxu0
      %v1660 = vadd.f32 0.0, %v1659
      %v1661 = vpop.f32.mrf.mxu0
      %1662 = vmatprep.mubr.bf16.mxu0 0
      %1663 = vmatmul.mubr.bf16.gmra.mxu0 %v1529
      %v1664 = vpop.f32.mrf.mxu0
      %v1665 = vadd.f32 0.0, %v1664
      %v1666 = vpop.f32.mrf.mxu0
      %v1667 = vpop.f32.mrf.mxu0
      %v1668 = vadd.f32 0.0, %v1667
      %v1669 = vpop.f32.mrf.mxu0
      %1670 = vmatprep.mubr.bf16.mxu0 0
      %1671 = vmatmul.mubr.bf16.gmra.mxu0 %v1532
      %v1672 = vpop.f32.mrf.mxu0
      %v1673 = vadd.f32 0.0, %v1672
      %v1674 = vpop.f32.mrf.mxu0
      %v1675 = vpop.f32.mrf.mxu0
      %v1676 = vadd.f32 0.0, %v1675
      %v1677 = vpop.f32.mrf.mxu0
      %1678 = vmatprep.mubr.bf16.mxu0 0
      %1679 = vmatmul.mubr.bf16.gmra.mxu0 %v1535
      %v1680 = vpop.f32.mrf.mxu0
      %v1681 = vadd.f32 0.0, %v1680
      %v1682 = vpop.f32.mrf.mxu0
      %v1683 = vpop.f32.mrf.mxu0
      %v1684 = vadd.f32 0.0, %v1683
      %v1685 = vpop.f32.mrf.mxu0
      %1686 = vmatprep.mubr.bf16.mxu0 0
      %1687 = vmatmul.mubr.bf16.gmra.mxu0 %v1538
      %v1688 = vpop.f32.mrf.mxu0
      %v1689 = vadd.f32 0.0, %v1688
      %v1690 = vpop.f32.mrf.mxu0
      %v1691 = vpop.f32.mrf.mxu0
      %v1692 = vadd.f32 0.0, %v1691
      %v1693 = vpop.f32.mrf.mxu0
      %1694 = vmatprep.mubr.bf16.mxu0 0
      %1695 = vmatmul.mubr.bf16.gmra.mxu0 %v1541
      %v1696 = vpop.f32.mrf.mxu0
      %v1697 = vadd.f32 0.0, %v1696
      %v1698 = vpop.f32.mrf.mxu0
      %v1699 = vpop.f32.mrf.mxu0
      %v1700 = vadd.f32 0.0, %v1699
      %v1701 = vpop.f32.mrf.mxu0
      %1702 = vmatprep.mubr.bf16.mxu0 0
      %1703 = vmatmul.mubr.bf16.gmra.mxu0 %v1544
      %v1704 = vpop.f32.mrf.mxu0
      %v1705 = vadd.f32 0.0, %v1704
      %v1706 = vpop.f32.mrf.mxu0
      %v1707 = vpop.f32.mrf.mxu0
      %v1708 = vadd.f32 0.0, %v1707
      %v1709 = vpop.f32.mrf.mxu0
      %1710 = vmatprep.mubr.bf16.mxu0 0
      %1711 = vmatmul.mubr.bf16.gmra.mxu0 %v1547
      %v1712 = vpop.f32.mrf.mxu0
      %v1713 = vadd.f32 0.0, %v1712
      %v1714 = vpop.f32.mrf.mxu0
      %v1715 = vpop.f32.mrf.mxu0
      %v1716 = vadd.f32 0.0, %v1715
      %v1717 = vpop.f32.mrf.mxu0
      %1718 = vmatprep.mubr.bf16.mxu0 0
      %1719 = vmatmul.mubr.bf16.gmra.mxu0 %v1550
      %v1720 = vpop.f32.mrf.mxu0
      %v1721 = vadd.f32 0.0, %v1720
      %v1722 = vpop.f32.mrf.mxu0
      %v1723 = vpop.f32.mrf.mxu0
      %v1724 = vadd.f32 0.0, %v1723
      %v1725 = vpop.f32.mrf.mxu0
      %1726 = vmatprep.mubr.bf16.mxu0 0
      %1727 = vmatmul.mubr.bf16.gmra.mxu0 %v1553
      %v1728 = vpop.f32.mrf.mxu0
      %v1729 = vadd.f32 0.0, %v1728
      %v1730 = vpop.f32.mrf.mxu0
      %v1731 = vpop.f32.mrf.mxu0
      %v1732 = vadd.f32 0.0, %v1731
      %v1733 = vpop.f32.mrf.mxu0
      %1734 = vdwg.mxu0
      %v1735 = vadd.f32 %v1296, %v1593
      %v1736 = vadd.f32 %v1297, %v1596
      %v1737 = vadd.f32 %v1298, %v1601
      %v1738 = vadd.f32 %v1299, %v1604
      %v1739 = vadd.f32 %v1300, %v1609
      %v1740 = vadd.f32 %v1301, %v1612
      %v1741 = vadd.f32 %v1302, %v1617
      %v1742 = vadd.f32 %v1303, %v1620
      %v1743 = vadd.f32 %v1304, %v1625
      %v1744 = vadd.f32 %v1305, %v1628
      %v1745 = vadd.f32 %v1306, %v1633
      %v1746 = vadd.f32 %v1307, %v1636
      %v1747 = vadd.f32 %v1308, %v1641
      %v1748 = vadd.f32 %v1309, %v1644
      %v1749 = vadd.f32 %v1310, %v1649
      %v1750 = vadd.f32 %v1311, %v1652
      %v1751 = vadd.f32 %v1312, %v1657
      %v1752 = vadd.f32 %v1313, %v1660
      %v1753 = vadd.f32 %v1314, %v1665
      %v1754 = vadd.f32 %v1315, %v1668
      %v1755 = vadd.f32 %v1316, %v1673
      %v1756 = vadd.f32 %v1317, %v1676
      %v1757 = vadd.f32 %v1318, %v1681
      %v1758 = vadd.f32 %v1319, %v1684
      %v1759 = vadd.f32 %v1320, %v1689
      %v1760 = vadd.f32 %v1321, %v1692
      %v1761 = vadd.f32 %v1322, %v1697
      %v1762 = vadd.f32 %v1323, %v1700
      %v1763 = vadd.f32 %v1324, %v1705
      %v1764 = vadd.f32 %v1325, %v1708
      %v1765 = vadd.f32 %v1326, %v1713
      %v1766 = vadd.f32 %v1327, %v1716
      %v1767 = vadd.f32 %v1328, %v1721
      %v1768 = vadd.f32 %v1329, %v1724
      %v1769 = vadd.f32 %v1330, %v1729
      %v1770 = vadd.f32 %v1331, %v1732
      %v1771 = vld [vmem:[%s258 + $0x98] sm:$0x3]
      %s1772 = scalar_lea.vmem %s266, 16
      %v1773 = vld [vmem:[%s1772] sm:$0xf]
      %v1775 = vunpack.c.l.b16 %v1771
      %v1776 = vpack.c.b16 %v1775, %v1775
      %vm1777 = vsmask.f32 6400
      %v1779 = vshrl.u32 %v1445, 16
      %v1781 = vrot.slane %v1779, 1
      %v1782 = vshll.u32 %v1445, 16
      %v1784 = vrot.slane %v1782, 2
      %v1785 = vor.u32 %v1781, %v1784
      %v1787 = vshrl.u32 %v1446, 16
      %v1789 = vrot.slane %v1787, 1
      %v1790 = vshll.u32 %v1446, 16
      %v1792 = vrot.slane %v1790, 2
      %v1793 = vor.u32 %v1789, %v1792
      %v1794 = vsel %vm1777, %v1785, %v1793
      %v1796 = vshrl.u32 %v1447, 16
      %v1798 = vrot.slane %v1796, 1
      %v1799 = vshll.u32 %v1447, 16
      %v1801 = vrot.slane %v1799, 2
      %v1802 = vor.u32 %v1798, %v1801
      %v1803 = vsel %vm1777, %v1793, %v1802
      %v1805 = vshrl.u32 %v1448, 16
      %v1807 = vrot.slane %v1805, 1
      %v1808 = vshll.u32 %v1448, 16
      %v1810 = vrot.slane %v1808, 2
      %v1811 = vor.u32 %v1807, %v1810
      %v1812 = vsel %vm1777, %v1802, %v1811
      %v1814 = vshrl.u32 %v1449, 16
      %v1816 = vrot.slane %v1814, 1
      %v1817 = vshll.u32 %v1449, 16
      %v1819 = vrot.slane %v1817, 2
      %v1820 = vor.u32 %v1816, %v1819
      %v1821 = vsel %vm1777, %v1811, %v1820
      %v1823 = vshrl.u32 %v1450, 16
      %v1825 = vrot.slane %v1823, 1
      %v1826 = vshll.u32 %v1450, 16
      %v1828 = vrot.slane %v1826, 2
      %v1829 = vor.u32 %v1825, %v1828
      %v1830 = vsel %vm1777, %v1820, %v1829
      %v1832 = vshrl.u32 %v1451, 16
      %v1834 = vrot.slane %v1832, 1
      %v1835 = vshll.u32 %v1451, 16
      %v1837 = vrot.slane %v1835, 2
      %v1838 = vor.u32 %v1834, %v1837
      %v1839 = vsel %vm1777, %v1829, %v1838
      %v1841 = vshrl.u32 %v1452, 16
      %v1843 = vrot.slane %v1841, 1
      %v1844 = vshll.u32 %v1452, 16
      %v1846 = vrot.slane %v1844, 2
      %v1847 = vor.u32 %v1843, %v1846
      %v1848 = vsel %vm1777, %v1838, %v1847
      %v1850 = vshrl.u32 %v1453, 16
      %v1852 = vrot.slane %v1850, 1
      %v1853 = vshll.u32 %v1453, 16
      %v1855 = vrot.slane %v1853, 2
      %v1856 = vor.u32 %v1852, %v1855
      %v1857 = vsel %vm1777, %v1847, %v1856
      %v1859 = vshrl.u32 %v1454, 16
      %v1861 = vrot.slane %v1859, 1
      %v1862 = vshll.u32 %v1454, 16
      %v1864 = vrot.slane %v1862, 2
      %v1865 = vor.u32 %v1861, %v1864
      %v1866 = vsel %vm1777, %v1856, %v1865
      %v1868 = vshrl.u32 %v1455, 16
      %v1870 = vrot.slane %v1868, 1
      %v1871 = vshll.u32 %v1455, 16
      %v1873 = vrot.slane %v1871, 2
      %v1874 = vor.u32 %v1870, %v1873
      %v1875 = vsel %vm1777, %v1865, %v1874
      %v1877 = vshrl.u32 %v1456, 16
      %v1879 = vrot.slane %v1877, 1
      %v1880 = vshll.u32 %v1456, 16
      %v1882 = vrot.slane %v1880, 2
      %v1883 = vor.u32 %v1879, %v1882
      %v1884 = vsel %vm1777, %v1874, %v1883
      %v1886 = vshrl.u32 %v1457, 16
      %v1888 = vrot.slane %v1886, 1
      %v1889 = vshll.u32 %v1457, 16
      %v1891 = vrot.slane %v1889, 2
      %v1892 = vor.u32 %v1888, %v1891
      %v1893 = vsel %vm1777, %v1883, %v1892
      %v1895 = vshrl.u32 %v1458, 16
      %v1897 = vrot.slane %v1895, 1
      %v1898 = vshll.u32 %v1458, 16
      %v1900 = vrot.slane %v1898, 2
      %v1901 = vor.u32 %v1897, %v1900
      %v1902 = vsel %vm1777, %v1892, %v1901
      %v1904 = vshrl.u32 %v1459, 16
      %v1906 = vrot.slane %v1904, 1
      %v1907 = vshll.u32 %v1459, 16
      %v1909 = vrot.slane %v1907, 2
      %v1910 = vor.u32 %v1906, %v1909
      %v1911 = vsel %vm1777, %v1901, %v1910
      %v1913 = vshrl.u32 %v1460, 16
      %v1915 = vrot.slane %v1913, 1
      %v1916 = vshll.u32 %v1460, 16
      %v1918 = vrot.slane %v1916, 2
      %v1919 = vor.u32 %v1915, %v1918
      %v1920 = vsel %vm1777, %v1910, %v1919
      %v1922 = vshrl.u32 %v1461, 16
      %v1924 = vrot.slane %v1922, 1
      %v1925 = vshll.u32 %v1461, 16
      %v1927 = vrot.slane %v1925, 2
      %v1928 = vor.u32 %v1924, %v1927
      %v1929 = vsel %vm1777, %v1919, %v1928
      %v1931 = vshrl.u32 %v1462, 16
      %v1933 = vrot.slane %v1931, 1
      %v1934 = vshll.u32 %v1462, 16
      %v1936 = vrot.slane %v1934, 2
      %v1937 = vor.u32 %v1933, %v1936
      %v1938 = vsel %vm1777, %v1928, %v1937
      %v1940 = vshrl.u32 %v1776, 16
      %v1942 = vrot.slane %v1940, 1
      %v1943 = vshll.u32 %v1776, 16
      %v1945 = vrot.slane %v1943, 2
      %v1946 = vor.u32 %v1942, %v1945
      %v1947 = vsel %vm1777, %v1937, %v1946
      %v1949 = vsel %vm566, %v1794, 0
      %v1952 = vsel %vm566, %v1803, 0
      %v1955 = vsel %vm566, %v1812, 0
      %v1958 = vsel %vm566, %v1821, 0
      %v1961 = vsel %vm566, %v1830, 0
      %v1964 = vsel %vm566, %v1839, 0
      %v1967 = vsel %vm566, %v1848, 0
      %v1970 = vsel %vm566, %v1857, 0
      %v1973 = vsel %vm566, %v1866, 0
      %v1976 = vsel %vm566, %v1875, 0
      %v1979 = vsel %vm566, %v1884, 0
      %v1982 = vsel %vm566, %v1893, 0
      %v1985 = vsel %vm566, %v1902, 0
      %v1988 = vsel %vm566, %v1911, 0
      %v1991 = vsel %vm566, %v1920, 0
      %v1994 = vsel %vm566, %v1929, 0
      %v1997 = vsel %vm566, %v1938, 0
      %v2000 = vsel %vm566, %v1947, 0
      %v2003 = vsel %vm621, %v1773, 0
      %2005 = vmatprep.subr.bf16.mxu0 0
      %2006 = vmatpush1.bf16.msra.mxu0 0
      %2007 = vmatprep.subr.bf16.mxu0 0
      %2008 = vmatpush1.bf16.msra.mxu0 0
      %2009 = vmatprep.subr.bf16.mxu0 0
      %2010 = vmatpush1.bf16.msra.mxu0 0
      %2011 = vmatprep.subr.bf16.mxu0 0
      %2012 = vmatpush1.bf16.msra.mxu0 0
      %2013 = vmatprep.subr.bf16.mxu0 0
      %2014 = vmatpush1.bf16.msra.mxu0 0
      %2015 = vmatprep.subr.bf16.mxu0 0
      %2016 = vmatpush1.bf16.msra.mxu0 0
      %2017 = vmatprep.subr.bf16.mxu0 0
      %2018 = vmatpush1.bf16.msra.mxu0 0
      %2019 = vmatprep.subr.bf16.mxu0 0
      %2020 = vmatpush1.bf16.msra.mxu0 %v2003
      %2021 = vmatprep.subr.bf16.mxu0 0
      %2022 = vmatpush2.bf16.msra.mxu0 0
      %2023 = vmatprep.subr.bf16.mxu0 0
      %2024 = vmatpush2.bf16.msra.mxu0 0
      %2025 = vmatprep.subr.bf16.mxu0 0
      %2026 = vmatpush2.bf16.msra.mxu0 0
      %2027 = vmatprep.subr.bf16.mxu0 0
      %2028 = vmatpush2.bf16.msra.mxu0 0
      %2029 = vmatprep.subr.bf16.mxu0 0
      %2030 = vmatpush2.bf16.msra.mxu0 0
      %2031 = vmatprep.subr.bf16.mxu0 0
      %2032 = vmatpush2.bf16.msra.mxu0 0
      %2033 = vmatprep.subr.bf16.mxu0 0
      %2034 = vmatpush2.bf16.msra.mxu0 0
      %2035 = vmatprep.subr.bf16.mxu0 0
      %2036 = vmatpush2.bf16.msra.mxu0 0
      %2037 = vmatprep.mubr.bf16.mxu0 0
      %2038 = vmatmul.mubr.bf16.gmra.mxu0 %v1949
      %v2039 = vpop.f32.mrf.mxu0
      %v2040 = vadd.f32 0.0, %v2039
      %v2041 = vpop.f32.mrf.mxu0
      %v2042 = vpop.f32.mrf.mxu0
      %v2043 = vadd.f32 0.0, %v2042
      %v2044 = vpop.f32.mrf.mxu0
      %2045 = vmatprep.mubr.bf16.mxu0 0
      %2046 = vmatmul.mubr.bf16.gmra.mxu0 %v1952
      %v2047 = vpop.f32.mrf.mxu0
      %v2048 = vadd.f32 0.0, %v2047
      %v2049 = vpop.f32.mrf.mxu0
      %v2050 = vpop.f32.mrf.mxu0
      %v2051 = vadd.f32 0.0, %v2050
      %v2052 = vpop.f32.mrf.mxu0
      %2053 = vmatprep.mubr.bf16.mxu0 0
      %2054 = vmatmul.mubr.bf16.gmra.mxu0 %v1955
      %v2055 = vpop.f32.mrf.mxu0
      %v2056 = vadd.f32 0.0, %v2055
      %v2057 = vpop.f32.mrf.mxu0
      %v2058 = vpop.f32.mrf.mxu0
      %v2059 = vadd.f32 0.0, %v2058
      %v2060 = vpop.f32.mrf.mxu0
      %2061 = vmatprep.mubr.bf16.mxu0 0
      %2062 = vmatmul.mubr.bf16.gmra.mxu0 %v1958
      %v2063 = vpop.f32.mrf.mxu0
      %v2064 = vadd.f32 0.0, %v2063
      %v2065 = vpop.f32.mrf.mxu0
      %v2066 = vpop.f32.mrf.mxu0
      %v2067 = vadd.f32 0.0, %v2066
      %v2068 = vpop.f32.mrf.mxu0
      %2069 = vmatprep.mubr.bf16.mxu0 0
      %2070 = vmatmul.mubr.bf16.gmra.mxu0 %v1961
      %v2071 = vpop.f32.mrf.mxu0
      %v2072 = vadd.f32 0.0, %v2071
      %v2073 = vpop.f32.mrf.mxu0
      %v2074 = vpop.f32.mrf.mxu0
      %v2075 = vadd.f32 0.0, %v2074
      %v2076 = vpop.f32.mrf.mxu0
      %2077 = vmatprep.mubr.bf16.mxu0 0
      %2078 = vmatmul.mubr.bf16.gmra.mxu0 %v1964
      %v2079 = vpop.f32.mrf.mxu0
      %v2080 = vadd.f32 0.0, %v2079
      %v2081 = vpop.f32.mrf.mxu0
      %v2082 = vpop.f32.mrf.mxu0
      %v2083 = vadd.f32 0.0, %v2082
      %v2084 = vpop.f32.mrf.mxu0
      %2085 = vmatprep.mubr.bf16.mxu0 0
      %2086 = vmatmul.mubr.bf16.gmra.mxu0 %v1967
      %v2087 = vpop.f32.mrf.mxu0
      %v2088 = vadd.f32 0.0, %v2087
      %v2089 = vpop.f32.mrf.mxu0
      %v2090 = vpop.f32.mrf.mxu0
      %v2091 = vadd.f32 0.0, %v2090
      %v2092 = vpop.f32.mrf.mxu0
      %2093 = vmatprep.mubr.bf16.mxu0 0
      %2094 = vmatmul.mubr.bf16.gmra.mxu0 %v1970
      %v2095 = vpop.f32.mrf.mxu0
      %v2096 = vadd.f32 0.0, %v2095
      %v2097 = vpop.f32.mrf.mxu0
      %v2098 = vpop.f32.mrf.mxu0
      %v2099 = vadd.f32 0.0, %v2098
      %v2100 = vpop.f32.mrf.mxu0
      %2101 = vmatprep.mubr.bf16.mxu0 0
      %2102 = vmatmul.mubr.bf16.gmra.mxu0 %v1973
      %v2103 = vpop.f32.mrf.mxu0
      %v2104 = vadd.f32 0.0, %v2103
      %v2105 = vpop.f32.mrf.mxu0
      %v2106 = vpop.f32.mrf.mxu0
      %v2107 = vadd.f32 0.0, %v2106
      %v2108 = vpop.f32.mrf.mxu0
      %2109 = vmatprep.mubr.bf16.mxu0 0
      %2110 = vmatmul.mubr.bf16.gmra.mxu0 %v1976
      %v2111 = vpop.f32.mrf.mxu0
      %v2112 = vadd.f32 0.0, %v2111
      %v2113 = vpop.f32.mrf.mxu0
      %v2114 = vpop.f32.mrf.mxu0
      %v2115 = vadd.f32 0.0, %v2114
      %v2116 = vpop.f32.mrf.mxu0
      %2117 = vmatprep.mubr.bf16.mxu0 0
      %2118 = vmatmul.mubr.bf16.gmra.mxu0 %v1979
      %v2119 = vpop.f32.mrf.mxu0
      %v2120 = vadd.f32 0.0, %v2119
      %v2121 = vpop.f32.mrf.mxu0
      %v2122 = vpop.f32.mrf.mxu0
      %v2123 = vadd.f32 0.0, %v2122
      %v2124 = vpop.f32.mrf.mxu0
      %2125 = vmatprep.mubr.bf16.mxu0 0
      %2126 = vmatmul.mubr.bf16.gmra.mxu0 %v1982
      %v2127 = vpop.f32.mrf.mxu0
      %v2128 = vadd.f32 0.0, %v2127
      %v2129 = vpop.f32.mrf.mxu0
      %v2130 = vpop.f32.mrf.mxu0
      %v2131 = vadd.f32 0.0, %v2130
      %v2132 = vpop.f32.mrf.mxu0
      %2133 = vmatprep.mubr.bf16.mxu0 0
      %2134 = vmatmul.mubr.bf16.gmra.mxu0 %v1985
      %v2135 = vpop.f32.mrf.mxu0
      %v2136 = vadd.f32 0.0, %v2135
      %v2137 = vpop.f32.mrf.mxu0
      %v2138 = vpop.f32.mrf.mxu0
      %v2139 = vadd.f32 0.0, %v2138
      %v2140 = vpop.f32.mrf.mxu0
      %2141 = vmatprep.mubr.bf16.mxu0 0
      %2142 = vmatmul.mubr.bf16.gmra.mxu0 %v1988
      %v2143 = vpop.f32.mrf.mxu0
      %v2144 = vadd.f32 0.0, %v2143
      %v2145 = vpop.f32.mrf.mxu0
      %v2146 = vpop.f32.mrf.mxu0
      %v2147 = vadd.f32 0.0, %v2146
      %v2148 = vpop.f32.mrf.mxu0
      %2149 = vmatprep.mubr.bf16.mxu0 0
      %2150 = vmatmul.mubr.bf16.gmra.mxu0 %v1991
      %v2151 = vpop.f32.mrf.mxu0
      %v2152 = vadd.f32 0.0, %v2151
      %v2153 = vpop.f32.mrf.mxu0
      %v2154 = vpop.f32.mrf.mxu0
      %v2155 = vadd.f32 0.0, %v2154
      %v2156 = vpop.f32.mrf.mxu0
      %2157 = vmatprep.mubr.bf16.mxu0 0
      %2158 = vmatmul.mubr.bf16.gmra.mxu0 %v1994
      %v2159 = vpop.f32.mrf.mxu0
      %v2160 = vadd.f32 0.0, %v2159
      %v2161 = vpop.f32.mrf.mxu0
      %v2162 = vpop.f32.mrf.mxu0
      %v2163 = vadd.f32 0.0, %v2162
      %v2164 = vpop.f32.mrf.mxu0
      %2165 = vmatprep.mubr.bf16.mxu0 0
      %2166 = vmatmul.mubr.bf16.gmra.mxu0 %v1997
      %v2167 = vpop.f32.mrf.mxu0
      %v2168 = vadd.f32 0.0, %v2167
      %v2169 = vpop.f32.mrf.mxu0
      %v2170 = vpop.f32.mrf.mxu0
      %v2171 = vadd.f32 0.0, %v2170
      %v2172 = vpop.f32.mrf.mxu0
      %2173 = vmatprep.mubr.bf16.mxu0 0
      %2174 = vmatmul.mubr.bf16.gmra.mxu0 %v2000
      %v2175 = vpop.f32.mrf.mxu0
      %v2176 = vadd.f32 0.0, %v2175
      %v2177 = vpop.f32.mrf.mxu0
      %v2178 = vpop.f32.mrf.mxu0
      %v2179 = vadd.f32 0.0, %v2178
      %v2180 = vpop.f32.mrf.mxu0
      %2181 = vdwg.mxu0
      %v2182 = vadd.f32 %v1735, %v2040
      %v2183 = vadd.f32 %v1736, %v2043
      %v2184 = vadd.f32 %v1737, %v2048
      %v2185 = vadd.f32 %v1738, %v2051
      %v2186 = vadd.f32 %v1739, %v2056
      %v2187 = vadd.f32 %v1740, %v2059
      %v2188 = vadd.f32 %v1741, %v2064
      %v2189 = vadd.f32 %v1742, %v2067
      %v2190 = vadd.f32 %v1743, %v2072
      %v2191 = vadd.f32 %v1744, %v2075
      %v2192 = vadd.f32 %v1745, %v2080
      %v2193 = vadd.f32 %v1746, %v2083
      %v2194 = vadd.f32 %v1747, %v2088
      %v2195 = vadd.f32 %v1748, %v2091
      %v2196 = vadd.f32 %v1749, %v2096
      %v2197 = vadd.f32 %v1750, %v2099
      %v2198 = vadd.f32 %v1751, %v2104
      %v2199 = vadd.f32 %v1752, %v2107
      %v2200 = vadd.f32 %v1753, %v2112
      %v2201 = vadd.f32 %v1754, %v2115
      %v2202 = vadd.f32 %v1755, %v2120
      %v2203 = vadd.f32 %v1756, %v2123
      %v2204 = vadd.f32 %v1757, %v2128
      %v2205 = vadd.f32 %v1758, %v2131
      %v2206 = vadd.f32 %v1759, %v2136
      %v2207 = vadd.f32 %v1760, %v2139
      %v2208 = vadd.f32 %v1761, %v2144
      %v2209 = vadd.f32 %v1762, %v2147
      %v2210 = vadd.f32 %v1763, %v2152
      %v2211 = vadd.f32 %v1764, %v2155
      %v2212 = vadd.f32 %v1765, %v2160
      %v2213 = vadd.f32 %v1766, %v2163
      %v2214 = vadd.f32 %v1767, %v2168
      %v2215 = vadd.f32 %v1768, %v2171
      %v2216 = vadd.f32 %v1769, %v2176
      %v2217 = vadd.f32 %v1770, %v2179
      %v2218 = vld [vmem:[%s258 + $0x8] sm:$0xc]
      %s2219 = scalar_lea.vmem %s266, 20
      %v2220 = vld [vmem:[%s2219] sm:$0xf]
      %v2222 = vunpack.c.l.b16 %v2218
      %v2223 = vpack.c.b16 %v1409, %v2222
      %vm2224 = vcmask 1045504
      %v2225 = vrot.slane %v2223, 2
      %v2226 = vrot.slane %v1446, 2
      %v2227 = vsel %vm2224, %v2225, %v2226
      %v2228 = vrot.slane %v1447, 2
      %v2229 = vsel %vm2224, %v2226, %v2228
      %v2230 = vrot.slane %v1448, 2
      %v2231 = vsel %vm2224, %v2228, %v2230
      %v2232 = vrot.slane %v1449, 2
      %v2233 = vsel %vm2224, %v2230, %v2232
      %v2234 = vrot.slane %v1450, 2
      %v2235 = vsel %vm2224, %v2232, %v2234
      %v2236 = vrot.slane %v1451, 2
      %v2237 = vsel %vm2224, %v2234, %v2236
      %v2238 = vrot.slane %v1452, 2
      %v2239 = vsel %vm2224, %v2236, %v2238
      %v2240 = vrot.slane %v1453, 2
      %v2241 = vsel %vm2224, %v2238, %v2240
      %v2242 = vrot.slane %v1454, 2
      %v2243 = vsel %vm2224, %v2240, %v2242
      %v2244 = vrot.slane %v1455, 2
      %v2245 = vsel %vm2224, %v2242, %v2244
      %v2246 = vrot.slane %v1456, 2
      %v2247 = vsel %vm2224, %v2244, %v2246
      %v2248 = vrot.slane %v1457, 2
      %v2249 = vsel %vm2224, %v2246, %v2248
      %v2250 = vrot.slane %v1458, 2
      %v2251 = vsel %vm2224, %v2248, %v2250
      %v2252 = vrot.slane %v1459, 2
      %v2253 = vsel %vm2224, %v2250, %v2252
      %v2254 = vrot.slane %v1460, 2
      %v2255 = vsel %vm2224, %v2252, %v2254
      %v2256 = vrot.slane %v1461, 2
      %v2257 = vsel %vm2224, %v2254, %v2256
      %v2258 = vrot.slane %v1462, 2
      %v2259 = vsel %vm2224, %v2256, %v2258
      %v2260 = vrot.slane %v1776, 2
      %v2261 = vsel %vm2224, %v2258, %v2260
      %v2263 = vsel %vm566, %v2227, 0
      %v2266 = vsel %vm566, %v2229, 0
      %v2269 = vsel %vm566, %v2231, 0
      %v2272 = vsel %vm566, %v2233, 0
      %v2275 = vsel %vm566, %v2235, 0
      %v2278 = vsel %vm566, %v2237, 0
      %v2281 = vsel %vm566, %v2239, 0
      %v2284 = vsel %vm566, %v2241, 0
      %v2287 = vsel %vm566, %v2243, 0
      %v2290 = vsel %vm566, %v2245, 0
      %v2293 = vsel %vm566, %v2247, 0
      %v2296 = vsel %vm566, %v2249, 0
      %v2299 = vsel %vm566, %v2251, 0
      %v2302 = vsel %vm566, %v2253, 0
      %v2305 = vsel %vm566, %v2255, 0
      %v2308 = vsel %vm566, %v2257, 0
      %v2311 = vsel %vm566, %v2259, 0
      %v2314 = vsel %vm566, %v2261, 0
      %v2317 = vsel %vm621, %v2220, 0
      %2319 = vmatprep.subr.bf16.mxu0 0
      %2320 = vmatpush1.bf16.msra.mxu0 0
      %2321 = vmatprep.subr.bf16.mxu0 0
      %2322 = vmatpush1.bf16.msra.mxu0 0
      %2323 = vmatprep.subr.bf16.mxu0 0
      %2324 = vmatpush1.bf16.msra.mxu0 0
      %2325 = vmatprep.subr.bf16.mxu0 0
      %2326 = vmatpush1.bf16.msra.mxu0 0
      %2327 = vmatprep.subr.bf16.mxu0 0
      %2328 = vmatpush1.bf16.msra.mxu0 0
      %2329 = vmatprep.subr.bf16.mxu0 0
      %2330 = vmatpush1.bf16.msra.mxu0 0
      %2331 = vmatprep.subr.bf16.mxu0 0
      %2332 = vmatpush1.bf16.msra.mxu0 0
      %2333 = vmatprep.subr.bf16.mxu0 0
      %2334 = vmatpush1.bf16.msra.mxu0 %v2317
      %2335 = vmatprep.subr.bf16.mxu0 0
      %2336 = vmatpush2.bf16.msra.mxu0 0
      %2337 = vmatprep.subr.bf16.mxu0 0
      %2338 = vmatpush2.bf16.msra.mxu0 0
      %2339 = vmatprep.subr.bf16.mxu0 0
      %2340 = vmatpush2.bf16.msra.mxu0 0
      %2341 = vmatprep.subr.bf16.mxu0 0
      %2342 = vmatpush2.bf16.msra.mxu0 0
      %2343 = vmatprep.subr.bf16.mxu0 0
      %2344 = vmatpush2.bf16.msra.mxu0 0
      %2345 = vmatprep.subr.bf16.mxu0 0
      %2346 = vmatpush2.bf16.msra.mxu0 0
      %2347 = vmatprep.subr.bf16.mxu0 0
      %2348 = vmatpush2.bf16.msra.mxu0 0
      %2349 = vmatprep.subr.bf16.mxu0 0
      %2350 = vmatpush2.bf16.msra.mxu0 0
      %2351 = vmatprep.mubr.bf16.mxu0 0
      %2352 = vmatmul.mubr.bf16.gmra.mxu0 %v2263
      %v2353 = vpop.f32.mrf.mxu0
      %v2354 = vadd.f32 0.0, %v2353
      %v2355 = vpop.f32.mrf.mxu0
      %v2356 = vpop.f32.mrf.mxu0
      %v2357 = vadd.f32 0.0, %v2356
      %v2358 = vpop.f32.mrf.mxu0
      %2359 = vmatprep.mubr.bf16.mxu0 0
      %2360 = vmatmul.mubr.bf16.gmra.mxu0 %v2266
      %v2361 = vpop.f32.mrf.mxu0
      %v2362 = vadd.f32 0.0, %v2361
      %v2363 = vpop.f32.mrf.mxu0
      %v2364 = vpop.f32.mrf.mxu0
      %v2365 = vadd.f32 0.0, %v2364
      %v2366 = vpop.f32.mrf.mxu0
      %2367 = vmatprep.mubr.bf16.mxu0 0
      %2368 = vmatmul.mubr.bf16.gmra.mxu0 %v2269
      %v2369 = vpop.f32.mrf.mxu0
      %v2370 = vadd.f32 0.0, %v2369
      %v2371 = vpop.f32.mrf.mxu0
      %v2372 = vpop.f32.mrf.mxu0
      %v2373 = vadd.f32 0.0, %v2372
      %v2374 = vpop.f32.mrf.mxu0
      %2375 = vmatprep.mubr.bf16.mxu0 0
      %2376 = vmatmul.mubr.bf16.gmra.mxu0 %v2272
      %v2377 = vpop.f32.mrf.mxu0
      %v2378 = vadd.f32 0.0, %v2377
      %v2379 = vpop.f32.mrf.mxu0
      %v2380 = vpop.f32.mrf.mxu0
      %v2381 = vadd.f32 0.0, %v2380
      %v2382 = vpop.f32.mrf.mxu0
      %2383 = vmatprep.mubr.bf16.mxu0 0
      %2384 = vmatmul.mubr.bf16.gmra.mxu0 %v2275
      %v2385 = vpop.f32.mrf.mxu0
      %v2386 = vadd.f32 0.0, %v2385
      %v2387 = vpop.f32.mrf.mxu0
      %v2388 = vpop.f32.mrf.mxu0
      %v2389 = vadd.f32 0.0, %v2388
      %v2390 = vpop.f32.mrf.mxu0
      %2391 = vmatprep.mubr.bf16.mxu0 0
      %2392 = vmatmul.mubr.bf16.gmra.mxu0 %v2278
      %v2393 = vpop.f32.mrf.mxu0
      %v2394 = vadd.f32 0.0, %v2393
      %v2395 = vpop.f32.mrf.mxu0
      %v2396 = vpop.f32.mrf.mxu0
      %v2397 = vadd.f32 0.0, %v2396
      %v2398 = vpop.f32.mrf.mxu0
      %2399 = vmatprep.mubr.bf16.mxu0 0
      %2400 = vmatmul.mubr.bf16.gmra.mxu0 %v2281
      %v2401 = vpop.f32.mrf.mxu0
      %v2402 = vadd.f32 0.0, %v2401
      %v2403 = vpop.f32.mrf.mxu0
      %v2404 = vpop.f32.mrf.mxu0
      %v2405 = vadd.f32 0.0, %v2404
      %v2406 = vpop.f32.mrf.mxu0
      %2407 = vmatprep.mubr.bf16.mxu0 0
      %2408 = vmatmul.mubr.bf16.gmra.mxu0 %v2284
      %v2409 = vpop.f32.mrf.mxu0
      %v2410 = vadd.f32 0.0, %v2409
      %v2411 = vpop.f32.mrf.mxu0
      %v2412 = vpop.f32.mrf.mxu0
      %v2413 = vadd.f32 0.0, %v2412
      %v2414 = vpop.f32.mrf.mxu0
      %2415 = vmatprep.mubr.bf16.mxu0 0
      %2416 = vmatmul.mubr.bf16.gmra.mxu0 %v2287
      %v2417 = vpop.f32.mrf.mxu0
      %v2418 = vadd.f32 0.0, %v2417
      %v2419 = vpop.f32.mrf.mxu0
      %v2420 = vpop.f32.mrf.mxu0
      %v2421 = vadd.f32 0.0, %v2420
      %v2422 = vpop.f32.mrf.mxu0
      %2423 = vmatprep.mubr.bf16.mxu0 0
      %2424 = vmatmul.mubr.bf16.gmra.mxu0 %v2290
      %v2425 = vpop.f32.mrf.mxu0
      %v2426 = vadd.f32 0.0, %v2425
      %v2427 = vpop.f32.mrf.mxu0
      %v2428 = vpop.f32.mrf.mxu0
      %v2429 = vadd.f32 0.0, %v2428
      %v2430 = vpop.f32.mrf.mxu0
      %2431 = vmatprep.mubr.bf16.mxu0 0
      %2432 = vmatmul.mubr.bf16.gmra.mxu0 %v2293
      %v2433 = vpop.f32.mrf.mxu0
      %v2434 = vadd.f32 0.0, %v2433
      %v2435 = vpop.f32.mrf.mxu0
      %v2436 = vpop.f32.mrf.mxu0
      %v2437 = vadd.f32 0.0, %v2436
      %v2438 = vpop.f32.mrf.mxu0
      %2439 = vmatprep.mubr.bf16.mxu0 0
      %2440 = vmatmul.mubr.bf16.gmra.mxu0 %v2296
      %v2441 = vpop.f32.mrf.mxu0
      %v2442 = vadd.f32 0.0, %v2441
      %v2443 = vpop.f32.mrf.mxu0
      %v2444 = vpop.f32.mrf.mxu0
      %v2445 = vadd.f32 0.0, %v2444
      %v2446 = vpop.f32.mrf.mxu0
      %2447 = vmatprep.mubr.bf16.mxu0 0
      %2448 = vmatmul.mubr.bf16.gmra.mxu0 %v2299
      %v2449 = vpop.f32.mrf.mxu0
      %v2450 = vadd.f32 0.0, %v2449
      %v2451 = vpop.f32.mrf.mxu0
      %v2452 = vpop.f32.mrf.mxu0
      %v2453 = vadd.f32 0.0, %v2452
      %v2454 = vpop.f32.mrf.mxu0
      %2455 = vmatprep.mubr.bf16.mxu0 0
      %2456 = vmatmul.mubr.bf16.gmra.mxu0 %v2302
      %v2457 = vpop.f32.mrf.mxu0
      %v2458 = vadd.f32 0.0, %v2457
      %v2459 = vpop.f32.mrf.mxu0
      %v2460 = vpop.f32.mrf.mxu0
      %v2461 = vadd.f32 0.0, %v2460
      %v2462 = vpop.f32.mrf.mxu0
      %2463 = vmatprep.mubr.bf16.mxu0 0
      %2464 = vmatmul.mubr.bf16.gmra.mxu0 %v2305
      %v2465 = vpop.f32.mrf.mxu0
      %v2466 = vadd.f32 0.0, %v2465
      %v2467 = vpop.f32.mrf.mxu0
      %v2468 = vpop.f32.mrf.mxu0
      %v2469 = vadd.f32 0.0, %v2468
      %v2470 = vpop.f32.mrf.mxu0
      %2471 = vmatprep.mubr.bf16.mxu0 0
      %2472 = vmatmul.mubr.bf16.gmra.mxu0 %v2308
      %v2473 = vpop.f32.mrf.mxu0
      %v2474 = vadd.f32 0.0, %v2473
      %v2475 = vpop.f32.mrf.mxu0
      %v2476 = vpop.f32.mrf.mxu0
      %v2477 = vadd.f32 0.0, %v2476
      %v2478 = vpop.f32.mrf.mxu0
      %2479 = vmatprep.mubr.bf16.mxu0 0
      %2480 = vmatmul.mubr.bf16.gmra.mxu0 %v2311
      %v2481 = vpop.f32.mrf.mxu0
      %v2482 = vadd.f32 0.0, %v2481
      %v2483 = vpop.f32.mrf.mxu0
      %v2484 = vpop.f32.mrf.mxu0
      %v2485 = vadd.f32 0.0, %v2484
      %v2486 = vpop.f32.mrf.mxu0
      %2487 = vmatprep.mubr.bf16.mxu0 0
      %2488 = vmatmul.mubr.bf16.gmra.mxu0 %v2314
      %v2489 = vpop.f32.mrf.mxu0
      %v2490 = vadd.f32 0.0, %v2489
      %v2491 = vpop.f32.mrf.mxu0
      %v2492 = vpop.f32.mrf.mxu0
      %v2493 = vadd.f32 0.0, %v2492
      %v2494 = vpop.f32.mrf.mxu0
      %2495 = vdwg.mxu0
      %v2496 = vadd.f32 %v2182, %v2354
      %v2497 = vadd.f32 %v2183, %v2357
      %v2498 = vadd.f32 %v2184, %v2362
      %v2499 = vadd.f32 %v2185, %v2365
      %v2500 = vadd.f32 %v2186, %v2370
      %v2501 = vadd.f32 %v2187, %v2373
      %v2502 = vadd.f32 %v2188, %v2378
      %v2503 = vadd.f32 %v2189, %v2381
      %v2504 = vadd.f32 %v2190, %v2386
      %v2505 = vadd.f32 %v2191, %v2389
      %v2506 = vadd.f32 %v2192, %v2394
      %v2507 = vadd.f32 %v2193, %v2397
      %v2508 = vadd.f32 %v2194, %v2402
      %v2509 = vadd.f32 %v2195, %v2405
      %v2510 = vadd.f32 %v2196, %v2410
      %v2511 = vadd.f32 %v2197, %v2413
      %v2512 = vadd.f32 %v2198, %v2418
      %v2513 = vadd.f32 %v2199, %v2421
      %v2514 = vadd.f32 %v2200, %v2426
      %v2515 = vadd.f32 %v2201, %v2429
      %v2516 = vadd.f32 %v2202, %v2434
      %v2517 = vadd.f32 %v2203, %v2437
      %v2518 = vadd.f32 %v2204, %v2442
      %v2519 = vadd.f32 %v2205, %v2445
      %v2520 = vadd.f32 %v2206, %v2450
      %v2521 = vadd.f32 %v2207, %v2453
      %v2522 = vadd.f32 %v2208, %v2458
      %v2523 = vadd.f32 %v2209, %v2461
      %v2524 = vadd.f32 %v2210, %v2466
      %v2525 = vadd.f32 %v2211, %v2469
      %v2526 = vadd.f32 %v2212, %v2474
      %v2527 = vadd.f32 %v2213, %v2477
      %v2528 = vadd.f32 %v2214, %v2482
      %v2529 = vadd.f32 %v2215, %v2485
      %v2530 = vadd.f32 %v2216, %v2490
      %v2531 = vadd.f32 %v2217, %v2493
      %v2532 = vld [vmem:[%s258 + $0x10] sm:$0xc]
      %v2533 = vld [vmem:[%s258 + $0x14] sm:$0xf]
      %v2534 = vld [vmem:[%s258 + $0x18] sm:$0xf]
      %v2535 = vld [vmem:[%s258 + $0x1c] sm:$0xf]
      %v2536 = vld [vmem:[%s258 + $0x20] sm:$0xf]
      %v2537 = vld [vmem:[%s258 + $0x24] sm:$0xf]
      %v2538 = vld [vmem:[%s258 + $0x28] sm:$0xf]
      %v2539 = vld [vmem:[%s258 + $0x2c] sm:$0xf]
      %v2540 = vld [vmem:[%s258 + $0x30] sm:$0xf]
      %v2541 = vld [vmem:[%s258 + $0x34] sm:$0xf]
      %v2542 = vld [vmem:[%s258 + $0x38] sm:$0xf]
      %v2543 = vld [vmem:[%s258 + $0x3c] sm:$0xf]
      %v2544 = vld [vmem:[%s258 + $0x40] sm:$0xf]
      %v2545 = vld [vmem:[%s258 + $0x44] sm:$0xf]
      %v2546 = vld [vmem:[%s258 + $0x48] sm:$0xf]
      %v2547 = vld [vmem:[%s258 + $0x4c] sm:$0xf]
      %v2548 = vld [vmem:[%s258 + $0x50] sm:$0xf]
      %v2549 = vld [vmem:[%s258 + $0x54] sm:$0xf]
      %v2550 = vld [vmem:[%s258 + $0x58] sm:$0xf]
      %v2551 = vld [vmem:[%s258 + $0x5c] sm:$0xf]
      %v2552 = vld [vmem:[%s258 + $0x60] sm:$0xf]
      %v2553 = vld [vmem:[%s258 + $0x64] sm:$0xf]
      %v2554 = vld [vmem:[%s258 + $0x68] sm:$0xf]
      %v2555 = vld [vmem:[%s258 + $0x6c] sm:$0xf]
      %v2556 = vld [vmem:[%s258 + $0x70] sm:$0xf]
      %v2557 = vld [vmem:[%s258 + $0x74] sm:$0xf]
      %v2558 = vld [vmem:[%s258 + $0x78] sm:$0xf]
      %v2559 = vld [vmem:[%s258 + $0x7c] sm:$0xf]
      %v2560 = vld [vmem:[%s258 + $0x80] sm:$0xf]
      %v2561 = vld [vmem:[%s258 + $0x84] sm:$0xf]
      %v2562 = vld [vmem:[%s258 + $0x88] sm:$0xf]
      %v2563 = vld [vmem:[%s258 + $0x8c] sm:$0xf]
      %v2564 = vld [vmem:[%s258 + $0x90] sm:$0xf]
      %v2565 = vld [vmem:[%s258 + $0x94] sm:$0xf]
      %v2566 = vld [vmem:[%s258 + $0x98] sm:$0xf]
      %v2567 = vld [vmem:[%s258 + $0x9c] sm:$0xf]
      %v2568 = vld [vmem:[%s258 + $0xa0] sm:$0x3]
      %s2569 = scalar_lea.vmem %s266, 24
      %v2570 = vld [vmem:[%s2569] sm:$0xf]
      %v2608 = vunpack.c.l.b16 %v2532
      %v2609 = vunpack.c.l.b16 %v2533
      %v2610 = vunpack.c.l.b16 %v2534
      %v2611 = vunpack.c.l.b16 %v2535
      %v2612 = vunpack.c.l.b16 %v2536
      %v2613 = vunpack.c.l.b16 %v2537
      %v2614 = vunpack.c.l.b16 %v2538
      %v2615 = vunpack.c.l.b16 %v2539
      %v2616 = vunpack.c.l.b16 %v2540
      %v2617 = vunpack.c.l.b16 %v2541
      %v2618 = vunpack.c.l.b16 %v2542
      %v2619 = vunpack.c.l.b16 %v2543
      %v2620 = vunpack.c.l.b16 %v2544
      %v2621 = vunpack.c.l.b16 %v2545
      %v2622 = vunpack.c.l.b16 %v2546
      %v2623 = vunpack.c.l.b16 %v2547
      %v2624 = vunpack.c.l.b16 %v2548
      %v2625 = vunpack.c.l.b16 %v2549
      %v2626 = vunpack.c.l.b16 %v2550
      %v2627 = vunpack.c.l.b16 %v2551
      %v2628 = vunpack.c.l.b16 %v2552
      %v2629 = vunpack.c.l.b16 %v2553
      %v2630 = vunpack.c.l.b16 %v2554
      %v2631 = vunpack.c.l.b16 %v2555
      %v2632 = vunpack.c.l.b16 %v2556
      %v2633 = vunpack.c.l.b16 %v2557
      %v2634 = vunpack.c.l.b16 %v2558
      %v2635 = vunpack.c.l.b16 %v2559
      %v2636 = vunpack.c.l.b16 %v2560
      %v2637 = vunpack.c.l.b16 %v2561
      %v2638 = vunpack.c.l.b16 %v2562
      %v2639 = vunpack.c.l.b16 %v2563
      %v2640 = vunpack.c.l.b16 %v2564
      %v2641 = vunpack.c.l.b16 %v2565
      %v2642 = vunpack.c.l.b16 %v2566
      %v2643 = vunpack.c.l.b16 %v2567
      %v2644 = vunpack.c.l.b16 %v2568
      %v2645 = vpack.c.b16 %v2609, %v2608
      %v2646 = vpack.c.b16 %v2611, %v2610
      %v2647 = vpack.c.b16 %v2613, %v2612
      %v2648 = vpack.c.b16 %v2615, %v2614
      %v2649 = vpack.c.b16 %v2617, %v2616
      %v2650 = vpack.c.b16 %v2619, %v2618
      %v2651 = vpack.c.b16 %v2621, %v2620
      %v2652 = vpack.c.b16 %v2623, %v2622
      %v2653 = vpack.c.b16 %v2625, %v2624
      %v2654 = vpack.c.b16 %v2627, %v2626
      %v2655 = vpack.c.b16 %v2629, %v2628
      %v2656 = vpack.c.b16 %v2631, %v2630
      %v2657 = vpack.c.b16 %v2633, %v2632
      %v2658 = vpack.c.b16 %v2635, %v2634
      %v2659 = vpack.c.b16 %v2637, %v2636
      %v2660 = vpack.c.b16 %v2639, %v2638
      %v2661 = vpack.c.b16 %v2641, %v2640
      %v2662 = vpack.c.b16 %v2643, %v2642
      %v2663 = vpack.c.b16 %v2644, %v2644
      %v2664 = vrot.slane %v2645, 2
      %v2665 = vrot.slane %v2646, 2
      %v2666 = vsel %vm2224, %v2664, %v2665
      %v2667 = vrot.slane %v2647, 2
      %v2668 = vsel %vm2224, %v2665, %v2667
      %v2669 = vrot.slane %v2648, 2
      %v2670 = vsel %vm2224, %v2667, %v2669
      %v2671 = vrot.slane %v2649, 2
      %v2672 = vsel %vm2224, %v2669, %v2671
      %v2673 = vrot.slane %v2650, 2
      %v2674 = vsel %vm2224, %v2671, %v2673
      %v2675 = vrot.slane %v2651, 2
      %v2676 = vsel %vm2224, %v2673, %v2675
      %v2677 = vrot.slane %v2652, 2
      %v2678 = vsel %vm2224, %v2675, %v2677
      %v2679 = vrot.slane %v2653, 2
      %v2680 = vsel %vm2224, %v2677, %v2679
      %v2681 = vrot.slane %v2654, 2
      %v2682 = vsel %vm2224, %v2679, %v2681
      %v2683 = vrot.slane %v2655, 2
      %v2684 = vsel %vm2224, %v2681, %v2683
      %v2685 = vrot.slane %v2656, 2
      %v2686 = vsel %vm2224, %v2683, %v2685
      %v2687 = vrot.slane %v2657, 2
      %v2688 = vsel %vm2224, %v2685, %v2687
      %v2689 = vrot.slane %v2658, 2
      %v2690 = vsel %vm2224, %v2687, %v2689
      %v2691 = vrot.slane %v2659, 2
      %v2692 = vsel %vm2224, %v2689, %v2691
      %v2693 = vrot.slane %v2660, 2
      %v2694 = vsel %vm2224, %v2691, %v2693
      %v2695 = vrot.slane %v2661, 2
      %v2696 = vsel %vm2224, %v2693, %v2695
      %v2697 = vrot.slane %v2662, 2
      %v2698 = vsel %vm2224, %v2695, %v2697
      %v2699 = vrot.slane %v2663, 2
      %v2700 = vsel %vm2224, %v2697, %v2699
      %v2702 = vsel %vm566, %v2666, 0
      %v2705 = vsel %vm566, %v2668, 0
      %v2708 = vsel %vm566, %v2670, 0
      %v2711 = vsel %vm566, %v2672, 0
      %v2714 = vsel %vm566, %v2674, 0
      %v2717 = vsel %vm566, %v2676, 0
      %v2720 = vsel %vm566, %v2678, 0
      %v2723 = vsel %vm566, %v2680, 0
      %v2726 = vsel %vm566, %v2682, 0
      %v2729 = vsel %vm566, %v2684, 0
      %v2732 = vsel %vm566, %v2686, 0
      %v2735 = vsel %vm566, %v2688, 0
      %v2738 = vsel %vm566, %v2690, 0
      %v2741 = vsel %vm566, %v2692, 0
      %v2744 = vsel %vm566, %v2694, 0
      %v2747 = vsel %vm566, %v2696, 0
      %v2750 = vsel %vm566, %v2698, 0
      %v2753 = vsel %vm566, %v2700, 0
      %v2756 = vsel %vm621, %v2570, 0
      %2758 = vmatprep.subr.bf16.mxu0 0
      %2759 = vmatpush1.bf16.msra.mxu0 0
      %2760 = vmatprep.subr.bf16.mxu0 0
      %2761 = vmatpush1.bf16.msra.mxu0 0
      %2762 = vmatprep.subr.bf16.mxu0 0
      %2763 = vmatpush1.bf16.msra.mxu0 0
      %2764 = vmatprep.subr.bf16.mxu0 0
      %2765 = vmatpush1.bf16.msra.mxu0 0
      %2766 = vmatprep.subr.bf16.mxu0 0
      %2767 = vmatpush1.bf16.msra.mxu0 0
      %2768 = vmatprep.subr.bf16.mxu0 0
      %2769 = vmatpush1.bf16.msra.mxu0 0
      %2770 = vmatprep.subr.bf16.mxu0 0
      %2771 = vmatpush1.bf16.msra.mxu0 0
      %2772 = vmatprep.subr.bf16.mxu0 0
      %2773 = vmatpush1.bf16.msra.mxu0 %v2756
      %2774 = vmatprep.subr.bf16.mxu0 0
      %2775 = vmatpush2.bf16.msra.mxu0 0
      %2776 = vmatprep.subr.bf16.mxu0 0
      %2777 = vmatpush2.bf16.msra.mxu0 0
      %2778 = vmatprep.subr.bf16.mxu0 0
      %2779 = vmatpush2.bf16.msra.mxu0 0
      %2780 = vmatprep.subr.bf16.mxu0 0
      %2781 = vmatpush2.bf16.msra.mxu0 0
      %2782 = vmatprep.subr.bf16.mxu0 0
      %2783 = vmatpush2.bf16.msra.mxu0 0
      %2784 = vmatprep.subr.bf16.mxu0 0
      %2785 = vmatpush2.bf16.msra.mxu0 0
      %2786 = vmatprep.subr.bf16.mxu0 0
      %2787 = vmatpush2.bf16.msra.mxu0 0
      %2788 = vmatprep.subr.bf16.mxu0 0
      %2789 = vmatpush2.bf16.msra.mxu0 0
      %2790 = vmatprep.mubr.bf16.mxu0 0
      %2791 = vmatmul.mubr.bf16.gmra.mxu0 %v2702
      %v2792 = vpop.f32.mrf.mxu0
      %v2793 = vadd.f32 0.0, %v2792
      %v2794 = vpop.f32.mrf.mxu0
      %v2795 = vpop.f32.mrf.mxu0
      %v2796 = vadd.f32 0.0, %v2795
      %v2797 = vpop.f32.mrf.mxu0
      %2798 = vmatprep.mubr.bf16.mxu0 0
      %2799 = vmatmul.mubr.bf16.gmra.mxu0 %v2705
      %v2800 = vpop.f32.mrf.mxu0
      %v2801 = vadd.f32 0.0, %v2800
      %v2802 = vpop.f32.mrf.mxu0
      %v2803 = vpop.f32.mrf.mxu0
      %v2804 = vadd.f32 0.0, %v2803
      %v2805 = vpop.f32.mrf.mxu0
      %2806 = vmatprep.mubr.bf16.mxu0 0
      %2807 = vmatmul.mubr.bf16.gmra.mxu0 %v2708
      %v2808 = vpop.f32.mrf.mxu0
      %v2809 = vadd.f32 0.0, %v2808
      %v2810 = vpop.f32.mrf.mxu0
      %v2811 = vpop.f32.mrf.mxu0
      %v2812 = vadd.f32 0.0, %v2811
      %v2813 = vpop.f32.mrf.mxu0
      %2814 = vmatprep.mubr.bf16.mxu0 0
      %2815 = vmatmul.mubr.bf16.gmra.mxu0 %v2711
      %v2816 = vpop.f32.mrf.mxu0
      %v2817 = vadd.f32 0.0, %v2816
      %v2818 = vpop.f32.mrf.mxu0
      %v2819 = vpop.f32.mrf.mxu0
      %v2820 = vadd.f32 0.0, %v2819
      %v2821 = vpop.f32.mrf.mxu0
      %2822 = vmatprep.mubr.bf16.mxu0 0
      %2823 = vmatmul.mubr.bf16.gmra.mxu0 %v2714
      %v2824 = vpop.f32.mrf.mxu0
      %v2825 = vadd.f32 0.0, %v2824
      %v2826 = vpop.f32.mrf.mxu0
      %v2827 = vpop.f32.mrf.mxu0
      %v2828 = vadd.f32 0.0, %v2827
      %v2829 = vpop.f32.mrf.mxu0
      %2830 = vmatprep.mubr.bf16.mxu0 0
      %2831 = vmatmul.mubr.bf16.gmra.mxu0 %v2717
      %v2832 = vpop.f32.mrf.mxu0
      %v2833 = vadd.f32 0.0, %v2832
      %v2834 = vpop.f32.mrf.mxu0
      %v2835 = vpop.f32.mrf.mxu0
      %v2836 = vadd.f32 0.0, %v2835
      %v2837 = vpop.f32.mrf.mxu0
      %2838 = vmatprep.mubr.bf16.mxu0 0
      %2839 = vmatmul.mubr.bf16.gmra.mxu0 %v2720
      %v2840 = vpop.f32.mrf.mxu0
      %v2841 = vadd.f32 0.0, %v2840
      %v2842 = vpop.f32.mrf.mxu0
      %v2843 = vpop.f32.mrf.mxu0
      %v2844 = vadd.f32 0.0, %v2843
      %v2845 = vpop.f32.mrf.mxu0
      %2846 = vmatprep.mubr.bf16.mxu0 0
      %2847 = vmatmul.mubr.bf16.gmra.mxu0 %v2723
      %v2848 = vpop.f32.mrf.mxu0
      %v2849 = vadd.f32 0.0, %v2848
      %v2850 = vpop.f32.mrf.mxu0
      %v2851 = vpop.f32.mrf.mxu0
      %v2852 = vadd.f32 0.0, %v2851
      %v2853 = vpop.f32.mrf.mxu0
      %2854 = vmatprep.mubr.bf16.mxu0 0
      %2855 = vmatmul.mubr.bf16.gmra.mxu0 %v2726
      %v2856 = vpop.f32.mrf.mxu0
      %v2857 = vadd.f32 0.0, %v2856
      %v2858 = vpop.f32.mrf.mxu0
      %v2859 = vpop.f32.mrf.mxu0
      %v2860 = vadd.f32 0.0, %v2859
      %v2861 = vpop.f32.mrf.mxu0
      %2862 = vmatprep.mubr.bf16.mxu0 0
      %2863 = vmatmul.mubr.bf16.gmra.mxu0 %v2729
      %v2864 = vpop.f32.mrf.mxu0
      %v2865 = vadd.f32 0.0, %v2864
      %v2866 = vpop.f32.mrf.mxu0
      %v2867 = vpop.f32.mrf.mxu0
      %v2868 = vadd.f32 0.0, %v2867
      %v2869 = vpop.f32.mrf.mxu0
      %2870 = vmatprep.mubr.bf16.mxu0 0
      %2871 = vmatmul.mubr.bf16.gmra.mxu0 %v2732
      %v2872 = vpop.f32.mrf.mxu0
      %v2873 = vadd.f32 0.0, %v2872
      %v2874 = vpop.f32.mrf.mxu0
      %v2875 = vpop.f32.mrf.mxu0
      %v2876 = vadd.f32 0.0, %v2875
      %v2877 = vpop.f32.mrf.mxu0
      %2878 = vmatprep.mubr.bf16.mxu0 0
      %2879 = vmatmul.mubr.bf16.gmra.mxu0 %v2735
      %v2880 = vpop.f32.mrf.mxu0
      %v2881 = vadd.f32 0.0, %v2880
      %v2882 = vpop.f32.mrf.mxu0
      %v2883 = vpop.f32.mrf.mxu0
      %v2884 = vadd.f32 0.0, %v2883
      %v2885 = vpop.f32.mrf.mxu0
      %2886 = vmatprep.mubr.bf16.mxu0 0
      %2887 = vmatmul.mubr.bf16.gmra.mxu0 %v2738
      %v2888 = vpop.f32.mrf.mxu0
      %v2889 = vadd.f32 0.0, %v2888
      %v2890 = vpop.f32.mrf.mxu0
      %v2891 = vpop.f32.mrf.mxu0
      %v2892 = vadd.f32 0.0, %v2891
      %v2893 = vpop.f32.mrf.mxu0
      %2894 = vmatprep.mubr.bf16.mxu0 0
      %2895 = vmatmul.mubr.bf16.gmra.mxu0 %v2741
      %v2896 = vpop.f32.mrf.mxu0
      %v2897 = vadd.f32 0.0, %v2896
      %v2898 = vpop.f32.mrf.mxu0
      %v2899 = vpop.f32.mrf.mxu0
      %v2900 = vadd.f32 0.0, %v2899
      %v2901 = vpop.f32.mrf.mxu0
      %2902 = vmatprep.mubr.bf16.mxu0 0
      %2903 = vmatmul.mubr.bf16.gmra.mxu0 %v2744
      %v2904 = vpop.f32.mrf.mxu0
      %v2905 = vadd.f32 0.0, %v2904
      %v2906 = vpop.f32.mrf.mxu0
      %v2907 = vpop.f32.mrf.mxu0
      %v2908 = vadd.f32 0.0, %v2907
      %v2909 = vpop.f32.mrf.mxu0
      %2910 = vmatprep.mubr.bf16.mxu0 0
      %2911 = vmatmul.mubr.bf16.gmra.mxu0 %v2747
      %v2912 = vpop.f32.mrf.mxu0
      %v2913 = vadd.f32 0.0, %v2912
      %v2914 = vpop.f32.mrf.mxu0
      %v2915 = vpop.f32.mrf.mxu0
      %v2916 = vadd.f32 0.0, %v2915
      %v2917 = vpop.f32.mrf.mxu0
      %2918 = vmatprep.mubr.bf16.mxu0 0
      %2919 = vmatmul.mubr.bf16.gmra.mxu0 %v2750
      %v2920 = vpop.f32.mrf.mxu0
      %v2921 = vadd.f32 0.0, %v2920
      %v2922 = vpop.f32.mrf.mxu0
      %v2923 = vpop.f32.mrf.mxu0
      %v2924 = vadd.f32 0.0, %v2923
      %v2925 = vpop.f32.mrf.mxu0
      %2926 = vmatprep.mubr.bf16.mxu0 0
      %2927 = vmatmul.mubr.bf16.gmra.mxu0 %v2753
      %v2928 = vpop.f32.mrf.mxu0
      %v2929 = vadd.f32 0.0, %v2928
      %v2930 = vpop.f32.mrf.mxu0
      %v2931 = vpop.f32.mrf.mxu0
      %v2932 = vadd.f32 0.0, %v2931
      %v2933 = vpop.f32.mrf.mxu0
      %2934 = vdwg.mxu0
      %v2935 = vadd.f32 %v2496, %v2793
      %v2936 = vadd.f32 %v2497, %v2796
      %v2937 = vadd.f32 %v2498, %v2801
      %v2938 = vadd.f32 %v2499, %v2804
      %v2939 = vadd.f32 %v2500, %v2809
      %v2940 = vadd.f32 %v2501, %v2812
      %v2941 = vadd.f32 %v2502, %v2817
      %v2942 = vadd.f32 %v2503, %v2820
      %v2943 = vadd.f32 %v2504, %v2825
      %v2944 = vadd.f32 %v2505, %v2828
      %v2945 = vadd.f32 %v2506, %v2833
      %v2946 = vadd.f32 %v2507, %v2836
      %v2947 = vadd.f32 %v2508, %v2841
      %v2948 = vadd.f32 %v2509, %v2844
      %v2949 = vadd.f32 %v2510, %v2849
      %v2950 = vadd.f32 %v2511, %v2852
      %v2951 = vadd.f32 %v2512, %v2857
      %v2952 = vadd.f32 %v2513, %v2860
      %v2953 = vadd.f32 %v2514, %v2865
      %v2954 = vadd.f32 %v2515, %v2868
      %v2955 = vadd.f32 %v2516, %v2873
      %v2956 = vadd.f32 %v2517, %v2876
      %v2957 = vadd.f32 %v2518, %v2881
      %v2958 = vadd.f32 %v2519, %v2884
      %v2959 = vadd.f32 %v2520, %v2889
      %v2960 = vadd.f32 %v2521, %v2892
      %v2961 = vadd.f32 %v2522, %v2897
      %v2962 = vadd.f32 %v2523, %v2900
      %v2963 = vadd.f32 %v2524, %v2905
      %v2964 = vadd.f32 %v2525, %v2908
      %v2965 = vadd.f32 %v2526, %v2913
      %v2966 = vadd.f32 %v2527, %v2916
      %v2967 = vadd.f32 %v2528, %v2921
      %v2968 = vadd.f32 %v2529, %v2924
      %v2969 = vadd.f32 %v2530, %v2929
      %v2970 = vadd.f32 %v2531, %v2932
      %v2971 = vld [vmem:[%s258 + $0xa0] sm:$0x7]
      %s2972 = scalar_lea.vmem %s266, 28
      %v2973 = vld [vmem:[%s2972] sm:$0xf]
      %v2975 = vunpack.c.l.b16 %v2971
      %v2976 = vpack.c.b16 %v2975, %v2975
      %vm2977 = vsmask.f32 5376
      %v2979 = vshrl.u32 %v2645, 16
      %v2981 = vrot.slane %v2979, 2
      %v2982 = vshll.u32 %v2645, 16
      %v2984 = vrot.slane %v2982, 3
      %v2985 = vor.u32 %v2981, %v2984
      %v2987 = vshrl.u32 %v2646, 16
      %v2989 = vrot.slane %v2987, 2
      %v2990 = vshll.u32 %v2646, 16
      %v2992 = vrot.slane %v2990, 3
      %v2993 = vor.u32 %v2989, %v2992
      %v2994 = vsel %vm2977, %v2985, %v2993
      %v2996 = vshrl.u32 %v2647, 16
      %v2998 = vrot.slane %v2996, 2
      %v2999 = vshll.u32 %v2647, 16
      %v3001 = vrot.slane %v2999, 3
      %v3002 = vor.u32 %v2998, %v3001
      %v3003 = vsel %vm2977, %v2993, %v3002
      %v3005 = vshrl.u32 %v2648, 16
      %v3007 = vrot.slane %v3005, 2
      %v3008 = vshll.u32 %v2648, 16
      %v3010 = vrot.slane %v3008, 3
      %v3011 = vor.u32 %v3007, %v3010
      %v3012 = vsel %vm2977, %v3002, %v3011
      %v3014 = vshrl.u32 %v2649, 16
      %v3016 = vrot.slane %v3014, 2
      %v3017 = vshll.u32 %v2649, 16
      %v3019 = vrot.slane %v3017, 3
      %v3020 = vor.u32 %v3016, %v3019
      %v3021 = vsel %vm2977, %v3011, %v3020
      %v3023 = vshrl.u32 %v2650, 16
      %v3025 = vrot.slane %v3023, 2
      %v3026 = vshll.u32 %v2650, 16
      %v3028 = vrot.slane %v3026, 3
      %v3029 = vor.u32 %v3025, %v3028
      %v3030 = vsel %vm2977, %v3020, %v3029
      %v3032 = vshrl.u32 %v2651, 16
      %v3034 = vrot.slane %v3032, 2
      %v3035 = vshll.u32 %v2651, 16
      %v3037 = vrot.slane %v3035, 3
      %v3038 = vor.u32 %v3034, %v3037
      %v3039 = vsel %vm2977, %v3029, %v3038
      %v3041 = vshrl.u32 %v2652, 16
      %v3043 = vrot.slane %v3041, 2
      %v3044 = vshll.u32 %v2652, 16
      %v3046 = vrot.slane %v3044, 3
      %v3047 = vor.u32 %v3043, %v3046
      %v3048 = vsel %vm2977, %v3038, %v3047
      %v3050 = vshrl.u32 %v2653, 16
      %v3052 = vrot.slane %v3050, 2
      %v3053 = vshll.u32 %v2653, 16
      %v3055 = vrot.slane %v3053, 3
      %v3056 = vor.u32 %v3052, %v3055
      %v3057 = vsel %vm2977, %v3047, %v3056
      %v3059 = vshrl.u32 %v2654, 16
      %v3061 = vrot.slane %v3059, 2
      %v3062 = vshll.u32 %v2654, 16
      %v3064 = vrot.slane %v3062, 3
      %v3065 = vor.u32 %v3061, %v3064
      %v3066 = vsel %vm2977, %v3056, %v3065
      %v3068 = vshrl.u32 %v2655, 16
      %v3070 = vrot.slane %v3068, 2
      %v3071 = vshll.u32 %v2655, 16
      %v3073 = vrot.slane %v3071, 3
      %v3074 = vor.u32 %v3070, %v3073
      %v3075 = vsel %vm2977, %v3065, %v3074
      %v3077 = vshrl.u32 %v2656, 16
      %v3079 = vrot.slane %v3077, 2
      %v3080 = vshll.u32 %v2656, 16
      %v3082 = vrot.slane %v3080, 3
      %v3083 = vor.u32 %v3079, %v3082
      %v3084 = vsel %vm2977, %v3074, %v3083
      %v3086 = vshrl.u32 %v2657, 16
      %v3088 = vrot.slane %v3086, 2
      %v3089 = vshll.u32 %v2657, 16
      %v3091 = vrot.slane %v3089, 3
      %v3092 = vor.u32 %v3088, %v3091
      %v3093 = vsel %vm2977, %v3083, %v3092
      %v3095 = vshrl.u32 %v2658, 16
      %v3097 = vrot.slane %v3095, 2
      %v3098 = vshll.u32 %v2658, 16
      %v3100 = vrot.slane %v3098, 3
      %v3101 = vor.u32 %v3097, %v3100
      %v3102 = vsel %vm2977, %v3092, %v3101
      %v3104 = vshrl.u32 %v2659, 16
      %v3106 = vrot.slane %v3104, 2
      %v3107 = vshll.u32 %v2659, 16
      %v3109 = vrot.slane %v3107, 3
      %v3110 = vor.u32 %v3106, %v3109
      %v3111 = vsel %vm2977, %v3101, %v3110
      %v3113 = vshrl.u32 %v2660, 16
      %v3115 = vrot.slane %v3113, 2
      %v3116 = vshll.u32 %v2660, 16
      %v3118 = vrot.slane %v3116, 3
      %v3119 = vor.u32 %v3115, %v3118
      %v3120 = vsel %vm2977, %v3110, %v3119
      %v3122 = vshrl.u32 %v2661, 16
      %v3124 = vrot.slane %v3122, 2
      %v3125 = vshll.u32 %v2661, 16
      %v3127 = vrot.slane %v3125, 3
      %v3128 = vor.u32 %v3124, %v3127
      %v3129 = vsel %vm2977, %v3119, %v3128
      %v3131 = vshrl.u32 %v2662, 16
      %v3133 = vrot.slane %v3131, 2
      %v3134 = vshll.u32 %v2662, 16
      %v3136 = vrot.slane %v3134, 3
      %v3137 = vor.u32 %v3133, %v3136
      %v3138 = vsel %vm2977, %v3128, %v3137
      %v3140 = vshrl.u32 %v2976, 16
      %v3142 = vrot.slane %v3140, 2
      %v3143 = vshll.u32 %v2976, 16
      %v3145 = vrot.slane %v3143, 3
      %v3146 = vor.u32 %v3142, %v3145
      %v3147 = vsel %vm2977, %v3137, %v3146
      %v3149 = vsel %vm566, %v2994, 0
      %v3152 = vsel %vm566, %v3003, 0
      %v3155 = vsel %vm566, %v3012, 0
      %v3158 = vsel %vm566, %v3021, 0
      %v3161 = vsel %vm566, %v3030, 0
      %v3164 = vsel %vm566, %v3039, 0
      %v3167 = vsel %vm566, %v3048, 0
      %v3170 = vsel %vm566, %v3057, 0
      %v3173 = vsel %vm566, %v3066, 0
      %v3176 = vsel %vm566, %v3075, 0
      %v3179 = vsel %vm566, %v3084, 0
      %v3182 = vsel %vm566, %v3093, 0
      %v3185 = vsel %vm566, %v3102, 0
      %v3188 = vsel %vm566, %v3111, 0
      %v3191 = vsel %vm566, %v3120, 0
      %v3194 = vsel %vm566, %v3129, 0
      %v3197 = vsel %vm566, %v3138, 0
      %v3200 = vsel %vm566, %v3147, 0
      %v3203 = vsel %vm621, %v2973, 0
      %3205 = vmatprep.subr.bf16.mxu0 0
      %3206 = vmatpush1.bf16.msra.mxu0 0
      %3207 = vmatprep.subr.bf16.mxu0 0
      %3208 = vmatpush1.bf16.msra.mxu0 0
      %3209 = vmatprep.subr.bf16.mxu0 0
      %3210 = vmatpush1.bf16.msra.mxu0 0
      %3211 = vmatprep.subr.bf16.mxu0 0
      %3212 = vmatpush1.bf16.msra.mxu0 0
      %3213 = vmatprep.subr.bf16.mxu0 0
      %3214 = vmatpush1.bf16.msra.mxu0 0
      %3215 = vmatprep.subr.bf16.mxu0 0
      %3216 = vmatpush1.bf16.msra.mxu0 0
      %3217 = vmatprep.subr.bf16.mxu0 0
      %3218 = vmatpush1.bf16.msra.mxu0 0
      %3219 = vmatprep.subr.bf16.mxu0 0
      %3220 = vmatpush1.bf16.msra.mxu0 %v3203
      %3221 = vmatprep.subr.bf16.mxu0 0
      %3222 = vmatpush2.bf16.msra.mxu0 0
      %3223 = vmatprep.subr.bf16.mxu0 0
      %3224 = vmatpush2.bf16.msra.mxu0 0
      %3225 = vmatprep.subr.bf16.mxu0 0
      %3226 = vmatpush2.bf16.msra.mxu0 0
      %3227 = vmatprep.subr.bf16.mxu0 0
      %3228 = vmatpush2.bf16.msra.mxu0 0
      %3229 = vmatprep.subr.bf16.mxu0 0
      %3230 = vmatpush2.bf16.msra.mxu0 0
      %3231 = vmatprep.subr.bf16.mxu0 0
      %3232 = vmatpush2.bf16.msra.mxu0 0
      %3233 = vmatprep.subr.bf16.mxu0 0
      %3234 = vmatpush2.bf16.msra.mxu0 0
      %3235 = vmatprep.subr.bf16.mxu0 0
      %3236 = vmatpush2.bf16.msra.mxu0 0
      %3237 = vmatprep.mubr.bf16.mxu0 0
      %3238 = vmatmul.mubr.bf16.gmra.mxu0 %v3149
      %v3239 = vpop.f32.mrf.mxu0
      %v3240 = vadd.f32 0.0, %v3239
      %v3241 = vpop.f32.mrf.mxu0
      %v3242 = vpop.f32.mrf.mxu0
      %v3243 = vadd.f32 0.0, %v3242
      %v3244 = vpop.f32.mrf.mxu0
      %3245 = vmatprep.mubr.bf16.mxu0 0
      %3246 = vmatmul.mubr.bf16.gmra.mxu0 %v3152
      %v3247 = vpop.f32.mrf.mxu0
      %v3248 = vadd.f32 0.0, %v3247
      %v3249 = vpop.f32.mrf.mxu0
      %v3250 = vpop.f32.mrf.mxu0
      %v3251 = vadd.f32 0.0, %v3250
      %v3252 = vpop.f32.mrf.mxu0
      %3253 = vmatprep.mubr.bf16.mxu0 0
      %3254 = vmatmul.mubr.bf16.gmra.mxu0 %v3155
      %v3255 = vpop.f32.mrf.mxu0
      %v3256 = vadd.f32 0.0, %v3255
      %v3257 = vpop.f32.mrf.mxu0
      %v3258 = vpop.f32.mrf.mxu0
      %v3259 = vadd.f32 0.0, %v3258
      %v3260 = vpop.f32.mrf.mxu0
      %3261 = vmatprep.mubr.bf16.mxu0 0
      %3262 = vmatmul.mubr.bf16.gmra.mxu0 %v3158
      %v3263 = vpop.f32.mrf.mxu0
      %v3264 = vadd.f32 0.0, %v3263
      %v3265 = vpop.f32.mrf.mxu0
      %v3266 = vpop.f32.mrf.mxu0
      %v3267 = vadd.f32 0.0, %v3266
      %v3268 = vpop.f32.mrf.mxu0
      %3269 = vmatprep.mubr.bf16.mxu0 0
      %3270 = vmatmul.mubr.bf16.gmra.mxu0 %v3161
      %v3271 = vpop.f32.mrf.mxu0
      %v3272 = vadd.f32 0.0, %v3271
      %v3273 = vpop.f32.mrf.mxu0
      %v3274 = vpop.f32.mrf.mxu0
      %v3275 = vadd.f32 0.0, %v3274
      %v3276 = vpop.f32.mrf.mxu0
      %3277 = vmatprep.mubr.bf16.mxu0 0
      %3278 = vmatmul.mubr.bf16.gmra.mxu0 %v3164
      %v3279 = vpop.f32.mrf.mxu0
      %v3280 = vadd.f32 0.0, %v3279
      %v3281 = vpop.f32.mrf.mxu0
      %v3282 = vpop.f32.mrf.mxu0
      %v3283 = vadd.f32 0.0, %v3282
      %v3284 = vpop.f32.mrf.mxu0
      %3285 = vmatprep.mubr.bf16.mxu0 0
      %3286 = vmatmul.mubr.bf16.gmra.mxu0 %v3167
      %v3287 = vpop.f32.mrf.mxu0
      %v3288 = vadd.f32 0.0, %v3287
      %v3289 = vpop.f32.mrf.mxu0
      %v3290 = vpop.f32.mrf.mxu0
      %v3291 = vadd.f32 0.0, %v3290
      %v3292 = vpop.f32.mrf.mxu0
      %3293 = vmatprep.mubr.bf16.mxu0 0
      %3294 = vmatmul.mubr.bf16.gmra.mxu0 %v3170
      %v3295 = vpop.f32.mrf.mxu0
      %v3296 = vadd.f32 0.0, %v3295
      %v3297 = vpop.f32.mrf.mxu0
      %v3298 = vpop.f32.mrf.mxu0
      %v3299 = vadd.f32 0.0, %v3298
      %v3300 = vpop.f32.mrf.mxu0
      %3301 = vmatprep.mubr.bf16.mxu0 0
      %3302 = vmatmul.mubr.bf16.gmra.mxu0 %v3173
      %v3303 = vpop.f32.mrf.mxu0
      %v3304 = vadd.f32 0.0, %v3303
      %v3305 = vpop.f32.mrf.mxu0
      %v3306 = vpop.f32.mrf.mxu0
      %v3307 = vadd.f32 0.0, %v3306
      %v3308 = vpop.f32.mrf.mxu0
      %3309 = vmatprep.mubr.bf16.mxu0 0
      %3310 = vmatmul.mubr.bf16.gmra.mxu0 %v3176
      %v3311 = vpop.f32.mrf.mxu0
      %v3312 = vadd.f32 0.0, %v3311
      %v3313 = vpop.f32.mrf.mxu0
      %v3314 = vpop.f32.mrf.mxu0
      %v3315 = vadd.f32 0.0, %v3314
      %v3316 = vpop.f32.mrf.mxu0
      %3317 = vmatprep.mubr.bf16.mxu0 0
      %3318 = vmatmul.mubr.bf16.gmra.mxu0 %v3179
      %v3319 = vpop.f32.mrf.mxu0
      %v3320 = vadd.f32 0.0, %v3319
      %v3321 = vpop.f32.mrf.mxu0
      %v3322 = vpop.f32.mrf.mxu0
      %v3323 = vadd.f32 0.0, %v3322
      %v3324 = vpop.f32.mrf.mxu0
      %3325 = vmatprep.mubr.bf16.mxu0 0
      %3326 = vmatmul.mubr.bf16.gmra.mxu0 %v3182
      %v3327 = vpop.f32.mrf.mxu0
      %v3328 = vadd.f32 0.0, %v3327
      %v3329 = vpop.f32.mrf.mxu0
      %v3330 = vpop.f32.mrf.mxu0
      %v3331 = vadd.f32 0.0, %v3330
      %v3332 = vpop.f32.mrf.mxu0
      %3333 = vmatprep.mubr.bf16.mxu0 0
      %3334 = vmatmul.mubr.bf16.gmra.mxu0 %v3185
      %v3335 = vpop.f32.mrf.mxu0
      %v3336 = vadd.f32 0.0, %v3335
      %v3337 = vpop.f32.mrf.mxu0
      %v3338 = vpop.f32.mrf.mxu0
      %v3339 = vadd.f32 0.0, %v3338
      %v3340 = vpop.f32.mrf.mxu0
      %3341 = vmatprep.mubr.bf16.mxu0 0
      %3342 = vmatmul.mubr.bf16.gmra.mxu0 %v3188
      %v3343 = vpop.f32.mrf.mxu0
      %v3344 = vadd.f32 0.0, %v3343
      %v3345 = vpop.f32.mrf.mxu0
      %v3346 = vpop.f32.mrf.mxu0
      %v3347 = vadd.f32 0.0, %v3346
      %v3348 = vpop.f32.mrf.mxu0
      %3349 = vmatprep.mubr.bf16.mxu0 0
      %3350 = vmatmul.mubr.bf16.gmra.mxu0 %v3191
      %v3351 = vpop.f32.mrf.mxu0
      %v3352 = vadd.f32 0.0, %v3351
      %v3353 = vpop.f32.mrf.mxu0
      %v3354 = vpop.f32.mrf.mxu0
      %v3355 = vadd.f32 0.0, %v3354
      %v3356 = vpop.f32.mrf.mxu0
      %3357 = vmatprep.mubr.bf16.mxu0 0
      %3358 = vmatmul.mubr.bf16.gmra.mxu0 %v3194
      %v3359 = vpop.f32.mrf.mxu0
      %v3360 = vadd.f32 0.0, %v3359
      %v3361 = vpop.f32.mrf.mxu0
      %v3362 = vpop.f32.mrf.mxu0
      %v3363 = vadd.f32 0.0, %v3362
      %v3364 = vpop.f32.mrf.mxu0
      %3365 = vmatprep.mubr.bf16.mxu0 0
      %3366 = vmatmul.mubr.bf16.gmra.mxu0 %v3197
      %v3367 = vpop.f32.mrf.mxu0
      %v3368 = vadd.f32 0.0, %v3367
      %v3369 = vpop.f32.mrf.mxu0
      %v3370 = vpop.f32.mrf.mxu0
      %v3371 = vadd.f32 0.0, %v3370
      %v3372 = vpop.f32.mrf.mxu0
      %3373 = vmatprep.mubr.bf16.mxu0 0
      %3374 = vmatmul.mubr.bf16.gmra.mxu0 %v3200
      %v3375 = vpop.f32.mrf.mxu0
      %v3376 = vadd.f32 0.0, %v3375
      %v3377 = vpop.f32.mrf.mxu0
      %v3378 = vpop.f32.mrf.mxu0
      %v3379 = vadd.f32 0.0, %v3378
      %v3380 = vpop.f32.mrf.mxu0
      %3381 = vdwg.mxu0
      %v3382 = vadd.f32 %v2935, %v3240
      %v3383 = vadd.f32 %v2936, %v3243
      %v3384 = vadd.f32 %v2937, %v3248
      %v3385 = vadd.f32 %v2938, %v3251
      %v3386 = vadd.f32 %v2939, %v3256
      %v3387 = vadd.f32 %v2940, %v3259
      %v3388 = vadd.f32 %v2941, %v3264
      %v3389 = vadd.f32 %v2942, %v3267
      %v3390 = vadd.f32 %v2943, %v3272
      %v3391 = vadd.f32 %v2944, %v3275
      %v3392 = vadd.f32 %v2945, %v3280
      %v3393 = vadd.f32 %v2946, %v3283
      %v3394 = vadd.f32 %v2947, %v3288
      %v3395 = vadd.f32 %v2948, %v3291
      %v3396 = vadd.f32 %v2949, %v3296
      %v3397 = vadd.f32 %v2950, %v3299
      %v3398 = vadd.f32 %v2951, %v3304
      %v3399 = vadd.f32 %v2952, %v3307
      %v3400 = vadd.f32 %v2953, %v3312
      %v3401 = vadd.f32 %v2954, %v3315
      %v3402 = vadd.f32 %v2955, %v3320
      %v3403 = vadd.f32 %v2956, %v3323
      %v3404 = vadd.f32 %v2957, %v3328
      %v3405 = vadd.f32 %v2958, %v3331
      %v3406 = vadd.f32 %v2959, %v3336
      %v3407 = vadd.f32 %v2960, %v3339
      %v3408 = vadd.f32 %v2961, %v3344
      %v3409 = vadd.f32 %v2962, %v3347
      %v3410 = vadd.f32 %v2963, %v3352
      %v3411 = vadd.f32 %v2964, %v3355
      %v3412 = vadd.f32 %v2965, %v3360
      %v3413 = vadd.f32 %v2966, %v3363
      %v3414 = vadd.f32 %v2967, %v3368
      %v3415 = vadd.f32 %v2968, %v3371
      %v3416 = vadd.f32 %v2969, %v3376
      %v3417 = vadd.f32 %v2970, %v3379
      %v3418 = vld [vmem:[%s258 + $0x10] sm:$0x8]
      %s3419 = scalar_lea.vmem %s266, 32
      %v3420 = vld [vmem:[%s3419] sm:$0xf]
      %v3422 = vunpack.c.l.b16 %v3418
      %v3423 = vpack.c.b16 %v2609, %v3422
      %vm3424 = vcmask 1044480
      %v3425 = vrot.slane %v3423, 3
      %v3426 = vrot.slane %v2646, 3
      %v3427 = vsel %vm3424, %v3425, %v3426
      %v3428 = vrot.slane %v2647, 3
      %v3429 = vsel %vm3424, %v3426, %v3428
      %v3430 = vrot.slane %v2648, 3
      %v3431 = vsel %vm3424, %v3428, %v3430
      %v3432 = vrot.slane %v2649, 3
      %v3433 = vsel %vm3424, %v3430, %v3432
      %v3434 = vrot.slane %v2650, 3
      %v3435 = vsel %vm3424, %v3432, %v3434
      %v3436 = vrot.slane %v2651, 3
      %v3437 = vsel %vm3424, %v3434, %v3436
      %v3438 = vrot.slane %v2652, 3
      %v3439 = vsel %vm3424, %v3436, %v3438
      %v3440 = vrot.slane %v2653, 3
      %v3441 = vsel %vm3424, %v3438, %v3440
      %v3442 = vrot.slane %v2654, 3
      %v3443 = vsel %vm3424, %v3440, %v3442
      %v3444 = vrot.slane %v2655, 3
      %v3445 = vsel %vm3424, %v3442, %v3444
      %v3446 = vrot.slane %v2656, 3
      %v3447 = vsel %vm3424, %v3444, %v3446
      %v3448 = vrot.slane %v2657, 3
      %v3449 = vsel %vm3424, %v3446, %v3448
      %v3450 = vrot.slane %v2658, 3
      %v3451 = vsel %vm3424, %v3448, %v3450
      %v3452 = vrot.slane %v2659, 3
      %v3453 = vsel %vm3424, %v3450, %v3452
      %v3454 = vrot.slane %v2660, 3
      %v3455 = vsel %vm3424, %v3452, %v3454
      %v3456 = vrot.slane %v2661, 3
      %v3457 = vsel %vm3424, %v3454, %v3456
      %v3458 = vrot.slane %v2662, 3
      %v3459 = vsel %vm3424, %v3456, %v3458
      %v3460 = vrot.slane %v2976, 3
      %v3461 = vsel %vm3424, %v3458, %v3460
      %v3463 = vsel %vm566, %v3427, 0
      %v3466 = vsel %vm566, %v3429, 0
      %v3469 = vsel %vm566, %v3431, 0
      %v3472 = vsel %vm566, %v3433, 0
      %v3475 = vsel %vm566, %v3435, 0
      %v3478 = vsel %vm566, %v3437, 0
      %v3481 = vsel %vm566, %v3439, 0
      %v3484 = vsel %vm566, %v3441, 0
      %v3487 = vsel %vm566, %v3443, 0
      %v3490 = vsel %vm566, %v3445, 0
      %v3493 = vsel %vm566, %v3447, 0
      %v3496 = vsel %vm566, %v3449, 0
      %v3499 = vsel %vm566, %v3451, 0
      %v3502 = vsel %vm566, %v3453, 0
      %v3505 = vsel %vm566, %v3455, 0
      %v3508 = vsel %vm566, %v3457, 0
      %v3511 = vsel %vm566, %v3459, 0
      %v3514 = vsel %vm566, %v3461, 0
      %v3517 = vsel %vm621, %v3420, 0
      %3519 = vmatprep.subr.bf16.mxu0 0
      %3520 = vmatpush1.bf16.msra.mxu0 0
      %3521 = vmatprep.subr.bf16.mxu0 0
      %3522 = vmatpush1.bf16.msra.mxu0 0
      %3523 = vmatprep.subr.bf16.mxu0 0
      %3524 = vmatpush1.bf16.msra.mxu0 0
      %3525 = vmatprep.subr.bf16.mxu0 0
      %3526 = vmatpush1.bf16.msra.mxu0 0
      %3527 = vmatprep.subr.bf16.mxu0 0
      %3528 = vmatpush1.bf16.msra.mxu0 0
      %3529 = vmatprep.subr.bf16.mxu0 0
      %3530 = vmatpush1.bf16.msra.mxu0 0
      %3531 = vmatprep.subr.bf16.mxu0 0
      %3532 = vmatpush1.bf16.msra.mxu0 0
      %3533 = vmatprep.subr.bf16.mxu0 0
      %3534 = vmatpush1.bf16.msra.mxu0 %v3517
      %3535 = vmatprep.subr.bf16.mxu0 0
      %3536 = vmatpush2.bf16.msra.mxu0 0
      %3537 = vmatprep.subr.bf16.mxu0 0
      %3538 = vmatpush2.bf16.msra.mxu0 0
      %3539 = vmatprep.subr.bf16.mxu0 0
      %3540 = vmatpush2.bf16.msra.mxu0 0
      %3541 = vmatprep.subr.bf16.mxu0 0
      %3542 = vmatpush2.bf16.msra.mxu0 0
      %3543 = vmatprep.subr.bf16.mxu0 0
      %3544 = vmatpush2.bf16.msra.mxu0 0
      %3545 = vmatprep.subr.bf16.mxu0 0
      %3546 = vmatpush2.bf16.msra.mxu0 0
      %3547 = vmatprep.subr.bf16.mxu0 0
      %3548 = vmatpush2.bf16.msra.mxu0 0
      %3549 = vmatprep.subr.bf16.mxu0 0
      %3550 = vmatpush2.bf16.msra.mxu0 0
      %3551 = vmatprep.mubr.bf16.mxu0 0
      %3552 = vmatmul.mubr.bf16.gmra.mxu0 %v3463
      %v3553 = vpop.f32.mrf.mxu0
      %v3554 = vadd.f32 0.0, %v3553
      %v3555 = vpop.f32.mrf.mxu0
      %v3556 = vpop.f32.mrf.mxu0
      %v3557 = vadd.f32 0.0, %v3556
      %v3558 = vpop.f32.mrf.mxu0
      %3559 = vmatprep.mubr.bf16.mxu0 0
      %3560 = vmatmul.mubr.bf16.gmra.mxu0 %v3466
      %v3561 = vpop.f32.mrf.mxu0
      %v3562 = vadd.f32 0.0, %v3561
      %v3563 = vpop.f32.mrf.mxu0
      %v3564 = vpop.f32.mrf.mxu0
      %v3565 = vadd.f32 0.0, %v3564
      %v3566 = vpop.f32.mrf.mxu0
      %3567 = vmatprep.mubr.bf16.mxu0 0
      %3568 = vmatmul.mubr.bf16.gmra.mxu0 %v3469
      %v3569 = vpop.f32.mrf.mxu0
      %v3570 = vadd.f32 0.0, %v3569
      %v3571 = vpop.f32.mrf.mxu0
      %v3572 = vpop.f32.mrf.mxu0
      %v3573 = vadd.f32 0.0, %v3572
      %v3574 = vpop.f32.mrf.mxu0
      %3575 = vmatprep.mubr.bf16.mxu0 0
      %3576 = vmatmul.mubr.bf16.gmra.mxu0 %v3472
      %v3577 = vpop.f32.mrf.mxu0
      %v3578 = vadd.f32 0.0, %v3577
      %v3579 = vpop.f32.mrf.mxu0
      %v3580 = vpop.f32.mrf.mxu0
      %v3581 = vadd.f32 0.0, %v3580
      %v3582 = vpop.f32.mrf.mxu0
      %3583 = vmatprep.mubr.bf16.mxu0 0
      %3584 = vmatmul.mubr.bf16.gmra.mxu0 %v3475
      %v3585 = vpop.f32.mrf.mxu0
      %v3586 = vadd.f32 0.0, %v3585
      %v3587 = vpop.f32.mrf.mxu0
      %v3588 = vpop.f32.mrf.mxu0
      %v3589 = vadd.f32 0.0, %v3588
      %v3590 = vpop.f32.mrf.mxu0
      %3591 = vmatprep.mubr.bf16.mxu0 0
      %3592 = vmatmul.mubr.bf16.gmra.mxu0 %v3478
      %v3593 = vpop.f32.mrf.mxu0
      %v3594 = vadd.f32 0.0, %v3593
      %v3595 = vpop.f32.mrf.mxu0
      %v3596 = vpop.f32.mrf.mxu0
      %v3597 = vadd.f32 0.0, %v3596
      %v3598 = vpop.f32.mrf.mxu0
      %3599 = vmatprep.mubr.bf16.mxu0 0
      %3600 = vmatmul.mubr.bf16.gmra.mxu0 %v3481
      %v3601 = vpop.f32.mrf.mxu0
      %v3602 = vadd.f32 0.0, %v3601
      %v3603 = vpop.f32.mrf.mxu0
      %v3604 = vpop.f32.mrf.mxu0
      %v3605 = vadd.f32 0.0, %v3604
      %v3606 = vpop.f32.mrf.mxu0
      %3607 = vmatprep.mubr.bf16.mxu0 0
      %3608 = vmatmul.mubr.bf16.gmra.mxu0 %v3484
      %v3609 = vpop.f32.mrf.mxu0
      %v3610 = vadd.f32 0.0, %v3609
      %v3611 = vpop.f32.mrf.mxu0
      %v3612 = vpop.f32.mrf.mxu0
      %v3613 = vadd.f32 0.0, %v3612
      %v3614 = vpop.f32.mrf.mxu0
      %3615 = vmatprep.mubr.bf16.mxu0 0
      %3616 = vmatmul.mubr.bf16.gmra.mxu0 %v3487
      %v3617 = vpop.f32.mrf.mxu0
      %v3618 = vadd.f32 0.0, %v3617
      %v3619 = vpop.f32.mrf.mxu0
      %v3620 = vpop.f32.mrf.mxu0
      %v3621 = vadd.f32 0.0, %v3620
      %v3622 = vpop.f32.mrf.mxu0
      %3623 = vmatprep.mubr.bf16.mxu0 0
      %3624 = vmatmul.mubr.bf16.gmra.mxu0 %v3490
      %v3625 = vpop.f32.mrf.mxu0
      %v3626 = vadd.f32 0.0, %v3625
      %v3627 = vpop.f32.mrf.mxu0
      %v3628 = vpop.f32.mrf.mxu0
      %v3629 = vadd.f32 0.0, %v3628
      %v3630 = vpop.f32.mrf.mxu0
      %3631 = vmatprep.mubr.bf16.mxu0 0
      %3632 = vmatmul.mubr.bf16.gmra.mxu0 %v3493
      %v3633 = vpop.f32.mrf.mxu0
      %v3634 = vadd.f32 0.0, %v3633
      %v3635 = vpop.f32.mrf.mxu0
      %v3636 = vpop.f32.mrf.mxu0
      %v3637 = vadd.f32 0.0, %v3636
      %v3638 = vpop.f32.mrf.mxu0
      %3639 = vmatprep.mubr.bf16.mxu0 0
      %3640 = vmatmul.mubr.bf16.gmra.mxu0 %v3496
      %v3641 = vpop.f32.mrf.mxu0
      %v3642 = vadd.f32 0.0, %v3641
      %v3643 = vpop.f32.mrf.mxu0
      %v3644 = vpop.f32.mrf.mxu0
      %v3645 = vadd.f32 0.0, %v3644
      %v3646 = vpop.f32.mrf.mxu0
      %3647 = vmatprep.mubr.bf16.mxu0 0
      %3648 = vmatmul.mubr.bf16.gmra.mxu0 %v3499
      %v3649 = vpop.f32.mrf.mxu0
      %v3650 = vadd.f32 0.0, %v3649
      %v3651 = vpop.f32.mrf.mxu0
      %v3652 = vpop.f32.mrf.mxu0
      %v3653 = vadd.f32 0.0, %v3652
      %v3654 = vpop.f32.mrf.mxu0
      %3655 = vmatprep.mubr.bf16.mxu0 0
      %3656 = vmatmul.mubr.bf16.gmra.mxu0 %v3502
      %v3657 = vpop.f32.mrf.mxu0
      %v3658 = vadd.f32 0.0, %v3657
      %v3659 = vpop.f32.mrf.mxu0
      %v3660 = vpop.f32.mrf.mxu0
      %v3661 = vadd.f32 0.0, %v3660
      %v3662 = vpop.f32.mrf.mxu0
      %3663 = vmatprep.mubr.bf16.mxu0 0
      %3664 = vmatmul.mubr.bf16.gmra.mxu0 %v3505
      %v3665 = vpop.f32.mrf.mxu0
      %v3666 = vadd.f32 0.0, %v3665
      %v3667 = vpop.f32.mrf.mxu0
      %v3668 = vpop.f32.mrf.mxu0
      %v3669 = vadd.f32 0.0, %v3668
      %v3670 = vpop.f32.mrf.mxu0
      %3671 = vmatprep.mubr.bf16.mxu0 0
      %3672 = vmatmul.mubr.bf16.gmra.mxu0 %v3508
      %v3673 = vpop.f32.mrf.mxu0
      %v3674 = vadd.f32 0.0, %v3673
      %v3675 = vpop.f32.mrf.mxu0
      %v3676 = vpop.f32.mrf.mxu0
      %v3677 = vadd.f32 0.0, %v3676
      %v3678 = vpop.f32.mrf.mxu0
      %3679 = vmatprep.mubr.bf16.mxu0 0
      %3680 = vmatmul.mubr.bf16.gmra.mxu0 %v3511
      %v3681 = vpop.f32.mrf.mxu0
      %v3682 = vadd.f32 0.0, %v3681
      %v3683 = vpop.f32.mrf.mxu0
      %v3684 = vpop.f32.mrf.mxu0
      %v3685 = vadd.f32 0.0, %v3684
      %v3686 = vpop.f32.mrf.mxu0
      %3687 = vmatprep.mubr.bf16.mxu0 0
      %3688 = vmatmul.mubr.bf16.gmra.mxu0 %v3514
      %v3689 = vpop.f32.mrf.mxu0
      %v3690 = vadd.f32 0.0, %v3689
      %v3691 = vpop.f32.mrf.mxu0
      %v3692 = vpop.f32.mrf.mxu0
      %v3693 = vadd.f32 0.0, %v3692
      %v3694 = vpop.f32.mrf.mxu0
      %3695 = vdwg.mxu0
      %v3696 = vadd.f32 %v3382, %v3554
      %v3697 = vadd.f32 %v3383, %v3557
      %v3698 = vadd.f32 %v3384, %v3562
      %v3699 = vadd.f32 %v3385, %v3565
      %v3700 = vadd.f32 %v3386, %v3570
      %v3701 = vadd.f32 %v3387, %v3573
      %v3702 = vadd.f32 %v3388, %v3578
      %v3703 = vadd.f32 %v3389, %v3581
      %v3704 = vadd.f32 %v3390, %v3586
      %v3705 = vadd.f32 %v3391, %v3589
      %v3706 = vadd.f32 %v3392, %v3594
      %v3707 = vadd.f32 %v3393, %v3597
      %v3708 = vadd.f32 %v3394, %v3602
      %v3709 = vadd.f32 %v3395, %v3605
      %v3710 = vadd.f32 %v3396, %v3610
      %v3711 = vadd.f32 %v3397, %v3613
      %v3712 = vadd.f32 %v3398, %v3618
      %v3713 = vadd.f32 %v3399, %v3621
      %v3714 = vadd.f32 %v3400, %v3626
      %v3715 = vadd.f32 %v3401, %v3629
      %v3716 = vadd.f32 %v3402, %v3634
      %v3717 = vadd.f32 %v3403, %v3637
      %v3718 = vadd.f32 %v3404, %v3642
      %v3719 = vadd.f32 %v3405, %v3645
      %v3720 = vadd.f32 %v3406, %v3650
      %v3721 = vadd.f32 %v3407, %v3653
      %v3722 = vadd.f32 %v3408, %v3658
      %v3723 = vadd.f32 %v3409, %v3661
      %v3724 = vadd.f32 %v3410, %v3666
      %v3725 = vadd.f32 %v3411, %v3669
      %v3726 = vadd.f32 %v3412, %v3674
      %v3727 = vadd.f32 %v3413, %v3677
      %v3728 = vadd.f32 %v3414, %v3682
      %v3729 = vadd.f32 %v3415, %v3685
      %v3730 = vadd.f32 %v3416, %v3690
      %v3731 = vadd.f32 %v3417, %v3693
      %v3732 = vld [vmem:[%s271] sm:$0xff]
      %v3733 = vld [vmem:[%s271 + $0x8] sm:$0xff]
      %v3734 = vld [vmem:[%s271 + $0x10] sm:$0xff]
      %v3735 = vld [vmem:[%s271 + $0x18] sm:$0xff]
      %v3736 = vld [vmem:[%s271 + $0x20] sm:$0xff]
      %v3737 = vld [vmem:[%s271 + $0x28] sm:$0xff]
      %v3738 = vld [vmem:[%s271 + $0x30] sm:$0xff]
      %v3739 = vld [vmem:[%s271 + $0x38] sm:$0xff]
      %v3740 = vld [vmem:[%s271 + $0x40] sm:$0xff]
      %v3741 = vld [vmem:[%s271 + $0x48] sm:$0xff]
      %v3742 = vld [vmem:[%s271 + $0x50] sm:$0xff]
      %v3743 = vld [vmem:[%s271 + $0x58] sm:$0xff]
      %v3744 = vld [vmem:[%s271 + $0x60] sm:$0xff]
      %v3745 = vld [vmem:[%s271 + $0x68] sm:$0xff]
      %v3746 = vld [vmem:[%s271 + $0x70] sm:$0xff]
      %v3747 = vld [vmem:[%s271 + $0x78] sm:$0xff]
      %v3748 = vld [vmem:[%s271 + $0x80] sm:$0xff]
      %v3749 = vld [vmem:[%s271 + $0x88] sm:$0xff]
      %v3750 = vld [vmem:[%s271 + $0x90] sm:$0xff]
      %v3751 = vld [vmem:[%s271 + $0x98] sm:$0xff]
      %v3752 = vld [vmem:[%s271 + $0xa0] sm:$0xff]
      %v3753 = vld [vmem:[%s271 + $0xa8] sm:$0xff]
      %v3754 = vld [vmem:[%s271 + $0xb0] sm:$0xff]
      %v3755 = vld [vmem:[%s271 + $0xb8] sm:$0xff]
      %v3756 = vld [vmem:[%s271 + $0xc0] sm:$0xff]
      %v3757 = vld [vmem:[%s271 + $0xc8] sm:$0xff]
      %v3758 = vld [vmem:[%s271 + $0xd0] sm:$0xff]
      %v3759 = vld [vmem:[%s271 + $0xd8] sm:$0xff]
      %v3760 = vld [vmem:[%s271 + $0xe0] sm:$0xff]
      %v3761 = vld [vmem:[%s271 + $0xe8] sm:$0xff]
      %v3762 = vld [vmem:[%s271 + $0xf0] sm:$0xff]
      %v3763 = vld [vmem:[%s271 + $0xf8] sm:$0xff]
      %v3764 = vld [vmem:[%s271 + $0x100] sm:$0xff]
      %v3765 = vld [vmem:[%s271 + $0x108] sm:$0xff]
      %v3766 = vld [vmem:[%s271 + $0x110] sm:$0xff]
      %v3767 = vld [vmem:[%s271 + $0x118] sm:$0xff]
      %3769 = vset.pattern.permute.xlu0 0
      %3770 = vperm.xlu0 %3769, %v3732
      %v3771 = vpop.permute.xlu0 %3770
      %3774 = vset.pattern.permute.xlu0 0
      %3775 = vperm.xlu0 %3774, %v3733
      %v3776 = vpop.permute.xlu0 %3775
      %3779 = vset.pattern.permute.xlu0 0
      %3780 = vperm.xlu0 %3779, %v3734
      %v3781 = vpop.permute.xlu0 %3780
      %3784 = vset.pattern.permute.xlu0 0
      %3785 = vperm.xlu0 %3784, %v3735
      %v3786 = vpop.permute.xlu0 %3785
      %3789 = vset.pattern.permute.xlu0 0
      %3790 = vperm.xlu0 %3789, %v3736
      %v3791 = vpop.permute.xlu0 %3790
      %3794 = vset.pattern.permute.xlu0 0
      %3795 = vperm.xlu0 %3794, %v3737
      %v3796 = vpop.permute.xlu0 %3795
      %3799 = vset.pattern.permute.xlu0 0
      %3800 = vperm.xlu0 %3799, %v3738
      %v3801 = vpop.permute.xlu0 %3800
      %3804 = vset.pattern.permute.xlu0 0
      %3805 = vperm.xlu0 %3804, %v3739
      %v3806 = vpop.permute.xlu0 %3805
      %3809 = vset.pattern.permute.xlu0 0
      %3810 = vperm.xlu0 %3809, %v3740
      %v3811 = vpop.permute.xlu0 %3810
      %3814 = vset.pattern.permute.xlu0 0
      %3815 = vperm.xlu0 %3814, %v3741
      %v3816 = vpop.permute.xlu0 %3815
      %3819 = vset.pattern.permute.xlu0 0
      %3820 = vperm.xlu0 %3819, %v3742
      %v3821 = vpop.permute.xlu0 %3820
      %3824 = vset.pattern.permute.xlu0 0
      %3825 = vperm.xlu0 %3824, %v3743
      %v3826 = vpop.permute.xlu0 %3825
      %3829 = vset.pattern.permute.xlu0 0
      %3830 = vperm.xlu0 %3829, %v3744
      %v3831 = vpop.permute.xlu0 %3830
      %3834 = vset.pattern.permute.xlu0 0
      %3835 = vperm.xlu0 %3834, %v3745
      %v3836 = vpop.permute.xlu0 %3835
      %3839 = vset.pattern.permute.xlu0 0
      %3840 = vperm.xlu0 %3839, %v3746
      %v3841 = vpop.permute.xlu0 %3840
      %3844 = vset.pattern.permute.xlu0 0
      %3845 = vperm.xlu0 %3844, %v3747
      %v3846 = vpop.permute.xlu0 %3845
      %3849 = vset.pattern.permute.xlu0 0
      %3850 = vperm.xlu0 %3849, %v3748
      %v3851 = vpop.permute.xlu0 %3850
      %3854 = vset.pattern.permute.xlu0 0
      %3855 = vperm.xlu0 %3854, %v3749
      %v3856 = vpop.permute.xlu0 %3855
      %3859 = vset.pattern.permute.xlu0 0
      %3860 = vperm.xlu0 %3859, %v3750
      %v3861 = vpop.permute.xlu0 %3860
      %3864 = vset.pattern.permute.xlu0 0
      %3865 = vperm.xlu0 %3864, %v3751
      %v3866 = vpop.permute.xlu0 %3865
      %3869 = vset.pattern.permute.xlu0 0
      %3870 = vperm.xlu0 %3869, %v3752
      %v3871 = vpop.permute.xlu0 %3870
      %3874 = vset.pattern.permute.xlu0 0
      %3875 = vperm.xlu0 %3874, %v3753
      %v3876 = vpop.permute.xlu0 %3875
      %3879 = vset.pattern.permute.xlu0 0
      %3880 = vperm.xlu0 %3879, %v3754
      %v3881 = vpop.permute.xlu0 %3880
      %3884 = vset.pattern.permute.xlu0 0
      %3885 = vperm.xlu0 %3884, %v3755
      %v3886 = vpop.permute.xlu0 %3885
      %3889 = vset.pattern.permute.xlu0 0
      %3890 = vperm.xlu0 %3889, %v3756
      %v3891 = vpop.permute.xlu0 %3890
      %3894 = vset.pattern.permute.xlu0 0
      %3895 = vperm.xlu0 %3894, %v3757
      %v3896 = vpop.permute.xlu0 %3895
      %3899 = vset.pattern.permute.xlu0 0
      %3900 = vperm.xlu0 %3899, %v3758
      %v3901 = vpop.permute.xlu0 %3900
      %3904 = vset.pattern.permute.xlu0 0
      %3905 = vperm.xlu0 %3904, %v3759
      %v3906 = vpop.permute.xlu0 %3905
      %3909 = vset.pattern.permute.xlu0 0
      %3910 = vperm.xlu0 %3909, %v3760
      %v3911 = vpop.permute.xlu0 %3910
      %3914 = vset.pattern.permute.xlu0 0
      %3915 = vperm.xlu0 %3914, %v3761
      %v3916 = vpop.permute.xlu0 %3915
      %3919 = vset.pattern.permute.xlu0 0
      %3920 = vperm.xlu0 %3919, %v3762
      %v3921 = vpop.permute.xlu0 %3920
      %3924 = vset.pattern.permute.xlu0 0
      %3925 = vperm.xlu0 %3924, %v3763
      %v3926 = vpop.permute.xlu0 %3925
      %3929 = vset.pattern.permute.xlu0 0
      %3930 = vperm.xlu0 %3929, %v3764
      %v3931 = vpop.permute.xlu0 %3930
      %3934 = vset.pattern.permute.xlu0 0
      %3935 = vperm.xlu0 %3934, %v3765
      %v3936 = vpop.permute.xlu0 %3935
      %3939 = vset.pattern.permute.xlu0 0
      %3940 = vperm.xlu0 %3939, %v3766
      %v3941 = vpop.permute.xlu0 %3940
      %3944 = vset.pattern.permute.xlu0 0
      %3945 = vperm.xlu0 %3944, %v3767
      %v3946 = vpop.permute.xlu0 %3945
      %v3948 = vadd.f32 %v3696, %v3771
      %v3949 = vadd.f32 %v3697, %v3776
      %v3950 = vadd.f32 %v3698, %v3781
      %v3951 = vadd.f32 %v3699, %v3786
      %v3952 = vadd.f32 %v3700, %v3791
      %v3953 = vadd.f32 %v3701, %v3796
      %v3954 = vadd.f32 %v3702, %v3801
      %v3955 = vadd.f32 %v3703, %v3806
      %v3956 = vadd.f32 %v3704, %v3811
      %v3957 = vadd.f32 %v3705, %v3816
      %v3958 = vadd.f32 %v3706, %v3821
      %v3959 = vadd.f32 %v3707, %v3826
      %v3960 = vadd.f32 %v3708, %v3831
      %v3961 = vadd.f32 %v3709, %v3836
      %v3962 = vadd.f32 %v3710, %v3841
      %v3963 = vadd.f32 %v3711, %v3846
      %v3964 = vadd.f32 %v3712, %v3851
      %v3965 = vadd.f32 %v3713, %v3856
      %v3966 = vadd.f32 %v3714, %v3861
      %v3967 = vadd.f32 %v3715, %v3866
      %v3968 = vadd.f32 %v3716, %v3871
      %v3969 = vadd.f32 %v3717, %v3876
      %v3970 = vadd.f32 %v3718, %v3881
      %v3971 = vadd.f32 %v3719, %v3886
      %v3972 = vadd.f32 %v3720, %v3891
      %v3973 = vadd.f32 %v3721, %v3896
      %v3974 = vadd.f32 %v3722, %v3901
      %v3975 = vadd.f32 %v3723, %v3906
      %v3976 = vadd.f32 %v3724, %v3911
      %v3977 = vadd.f32 %v3725, %v3916
      %v3978 = vadd.f32 %v3726, %v3921
      %v3979 = vadd.f32 %v3727, %v3926
      %v3980 = vadd.f32 %v3728, %v3931
      %v3981 = vadd.f32 %v3729, %v3936
      %v3982 = vadd.f32 %v3730, %v3941
      %v3983 = vadd.f32 %v3731, %v3946
      %v3984 = vld [vmem:[%s274] sm:$0x1]
      %v3986 = vlaneseq
      %v3987 = vshrl.u32 %v3986, 7
      %v3988 = vsub.s32 0, %v3987
      %v3989 = vrot.slane %v3984, %v3988
      %v3991 = vadd.f32 %v3948, %v3989
      %v3992 = vadd.f32 %v3949, %v3989
      %v3993 = vadd.f32 %v3950, %v3989
      %v3994 = vadd.f32 %v3951, %v3989
      %v3995 = vadd.f32 %v3952, %v3989
      %v3996 = vadd.f32 %v3953, %v3989
      %v3997 = vadd.f32 %v3954, %v3989
      %v3998 = vadd.f32 %v3955, %v3989
      %v3999 = vadd.f32 %v3956, %v3989
      %v4000 = vadd.f32 %v3957, %v3989
      %v4001 = vadd.f32 %v3958, %v3989
      %v4002 = vadd.f32 %v3959, %v3989
      %v4003 = vadd.f32 %v3960, %v3989
      %v4004 = vadd.f32 %v3961, %v3989
      %v4005 = vadd.f32 %v3962, %v3989
      %v4006 = vadd.f32 %v3963, %v3989
      %v4007 = vadd.f32 %v3964, %v3989
      %v4008 = vadd.f32 %v3965, %v3989
      %v4009 = vadd.f32 %v3966, %v3989
      %v4010 = vadd.f32 %v3967, %v3989
      %v4011 = vadd.f32 %v3968, %v3989
      %v4012 = vadd.f32 %v3969, %v3989
      %v4013 = vadd.f32 %v3970, %v3989
      %v4014 = vadd.f32 %v3971, %v3989
      %v4015 = vadd.f32 %v3972, %v3989
      %v4016 = vadd.f32 %v3973, %v3989
      %v4017 = vadd.f32 %v3974, %v3989
      %v4018 = vadd.f32 %v3975, %v3989
      %v4019 = vadd.f32 %v3976, %v3989
      %v4020 = vadd.f32 %v3977, %v3989
      %v4021 = vadd.f32 %v3978, %v3989
      %v4022 = vadd.f32 %v3979, %v3989
      %v4023 = vadd.f32 %v3980, %v3989
      %v4024 = vadd.f32 %v3981, %v3989
      %v4025 = vadd.f32 %v3982, %v3989
      %v4026 = vadd.f32 %v3983, %v3989
      %vm4027 = vcmp.ge.f32.partialorder %v3991, 0.0
      %vm4028 = vcmp.ge.f32.partialorder %v3992, 0.0
      %vm4029 = vcmp.ge.f32.partialorder %v3993, 0.0
      %vm4030 = vcmp.ge.f32.partialorder %v3994, 0.0
      %vm4031 = vcmp.ge.f32.partialorder %v3995, 0.0
      %vm4032 = vcmp.ge.f32.partialorder %v3996, 0.0
      %vm4033 = vcmp.ge.f32.partialorder %v3997, 0.0
      %vm4034 = vcmp.ge.f32.partialorder %v3998, 0.0
      %vm4035 = vcmp.ge.f32.partialorder %v3999, 0.0
      %vm4036 = vcmp.ge.f32.partialorder %v4000, 0.0
      %vm4037 = vcmp.ge.f32.partialorder %v4001, 0.0
      %vm4038 = vcmp.ge.f32.partialorder %v4002, 0.0
      %vm4039 = vcmp.ge.f32.partialorder %v4003, 0.0
      %vm4040 = vcmp.ge.f32.partialorder %v4004, 0.0
      %vm4041 = vcmp.ge.f32.partialorder %v4005, 0.0
      %vm4042 = vcmp.ge.f32.partialorder %v4006, 0.0
      %vm4043 = vcmp.ge.f32.partialorder %v4007, 0.0
      %vm4044 = vcmp.ge.f32.partialorder %v4008, 0.0
      %vm4045 = vcmp.ge.f32.partialorder %v4009, 0.0
      %vm4046 = vcmp.ge.f32.partialorder %v4010, 0.0
      %vm4047 = vcmp.ge.f32.partialorder %v4011, 0.0
      %vm4048 = vcmp.ge.f32.partialorder %v4012, 0.0
      %vm4049 = vcmp.ge.f32.partialorder %v4013, 0.0
      %vm4050 = vcmp.ge.f32.partialorder %v4014, 0.0
      %vm4051 = vcmp.ge.f32.partialorder %v4015, 0.0
      %vm4052 = vcmp.ge.f32.partialorder %v4016, 0.0
      %vm4053 = vcmp.ge.f32.partialorder %v4017, 0.0
      %vm4054 = vcmp.ge.f32.partialorder %v4018, 0.0
      %vm4055 = vcmp.ge.f32.partialorder %v4019, 0.0
      %vm4056 = vcmp.ge.f32.partialorder %v4020, 0.0
      %vm4057 = vcmp.ge.f32.partialorder %v4021, 0.0
      %vm4058 = vcmp.ge.f32.partialorder %v4022, 0.0
      %vm4059 = vcmp.ge.f32.partialorder %v4023, 0.0
      %vm4060 = vcmp.ge.f32.partialorder %v4024, 0.0
      %vm4061 = vcmp.ge.f32.partialorder %v4025, 0.0
      %vm4062 = vcmp.ge.f32.partialorder %v4026, 0.0
      %v4063 = vmul.f32 %v3991, 0.2
      %v4064 = vmul.f32 %v3992, 0.2
      %v4065 = vmul.f32 %v3993, 0.2
      %v4066 = vmul.f32 %v3994, 0.2
      %v4067 = vmul.f32 %v3995, 0.2
      %v4068 = vmul.f32 %v3996, 0.2
      %v4069 = vmul.f32 %v3997, 0.2
      %v4070 = vmul.f32 %v3998, 0.2
      %v4071 = vmul.f32 %v3999, 0.2
      %v4072 = vmul.f32 %v4000, 0.2
      %v4073 = vmul.f32 %v4001, 0.2
      %v4074 = vmul.f32 %v4002, 0.2
      %v4075 = vmul.f32 %v4003, 0.2
      %v4076 = vmul.f32 %v4004, 0.2
      %v4077 = vmul.f32 %v4005, 0.2
      %v4078 = vmul.f32 %v4006, 0.2
      %v4079 = vmul.f32 %v4007, 0.2
      %v4080 = vmul.f32 %v4008, 0.2
      %v4081 = vmul.f32 %v4009, 0.2
      %v4082 = vmul.f32 %v4010, 0.2
      %v4083 = vmul.f32 %v4011, 0.2
      %v4084 = vmul.f32 %v4012, 0.2
      %v4085 = vmul.f32 %v4013, 0.2
      %v4086 = vmul.f32 %v4014, 0.2
      %v4087 = vmul.f32 %v4015, 0.2
      %v4088 = vmul.f32 %v4016, 0.2
      %v4089 = vmul.f32 %v4017, 0.2
      %v4090 = vmul.f32 %v4018, 0.2
      %v4091 = vmul.f32 %v4019, 0.2
      %v4092 = vmul.f32 %v4020, 0.2
      %v4093 = vmul.f32 %v4021, 0.2
      %v4094 = vmul.f32 %v4022, 0.2
      %v4095 = vmul.f32 %v4023, 0.2
      %v4096 = vmul.f32 %v4024, 0.2
      %v4097 = vmul.f32 %v4025, 0.2
      %v4098 = vmul.f32 %v4026, 0.2
      %v4099 = vsel %vm4027, %v3991, %v4063
      %v4100 = vsel %vm4028, %v3992, %v4064
      %v4101 = vsel %vm4029, %v3993, %v4065
      %v4102 = vsel %vm4030, %v3994, %v4066
      %v4103 = vsel %vm4031, %v3995, %v4067
      %v4104 = vsel %vm4032, %v3996, %v4068
      %v4105 = vsel %vm4033, %v3997, %v4069
      %v4106 = vsel %vm4034, %v3998, %v4070
      %v4107 = vsel %vm4035, %v3999, %v4071
      %v4108 = vsel %vm4036, %v4000, %v4072
      %v4109 = vsel %vm4037, %v4001, %v4073
      %v4110 = vsel %vm4038, %v4002, %v4074
      %v4111 = vsel %vm4039, %v4003, %v4075
      %v4112 = vsel %vm4040, %v4004, %v4076
      %v4113 = vsel %vm4041, %v4005, %v4077
      %v4114 = vsel %vm4042, %v4006, %v4078
      %v4115 = vsel %vm4043, %v4007, %v4079
      %v4116 = vsel %vm4044, %v4008, %v4080
      %v4117 = vsel %vm4045, %v4009, %v4081
      %v4118 = vsel %vm4046, %v4010, %v4082
      %v4119 = vsel %vm4047, %v4011, %v4083
      %v4120 = vsel %vm4048, %v4012, %v4084
      %v4121 = vsel %vm4049, %v4013, %v4085
      %v4122 = vsel %vm4050, %v4014, %v4086
      %v4123 = vsel %vm4051, %v4015, %v4087
      %v4124 = vsel %vm4052, %v4016, %v4088
      %v4125 = vsel %vm4053, %v4017, %v4089
      %v4126 = vsel %vm4054, %v4018, %v4090
      %v4127 = vsel %vm4055, %v4019, %v4091
      %v4128 = vsel %vm4056, %v4020, %v4092
      %v4129 = vsel %vm4057, %v4021, %v4093
      %v4130 = vsel %vm4058, %v4022, %v4094
      %v4131 = vsel %vm4059, %v4023, %v4095
      %v4132 = vsel %vm4060, %v4024, %v4096
      %v4133 = vsel %vm4061, %v4025, %v4097
      %v4134 = vsel %vm4062, %v4026, %v4098
      %v4135 = vmul.f32 %v4099, 1.4142135
      %v4136 = vmul.f32 %v4100, 1.4142135
      %v4137 = vmul.f32 %v4101, 1.4142135
      %v4138 = vmul.f32 %v4102, 1.4142135
      %v4139 = vmul.f32 %v4103, 1.4142135
      %v4140 = vmul.f32 %v4104, 1.4142135
      %v4141 = vmul.f32 %v4105, 1.4142135
      %v4142 = vmul.f32 %v4106, 1.4142135
      %v4143 = vmul.f32 %v4107, 1.4142135
      %v4144 = vmul.f32 %v4108, 1.4142135
      %v4145 = vmul.f32 %v4109, 1.4142135
      %v4146 = vmul.f32 %v4110, 1.4142135
      %v4147 = vmul.f32 %v4111, 1.4142135
      %v4148 = vmul.f32 %v4112, 1.4142135
      %v4149 = vmul.f32 %v4113, 1.4142135
      %v4150 = vmul.f32 %v4114, 1.4142135
      %v4151 = vmul.f32 %v4115, 1.4142135
      %v4152 = vmul.f32 %v4116, 1.4142135
      %v4153 = vmul.f32 %v4117, 1.4142135
      %v4154 = vmul.f32 %v4118, 1.4142135
      %v4155 = vmul.f32 %v4119, 1.4142135
      %v4156 = vmul.f32 %v4120, 1.4142135
      %v4157 = vmul.f32 %v4121, 1.4142135
      %v4158 = vmul.f32 %v4122, 1.4142135
      %v4159 = vmul.f32 %v4123, 1.4142135
      %v4160 = vmul.f32 %v4124, 1.4142135
      %v4161 = vmul.f32 %v4125, 1.4142135
      %v4162 = vmul.f32 %v4126, 1.4142135
      %v4163 = vmul.f32 %v4127, 1.4142135
      %v4164 = vmul.f32 %v4128, 1.4142135
      %v4165 = vmul.f32 %v4129, 1.4142135
      %v4166 = vmul.f32 %v4130, 1.4142135
      %v4167 = vmul.f32 %v4131, 1.4142135
      %v4168 = vmul.f32 %v4132, 1.4142135
      %v4169 = vmul.f32 %v4133, 1.4142135
      %v4170 = vmul.f32 %v4134, 1.4142135
      %vm4171 = vcmask 130048
      %4172 = vst.msk [vmem:[%s282] sm:$0xff] %vm4171, %v4135
      %4173 = vst.msk [vmem:[%s282 + $0x8] sm:$0xff] %vm4171, %v4136
      %4174 = vst.msk [vmem:[%s282 + $0x10] sm:$0xff] %vm4171, %v4137
      %4175 = vst.msk [vmem:[%s282 + $0x18] sm:$0xff] %vm4171, %v4138
      %4176 = vst.msk [vmem:[%s282 + $0x20] sm:$0xff] %vm4171, %v4139
      %4177 = vst.msk [vmem:[%s282 + $0x28] sm:$0xff] %vm4171, %v4140
      %4178 = vst.msk [vmem:[%s282 + $0x30] sm:$0xff] %vm4171, %v4141
      %4179 = vst.msk [vmem:[%s282 + $0x38] sm:$0xff] %vm4171, %v4142
      %4180 = vst.msk [vmem:[%s282 + $0x40] sm:$0xff] %vm4171, %v4143
      %4181 = vst.msk [vmem:[%s282 + $0x48] sm:$0xff] %vm4171, %v4144
      %4182 = vst.msk [vmem:[%s282 + $0x50] sm:$0xff] %vm4171, %v4145
      %4183 = vst.msk [vmem:[%s282 + $0x58] sm:$0xff] %vm4171, %v4146
      %4184 = vst.msk [vmem:[%s282 + $0x60] sm:$0xff] %vm4171, %v4147
      %4185 = vst.msk [vmem:[%s282 + $0x68] sm:$0xff] %vm4171, %v4148
      %4186 = vst.msk [vmem:[%s282 + $0x70] sm:$0xff] %vm4171, %v4149
      %4187 = vst.msk [vmem:[%s282 + $0x78] sm:$0xff] %vm4171, %v4150
      %4188 = vst.msk [vmem:[%s282 + $0x80] sm:$0xff] %vm4171, %v4151
      %4189 = vst.msk [vmem:[%s282 + $0x88] sm:$0xff] %vm4171, %v4152
      %4190 = vst.msk [vmem:[%s282 + $0x90] sm:$0xff] %vm4171, %v4153
      %4191 = vst.msk [vmem:[%s282 + $0x98] sm:$0xff] %vm4171, %v4154
      %4192 = vst.msk [vmem:[%s282 + $0xa0] sm:$0xff] %vm4171, %v4155
      %4193 = vst.msk [vmem:[%s282 + $0xa8] sm:$0xff] %vm4171, %v4156
      %4194 = vst.msk [vmem:[%s282 + $0xb0] sm:$0xff] %vm4171, %v4157
      %4195 = vst.msk [vmem:[%s282 + $0xb8] sm:$0xff] %vm4171, %v4158
      %4196 = vst.msk [vmem:[%s282 + $0xc0] sm:$0xff] %vm4171, %v4159
      %4197 = vst.msk [vmem:[%s282 + $0xc8] sm:$0xff] %vm4171, %v4160
      %4198 = vst.msk [vmem:[%s282 + $0xd0] sm:$0xff] %vm4171, %v4161
      %4199 = vst.msk [vmem:[%s282 + $0xd8] sm:$0xff] %vm4171, %v4162
      %4200 = vst.msk [vmem:[%s282 + $0xe0] sm:$0xff] %vm4171, %v4163
      %4201 = vst.msk [vmem:[%s282 + $0xe8] sm:$0xff] %vm4171, %v4164
      %4202 = vst.msk [vmem:[%s282 + $0xf0] sm:$0xff] %vm4171, %v4165
      %4203 = vst.msk [vmem:[%s282 + $0xf8] sm:$0xff] %vm4171, %v4166
      %4204 = vst.msk [vmem:[%s282 + $0x100] sm:$0xff] %vm4171, %v4167
      %4205 = vst.msk [vmem:[%s282 + $0x108] sm:$0xff] %vm4171, %v4168
      %4206 = vst.msk [vmem:[%s282 + $0x110] sm:$0xff] %vm4171, %v4169
      %4207 = vst.msk [vmem:[%s282 + $0x118] sm:$0xff] %vm4171, %v4170
      %p4208 = scmp.lt.s32.totalorder %s19, 1
      %s4209 = scalar_select %p4208, %s19, 1
      %p4210 = scmp.lt.s32.totalorder %s20, 0
      %s4211 = scalar_select %p4210, %s20, 0
      %s4212 = smul.addr %s4209, 36
      %s4213 = sadd.s32 %s4211, %s4212
      %s4214 = smul.addr %s4213, 8
      %s4215 = scalar_lea.vmem %s4, %s4214
      // Predicated region
      $region37: #{synthesis_block_forward.3} parent=35 // pred_check
        %p4216 = pneg %p153
      $region38: #{synthesis_block_forward.3} parent=35 // pred_check_branch
        %4218 = sbr.rel (%p4216) target = $region40
      $region39: #{synthesis_block_forward.3} parent=35 // pred_region
        _
      $region40: #{synthesis_block_forward.3} parent=35 // pred_fallthru
        _
    $region36: #{synthesis_block_forward.3} parent=5 // pred_fallthru
      _
    %p4219 = scmp.le.s32.totalorder 2, %s10
    // Predicated region
    $region41: #{synthesis_block_forward.3} parent=5 // pred_check
      %p4220 = pneg %p4219
    $region42: #{synthesis_block_forward.3} parent=5 // pred_check_branch
      %4222 = sbr.rel (%p4220) target = $region44
    $region43: #{synthesis_block_forward.3} parent=5 // pred_region
      %s4223 = ssub.s32 %s10, 2
      // Predicated region
      $region45: #{synthesis_block_forward.3} parent=43 // pred_check
        %p4224 = pneg %p159
      $region46: #{synthesis_block_forward.3} parent=43 // pred_check_branch
        %4226 = sbr.rel (%p4224) target = $region48
      $region47: #{synthesis_block_forward.3} parent=43 // pred_region
        %p4227 = scmp.lt.s32.totalorder %s21, 1
        %s4228 = scalar_select %p4227, %s21, 1
        %p4229 = scmp.lt.s32.totalorder %s22, 0
        %s4230 = scalar_select %p4229, %s22, 0
        %s4231 = smul.addr %s4228, 36
        %s4232 = sadd.s32 %s4230, %s4231
        %s4233 = smul.addr %s4232, 8
        %s4234 = scalar_lea.vmem %s4, %s4233
      $region48: #{synthesis_block_forward.3} parent=43 // pred_fallthru
        _
    $region44: #{synthesis_block_forward.3} parent=5 // pred_fallthru
      _
  $region6: #{synthesis_block_forward.3} parent=0 // loop_footer
    %s14 = sadd.s32 1, %s10
  $region7: #{synthesis_block_forward.3} parent=0 // loop_footer_branch
    %9 = sbr.rel target = $region3
  $region8: #{synthesis_block_forward.3} parent=0 // loop_exit
    _

// kernel: synthesis_block_forward.5
$region0: #{synthesis_block_forward.5}
  #allocation0 [shape = 'u32[]', space=smem, size = 0x4, offset = 0x4, fixed_abs, tag = 'smem constant byte address 0x4 - core index']
  #allocation1 [shape = 'u32[144,128]{1,0:T(1,128)}', space=vmem, size = 0x12000, scoped, tag = 'internal scratch']
  %s0 = inlined_call_operand.vmem [shape: bf16[2,256,16], index: 0, kind: input, shape index: {}]
  %s1 = inlined_call_operand.vmem [shape: bf16[2,16,3], index: 1, kind: input, shape index: {}]
  %s2 = inlined_call_operand.vmem [shape: f32[1,3], index: 2, kind: input, shape index: {}]
  %s3 = inlined_call_operand.vmem [shape: f32[2,256,3], index: 3, kind: output, shape index: {}]
  %s4 = sld [smem:[#allocation0]]
  $region45: #{synthesis_block_forward.5} parent=0
    _
  %s6 = ssub.s32 1, %s4
  %s7 = scalar_select 0, %s6, %s4
  loop: start=0, step=1, limit=4
  $region2: #{synthesis_block_forward.5} parent=0 // loop_pre_header
    _
  $region3: #{synthesis_block_forward.5} parent=0 // loop_header
    %s9 = sphi 0, %s13
    %p10 = scmp.ge.s32.totalorder %s9, 4
    %s19 = sphi 0, %s21
    %s22 = sphi 0, %s19
    %s23 = sphi 0, %s22
    %s39 = sphi 0, %s23
    %s45 = sphi 0, %s47
    %s48 = sphi 0, %s45
    %s49 = sphi 0, %s48
    %s65 = sphi 0, %s49
    %s69 = sphi 0, %s69
    %s71 = sphi 0, %s69
    %s72 = sphi 0, %s71
    %s86 = sphi 0, %s72
    %s92 = sphi 0, %s94
    %s95 = sphi 0, %s92
    %s96 = sphi 0, %s95
    %s112 = sphi 0, %s96
  $region4: #{synthesis_block_forward.5} parent=0 // loop_header_branch
    %12 = sbr.rel (%p10) target = $region8
  $region5: #{synthesis_block_forward.5} parent=0 // loop_body
    %s14 = ssub.s32 %s9, 1
    %s15 = ssub.s32 %s9, 2
    %s16 = sadd.s32 %s9, 1
    %s17 = ssub.s32 %s9, %s16
    %p18 = scmp.eq.s32.totalorder %s17, 0
    %s20 = sadd.s32 %s19, 1
    %s21 = scalar_select %p18, %s19, %s20
    %p24 = pneg %p18
    %p25 = scmp.eq.s32.totalorder %s9, 1
    %p26 = por %p24, %p25
    %p27 = scmp.ne.s32.totalorder %s19, %s22
    %p28 = scmp.eq.s32.totalorder %s9, 0
    %p29 = por %p27, %p28
    %p30 = scmp.ne.s32.totalorder %s19, %s22
    %p31 = scmp.eq.s32.totalorder %s14, 1
    %p32 = por %p30, %p31
    %p33 = scmp.ne.s32.totalorder %s22, %s23
    %p34 = scmp.eq.s32.totalorder %s14, 0
    %p35 = por %p33, %p34
    %p36 = scmp.ne.s32.totalorder %s22, %s23
    %p37 = scmp.eq.s32.totalorder %s15, 1
    %p38 = por %p36, %p37
    %p40 = scmp.ne.s32.totalorder %s23, %s39
    %p41 = scmp.eq.s32.totalorder %s15, 0
    %p42 = por %p40, %p41
    %s43 = ssub.s32 %s9, %s16
    %p44 = scmp.eq.s32.totalorder %s43, 0
    %s46 = sadd.s32 %s45, 1
    %s47 = scalar_select %p44, %s45, %s46
    %p50 = pneg %p44
    %p51 = scmp.eq.s32.totalorder %s9, 1
    %p52 = por %p50, %p51
    %p53 = scmp.ne.s32.totalorder %s45, %s48
    %p54 = scmp.eq.s32.totalorder %s9, 0
    %p55 = por %p53, %p54
    %p56 = scmp.ne.s32.totalorder %s45, %s48
    %p57 = scmp.eq.s32.totalorder %s14, 1
    %p58 = por %p56, %p57
    %p59 = scmp.ne.s32.totalorder %s48, %s49
    %p60 = scmp.eq.s32.totalorder %s14, 0
    %p61 = por %p59, %p60
    %p62 = scmp.ne.s32.totalorder %s48, %s49
    %p63 = scmp.eq.s32.totalorder %s15, 1
    %p64 = por %p62, %p63
    %p66 = scmp.ne.s32.totalorder %s49, %s65
    %p67 = scmp.eq.s32.totalorder %s15, 0
    %p68 = por %p66, %p67
    %s70 = sadd.s32 %s69, 1
    %p73 = scmp.eq.s32.totalorder %s9, 1
    %p74 = scmp.ne.s32.totalorder %s69, %s71
    %p75 = scmp.eq.s32.totalorder %s9, 0
    %p76 = por %p74, %p75
    %p77 = scmp.ne.s32.totalorder %s69, %s71
    %p78 = scmp.eq.s32.totalorder %s14, 1
    %p79 = por %p77, %p78
    %p80 = scmp.ne.s32.totalorder %s71, %s72
    %p81 = scmp.eq.s32.totalorder %s14, 0
    %p82 = por %p80, %p81
    %p83 = scmp.ne.s32.totalorder %s71, %s72
    %p84 = scmp.eq.s32.totalorder %s15, 1
    %p85 = por %p83, %p84
    %p87 = scmp.ne.s32.totalorder %s72, %s86
    %p88 = scmp.eq.s32.totalorder %s15, 0
    %p89 = por %p87, %p88
    %s90 = ssub.s32 %s9, %s16
    %p91 = scmp.eq.s32.totalorder %s90, 0
    %s93 = sadd.s32 %s92, 1
    %s94 = scalar_select %p91, %s92, %s93
    %p97 = pneg %p91
    %p98 = scmp.eq.s32.totalorder %s9, 1
    %p99 = por %p97, %p98
    %p100 = scmp.ne.s32.totalorder %s92, %s95
    %p101 = scmp.eq.s32.totalorder %s9, 0
    %p102 = por %p100, %p101
    %p103 = scmp.ne.s32.totalorder %s92, %s95
    %p104 = scmp.eq.s32.totalorder %s14, 1
    %p105 = por %p103, %p104
    %p106 = scmp.ne.s32.totalorder %s95, %s96
    %p107 = scmp.eq.s32.totalorder %s14, 0
    %p108 = por %p106, %p107
    %p109 = scmp.ne.s32.totalorder %s95, %s96
    %p110 = scmp.eq.s32.totalorder %s15, 1
    %p111 = por %p109, %p110
    %p113 = scmp.ne.s32.totalorder %s96, %s112
    %p114 = scmp.eq.s32.totalorder %s15, 0
    %p115 = por %p113, %p114
    %p116 = scmp.le.s32.totalorder 1, %s9
    %p117 = scmp.lt.s32.totalorder %s9, 3
    %p118 = pnand %p116, %p117
    %p119 = pneg %p118
    // Predicated region
    $region9: #{synthesis_block_forward.5} parent=5 // pred_check
      _
    $region10: #{synthesis_block_forward.5} parent=5 // pred_check_branch
      %121 = sbr.rel (%p118) target = $region12
    $region11: #{synthesis_block_forward.5} parent=5 // pred_region
      %s122 = ssub.s32 %s9, 1
      // Predicated region
      $region13: #{synthesis_block_forward.5} parent=11 // pred_check
        %p123 = pneg %p82
      $region14: #{synthesis_block_forward.5} parent=11 // pred_check_branch
        %125 = sbr.rel (%p123) target = $region16
      $region15: #{synthesis_block_forward.5} parent=11 // pred_region
        _
      $region16: #{synthesis_block_forward.5} parent=11 // pred_fallthru
        _
    $region12: #{synthesis_block_forward.5} parent=5 // pred_fallthru
      _
    %p126 = scmp.lt.s32.totalorder %s9, 2
    // Predicated region
    $region17: #{synthesis_block_forward.5} parent=5 // pred_check
      %p127 = pneg %p126
    $region18: #{synthesis_block_forward.5} parent=5 // pred_check_branch
      %129 = sbr.rel (%p127) target = $region20
    $region19: #{synthesis_block_forward.5} parent=5 // pred_region
      // Predicated region
      $region21: #{synthesis_block_forward.5} parent=19 // pred_check
        %p130 = pneg %p29
      $region22: #{synthesis_block_forward.5} parent=19 // pred_check_branch
        %132 = sbr.rel (%p130) target = $region24
      $region23: #{synthesis_block_forward.5} parent=19 // pred_region
        %p133 = scmp.lt.s32.totalorder %s9, 1
        %s134 = scalar_select %p133, %s9, 1
        %s135 = smul.addr %s134, 32
        %s136 = smul.addr %s135, 4
        %s137 = scalar_lea.vmem %s0, %s136
      $region24: #{synthesis_block_forward.5} parent=19 // pred_fallthru
        _
      // Predicated region
      $region25: #{synthesis_block_forward.5} parent=19 // pred_check
        %p138 = pneg %p55
      $region26: #{synthesis_block_forward.5} parent=19 // pred_check_branch
        %140 = sbr.rel (%p138) target = $region28
      $region27: #{synthesis_block_forward.5} parent=19 // pred_region
        %p141 = scmp.lt.s32.totalorder %s9, 1
        %s142 = scalar_select %p141, %s9, 1
        %s143 = smul.addr %s142, 2
        %s144 = smul.addr %s143, 4
        %s145 = scalar_lea.vmem %s1, %s144
      $region28: #{synthesis_block_forward.5} parent=19 // pred_fallthru
        _
    $region20: #{synthesis_block_forward.5} parent=5 // pred_fallthru
      _
    %p146 = scmp.le.s32.totalorder 1, %s9
    %p147 = scmp.lt.s32.totalorder %s9, 3
    %p148 = pnand %p146, %p147
    %p149 = pneg %p148
    // Predicated region
    $region29: #{synthesis_block_forward.5} parent=5 // pred_check
      _
    $region30: #{synthesis_block_forward.5} parent=5 // pred_check_branch
      %151 = sbr.rel (%p148) target = $region32
    $region31: #{synthesis_block_forward.5} parent=5 // pred_region
      %s152 = ssub.s32 %s9, 1
      %p153 = scmp.lt.s32.totalorder %s14, 1
      %s154 = scalar_select %p153, %s14, 1
      %s155 = smul.addr %s154, 32
      %s156 = smul.addr %s155, 4
      %s157 = scalar_lea.vmem %s0, %s156
      %p158 = pneg %p35
      %p159 = pneg %p32
      %p160 = scmp.lt.s32.totalorder %s14, 1
      %s161 = scalar_select %p160, %s14, 1
      %s162 = smul.addr %s161, 2
      %s163 = smul.addr %s162, 4
      %s164 = scalar_lea.vmem %s1, %s163
      %p165 = pneg %p61
      %p166 = pneg %p58
      %p167 = pneg %p82
      %p168 = pneg %p79
      %p169 = pneg %p108
      %p170 = pneg %p105
      %p171 = scmp.lt.s32.totalorder %s14, 1
      %s172 = scalar_select %p171, %s14, 1
      %s173 = smul.addr %s172, 32
      %s174 = smul.addr %s173, 8
      %s175 = scalar_lea.vmem %s3, %s174
      %p176 = scmp.lt.s32.totalorder %s14, 1
      %s177 = scalar_select %p176, %s14, 1
      %s178 = smul.addr %s177, 32
      %s179 = smul.addr %s178, 4
      %s180 = scalar_lea.vmem %s0, %s179
      %p181 = scmp.lt.s32.totalorder %s14, 1
      %s182 = scalar_select %p181, %s14, 1
      %s183 = smul.addr %s182, 2
      %s184 = smul.addr %s183, 4
      %s185 = scalar_lea.vmem %s1, %s184
      %p186 = scmp.lt.s32.totalorder %s14, 1
      %s187 = scalar_select %p186, %s14, 1
      %s188 = smul.addr %s187, 32
      %s189 = smul.addr %s188, 8
      %s190 = scalar_lea.vmem %s3, %s189
      %v192 = vld [vmem:[%s180] sm:$0xf]
      %v193 = vld [vmem:[%s180 + $0x4] sm:$0xf]
      %v194 = vld [vmem:[%s180 + $0x8] sm:$0xf]
      %v195 = vld [vmem:[%s180 + $0xc] sm:$0xf]
      %v196 = vld [vmem:[%s180 + $0x10] sm:$0xf]
      %v197 = vld [vmem:[%s180 + $0x14] sm:$0xf]
      %v198 = vld [vmem:[%s180 + $0x18] sm:$0xf]
      %v199 = vld [vmem:[%s180 + $0x1c] sm:$0xf]
      %v200 = vld [vmem:[%s180 + $0x20] sm:$0xf]
      %v201 = vld [vmem:[%s180 + $0x24] sm:$0xf]
      %v202 = vld [vmem:[%s180 + $0x28] sm:$0xf]
      %v203 = vld [vmem:[%s180 + $0x2c] sm:$0xf]
      %v204 = vld [vmem:[%s180 + $0x30] sm:$0xf]
      %v205 = vld [vmem:[%s180 + $0x34] sm:$0xf]
      %v206 = vld [vmem:[%s180 + $0x38] sm:$0xf]
      %v207 = vld [vmem:[%s180 + $0x3c] sm:$0xf]
      %v208 = vld [vmem:[%s180 + $0x40] sm:$0xf]
      %v209 = vld [vmem:[%s180 + $0x44] sm:$0xf]
      %v210 = vld [vmem:[%s180 + $0x48] sm:$0xf]
      %v211 = vld [vmem:[%s180 + $0x4c] sm:$0xf]
      %v212 = vld [vmem:[%s180 + $0x50] sm:$0xf]
      %v213 = vld [vmem:[%s180 + $0x54] sm:$0xf]
      %v214 = vld [vmem:[%s180 + $0x58] sm:$0xf]
      %v215 = vld [vmem:[%s180 + $0x5c] sm:$0xf]
      %v216 = vld [vmem:[%s180 + $0x60] sm:$0xf]
      %v217 = vld [vmem:[%s180 + $0x64] sm:$0xf]
      %v218 = vld [vmem:[%s180 + $0x68] sm:$0xf]
      %v219 = vld [vmem:[%s180 + $0x6c] sm:$0xf]
      %v220 = vld [vmem:[%s180 + $0x70] sm:$0xf]
      %v221 = vld [vmem:[%s180 + $0x74] sm:$0xf]
      %v222 = vld [vmem:[%s180 + $0x78] sm:$0xf]
      %v223 = vld [vmem:[%s180 + $0x7c] sm:$0xf]
      %v224 = vld [vmem:[%s185] sm:$0xf]
      %v225 = vld [vmem:[%s185 + $0x4] sm:$0xf]
      %v226 = vld [vmem:[%s2] sm:$0x1]
      %v228 = vlaneseq
      %v229 = vshrl.u32 %v228, 7
      %v230 = vsub.s32 0, %v229
      %v231 = vrot.slane %v226, %v230
      %v265 = vunpack.c.l.b16 %v192
      %v266 = vunpack.c.l.b16 %v193
      %v267 = vunpack.c.l.b16 %v194
      %v268 = vunpack.c.l.b16 %v195
      %v269 = vunpack.c.l.b16 %v196
      %v270 = vunpack.c.l.b16 %v197
      %v271 = vunpack.c.l.b16 %v198
      %v272 = vunpack.c.l.b16 %v199
      %v273 = vunpack.c.l.b16 %v200
      %v274 = vunpack.c.l.b16 %v201
      %v275 = vunpack.c.l.b16 %v202
      %v276 = vunpack.c.l.b16 %v203
      %v277 = vunpack.c.l.b16 %v204
      %v278 = vunpack.c.l.b16 %v205
      %v279 = vunpack.c.l.b16 %v206
      %v280 = vunpack.c.l.b16 %v207
      %v281 = vunpack.c.l.b16 %v208
      %v282 = vunpack.c.l.b16 %v209
      %v283 = vunpack.c.l.b16 %v210
      %v284 = vunpack.c.l.b16 %v211
      %v285 = vunpack.c.l.b16 %v212
      %v286 = vunpack.c.l.b16 %v213
      %v287 = vunpack.c.l.b16 %v214
      %v288 = vunpack.c.l.b16 %v215
      %v289 = vunpack.c.l.b16 %v216
      %v290 = vunpack.c.l.b16 %v217
      %v291 = vunpack.c.l.b16 %v218
      %v292 = vunpack.c.l.b16 %v219
      %v293 = vunpack.c.l.b16 %v220
      %v294 = vunpack.c.l.b16 %v221
      %v295 = vunpack.c.l.b16 %v222
      %v296 = vunpack.c.l.b16 %v223
      %v297 = vpack.c.b16 %v266, %v265
      %v298 = vpack.c.b16 %v268, %v267
      %v299 = vpack.c.b16 %v270, %v269
      %v300 = vpack.c.b16 %v272, %v271
      %v301 = vpack.c.b16 %v274, %v273
      %v302 = vpack.c.b16 %v276, %v275
      %v303 = vpack.c.b16 %v278, %v277
      %v304 = vpack.c.b16 %v280, %v279
      %v305 = vpack.c.b16 %v282, %v281
      %v306 = vpack.c.b16 %v284, %v283
      %v307 = vpack.c.b16 %v286, %v285
      %v308 = vpack.c.b16 %v288, %v287
      %v309 = vpack.c.b16 %v290, %v289
      %v310 = vpack.c.b16 %v292, %v291
      %v311 = vpack.c.b16 %v294, %v293
      %v312 = vpack.c.b16 %v296, %v295
      %v315 = vunpack.c.l.b16 %v224
      %v316 = vunpack.c.l.b16 %v225
      %v317 = vpack.c.b16 %v316, %v315
      %vm319 = vcmask 130048
      %v321 = vsel %vm319, %v297, 0
      %v324 = vsel %vm319, %v298, 0
      %v327 = vsel %vm319, %v299, 0
      %v330 = vsel %vm319, %v300, 0
      %v333 = vsel %vm319, %v301, 0
      %v336 = vsel %vm319, %v302, 0
      %v339 = vsel %vm319, %v303, 0
      %v342 = vsel %vm319, %v304, 0
      %v345 = vsel %vm319, %v305, 0
      %v348 = vsel %vm319, %v306, 0
      %v351 = vsel %vm319, %v307, 0
      %v354 = vsel %vm319, %v308, 0
      %v357 = vsel %vm319, %v309, 0
      %v360 = vsel %vm319, %v310, 0
      %v363 = vsel %vm319, %v311, 0
      %v366 = vsel %vm319, %v312, 0
      %368 = vmatprep.subr.bf16.mxu0 0
      %369 = vmatpush1.bf16.msra.mxu0 0
      %370 = vmatprep.subr.bf16.mxu0 0
      %371 = vmatpush1.bf16.msra.mxu0 0
      %372 = vmatprep.subr.bf16.mxu0 0
      %373 = vmatpush1.bf16.msra.mxu0 0
      %374 = vmatprep.subr.bf16.mxu0 0
      %375 = vmatpush1.bf16.msra.mxu0 0
      %376 = vmatprep.subr.bf16.mxu0 0
      %377 = vmatpush1.bf16.msra.mxu0 0
      %378 = vmatprep.subr.bf16.mxu0 0
      %379 = vmatpush1.bf16.msra.mxu0 0
      %380 = vmatprep.subr.bf16.mxu0 0
      %381 = vmatpush1.bf16.msra.mxu0 0
      %382 = vmatprep.subr.bf16.mxu0 0
      %383 = vmatpush1.bf16.msra.mxu0 %v317
      %384 = vmatprep.subr.bf16.mxu0 0
      %385 = vmatpush2.bf16.msra.mxu0 0
      %386 = vmatprep.subr.bf16.mxu0 0
      %387 = vmatpush2.bf16.msra.mxu0 0
      %388 = vmatprep.subr.bf16.mxu0 0
      %389 = vmatpush2.bf16.msra.mxu0 0
      %390 = vmatprep.subr.bf16.mxu0 0
      %391 = vmatpush2.bf16.msra.mxu0 0
      %392 = vmatprep.subr.bf16.mxu0 0
      %393 = vmatpush2.bf16.msra.mxu0 0
      %394 = vmatprep.subr.bf16.mxu0 0
      %395 = vmatpush2.bf16.msra.mxu0 0
      %396 = vmatprep.subr.bf16.mxu0 0
      %397 = vmatpush2.bf16.msra.mxu0 0
      %398 = vmatprep.subr.bf16.mxu0 0
      %399 = vmatpush2.bf16.msra.mxu0 0
      %400 = vmatprep.mubr.bf16.mxu0 0
      %401 = vmatmul.mubr.bf16.gmra.mxu0 %v321
      %v402 = vpop.f32.mrf.mxu0
      %v403 = vadd.f32 %v231, %v402
      %v404 = vpop.f32.mrf.mxu0
      %v405 = vpop.f32.mrf.mxu0
      %v406 = vadd.f32 %v231, %v405
      %v407 = vpop.f32.mrf.mxu0
      %408 = vmatprep.mubr.bf16.mxu0 0
      %409 = vmatmul.mubr.bf16.gmra.mxu0 %v324
      %v410 = vpop.f32.mrf.mxu0
      %v411 = vadd.f32 %v231, %v410
      %v412 = vpop.f32.mrf.mxu0
      %v413 = vpop.f32.mrf.mxu0
      %v414 = vadd.f32 %v231, %v413
      %v415 = vpop.f32.mrf.mxu0
      %416 = vmatprep.mubr.bf16.mxu0 0
      %417 = vmatmul.mubr.bf16.gmra.mxu0 %v327
      %v418 = vpop.f32.mrf.mxu0
      %v419 = vadd.f32 %v231, %v418
      %v420 = vpop.f32.mrf.mxu0
      %v421 = vpop.f32.mrf.mxu0
      %v422 = vadd.f32 %v231, %v421
      %v423 = vpop.f32.mrf.mxu0
      %424 = vmatprep.mubr.bf16.mxu0 0
      %425 = vmatmul.mubr.bf16.gmra.mxu0 %v330
      %v426 = vpop.f32.mrf.mxu0
      %v427 = vadd.f32 %v231, %v426
      %v428 = vpop.f32.mrf.mxu0
      %v429 = vpop.f32.mrf.mxu0
      %v430 = vadd.f32 %v231, %v429
      %v431 = vpop.f32.mrf.mxu0
      %432 = vmatprep.mubr.bf16.mxu0 0
      %433 = vmatmul.mubr.bf16.gmra.mxu0 %v333
      %v434 = vpop.f32.mrf.mxu0
      %v435 = vadd.f32 %v231, %v434
      %v436 = vpop.f32.mrf.mxu0
      %v437 = vpop.f32.mrf.mxu0
      %v438 = vadd.f32 %v231, %v437
      %v439 = vpop.f32.mrf.mxu0
      %440 = vmatprep.mubr.bf16.mxu0 0
      %441 = vmatmul.mubr.bf16.gmra.mxu0 %v336
      %v442 = vpop.f32.mrf.mxu0
      %v443 = vadd.f32 %v231, %v442
      %v444 = vpop.f32.mrf.mxu0
      %v445 = vpop.f32.mrf.mxu0
      %v446 = vadd.f32 %v231, %v445
      %v447 = vpop.f32.mrf.mxu0
      %448 = vmatprep.mubr.bf16.mxu0 0
      %449 = vmatmul.mubr.bf16.gmra.mxu0 %v339
      %v450 = vpop.f32.mrf.mxu0
      %v451 = vadd.f32 %v231, %v450
      %v452 = vpop.f32.mrf.mxu0
      %v453 = vpop.f32.mrf.mxu0
      %v454 = vadd.f32 %v231, %v453
      %v455 = vpop.f32.mrf.mxu0
      %456 = vmatprep.mubr.bf16.mxu0 0
      %457 = vmatmul.mubr.bf16.gmra.mxu0 %v342
      %v458 = vpop.f32.mrf.mxu0
      %v459 = vadd.f32 %v231, %v458
      %v460 = vpop.f32.mrf.mxu0
      %v461 = vpop.f32.mrf.mxu0
      %v462 = vadd.f32 %v231, %v461
      %v463 = vpop.f32.mrf.mxu0
      %464 = vmatprep.mubr.bf16.mxu0 0
      %465 = vmatmul.mubr.bf16.gmra.mxu0 %v345
      %v466 = vpop.f32.mrf.mxu0
      %v467 = vadd.f32 %v231, %v466
      %v468 = vpop.f32.mrf.mxu0
      %v469 = vpop.f32.mrf.mxu0
      %v470 = vadd.f32 %v231, %v469
      %v471 = vpop.f32.mrf.mxu0
      %472 = vmatprep.mubr.bf16.mxu0 0
      %473 = vmatmul.mubr.bf16.gmra.mxu0 %v348
      %v474 = vpop.f32.mrf.mxu0
      %v475 = vadd.f32 %v231, %v474
      %v476 = vpop.f32.mrf.mxu0
      %v477 = vpop.f32.mrf.mxu0
      %v478 = vadd.f32 %v231, %v477
      %v479 = vpop.f32.mrf.mxu0
      %480 = vmatprep.mubr.bf16.mxu0 0
      %481 = vmatmul.mubr.bf16.gmra.mxu0 %v351
      %v482 = vpop.f32.mrf.mxu0
      %v483 = vadd.f32 %v231, %v482
      %v484 = vpop.f32.mrf.mxu0
      %v485 = vpop.f32.mrf.mxu0
      %v486 = vadd.f32 %v231, %v485
      %v487 = vpop.f32.mrf.mxu0
      %488 = vmatprep.mubr.bf16.mxu0 0
      %489 = vmatmul.mubr.bf16.gmra.mxu0 %v354
      %v490 = vpop.f32.mrf.mxu0
      %v491 = vadd.f32 %v231, %v490
      %v492 = vpop.f32.mrf.mxu0
      %v493 = vpop.f32.mrf.mxu0
      %v494 = vadd.f32 %v231, %v493
      %v495 = vpop.f32.mrf.mxu0
      %496 = vmatprep.mubr.bf16.mxu0 0
      %497 = vmatmul.mubr.bf16.gmra.mxu0 %v357
      %v498 = vpop.f32.mrf.mxu0
      %v499 = vadd.f32 %v231, %v498
      %v500 = vpop.f32.mrf.mxu0
      %v501 = vpop.f32.mrf.mxu0
      %v502 = vadd.f32 %v231, %v501
      %v503 = vpop.f32.mrf.mxu0
      %504 = vmatprep.mubr.bf16.mxu0 0
      %505 = vmatmul.mubr.bf16.gmra.mxu0 %v360
      %v506 = vpop.f32.mrf.mxu0
      %v507 = vadd.f32 %v231, %v506
      %v508 = vpop.f32.mrf.mxu0
      %v509 = vpop.f32.mrf.mxu0
      %v510 = vadd.f32 %v231, %v509
      %v511 = vpop.f32.mrf.mxu0
      %512 = vmatprep.mubr.bf16.mxu0 0
      %513 = vmatmul.mubr.bf16.gmra.mxu0 %v363
      %v514 = vpop.f32.mrf.mxu0
      %v515 = vadd.f32 %v231, %v514
      %v516 = vpop.f32.mrf.mxu0
      %v517 = vpop.f32.mrf.mxu0
      %v518 = vadd.f32 %v231, %v517
      %v519 = vpop.f32.mrf.mxu0
      %520 = vmatprep.mubr.bf16.mxu0 0
      %521 = vmatmul.mubr.bf16.gmra.mxu0 %v366
      %v522 = vpop.f32.mrf.mxu0
      %v523 = vadd.f32 %v231, %v522
      %v524 = vpop.f32.mrf.mxu0
      %v525 = vpop.f32.mrf.mxu0
      %v526 = vadd.f32 %v231, %v525
      %v527 = vpop.f32.mrf.mxu0
      %528 = vdwg.mxu0
      %vm529 = vcmask 23552
      %530 = vst.msk [vmem:[%s190] sm:$0xff] %vm529, %v403
      %531 = vst.msk [vmem:[%s190 + $0x8] sm:$0xff] %vm529, %v406
      %532 = vst.msk [vmem:[%s190 + $0x10] sm:$0xff] %vm529, %v411
      %533 = vst.msk [vmem:[%s190 + $0x18] sm:$0xff] %vm529, %v414
      %534 = vst.msk [vmem:[%s190 + $0x20] sm:$0xff] %vm529, %v419
      %535 = vst.msk [vmem:[%s190 + $0x28] sm:$0xff] %vm529, %v422
      %536 = vst.msk [vmem:[%s190 + $0x30] sm:$0xff] %vm529, %v427
      %537 = vst.msk [vmem:[%s190 + $0x38] sm:$0xff] %vm529, %v430
      %538 = vst.msk [vmem:[%s190 + $0x40] sm:$0xff] %vm529, %v435
      %539 = vst.msk [vmem:[%s190 + $0x48] sm:$0xff] %vm529, %v438
      %540 = vst.msk [vmem:[%s190 + $0x50] sm:$0xff] %vm529, %v443
      %541 = vst.msk [vmem:[%s190 + $0x58] sm:$0xff] %vm529, %v446
      %542 = vst.msk [vmem:[%s190 + $0x60] sm:$0xff] %vm529, %v451
      %543 = vst.msk [vmem:[%s190 + $0x68] sm:$0xff] %vm529, %v454
      %544 = vst.msk [vmem:[%s190 + $0x70] sm:$0xff] %vm529, %v459
      %545 = vst.msk [vmem:[%s190 + $0x78] sm:$0xff] %vm529, %v462
      %546 = vst.msk [vmem:[%s190 + $0x80] sm:$0xff] %vm529, %v467
      %547 = vst.msk [vmem:[%s190 + $0x88] sm:$0xff] %vm529, %v470
      %548 = vst.msk [vmem:[%s190 + $0x90] sm:$0xff] %vm529, %v475
      %549 = vst.msk [vmem:[%s190 + $0x98] sm:$0xff] %vm529, %v478
      %550 = vst.msk [vmem:[%s190 + $0xa0] sm:$0xff] %vm529, %v483
      %551 = vst.msk [vmem:[%s190 + $0xa8] sm:$0xff] %vm529, %v486
      %552 = vst.msk [vmem:[%s190 + $0xb0] sm:$0xff] %vm529, %v491
      %553 = vst.msk [vmem:[%s190 + $0xb8] sm:$0xff] %vm529, %v494
      %554 = vst.msk [vmem:[%s190 + $0xc0] sm:$0xff] %vm529, %v499
      %555 = vst.msk [vmem:[%s190 + $0xc8] sm:$0xff] %vm529, %v502
      %556 = vst.msk [vmem:[%s190 + $0xd0] sm:$0xff] %vm529, %v507
      %557 = vst.msk [vmem:[%s190 + $0xd8] sm:$0xff] %vm529, %v510
      %558 = vst.msk [vmem:[%s190 + $0xe0] sm:$0xff] %vm529, %v515
      %559 = vst.msk [vmem:[%s190 + $0xe8] sm:$0xff] %vm529, %v518
      %560 = vst.msk [vmem:[%s190 + $0xf0] sm:$0xff] %vm529, %v523
      %561 = vst.msk [vmem:[%s190 + $0xf8] sm:$0xff] %vm529, %v526
      %p562 = scmp.lt.s32.totalorder %s14, 1
      %s563 = scalar_select %p562, %s14, 1
      %s564 = smul.addr %s563, 32
      %s565 = smul.addr %s564, 8
      %s566 = scalar_lea.vmem %s3, %s565
      // Predicated region
      $region33: #{synthesis_block_forward.5} parent=31 // pred_check
        %p567 = pneg %p105
      $region34: #{synthesis_block_forward.5} parent=31 // pred_check_branch
        %569 = sbr.rel (%p567) target = $region36
      $region35: #{synthesis_block_forward.5} parent=31 // pred_region
        _
      $region36: #{synthesis_block_forward.5} parent=31 // pred_fallthru
        _
    $region32: #{synthesis_block_forward.5} parent=5 // pred_fallthru
      _
    %p570 = scmp.le.s32.totalorder 2, %s9
    // Predicated region
    $region37: #{synthesis_block_forward.5} parent=5 // pred_check
      %p571 = pneg %p570
    $region38: #{synthesis_block_forward.5} parent=5 // pred_check_branch
      %573 = sbr.rel (%p571) target = $region40
    $region39: #{synthesis_block_forward.5} parent=5 // pred_region
      %s574 = ssub.s32 %s9, 2
      // Predicated region
      $region41: #{synthesis_block_forward.5} parent=39 // pred_check
        %p575 = pneg %p111
      $region42: #{synthesis_block_forward.5} parent=39 // pred_check_branch
        %577 = sbr.rel (%p575) target = $region44
      $region43: #{synthesis_block_forward.5} parent=39 // pred_region
        %p578 = scmp.lt.s32.totalorder %s15, 1
        %s579 = scalar_select %p578, %s15, 1
        %s580 = smul.addr %s579, 32
        %s581 = smul.addr %s580, 8
        %s582 = scalar_lea.vmem %s3, %s581
      $region44: #{synthesis_block_forward.5} parent=39 // pred_fallthru
        _
    $region40: #{synthesis_block_forward.5} parent=5 // pred_fallthru
      _
  $region6: #{synthesis_block_forward.5} parent=0 // loop_footer
    %s13 = sadd.s32 1, %s9
  $region7: #{synthesis_block_forward.5} parent=0 // loop_footer_branch
    %8 = sbr.rel target = $region3
  $region8: #{synthesis_block_forward.5} parent=0 // loop_exit
    _

// kernel: synthesis_block_forward.4
$region0: #{synthesis_block_forward.4}
  #allocation0 [shape = 'u32[]', space=smem, size = 0x4, offset = 0x4, fixed_abs, tag = 'smem constant byte address 0x4 - core index']
  #allocation1 [shape = 'u32[144,128]{1,0:T(1,128)}', space=vmem, size = 0x12000, scoped, tag = 'internal scratch']
  %s0 = inlined_call_operand.vmem [shape: bf16[2,342,16], index: 0, kind: input, shape index: {}]
  %s1 = inlined_call_operand.vmem [shape: bf16[2,9,16,16], index: 1, kind: input, shape index: {}]
  %s2 = inlined_call_operand.vmem [shape: f32[2,288,1], index: 2, kind: input, shape index: {}]
  %s3 = inlined_call_operand.vmem [shape: f32[1,16], index: 3, kind: input, shape index: {}]
  %s4 = inlined_call_operand.vmem [shape: f32[2,288,16], index: 4, kind: output, shape index: {}]
  %s5 = sld [smem:[#allocation0]]
  $region49: #{synthesis_block_forward.4} parent=0
    _
  %s7 = ssub.s32 1, %s5
  %s8 = scalar_select 0, %s7, %s5
  loop: start=0, step=1, limit=4
  $region2: #{synthesis_block_forward.4} parent=0 // loop_pre_header
    _
  $region3: #{synthesis_block_forward.4} parent=0 // loop_header
    %s10 = sphi 0, %s14
    %p11 = scmp.ge.s32.totalorder %s10, 4
    %s17 = sphi 0, %s29
    %s18 = sphi 0, %s25
    %s19 = sphi 0, %s17
    %s20 = sphi 0, %s18
    %s21 = sphi 0, %s19
    %s22 = sphi 0, %s20
    %s32 = sphi 0, %s34
    %s35 = sphi 0, %s32
    %s36 = sphi 0, %s35
    %s52 = sphi 0, %s36
    %s60 = sphi 0, %s62
    %s63 = sphi 0, %s60
    %s64 = sphi 0, %s63
    %s80 = sphi 0, %s64
    %s86 = sphi 0, %s88
    %s89 = sphi 0, %s86
    %s90 = sphi 0, %s89
    %s106 = sphi 0, %s90
    %s112 = sphi 0, %s114
    %s115 = sphi 0, %s112
    %s116 = sphi 0, %s115
    %s132 = sphi 0, %s116
    %s140 = sphi 0, %s142
    %s143 = sphi 0, %s140
    %s144 = sphi 0, %s143
    %s160 = sphi 0, %s144
  $region4: #{synthesis_block_forward.4} parent=0 // loop_header_branch
    %13 = sbr.rel (%p11) target = $region8
  $region5: #{synthesis_block_forward.4} parent=0 // loop_body
    %s15 = ssub.s32 %s10, 1
    %s16 = ssub.s32 %s10, 2
    %s23 = sadd.s32 1, %s18
    %p24 = scmp.ge.s32.totalorder %s23, 1
    %s25 = scalar_select %p24, 0, %s23
    %s26 = sadd.s32 1, %s17
    %s27 = scalar_select %p24, %s26, %s17
    %p28 = scmp.ge.s32.totalorder %s27, 2
    %s29 = scalar_select %p28, 0, %s27
    %s30 = ssub.s32 %s17, %s29
    %p31 = scmp.eq.s32.totalorder %s30, 0
    %s33 = sadd.s32 %s32, 1
    %s34 = scalar_select %p31, %s32, %s33
    %p37 = pneg %p31
    %p38 = scmp.eq.s32.totalorder %s10, 1
    %p39 = por %p37, %p38
    %p40 = scmp.ne.s32.totalorder %s32, %s35
    %p41 = scmp.eq.s32.totalorder %s10, 0
    %p42 = por %p40, %p41
    %p43 = scmp.ne.s32.totalorder %s32, %s35
    %p44 = scmp.eq.s32.totalorder %s15, 1
    %p45 = por %p43, %p44
    %p46 = scmp.ne.s32.totalorder %s35, %s36
    %p47 = scmp.eq.s32.totalorder %s15, 0
    %p48 = por %p46, %p47
    %p49 = scmp.ne.s32.totalorder %s35, %s36
    %p50 = scmp.eq.s32.totalorder %s16, 1
    %p51 = por %p49, %p50
    %p53 = scmp.ne.s32.totalorder %s36, %s52
    %p54 = scmp.eq.s32.totalorder %s16, 0
    %p55 = por %p53, %p54
    %s56 = ssub.s32 %s17, %s29
    %s57 = ssub.s32 %s18, %s25
    %s58 = sor.u32 %s56, %s57
    %p59 = scmp.eq.s32.totalorder %s58, 0
    %s61 = sadd.s32 %s60, 1
    %s62 = scalar_select %p59, %s60, %s61
    %p65 = pneg %p59
    %p66 = scmp.eq.s32.totalorder %s10, 1
    %p67 = por %p65, %p66
    %p68 = scmp.ne.s32.totalorder %s60, %s63
    %p69 = scmp.eq.s32.totalorder %s10, 0
    %p70 = por %p68, %p69
    %p71 = scmp.ne.s32.totalorder %s60, %s63
    %p72 = scmp.eq.s32.totalorder %s15, 1
    %p73 = por %p71, %p72
    %p74 = scmp.ne.s32.totalorder %s63, %s64
    %p75 = scmp.eq.s32.totalorder %s15, 0
    %p76 = por %p74, %p75
    %p77 = scmp.ne.s32.totalorder %s63, %s64
    %p78 = scmp.eq.s32.totalorder %s16, 1
    %p79 = por %p77, %p78
    %p81 = scmp.ne.s32.totalorder %s64, %s80
    %p82 = scmp.eq.s32.totalorder %s16, 0
    %p83 = por %p81, %p82
    %s84 = ssub.s32 %s17, %s29
    %p85 = scmp.eq.s32.totalorder %s84, 0
    %s87 = sadd.s32 %s86, 1
    %s88 = scalar_select %p85, %s86, %s87
    %p91 = pneg %p85
    %p92 = scmp.eq.s32.totalorder %s10, 1
    %p93 = por %p91, %p92
    %p94 = scmp.ne.s32.totalorder %s86, %s89
    %p95 = scmp.eq.s32.totalorder %s10, 0
    %p96 = por %p94, %p95
    %p97 = scmp.ne.s32.totalorder %s86, %s89
    %p98 = scmp.eq.s32.totalorder %s15, 1
    %p99 = por %p97, %p98
    %p100 = scmp.ne.s32.totalorder %s89, %s90
    %p101 = scmp.eq.s32.totalorder %s15, 0
    %p102 = por %p100, %p101
    %p103 = scmp.ne.s32.totalorder %s89, %s90
    %p104 = scmp.eq.s32.totalorder %s16, 1
    %p105 = por %p103, %p104
    %p107 = scmp.ne.s32.totalorder %s90, %s106
    %p108 = scmp.eq.s32.totalorder %s16, 0
    %p109 = por %p107, %p108
    %s110 = ssub.s32 %s18, %s25
    %p111 = scmp.eq.s32.totalorder %s110, 0
    %s113 = sadd.s32 %s112, 1
    %s114 = scalar_select %p111, %s112, %s113
    %p117 = pneg %p111
    %p118 = scmp.eq.s32.totalorder %s10, 1
    %p119 = por %p117, %p118
    %p120 = scmp.ne.s32.totalorder %s112, %s115
    %p121 = scmp.eq.s32.totalorder %s10, 0
    %p122 = por %p120, %p121
    %p123 = scmp.ne.s32.totalorder %s112, %s115
    %p124 = scmp.eq.s32.totalorder %s15, 1
    %p125 = por %p123, %p124
    %p126 = scmp.ne.s32.totalorder %s115, %s116
    %p127 = scmp.eq.s32.totalorder %s15, 0
    %p128 = por %p126, %p127
    %p129 = scmp.ne.s32.totalorder %s115, %s116
    %p130 = scmp.eq.s32.totalorder %s16, 1
    %p131 = por %p129, %p130
    %p133 = scmp.ne.s32.totalorder %s116, %s132
    %p134 = scmp.eq.s32.totalorder %s16, 0
    %p135 = por %p133, %p134
    %s136 = ssub.s32 %s17, %s29
    %s137 = ssub.s32 %s18, %s25
    %s138 = sor.u32 %s136, %s137
    %p139 = scmp.eq.s32.totalorder %s138, 0
    %s141 = sadd.s32 %s140, 1
    %s142 = scalar_select %p139, %s140, %s141
    %p145 = pneg %p139
    %p146 = scmp.eq.s32.totalorder %s10, 1
    %p147 = por %p145, %p146
    %p148 = scmp.ne.s32.totalorder %s140, %s143
    %p149 = scmp.eq.s32.totalorder %s10, 0
    %p150 = por %p148, %p149
    %p151 = scmp.ne.s32.totalorder %s140, %s143
    %p152 = scmp.eq.s32.totalorder %s15, 1
    %p153 = por %p151, %p152
    %p154 = scmp.ne.s32.totalorder %s143, %s144
    %p155 = scmp.eq.s32.totalorder %s15, 0
    %p156 = por %p154, %p155
    %p157 = scmp.ne.s32.totalorder %s143, %s144
    %p158 = scmp.eq.s32.totalorder %s16, 1
    %p159 = por %p157, %p158
    %p161 = scmp.ne.s32.totalorder %s144, %s160
    %p162 = scmp.eq.s32.totalorder %s16, 0
    %p163 = por %p161, %p162
    %p164 = scmp.le.s32.totalorder 1, %s10
    %p165 = scmp.lt.s32.totalorder %s10, 3
    %p166 = pnand %p164, %p165
    %p167 = pneg %p166
    // Predicated region
    $region9: #{synthesis_block_forward.4} parent=5 // pred_check
      _
    $region10: #{synthesis_block_forward.4} parent=5 // pred_check_branch
      %169 = sbr.rel (%p166) target = $region12
    $region11: #{synthesis_block_forward.4} parent=5 // pred_region
      %s170 = ssub.s32 %s10, 1
      // Predicated region
      $region13: #{synthesis_block_forward.4} parent=11 // pred_check
        %p171 = pneg %p128
      $region14: #{synthesis_block_forward.4} parent=11 // pred_check_branch
        %173 = sbr.rel (%p171) target = $region16
      $region15: #{synthesis_block_forward.4} parent=11 // pred_region
        %p174 = scmp.lt.s32.totalorder %s20, 0
        %s175 = scalar_select %p174, %s20, 0
        %s176 = scalar_lea.vmem %s3, %s175
      $region16: #{synthesis_block_forward.4} parent=11 // pred_fallthru
        _
    $region12: #{synthesis_block_forward.4} parent=5 // pred_fallthru
      _
    %p177 = scmp.lt.s32.totalorder %s10, 2
    // Predicated region
    $region17: #{synthesis_block_forward.4} parent=5 // pred_check
      %p178 = pneg %p177
    $region18: #{synthesis_block_forward.4} parent=5 // pred_check_branch
      %180 = sbr.rel (%p178) target = $region20
    $region19: #{synthesis_block_forward.4} parent=5 // pred_region
      // Predicated region
      $region21: #{synthesis_block_forward.4} parent=19 // pred_check
        %p181 = pneg %p42
      $region22: #{synthesis_block_forward.4} parent=19 // pred_check_branch
        %183 = sbr.rel (%p181) target = $region24
      $region23: #{synthesis_block_forward.4} parent=19 // pred_region
        %p184 = scmp.lt.s32.totalorder %s17, 1
        %s185 = scalar_select %p184, %s17, 1
        %s186 = smul.addr %s185, 43
        %s187 = smul.addr %s186, 4
        %s188 = scalar_lea.vmem %s0, %s187
      $region24: #{synthesis_block_forward.4} parent=19 // pred_fallthru
        _
      // Predicated region
      $region25: #{synthesis_block_forward.4} parent=19 // pred_check
        %p189 = pneg %p70
      $region26: #{synthesis_block_forward.4} parent=19 // pred_check_branch
        %191 = sbr.rel (%p189) target = $region28
      $region27: #{synthesis_block_forward.4} parent=19 // pred_region
        %p192 = scmp.lt.s32.totalorder %s17, 1
        %s193 = scalar_select %p192, %s17, 1
        %p194 = scmp.lt.s32.totalorder %s18, 0
        %s195 = scalar_select %p194, %s18, 0
        %s196 = smul.addr %s193, 18
        %s197 = sadd.s32 %s195, %s196
        %s198 = smul.addr %s197, 4
        %s199 = scalar_lea.vmem %s1, %s198
      $region28: #{synthesis_block_forward.4} parent=19 // pred_fallthru
        _
      // Predicated region
      $region29: #{synthesis_block_forward.4} parent=19 // pred_check
        %p200 = pneg %p96
      $region30: #{synthesis_block_forward.4} parent=19 // pred_check_branch
        %202 = sbr.rel (%p200) target = $region32
      $region31: #{synthesis_block_forward.4} parent=19 // pred_region
        %p203 = scmp.lt.s32.totalorder %s17, 1
        %s204 = scalar_select %p203, %s17, 1
        %s205 = smul.addr %s204, 36
        %s206 = smul.addr %s205, 8
        %s207 = scalar_lea.vmem %s2, %s206
      $region32: #{synthesis_block_forward.4} parent=19 // pred_fallthru
        _
    $region20: #{synthesis_block_forward.4} parent=5 // pred_fallthru
      _
    %p208 = scmp.le.s32.totalorder 1, %s10
    %p209 = scmp.lt.s32.totalorder %s10, 3
    %p210 = pnand %p208, %p209
    %p211 = pneg %p210
    // Predicated region
    $region33: #{synthesis_block_forward.4} parent=5 // pred_check
      _
    $region34: #{synthesis_block_forward.4} parent=5 // pred_check_branch
      %213 = sbr.rel (%p210) target = $region36
    $region35: #{synthesis_block_forward.4} parent=5 // pred_region
      %s214 = ssub.s32 %s10, 1
      %p215 = scmp.lt.s32.totalorder %s19, 1
      %s216 = scalar_select %p215, %s19, 1
      %s217 = smul.addr %s216, 43
      %s218 = smul.addr %s217, 4
      %s219 = scalar_lea.vmem %s0, %s218
      %p220 = pneg %p48
      %p221 = pneg %p45
      %p222 = scmp.lt.s32.totalorder %s19, 1
      %s223 = scalar_select %p222, %s19, 1
      %p224 = scmp.lt.s32.totalorder %s20, 0
      %s225 = scalar_select %p224, %s20, 0
      %s226 = smul.addr %s223, 18
      %s227 = sadd.s32 %s225, %s226
      %s228 = smul.addr %s227, 4
      %s229 = scalar_lea.vmem %s1, %s228
      %p230 = pneg %p76
      %p231 = pneg %p73
      %p232 = scmp.lt.s32.totalorder %s19, 1
      %s233 = scalar_select %p232, %s19, 1
      %s234 = smul.addr %s233, 36
      %s235 = smul.addr %s234, 8
      %s236 = scalar_lea.vmem %s2, %s235
      %p237 = pneg %p102
      %p238 = pneg %p99
      %p239 = scmp.lt.s32.totalorder %s20, 0
      %s240 = scalar_select %p239, %s20, 0
      %s241 = scalar_lea.vmem %s3, %s240
      %p242 = pneg %p128
      %p243 = pneg %p125
      %p244 = pneg %p156
      %p245 = pneg %p153
      %p246 = scmp.lt.s32.totalorder %s19, 1
      %s247 = scalar_select %p246, %s19, 1
      %p248 = scmp.lt.s32.totalorder %s20, 0
      %s249 = scalar_select %p248, %s20, 0
      %s250 = smul.addr %s247, 36
      %s251 = sadd.s32 %s249, %s250
      %s252 = smul.addr %s251, 8
      %s253 = scalar_lea.vmem %s4, %s252
      %p254 = scmp.lt.s32.totalorder %s19, 1
      %s255 = scalar_select %p254, %s19, 1
      %s256 = smul.addr %s255, 43
      %s257 = smul.addr %s256, 4
      %s258 = scalar_lea.vmem %s0, %s257
      %p259 = scmp.lt.s32.totalorder %s19, 1
      %s260 = scalar_select %p259, %s19, 1
      %p261 = scmp.lt.s32.totalorder %s20, 0
      %s262 = scalar_select %p261, %s20, 0
      %s263 = smul.addr %s260, 18
      %s264 = sadd.s32 %s262, %s263
      %s265 = smul.addr %s264, 4
      %s266 = scalar_lea.vmem %s1, %s265
      %p267 = scmp.lt.s32.totalorder %s19, 1
      %s268 = scalar_select %p267, %s19, 1
      %s269 = smul.addr %s268, 36
      %s270 = smul.addr %s269, 8
      %s271 = scalar_lea.vmem %s2, %s270
      %p272 = scmp.lt.s32.totalorder %s20, 0
      %s273 = scalar_select %p272, %s20, 0
      %s274 = scalar_lea.vmem %s3, %s273
      %p275 = scmp.lt.s32.totalorder %s19, 1
      %s276 = scalar_select %p275, %s19, 1
      %p277 = scmp.lt.s32.totalorder %s20, 0
      %s278 = scalar_select %p277, %s20, 0
      %s279 = smul.addr %s276, 36
      %s280 = sadd.s32 %s278, %s279
      %s281 = smul.addr %s280, 8
      %s282 = scalar_lea.vmem %s4, %s281
      %v284 = vld [vmem:[%s258] sm:$0xf]
      %v285 = vld [vmem:[%s258 + $0x4] sm:$0xf]
      %v286 = vld [vmem:[%s258 + $0x8] sm:$0xf]
      %v287 = vld [vmem:[%s258 + $0xc] sm:$0xf]
      %v288 = vld [vmem:[%s258 + $0x10] sm:$0xf]
      %v289 = vld [vmem:[%s258 + $0x14] sm:$0xf]
      %v290 = vld [vmem:[%s258 + $0x18] sm:$0xf]
      %v291 = vld [vmem:[%s258 + $0x1c] sm:$0xf]
      %v292 = vld [vmem:[%s258 + $0x20] sm:$0xf]
      %v293 = vld [vmem:[%s258 + $0x24] sm:$0xf]
      %v294 = vld [vmem:[%s258 + $0x28] sm:$0xf]
      %v295 = vld [vmem:[%s258 + $0x2c] sm:$0xf]
      %v296 = vld [vmem:[%s258 + $0x30] sm:$0xf]
      %v297 = vld [vmem:[%s258 + $0x34] sm:$0xf]
      %v298 = vld [vmem:[%s258 + $0x38] sm:$0xf]
      %v299 = vld [vmem:[%s258 + $0x3c] sm:$0xf]
      %v300 = vld [vmem:[%s258 + $0x40] sm:$0xf]
      %v301 = vld [vmem:[%s258 + $0x44] sm:$0xf]
      %v302 = vld [vmem:[%s258 + $0x48] sm:$0xf]
      %v303 = vld [vmem:[%s258 + $0x4c] sm:$0xf]
      %v304 = vld [vmem:[%s258 + $0x50] sm:$0xf]
      %v305 = vld [vmem:[%s258 + $0x54] sm:$0xf]
      %v306 = vld [vmem:[%s258 + $0x58] sm:$0xf]
      %v307 = vld [vmem:[%s258 + $0x5c] sm:$0xf]
      %v308 = vld [vmem:[%s258 + $0x60] sm:$0xf]
      %v309 = vld [vmem:[%s258 + $0x64] sm:$0xf]
      %v310 = vld [vmem:[%s258 + $0x68] sm:$0xf]
      %v311 = vld [vmem:[%s258 + $0x6c] sm:$0xf]
      %v312 = vld [vmem:[%s258 + $0x70] sm:$0xf]
      %v313 = vld [vmem:[%s258 + $0x74] sm:$0xf]
      %v314 = vld [vmem:[%s258 + $0x78] sm:$0xf]
      %v315 = vld [vmem:[%s258 + $0x7c] sm:$0xf]
      %v316 = vld [vmem:[%s258 + $0x80] sm:$0xf]
      %v317 = vld [vmem:[%s258 + $0x84] sm:$0xf]
      %v318 = vld [vmem:[%s258 + $0x88] sm:$0xf]
      %v319 = vld [vmem:[%s258 + $0x8c] sm:$0xf]
      %v320 = vld [vmem:[%s266] sm:$0xf]
      %v321 = vld [vmem:[%s266 + $0x4] sm:$0xf]
      %v322 = vld [vmem:[%s258 + $0x90] sm:$0x1]
      %s323 = scalar_lea.vmem %s266, 8
      %v324 = vld [vmem:[%s323] sm:$0xf]
      %v325 = vld [vmem:[%s323 + $0x4] sm:$0xf]
      %v363 = vunpack.c.l.b16 %v284
      %v364 = vunpack.c.l.b16 %v285
      %v365 = vunpack.c.l.b16 %v286
      %v366 = vunpack.c.l.b16 %v287
      %v367 = vunpack.c.l.b16 %v288
      %v368 = vunpack.c.l.b16 %v289
      %v369 = vunpack.c.l.b16 %v290
      %v370 = vunpack.c.l.b16 %v291
      %v371 = vunpack.c.l.b16 %v292
      %v372 = vunpack.c.l.b16 %v293
      %v373 = vunpack.c.l.b16 %v294
      %v374 = vunpack.c.l.b16 %v295
      %v375 = vunpack.c.l.b16 %v296
      %v376 = vunpack.c.l.b16 %v297
      %v377 = vunpack.c.l.b16 %v298
      %v378 = vunpack.c.l.b16 %v299
      %v379 = vunpack.c.l.b16 %v300
      %v380 = vunpack.c.l.b16 %v301
      %v381 = vunpack.c.l.b16 %v302
      %v382 = vunpack.c.l.b16 %v303
      %v383 = vunpack.c.l.b16 %v304
      %v384 = vunpack.c.l.b16 %v305
      %v385 = vunpack.c.l.b16 %v306
      %v386 = vunpack.c.l.b16 %v307
      %v387 = vunpack.c.l.b16 %v308
      %v388 = vunpack.c.l.b16 %v309
      %v389 = vunpack.c.l.b16 %v310
      %v390 = vunpack.c.l.b16 %v311
      %v391 = vunpack.c.l.b16 %v312
      %v392 = vunpack.c.l.b16 %v313
      %v393 = vunpack.c.l.b16 %v314
      %v394 = vunpack.c.l.b16 %v315
      %v395 = vunpack.c.l.b16 %v316
      %v396 = vunpack.c.l.b16 %v317
      %v397 = vunpack.c.l.b16 %v318
      %v398 = vunpack.c.l.b16 %v319
      %v399 = vunpack.c.l.b16 %v322
      %v400 = vpack.c.b16 %v364, %v363
      %v401 = vpack.c.b16 %v366, %v365
      %v402 = vpack.c.b16 %v368, %v367
      %v403 = vpack.c.b16 %v370, %v369
      %v404 = vpack.c.b16 %v372, %v371
      %v405 = vpack.c.b16 %v374, %v373
      %v406 = vpack.c.b16 %v376, %v375
      %v407 = vpack.c.b16 %v378, %v377
      %v408 = vpack.c.b16 %v380, %v379
      %v409 = vpack.c.b16 %v382, %v381
      %v410 = vpack.c.b16 %v384, %v383
      %v411 = vpack.c.b16 %v386, %v385
      %v412 = vpack.c.b16 %v388, %v387
      %v413 = vpack.c.b16 %v390, %v389
      %v414 = vpack.c.b16 %v392, %v391
      %v415 = vpack.c.b16 %v394, %v393
      %v416 = vpack.c.b16 %v396, %v395
      %v417 = vpack.c.b16 %v398, %v397
      %v418 = vpack.c.b16 %v399, %v399
      %vm419 = vsmask.f32 7424
      %v421 = vshrl.u32 %v400, 16
      %v423 = vshll.u32 %v400, 16
      %v425 = vrot.slane %v423, 1
      %v426 = vor.u32 %v421, %v425
      %v428 = vshll.u32 %v401, 16
      %v430 = vrot.slane %v428, 1
      %v431 = vsel %vm419, %v426, %v430
      %v432 = vshrl.u32 %v401, 16
      %v434 = vor.u32 %v432, %v430
      %v436 = vshll.u32 %v402, 16
      %v438 = vrot.slane %v436, 1
      %v439 = vsel %vm419, %v434, %v438
      %v440 = vshrl.u32 %v402, 16
      %v442 = vor.u32 %v440, %v438
      %v444 = vshll.u32 %v403, 16
      %v446 = vrot.slane %v444, 1
      %v447 = vsel %vm419, %v442, %v446
      %v448 = vshrl.u32 %v403, 16
      %v450 = vor.u32 %v448, %v446
      %v452 = vshll.u32 %v404, 16
      %v454 = vrot.slane %v452, 1
      %v455 = vsel %vm419, %v450, %v454
      %v456 = vshrl.u32 %v404, 16
      %v458 = vor.u32 %v456, %v454
      %v460 = vshll.u32 %v405, 16
      %v462 = vrot.slane %v460, 1
      %v463 = vsel %vm419, %v458, %v462
      %v464 = vshrl.u32 %v405, 16
      %v466 = vor.u32 %v464, %v462
      %v468 = vshll.u32 %v406, 16
      %v470 = vrot.slane %v468, 1
      %v471 = vsel %vm419, %v466, %v470
      %v472 = vshrl.u32 %v406, 16
      %v474 = vor.u32 %v472, %v470
      %v476 = vshll.u32 %v407, 16
      %v478 = vrot.slane %v476, 1
      %v479 = vsel %vm419, %v474, %v478
      %v480 = vshrl.u32 %v407, 16
      %v482 = vor.u32 %v480, %v478
      %v484 = vshll.u32 %v408, 16
      %v486 = vrot.slane %v484, 1
      %v487 = vsel %vm419, %v482, %v486
      %v488 = vshrl.u32 %v408, 16
      %v490 = vor.u32 %v488, %v486
      %v492 = vshll.u32 %v409, 16
      %v494 = vrot.slane %v492, 1
      %v495 = vsel %vm419, %v490, %v494
      %v496 = vshrl.u32 %v409, 16
      %v498 = vor.u32 %v496, %v494
      %v500 = vshll.u32 %v410, 16
      %v502 = vrot.slane %v500, 1
      %v503 = vsel %vm419, %v498, %v502
      %v504 = vshrl.u32 %v410, 16
      %v506 = vor.u32 %v504, %v502
      %v508 = vshll.u32 %v411, 16
      %v510 = vrot.slane %v508, 1
      %v511 = vsel %vm419, %v506, %v510
      %v512 = vshrl.u32 %v411, 16
      %v514 = vor.u32 %v512, %v510
      %v516 = vshll.u32 %v412, 16
      %v518 = vrot.slane %v516, 1
      %v519 = vsel %vm419, %v514, %v518
      %v520 = vshrl.u32 %v412, 16
      %v522 = vor.u32 %v520, %v518
      %v524 = vshll.u32 %v413, 16
      %v526 = vrot.slane %v524, 1
      %v527 = vsel %vm419, %v522, %v526
      %v528 = vshrl.u32 %v413, 16
      %v530 = vor.u32 %v528, %v526
      %v532 = vshll.u32 %v414, 16
      %v534 = vrot.slane %v532, 1
      %v535 = vsel %vm419, %v530, %v534
      %v536 = vshrl.u32 %v414, 16
      %v538 = vor.u32 %v536, %v534
      %v540 = vshll.u32 %v415, 16
      %v542 = vrot.slane %v540, 1
      %v543 = vsel %vm419, %v538, %v542
      %v544 = vshrl.u32 %v415, 16
      %v546 = vor.u32 %v544, %v542
      %v548 = vshll.u32 %v416, 16
      %v550 = vrot.slane %v548, 1
      %v551 = vsel %vm419, %v546, %v550
      %v552 = vshrl.u32 %v416, 16
      %v554 = vor.u32 %v552, %v550
      %v556 = vshll.u32 %v417, 16
      %v558 = vrot.slane %v556, 1
      %v559 = vsel %vm419, %v554, %v558
      %v560 = vshrl.u32 %v417, 16
      %v562 = vor.u32 %v560, %v558
      %v564 = vshll.u32 %v418, 16
      %v566 = vrot.slane %v564, 1
      %v567 = vsel %vm419, %v562, %v566
      %v570 = vunpack.c.l.b16 %v324
      %v571 = vunpack.c.l.b16 %v325
      %v572 = vpack.c.b16 %v571, %v570
      %vm574 = vcmask 130048
      %v576 = vsel %vm574, %v431, 0
      %v579 = vsel %vm574, %v439, 0
      %v582 = vsel %vm574, %v447, 0
      %v585 = vsel %vm574, %v455, 0
      %v588 = vsel %vm574, %v463, 0
      %v591 = vsel %vm574, %v471, 0
      %v594 = vsel %vm574, %v479, 0
      %v597 = vsel %vm574, %v487, 0
      %v600 = vsel %vm574, %v495, 0
      %v603 = vsel %vm574, %v503, 0
      %v606 = vsel %vm574, %v511, 0
      %v609 = vsel %vm574, %v519, 0
      %v612 = vsel %vm574, %v527, 0
      %v615 = vsel %vm574, %v535, 0
      %v618 = vsel %vm574, %v543, 0
      %v621 = vsel %vm574, %v551, 0
      %v624 = vsel %vm574, %v559, 0
      %v627 = vsel %vm574, %v567, 0
      %629 = vmatprep.subr.bf16.mxu0 0
      %630 = vmatpush1.bf16.msra.mxu0 0
      %631 = vmatprep.subr.bf16.mxu0 0
      %632 = vmatpush1.bf16.msra.mxu0 0
      %633 = vmatprep.subr.bf16.mxu0 0
      %634 = vmatpush1.bf16.msra.mxu0 0
      %635 = vmatprep.subr.bf16.mxu0 0
      %636 = vmatpush1.bf16.msra.mxu0 0
      %637 = vmatprep.subr.bf16.mxu0 0
      %638 = vmatpush1.bf16.msra.mxu0 0
      %639 = vmatprep.subr.bf16.mxu0 0
      %640 = vmatpush1.bf16.msra.mxu0 0
      %641 = vmatprep.subr.bf16.mxu0 0
      %642 = vmatpush1.bf16.msra.mxu0 0
      %643 = vmatprep.subr.bf16.mxu0 0
      %644 = vmatpush1.bf16.msra.mxu0 %v572
      %645 = vmatprep.subr.bf16.mxu0 0
      %646 = vmatpush2.bf16.msra.mxu0 0
      %647 = vmatprep.subr.bf16.mxu0 0
      %648 = vmatpush2.bf16.msra.mxu0 0
      %649 = vmatprep.subr.bf16.mxu0 0
      %650 = vmatpush2.bf16.msra.mxu0 0
      %651 = vmatprep.subr.bf16.mxu0 0
      %652 = vmatpush2.bf16.msra.mxu0 0
      %653 = vmatprep.subr.bf16.mxu0 0
      %654 = vmatpush2.bf16.msra.mxu0 0
      %655 = vmatprep.subr.bf16.mxu0 0
      %656 = vmatpush2.bf16.msra.mxu0 0
      %657 = vmatprep.subr.bf16.mxu0 0
      %658 = vmatpush2.bf16.msra.mxu0 0
      %659 = vmatprep.subr.bf16.mxu0 0
      %660 = vmatpush2.bf16.msra.mxu0 0
      %661 = vmatprep.mubr.bf16.mxu0 0
      %662 = vmatmul.mubr.bf16.gmra.mxu0 %v576
      %v663 = vpop.f32.mrf.mxu0
      %v664 = vadd.f32 0.0, %v663
      %v665 = vpop.f32.mrf.mxu0
      %v666 = vpop.f32.mrf.mxu0
      %v667 = vadd.f32 0.0, %v666
      %v668 = vpop.f32.mrf.mxu0
      %669 = vmatprep.mubr.bf16.mxu0 0
      %670 = vmatmul.mubr.bf16.gmra.mxu0 %v579
      %v671 = vpop.f32.mrf.mxu0
      %v672 = vadd.f32 0.0, %v671
      %v673 = vpop.f32.mrf.mxu0
      %v674 = vpop.f32.mrf.mxu0
      %v675 = vadd.f32 0.0, %v674
      %v676 = vpop.f32.mrf.mxu0
      %677 = vmatprep.mubr.bf16.mxu0 0
      %678 = vmatmul.mubr.bf16.gmra.mxu0 %v582
      %v679 = vpop.f32.mrf.mxu0
      %v680 = vadd.f32 0.0, %v679
      %v681 = vpop.f32.mrf.mxu0
      %v682 = vpop.f32.mrf.mxu0
      %v683 = vadd.f32 0.0, %v682
      %v684 = vpop.f32.mrf.mxu0
      %685 = vmatprep.mubr.bf16.mxu0 0
      %686 = vmatmul.mubr.bf16.gmra.mxu0 %v585
      %v687 = vpop.f32.mrf.mxu0
      %v688 = vadd.f32 0.0, %v687
      %v689 = vpop.f32.mrf.mxu0
      %v690 = vpop.f32.mrf.mxu0
      %v691 = vadd.f32 0.0, %v690
      %v692 = vpop.f32.mrf.mxu0
      %693 = vmatprep.mubr.bf16.mxu0 0
      %694 = vmatmul.mubr.bf16.gmra.mxu0 %v588
      %v695 = vpop.f32.mrf.mxu0
      %v696 = vadd.f32 0.0, %v695
      %v697 = vpop.f32.mrf.mxu0
      %v698 = vpop.f32.mrf.mxu0
      %v699 = vadd.f32 0.0, %v698
      %v700 = vpop.f32.mrf.mxu0
      %701 = vmatprep.mubr.bf16.mxu0 0
      %702 = vmatmul.mubr.bf16.gmra.mxu0 %v591
      %v703 = vpop.f32.mrf.mxu0
      %v704 = vadd.f32 0.0, %v703
      %v705 = vpop.f32.mrf.mxu0
      %v706 = vpop.f32.mrf.mxu0
      %v707 = vadd.f32 0.0, %v706
      %v708 = vpop.f32.mrf.mxu0
      %709 = vmatprep.mubr.bf16.mxu0 0
      %710 = vmatmul.mubr.bf16.gmra.mxu0 %v594
      %v711 = vpop.f32.mrf.mxu0
      %v712 = vadd.f32 0.0, %v711
      %v713 = vpop.f32.mrf.mxu0
      %v714 = vpop.f32.mrf.mxu0
      %v715 = vadd.f32 0.0, %v714
      %v716 = vpop.f32.mrf.mxu0
      %717 = vmatprep.mubr.bf16.mxu0 0
      %718 = vmatmul.mubr.bf16.gmra.mxu0 %v597
      %v719 = vpop.f32.mrf.mxu0
      %v720 = vadd.f32 0.0, %v719
      %v721 = vpop.f32.mrf.mxu0
      %v722 = vpop.f32.mrf.mxu0
      %v723 = vadd.f32 0.0, %v722
      %v724 = vpop.f32.mrf.mxu0
      %725 = vmatprep.mubr.bf16.mxu0 0
      %726 = vmatmul.mubr.bf16.gmra.mxu0 %v600
      %v727 = vpop.f32.mrf.mxu0
      %v728 = vadd.f32 0.0, %v727
      %v729 = vpop.f32.mrf.mxu0
      %v730 = vpop.f32.mrf.mxu0
      %v731 = vadd.f32 0.0, %v730
      %v732 = vpop.f32.mrf.mxu0
      %733 = vmatprep.mubr.bf16.mxu0 0
      %734 = vmatmul.mubr.bf16.gmra.mxu0 %v603
      %v735 = vpop.f32.mrf.mxu0
      %v736 = vadd.f32 0.0, %v735
      %v737 = vpop.f32.mrf.mxu0
      %v738 = vpop.f32.mrf.mxu0
      %v739 = vadd.f32 0.0, %v738
      %v740 = vpop.f32.mrf.mxu0
      %741 = vmatprep.mubr.bf16.mxu0 0
      %742 = vmatmul.mubr.bf16.gmra.mxu0 %v606
      %v743 = vpop.f32.mrf.mxu0
      %v744 = vadd.f32 0.0, %v743
      %v745 = vpop.f32.mrf.mxu0
      %v746 = vpop.f32.mrf.mxu0
      %v747 = vadd.f32 0.0, %v746
      %v748 = vpop.f32.mrf.mxu0
      %749 = vmatprep.mubr.bf16.mxu0 0
      %750 = vmatmul.mubr.bf16.gmra.mxu0 %v609
      %v751 = vpop.f32.mrf.mxu0
      %v752 = vadd.f32 0.0, %v751
      %v753 = vpop.f32.mrf.mxu0
      %v754 = vpop.f32.mrf.mxu0
      %v755 = vadd.f32 0.0, %v754
      %v756 = vpop.f32.mrf.mxu0
      %757 = vmatprep.mubr.bf16.mxu0 0
      %758 = vmatmul.mubr.bf16.gmra.mxu0 %v612
      %v759 = vpop.f32.mrf.mxu0
      %v760 = vadd.f32 0.0, %v759
      %v761 = vpop.f32.mrf.mxu0
      %v762 = vpop.f32.mrf.mxu0
      %v763 = vadd.f32 0.0, %v762
      %v764 = vpop.f32.mrf.mxu0
      %765 = vmatprep.mubr.bf16.mxu0 0
      %766 = vmatmul.mubr.bf16.gmra.mxu0 %v615
      %v767 = vpop.f32.mrf.mxu0
      %v768 = vadd.f32 0.0, %v767
      %v769 = vpop.f32.mrf.mxu0
      %v770 = vpop.f32.mrf.mxu0
      %v771 = vadd.f32 0.0, %v770
      %v772 = vpop.f32.mrf.mxu0
      %773 = vmatprep.mubr.bf16.mxu0 0
      %774 = vmatmul.mubr.bf16.gmra.mxu0 %v618
      %v775 = vpop.f32.mrf.mxu0
      %v776 = vadd.f32 0.0, %v775
      %v777 = vpop.f32.mrf.mxu0
      %v778 = vpop.f32.mrf.mxu0
      %v779 = vadd.f32 0.0, %v778
      %v780 = vpop.f32.mrf.mxu0
      %781 = vmatprep.mubr.bf16.mxu0 0
      %782 = vmatmul.mubr.bf16.gmra.mxu0 %v621
      %v783 = vpop.f32.mrf.mxu0
      %v784 = vadd.f32 0.0, %v783
      %v785 = vpop.f32.mrf.mxu0
      %v786 = vpop.f32.mrf.mxu0
      %v787 = vadd.f32 0.0, %v786
      %v788 = vpop.f32.mrf.mxu0
      %789 = vmatprep.mubr.bf16.mxu0 0
      %790 = vmatmul.mubr.bf16.gmra.mxu0 %v624
      %v791 = vpop.f32.mrf.mxu0
      %v792 = vadd.f32 0.0, %v791
      %v793 = vpop.f32.mrf.mxu0
      %v794 = vpop.f32.mrf.mxu0
      %v795 = vadd.f32 0.0, %v794
      %v796 = vpop.f32.mrf.mxu0
      %797 = vmatprep.mubr.bf16.mxu0 0
      %798 = vmatmul.mubr.bf16.gmra.mxu0 %v627
      %v799 = vpop.f32.mrf.mxu0
      %v800 = vadd.f32 0.0, %v799
      %v801 = vpop.f32.mrf.mxu0
      %v802 = vpop.f32.mrf.mxu0
      %v803 = vadd.f32 0.0, %v802
      %v804 = vpop.f32.mrf.mxu0
      %805 = vdwg.mxu0
      %v808 = vunpack.c.l.b16 %v320
      %v809 = vunpack.c.l.b16 %v321
      %v810 = vpack.c.b16 %v809, %v808
      %v812 = vsel %vm574, %v400, 0
      %v814 = vsel %vm574, %v401, 0
      %v816 = vsel %vm574, %v402, 0
      %v818 = vsel %vm574, %v403, 0
      %v820 = vsel %vm574, %v404, 0
      %v822 = vsel %vm574, %v405, 0
      %v824 = vsel %vm574, %v406, 0
      %v826 = vsel %vm574, %v407, 0
      %v828 = vsel %vm574, %v408, 0
      %v830 = vsel %vm574, %v409, 0
      %v832 = vsel %vm574, %v410, 0
      %v834 = vsel %vm574, %v411, 0
      %v836 = vsel %vm574, %v412, 0
      %v838 = vsel %vm574, %v413, 0
      %v840 = vsel %vm574, %v414, 0
      %v842 = vsel %vm574, %v415, 0
      %v844 = vsel %vm574, %v416, 0
      %v846 = vsel %vm574, %v417, 0
      %848 = vmatprep.subr.bf16.mxu0 0
      %849 = vmatpush1.bf16.msra.mxu0 0
      %850 = vmatprep.subr.bf16.mxu0 0
      %851 = vmatpush1.bf16.msra.mxu0 0
      %852 = vmatprep.subr.bf16.mxu0 0
      %853 = vmatpush1.bf16.msra.mxu0 0
      %854 = vmatprep.subr.bf16.mxu0 0
      %855 = vmatpush1.bf16.msra.mxu0 0
      %856 = vmatprep.subr.bf16.mxu0 0
      %857 = vmatpush1.bf16.msra.mxu0 0
      %858 = vmatprep.subr.bf16.mxu0 0
      %859 = vmatpush1.bf16.msra.mxu0 0
      %860 = vmatprep.subr.bf16.mxu0 0
      %861 = vmatpush1.bf16.msra.mxu0 0
      %862 = vmatprep.subr.bf16.mxu0 0
      %863 = vmatpush1.bf16.msra.mxu0 %v810
      %864 = vmatprep.subr.bf16.mxu0 0
      %865 = vmatpush2.bf16.msra.mxu0 0
      %866 = vmatprep.subr.bf16.mxu0 0
      %867 = vmatpush2.bf16.msra.mxu0 0
      %868 = vmatprep.subr.bf16.mxu0 0
      %869 = vmatpush2.bf16.msra.mxu0 0
      %870 = vmatprep.subr.bf16.mxu0 0
      %871 = vmatpush2.bf16.msra.mxu0 0
      %872 = vmatprep.subr.bf16.mxu0 0
      %873 = vmatpush2.bf16.msra.mxu0 0
      %874 = vmatprep.subr.bf16.mxu0 0
      %875 = vmatpush2.bf16.msra.mxu0 0
      %876 = vmatprep.subr.bf16.mxu0 0
      %877 = vmatpush2.bf16.msra.mxu0 0
      %878 = vmatprep.subr.bf16.mxu0 0
      %879 = vmatpush2.bf16.msra.mxu0 0
      %880 = vmatprep.mubr.bf16.mxu0 0
      %881 = vmatmul.mubr.bf16.gmra.mxu0 %v812
      %v882 = vpop.f32.mrf.mxu0
      %v883 = vadd.f32 %v664, %v882
      %v884 = vpop.f32.mrf.mxu0
      %v885 = vpop.f32.mrf.mxu0
      %v886 = vadd.f32 %v667, %v885
      %v887 = vpop.f32.mrf.mxu0
      %888 = vmatprep.mubr.bf16.mxu0 0
      %889 = vmatmul.mubr.bf16.gmra.mxu0 %v814
      %v890 = vpop.f32.mrf.mxu0
      %v891 = vadd.f32 %v672, %v890
      %v892 = vpop.f32.mrf.mxu0
      %v893 = vpop.f32.mrf.mxu0
      %v894 = vadd.f32 %v675, %v893
      %v895 = vpop.f32.mrf.mxu0
      %896 = vmatprep.mubr.bf16.mxu0 0
      %897 = vmatmul.mubr.bf16.gmra.mxu0 %v816
      %v898 = vpop.f32.mrf.mxu0
      %v899 = vadd.f32 %v680, %v898
      %v900 = vpop.f32.mrf.mxu0
      %v901 = vpop.f32.mrf.mxu0
      %v902 = vadd.f32 %v683, %v901
      %v903 = vpop.f32.mrf.mxu0
      %904 = vmatprep.mubr.bf16.mxu0 0
      %905 = vmatmul.mubr.bf16.gmra.mxu0 %v818
      %v906 = vpop.f32.mrf.mxu0
      %v907 = vadd.f32 %v688, %v906
      %v908 = vpop.f32.mrf.mxu0
      %v909 = vpop.f32.mrf.mxu0
      %v910 = vadd.f32 %v691, %v909
      %v911 = vpop.f32.mrf.mxu0
      %912 = vmatprep.mubr.bf16.mxu0 0
      %913 = vmatmul.mubr.bf16.gmra.mxu0 %v820
      %v914 = vpop.f32.mrf.mxu0
      %v915 = vadd.f32 %v696, %v914
      %v916 = vpop.f32.mrf.mxu0
      %v917 = vpop.f32.mrf.mxu0
      %v918 = vadd.f32 %v699, %v917
      %v919 = vpop.f32.mrf.mxu0
      %920 = vmatprep.mubr.bf16.mxu0 0
      %921 = vmatmul.mubr.bf16.gmra.mxu0 %v822
      %v922 = vpop.f32.mrf.mxu0
      %v923 = vadd.f32 %v704, %v922
      %v924 = vpop.f32.mrf.mxu0
      %v925 = vpop.f32.mrf.mxu0
      %v926 = vadd.f32 %v707, %v925
      %v927 = vpop.f32.mrf.mxu0
      %928 = vmatprep.mubr.bf16.mxu0 0
      %929 = vmatmul.mubr.bf16.gmra.mxu0 %v824
      %v930 = vpop.f32.mrf.mxu0
      %v931 = vadd.f32 %v712, %v930
      %v932 = vpop.f32.mrf.mxu0
      %v933 = vpop.f32.mrf.mxu0
      %v934 = vadd.f32 %v715, %v933
      %v935 = vpop.f32.mrf.mxu0
      %936 = vmatprep.mubr.bf16.mxu0 0
      %937 = vmatmul.mubr.bf16.gmra.mxu0 %v826
      %v938 = vpop.f32.mrf.mxu0
      %v939 = vadd.f32 %v720, %v938
      %v940 = vpop.f32.mrf.mxu0
      %v941 = vpop.f32.mrf.mxu0
      %v942 = vadd.f32 %v723, %v941
      %v943 = vpop.f32.mrf.mxu0
      %944 = vmatprep.mubr.bf16.mxu0 0
      %945 = vmatmul.mubr.bf16.gmra.mxu0 %v828
      %v946 = vpop.f32.mrf.mxu0
      %v947 = vadd.f32 %v728, %v946
      %v948 = vpop.f32.mrf.mxu0
      %v949 = vpop.f32.mrf.mxu0
      %v950 = vadd.f32 %v731, %v949
      %v951 = vpop.f32.mrf.mxu0
      %952 = vmatprep.mubr.bf16.mxu0 0
      %953 = vmatmul.mubr.bf16.gmra.mxu0 %v830
      %v954 = vpop.f32.mrf.mxu0
      %v955 = vadd.f32 %v736, %v954
      %v956 = vpop.f32.mrf.mxu0
      %v957 = vpop.f32.mrf.mxu0
      %v958 = vadd.f32 %v739, %v957
      %v959 = vpop.f32.mrf.mxu0
      %960 = vmatprep.mubr.bf16.mxu0 0
      %961 = vmatmul.mubr.bf16.gmra.mxu0 %v832
      %v962 = vpop.f32.mrf.mxu0
      %v963 = vadd.f32 %v744, %v962
      %v964 = vpop.f32.mrf.mxu0
      %v965 = vpop.f32.mrf.mxu0
      %v966 = vadd.f32 %v747, %v965
      %v967 = vpop.f32.mrf.mxu0
      %968 = vmatprep.mubr.bf16.mxu0 0
      %969 = vmatmul.mubr.bf16.gmra.mxu0 %v834
      %v970 = vpop.f32.mrf.mxu0
      %v971 = vadd.f32 %v752, %v970
      %v972 = vpop.f32.mrf.mxu0
      %v973 = vpop.f32.mrf.mxu0
      %v974 = vadd.f32 %v755, %v973
      %v975 = vpop.f32.mrf.mxu0
      %976 = vmatprep.mubr.bf16.mxu0 0
      %977 = vmatmul.mubr.bf16.gmra.mxu0 %v836
      %v978 = vpop.f32.mrf.mxu0
      %v979 = vadd.f32 %v760, %v978
      %v980 = vpop.f32.mrf.mxu0
      %v981 = vpop.f32.mrf.mxu0
      %v982 = vadd.f32 %v763, %v981
      %v983 = vpop.f32.mrf.mxu0
      %984 = vmatprep.mubr.bf16.mxu0 0
      %985 = vmatmul.mubr.bf16.gmra.mxu0 %v838
      %v986 = vpop.f32.mrf.mxu0
      %v987 = vadd.f32 %v768, %v986
      %v988 = vpop.f32.mrf.mxu0
      %v989 = vpop.f32.mrf.mxu0
      %v990 = vadd.f32 %v771, %v989
      %v991 = vpop.f32.mrf.mxu0
      %992 = vmatprep.mubr.bf16.mxu0 0
      %993 = vmatmul.mubr.bf16.gmra.mxu0 %v840
      %v994 = vpop.f32.mrf.mxu0
      %v995 = vadd.f32 %v776, %v994
      %v996 = vpop.f32.mrf.mxu0
      %v997 = vpop.f32.mrf.mxu0
      %v998 = vadd.f32 %v779, %v997
      %v999 = vpop.f32.mrf.mxu0
      %1000 = vmatprep.mubr.bf16.mxu0 0
      %1001 = vmatmul.mubr.bf16.gmra.mxu0 %v842
      %v1002 = vpop.f32.mrf.mxu0
      %v1003 = vadd.f32 %v784, %v1002
      %v1004 = vpop.f32.mrf.mxu0
      %v1005 = vpop.f32.mrf.mxu0
      %v1006 = vadd.f32 %v787, %v1005
      %v1007 = vpop.f32.mrf.mxu0
      %1008 = vmatprep.mubr.bf16.mxu0 0
      %1009 = vmatmul.mubr.bf16.gmra.mxu0 %v844
      %v1010 = vpop.f32.mrf.mxu0
      %v1011 = vadd.f32 %v792, %v1010
      %v1012 = vpop.f32.mrf.mxu0
      %v1013 = vpop.f32.mrf.mxu0
      %v1014 = vadd.f32 %v795, %v1013
      %v1015 = vpop.f32.mrf.mxu0
      %1016 = vmatprep.mubr.bf16.mxu0 0
      %1017 = vmatmul.mubr.bf16.gmra.mxu0 %v846
      %v1018 = vpop.f32.mrf.mxu0
      %v1019 = vadd.f32 %v800, %v1018
      %v1020 = vpop.f32.mrf.mxu0
      %v1021 = vpop.f32.mrf.mxu0
      %v1022 = vadd.f32 %v803, %v1021
      %v1023 = vpop.f32.mrf.mxu0
      %1024 = vdwg.mxu0
      %v1025 = vld [vmem:[%s258] sm:$0xe]
      %s1026 = scalar_lea.vmem %s266, 16
      %v1027 = vld [vmem:[%s1026] sm:$0xf]
      %v1028 = vld [vmem:[%s1026 + $0x4] sm:$0xf]
      %v1030 = vunpack.c.l.b16 %v1025
      %v1031 = vpack.c.b16 %v364, %v1030
      %vm1032 = vcmask 1046528
      %v1033 = vrot.slane %v1031, 1
      %v1034 = vrot.slane %v401, 1
      %v1035 = vsel %vm1032, %v1033, %v1034
      %v1036 = vrot.slane %v402, 1
      %v1037 = vsel %vm1032, %v1034, %v1036
      %v1038 = vrot.slane %v403, 1
      %v1039 = vsel %vm1032, %v1036, %v1038
      %v1040 = vrot.slane %v404, 1
      %v1041 = vsel %vm1032, %v1038, %v1040
      %v1042 = vrot.slane %v405, 1
      %v1043 = vsel %vm1032, %v1040, %v1042
      %v1044 = vrot.slane %v406, 1
      %v1045 = vsel %vm1032, %v1042, %v1044
      %v1046 = vrot.slane %v407, 1
      %v1047 = vsel %vm1032, %v1044, %v1046
      %v1048 = vrot.slane %v408, 1
      %v1049 = vsel %vm1032, %v1046, %v1048
      %v1050 = vrot.slane %v409, 1
      %v1051 = vsel %vm1032, %v1048, %v1050
      %v1052 = vrot.slane %v410, 1
      %v1053 = vsel %vm1032, %v1050, %v1052
      %v1054 = vrot.slane %v411, 1
      %v1055 = vsel %vm1032, %v1052, %v1054
      %v1056 = vrot.slane %v412, 1
      %v1057 = vsel %vm1032, %v1054, %v1056
      %v1058 = vrot.slane %v413, 1
      %v1059 = vsel %vm1032, %v1056, %v1058
      %v1060 = vrot.slane %v414, 1
      %v1061 = vsel %vm1032, %v1058, %v1060
      %v1062 = vrot.slane %v415, 1
      %v1063 = vsel %vm1032, %v1060, %v1062
      %v1064 = vrot.slane %v416, 1
      %v1065 = vsel %vm1032, %v1062, %v1064
      %v1066 = vrot.slane %v417, 1
      %v1067 = vsel %vm1032, %v1064, %v1066
      %v1068 = vrot.slane %v418, 1
      %v1069 = vsel %vm1032, %v1066, %v1068
      %v1072 = vunpack.c.l.b16 %v1027
      %v1073 = vunpack.c.l.b16 %v1028
      %v1074 = vpack.c.b16 %v1073, %v1072
      %v1077 = vsel %vm574, %v1035, 0
      %v1080 = vsel %vm574, %v1037, 0
      %v1083 = vsel %vm574, %v1039, 0
      %v1086 = vsel %vm574, %v1041, 0
      %v1089 = vsel %vm574, %v1043, 0
      %v1092 = vsel %vm574, %v1045, 0
      %v1095 = vsel %vm574, %v1047, 0
      %v1098 = vsel %vm574, %v1049, 0
      %v1101 = vsel %vm574, %v1051, 0
      %v1104 = vsel %vm574, %v1053, 0
      %v1107 = vsel %vm574, %v1055, 0
      %v1110 = vsel %vm574, %v1057, 0
      %v1113 = vsel %vm574, %v1059, 0
      %v1116 = vsel %vm574, %v1061, 0
      %v1119 = vsel %vm574, %v1063, 0
      %v1122 = vsel %vm574, %v1065, 0
      %v1125 = vsel %vm574, %v1067, 0
      %v1128 = vsel %vm574, %v1069, 0
      %1130 = vmatprep.subr.bf16.mxu0 0
      %1131 = vmatpush1.bf16.msra.mxu0 0
      %1132 = vmatprep.subr.bf16.mxu0 0
      %1133 = vmatpush1.bf16.msra.mxu0 0
      %1134 = vmatprep.subr.bf16.mxu0 0
      %1135 = vmatpush1.bf16.msra.mxu0 0
      %1136 = vmatprep.subr.bf16.mxu0 0
      %1137 = vmatpush1.bf16.msra.mxu0 0
      %1138 = vmatprep.subr.bf16.mxu0 0
      %1139 = vmatpush1.bf16.msra.mxu0 0
      %1140 = vmatprep.subr.bf16.mxu0 0
      %1141 = vmatpush1.bf16.msra.mxu0 0
      %1142 = vmatprep.subr.bf16.mxu0 0
      %1143 = vmatpush1.bf16.msra.mxu0 0
      %1144 = vmatprep.subr.bf16.mxu0 0
      %1145 = vmatpush1.bf16.msra.mxu0 %v1074
      %1146 = vmatprep.subr.bf16.mxu0 0
      %1147 = vmatpush2.bf16.msra.mxu0 0
      %1148 = vmatprep.subr.bf16.mxu0 0
      %1149 = vmatpush2.bf16.msra.mxu0 0
      %1150 = vmatprep.subr.bf16.mxu0 0
      %1151 = vmatpush2.bf16.msra.mxu0 0
      %1152 = vmatprep.subr.bf16.mxu0 0
      %1153 = vmatpush2.bf16.msra.mxu0 0
      %1154 = vmatprep.subr.bf16.mxu0 0
      %1155 = vmatpush2.bf16.msra.mxu0 0
      %1156 = vmatprep.subr.bf16.mxu0 0
      %1157 = vmatpush2.bf16.msra.mxu0 0
      %1158 = vmatprep.subr.bf16.mxu0 0
      %1159 = vmatpush2.bf16.msra.mxu0 0
      %1160 = vmatprep.subr.bf16.mxu0 0
      %1161 = vmatpush2.bf16.msra.mxu0 0
      %1162 = vmatprep.mubr.bf16.mxu0 0
      %1163 = vmatmul.mubr.bf16.gmra.mxu0 %v1077
      %v1164 = vpop.f32.mrf.mxu0
      %v1165 = vadd.f32 0.0, %v1164
      %v1166 = vpop.f32.mrf.mxu0
      %v1167 = vpop.f32.mrf.mxu0
      %v1168 = vadd.f32 0.0, %v1167
      %v1169 = vpop.f32.mrf.mxu0
      %1170 = vmatprep.mubr.bf16.mxu0 0
      %1171 = vmatmul.mubr.bf16.gmra.mxu0 %v1080
      %v1172 = vpop.f32.mrf.mxu0
      %v1173 = vadd.f32 0.0, %v1172
      %v1174 = vpop.f32.mrf.mxu0
      %v1175 = vpop.f32.mrf.mxu0
      %v1176 = vadd.f32 0.0, %v1175
      %v1177 = vpop.f32.mrf.mxu0
      %1178 = vmatprep.mubr.bf16.mxu0 0
      %1179 = vmatmul.mubr.bf16.gmra.mxu0 %v1083
      %v1180 = vpop.f32.mrf.mxu0
      %v1181 = vadd.f32 0.0, %v1180
      %v1182 = vpop.f32.mrf.mxu0
      %v1183 = vpop.f32.mrf.mxu0
      %v1184 = vadd.f32 0.0, %v1183
      %v1185 = vpop.f32.mrf.mxu0
      %1186 = vmatprep.mubr.bf16.mxu0 0
      %1187 = vmatmul.mubr.bf16.gmra.mxu0 %v1086
      %v1188 = vpop.f32.mrf.mxu0
      %v1189 = vadd.f32 0.0, %v1188
      %v1190 = vpop.f32.mrf.mxu0
      %v1191 = vpop.f32.mrf.mxu0
      %v1192 = vadd.f32 0.0, %v1191
      %v1193 = vpop.f32.mrf.mxu0
      %1194 = vmatprep.mubr.bf16.mxu0 0
      %1195 = vmatmul.mubr.bf16.gmra.mxu0 %v1089
      %v1196 = vpop.f32.mrf.mxu0
      %v1197 = vadd.f32 0.0, %v1196
      %v1198 = vpop.f32.mrf.mxu0
      %v1199 = vpop.f32.mrf.mxu0
      %v1200 = vadd.f32 0.0, %v1199
      %v1201 = vpop.f32.mrf.mxu0
      %1202 = vmatprep.mubr.bf16.mxu0 0
      %1203 = vmatmul.mubr.bf16.gmra.mxu0 %v1092
      %v1204 = vpop.f32.mrf.mxu0
      %v1205 = vadd.f32 0.0, %v1204
      %v1206 = vpop.f32.mrf.mxu0
      %v1207 = vpop.f32.mrf.mxu0
      %v1208 = vadd.f32 0.0, %v1207
      %v1209 = vpop.f32.mrf.mxu0
      %1210 = vmatprep.mubr.bf16.mxu0 0
      %1211 = vmatmul.mubr.bf16.gmra.mxu0 %v1095
      %v1212 = vpop.f32.mrf.mxu0
      %v1213 = vadd.f32 0.0, %v1212
      %v1214 = vpop.f32.mrf.mxu0
      %v1215 = vpop.f32.mrf.mxu0
      %v1216 = vadd.f32 0.0, %v1215
      %v1217 = vpop.f32.mrf.mxu0
      %1218 = vmatprep.mubr.bf16.mxu0 0
      %1219 = vmatmul.mubr.bf16.gmra.mxu0 %v1098
      %v1220 = vpop.f32.mrf.mxu0
      %v1221 = vadd.f32 0.0, %v1220
      %v1222 = vpop.f32.mrf.mxu0
      %v1223 = vpop.f32.mrf.mxu0
      %v1224 = vadd.f32 0.0, %v1223
      %v1225 = vpop.f32.mrf.mxu0
      %1226 = vmatprep.mubr.bf16.mxu0 0
      %1227 = vmatmul.mubr.bf16.gmra.mxu0 %v1101
      %v1228 = vpop.f32.mrf.mxu0
      %v1229 = vadd.f32 0.0, %v1228
      %v1230 = vpop.f32.mrf.mxu0
      %v1231 = vpop.f32.mrf.mxu0
      %v1232 = vadd.f32 0.0, %v1231
      %v1233 = vpop.f32.mrf.mxu0
      %1234 = vmatprep.mubr.bf16.mxu0 0
      %1235 = vmatmul.mubr.bf16.gmra.mxu0 %v1104
      %v1236 = vpop.f32.mrf.mxu0
      %v1237 = vadd.f32 0.0, %v1236
      %v1238 = vpop.f32.mrf.mxu0
      %v1239 = vpop.f32.mrf.mxu0
      %v1240 = vadd.f32 0.0, %v1239
      %v1241 = vpop.f32.mrf.mxu0
      %1242 = vmatprep.mubr.bf16.mxu0 0
      %1243 = vmatmul.mubr.bf16.gmra.mxu0 %v1107
      %v1244 = vpop.f32.mrf.mxu0
      %v1245 = vadd.f32 0.0, %v1244
      %v1246 = vpop.f32.mrf.mxu0
      %v1247 = vpop.f32.mrf.mxu0
      %v1248 = vadd.f32 0.0, %v1247
      %v1249 = vpop.f32.mrf.mxu0
      %1250 = vmatprep.mubr.bf16.mxu0 0
      %1251 = vmatmul.mubr.bf16.gmra.mxu0 %v1110
      %v1252 = vpop.f32.mrf.mxu0
      %v1253 = vadd.f32 0.0, %v1252
      %v1254 = vpop.f32.mrf.mxu0
      %v1255 = vpop.f32.mrf.mxu0
      %v1256 = vadd.f32 0.0, %v1255
      %v1257 = vpop.f32.mrf.mxu0
      %1258 = vmatprep.mubr.bf16.mxu0 0
      %1259 = vmatmul.mubr.bf16.gmra.mxu0 %v1113
      %v1260 = vpop.f32.mrf.mxu0
      %v1261 = vadd.f32 0.0, %v1260
      %v1262 = vpop.f32.mrf.mxu0
      %v1263 = vpop.f32.mrf.mxu0
      %v1264 = vadd.f32 0.0, %v1263
      %v1265 = vpop.f32.mrf.mxu0
      %1266 = vmatprep.mubr.bf16.mxu0 0
      %1267 = vmatmul.mubr.bf16.gmra.mxu0 %v1116
      %v1268 = vpop.f32.mrf.mxu0
      %v1269 = vadd.f32 0.0, %v1268
      %v1270 = vpop.f32.mrf.mxu0
      %v1271 = vpop.f32.mrf.mxu0
      %v1272 = vadd.f32 0.0, %v1271
      %v1273 = vpop.f32.mrf.mxu0
      %1274 = vmatprep.mubr.bf16.mxu0 0
      %1275 = vmatmul.mubr.bf16.gmra.mxu0 %v1119
      %v1276 = vpop.f32.mrf.mxu0
      %v1277 = vadd.f32 0.0, %v1276
      %v1278 = vpop.f32.mrf.mxu0
      %v1279 = vpop.f32.mrf.mxu0
      %v1280 = vadd.f32 0.0, %v1279
      %v1281 = vpop.f32.mrf.mxu0
      %1282 = vmatprep.mubr.bf16.mxu0 0
      %1283 = vmatmul.mubr.bf16.gmra.mxu0 %v1122
      %v1284 = vpop.f32.mrf.mxu0
      %v1285 = vadd.f32 0.0, %v1284
      %v1286 = vpop.f32.mrf.mxu0
      %v1287 = vpop.f32.mrf.mxu0
      %v1288 = vadd.f32 0.0, %v1287
      %v1289 = vpop.f32.mrf.mxu0
      %1290 = vmatprep.mubr.bf16.mxu0 0
      %1291 = vmatmul.mubr.bf16.gmra.mxu0 %v1125
      %v1292 = vpop.f32.mrf.mxu0
      %v1293 = vadd.f32 0.0, %v1292
      %v1294 = vpop.f32.mrf.mxu0
      %v1295 = vpop.f32.mrf.mxu0
      %v1296 = vadd.f32 0.0, %v1295
      %v1297 = vpop.f32.mrf.mxu0
      %1298 = vmatprep.mubr.bf16.mxu0 0
      %1299 = vmatmul.mubr.bf16.gmra.mxu0 %v1128
      %v1300 = vpop.f32.mrf.mxu0
      %v1301 = vadd.f32 0.0, %v1300
      %v1302 = vpop.f32.mrf.mxu0
      %v1303 = vpop.f32.mrf.mxu0
      %v1304 = vadd.f32 0.0, %v1303
      %v1305 = vpop.f32.mrf.mxu0
      %1306 = vdwg.mxu0
      %v1307 = vadd.f32 %v883, %v1165
      %v1308 = vadd.f32 %v886, %v1168
      %v1309 = vadd.f32 %v891, %v1173
      %v1310 = vadd.f32 %v894, %v1176
      %v1311 = vadd.f32 %v899, %v1181
      %v1312 = vadd.f32 %v902, %v1184
      %v1313 = vadd.f32 %v907, %v1189
      %v1314 = vadd.f32 %v910, %v1192
      %v1315 = vadd.f32 %v915, %v1197
      %v1316 = vadd.f32 %v918, %v1200
      %v1317 = vadd.f32 %v923, %v1205
      %v1318 = vadd.f32 %v926, %v1208
      %v1319 = vadd.f32 %v931, %v1213
      %v1320 = vadd.f32 %v934, %v1216
      %v1321 = vadd.f32 %v939, %v1221
      %v1322 = vadd.f32 %v942, %v1224
      %v1323 = vadd.f32 %v947, %v1229
      %v1324 = vadd.f32 %v950, %v1232
      %v1325 = vadd.f32 %v955, %v1237
      %v1326 = vadd.f32 %v958, %v1240
      %v1327 = vadd.f32 %v963, %v1245
      %v1328 = vadd.f32 %v966, %v1248
      %v1329 = vadd.f32 %v971, %v1253
      %v1330 = vadd.f32 %v974, %v1256
      %v1331 = vadd.f32 %v979, %v1261
      %v1332 = vadd.f32 %v982, %v1264
      %v1333 = vadd.f32 %v987, %v1269
      %v1334 = vadd.f32 %v990, %v1272
      %v1335 = vadd.f32 %v995, %v1277
      %v1336 = vadd.f32 %v998, %v1280
      %v1337 = vadd.f32 %v1003, %v1285
      %v1338 = vadd.f32 %v1006, %v1288
      %v1339 = vadd.f32 %v1011, %v1293
      %v1340 = vadd.f32 %v1014, %v1296
      %v1341 = vadd.f32 %v1019, %v1301
      %v1342 = vadd.f32 %v1022, %v1304
      %v1343 = vld [vmem:[%s258 + $0x8] sm:$0xe]
      %v1344 = vld [vmem:[%s258 + $0xc] sm:$0xf]
      %v1345 = vld [vmem:[%s258 + $0x10] sm:$0xf]
      %v1346 = vld [vmem:[%s258 + $0x14] sm:$0xf]
      %v1347 = vld [vmem:[%s258 + $0x18] sm:$0xf]
      %v1348 = vld [vmem:[%s258 + $0x1c] sm:$0xf]
      %v1349 = vld [vmem:[%s258 + $0x20] sm:$0xf]
      %v1350 = vld [vmem:[%s258 + $0x24] sm:$0xf]
      %v1351 = vld [vmem:[%s258 + $0x28] sm:$0xf]
      %v1352 = vld [vmem:[%s258 + $0x2c] sm:$0xf]
      %v1353 = vld [vmem:[%s258 + $0x30] sm:$0xf]
      %v1354 = vld [vmem:[%s258 + $0x34] sm:$0xf]
      %v1355 = vld [vmem:[%s258 + $0x38] sm:$0xf]
      %v1356 = vld [vmem:[%s258 + $0x3c] sm:$0xf]
      %v1357 = vld [vmem:[%s258 + $0x40] sm:$0xf]
      %v1358 = vld [vmem:[%s258 + $0x44] sm:$0xf]
      %v1359 = vld [vmem:[%s258 + $0x48] sm:$0xf]
      %v1360 = vld [vmem:[%s258 + $0x4c] sm:$0xf]
      %v1361 = vld [vmem:[%s258 + $0x50] sm:$0xf]
      %v1362 = vld [vmem:[%s258 + $0x54] sm:$0xf]
      %v1363 = vld [vmem:[%s258 + $0x58] sm:$0xf]
      %v1364 = vld [vmem:[%s258 + $0x5c] sm:$0xf]
      %v1365 = vld [vmem:[%s258 + $0x60] sm:$0xf]
      %v1366 = vld [vmem:[%s258 + $0x64] sm:$0xf]
      %v1367 = vld [vmem:[%s258 + $0x68] sm:$0xf]
      %v1368 = vld [vmem:[%s258 + $0x6c] sm:$0xf]
      %v1369 = vld [vmem:[%s258 + $0x70] sm:$0xf]
      %v1370 = vld [vmem:[%s258 + $0x74] sm:$0xf]
      %v1371 = vld [vmem:[%s258 + $0x78] sm:$0xf]
      %v1372 = vld [vmem:[%s258 + $0x7c] sm:$0xf]
      %v1373 = vld [vmem:[%s258 + $0x80] sm:$0xf]
      %v1374 = vld [vmem:[%s258 + $0x84] sm:$0xf]
      %v1375 = vld [vmem:[%s258 + $0x88] sm:$0xf]
      %v1376 = vld [vmem:[%s258 + $0x8c] sm:$0xf]
      %v1377 = vld [vmem:[%s258 + $0x90] sm:$0xf]
      %v1378 = vld [vmem:[%s258 + $0x94] sm:$0xf]
      %v1379 = vld [vmem:[%s258 + $0x98] sm:$0x1]
      %s1380 = scalar_lea.vmem %s266, 24
      %v1381 = vld [vmem:[%s1380] sm:$0xf]
      %v1382 = vld [vmem:[%s1380 + $0x4] sm:$0xf]
      %v1420 = vunpack.c.l.b16 %v1343
      %v1421 = vunpack.c.l.b16 %v1344
      %v1422 = vunpack.c.l.b16 %v1345
      %v1423 = vunpack.c.l.b16 %v1346
      %v1424 = vunpack.c.l.b16 %v1347
      %v1425 = vunpack.c.l.b16 %v1348
      %v1426 = vunpack.c.l.b16 %v1349
      %v1427 = vunpack.c.l.b16 %v1350
      %v1428 = vunpack.c.l.b16 %v1351
      %v1429 = vunpack.c.l.b16 %v1352
      %v1430 = vunpack.c.l.b16 %v1353
      %v1431 = vunpack.c.l.b16 %v1354
      %v1432 = vunpack.c.l.b16 %v1355
      %v1433 = vunpack.c.l.b16 %v1356
      %v1434 = vunpack.c.l.b16 %v1357
      %v1435 = vunpack.c.l.b16 %v1358
      %v1436 = vunpack.c.l.b16 %v1359
      %v1437 = vunpack.c.l.b16 %v1360
      %v1438 = vunpack.c.l.b16 %v1361
      %v1439 = vunpack.c.l.b16 %v1362
      %v1440 = vunpack.c.l.b16 %v1363
      %v1441 = vunpack.c.l.b16 %v1364
      %v1442 = vunpack.c.l.b16 %v1365
      %v1443 = vunpack.c.l.b16 %v1366
      %v1444 = vunpack.c.l.b16 %v1367
      %v1445 = vunpack.c.l.b16 %v1368
      %v1446 = vunpack.c.l.b16 %v1369
      %v1447 = vunpack.c.l.b16 %v1370
      %v1448 = vunpack.c.l.b16 %v1371
      %v1449 = vunpack.c.l.b16 %v1372
      %v1450 = vunpack.c.l.b16 %v1373
      %v1451 = vunpack.c.l.b16 %v1374
      %v1452 = vunpack.c.l.b16 %v1375
      %v1453 = vunpack.c.l.b16 %v1376
      %v1454 = vunpack.c.l.b16 %v1377
      %v1455 = vunpack.c.l.b16 %v1378
      %v1456 = vunpack.c.l.b16 %v1379
      %v1457 = vpack.c.b16 %v1421, %v1420
      %v1458 = vpack.c.b16 %v1423, %v1422
      %v1459 = vpack.c.b16 %v1425, %v1424
      %v1460 = vpack.c.b16 %v1427, %v1426
      %v1461 = vpack.c.b16 %v1429, %v1428
      %v1462 = vpack.c.b16 %v1431, %v1430
      %v1463 = vpack.c.b16 %v1433, %v1432
      %v1464 = vpack.c.b16 %v1435, %v1434
      %v1465 = vpack.c.b16 %v1437, %v1436
      %v1466 = vpack.c.b16 %v1439, %v1438
      %v1467 = vpack.c.b16 %v1441, %v1440
      %v1468 = vpack.c.b16 %v1443, %v1442
      %v1469 = vpack.c.b16 %v1445, %v1444
      %v1470 = vpack.c.b16 %v1447, %v1446
      %v1471 = vpack.c.b16 %v1449, %v1448
      %v1472 = vpack.c.b16 %v1451, %v1450
      %v1473 = vpack.c.b16 %v1453, %v1452
      %v1474 = vpack.c.b16 %v1455, %v1454
      %v1475 = vpack.c.b16 %v1456, %v1456
      %v1476 = vrot.slane %v1457, 1
      %v1477 = vrot.slane %v1458, 1
      %v1478 = vsel %vm1032, %v1476, %v1477
      %v1479 = vrot.slane %v1459, 1
      %v1480 = vsel %vm1032, %v1477, %v1479
      %v1481 = vrot.slane %v1460, 1
      %v1482 = vsel %vm1032, %v1479, %v1481
      %v1483 = vrot.slane %v1461, 1
      %v1484 = vsel %vm1032, %v1481, %v1483
      %v1485 = vrot.slane %v1462, 1
      %v1486 = vsel %vm1032, %v1483, %v1485
      %v1487 = vrot.slane %v1463, 1
      %v1488 = vsel %vm1032, %v1485, %v1487
      %v1489 = vrot.slane %v1464, 1
      %v1490 = vsel %vm1032, %v1487, %v1489
      %v1491 = vrot.slane %v1465, 1
      %v1492 = vsel %vm1032, %v1489, %v1491
      %v1493 = vrot.slane %v1466, 1
      %v1494 = vsel %vm1032, %v1491, %v1493
      %v1495 = vrot.slane %v1467, 1
      %v1496 = vsel %vm1032, %v1493, %v1495
      %v1497 = vrot.slane %v1468, 1
      %v1498 = vsel %vm1032, %v1495, %v1497
      %v1499 = vrot.slane %v1469, 1
      %v1500 = vsel %vm1032, %v1497, %v1499
      %v1501 = vrot.slane %v1470, 1
      %v1502 = vsel %vm1032, %v1499, %v1501
      %v1503 = vrot.slane %v1471, 1
      %v1504 = vsel %vm1032, %v1501, %v1503
      %v1505 = vrot.slane %v1472, 1
      %v1506 = vsel %vm1032, %v1503, %v1505
      %v1507 = vrot.slane %v1473, 1
      %v1508 = vsel %vm1032, %v1505, %v1507
      %v1509 = vrot.slane %v1474, 1
      %v1510 = vsel %vm1032, %v1507, %v1509
      %v1511 = vrot.slane %v1475, 1
      %v1512 = vsel %vm1032, %v1509, %v1511
      %v1515 = vunpack.c.l.b16 %v1381
      %v1516 = vunpack.c.l.b16 %v1382
      %v1517 = vpack.c.b16 %v1516, %v1515
      %v1520 = vsel %vm574, %v1478, 0
      %v1523 = vsel %vm574, %v1480, 0
      %v1526 = vsel %vm574, %v1482, 0
      %v1529 = vsel %vm574, %v1484, 0
      %v1532 = vsel %vm574, %v1486, 0
      %v1535 = vsel %vm574, %v1488, 0
      %v1538 = vsel %vm574, %v1490, 0
      %v1541 = vsel %vm574, %v1492, 0
      %v1544 = vsel %vm574, %v1494, 0
      %v1547 = vsel %vm574, %v1496, 0
      %v1550 = vsel %vm574, %v1498, 0
      %v1553 = vsel %vm574, %v1500, 0
      %v1556 = vsel %vm574, %v1502, 0
      %v1559 = vsel %vm574, %v1504, 0
      %v1562 = vsel %vm574, %v1506, 0
      %v1565 = vsel %vm574, %v1508, 0
      %v1568 = vsel %vm574, %v1510, 0
      %v1571 = vsel %vm574, %v1512, 0
      %1573 = vmatprep.subr.bf16.mxu0 0
      %1574 = vmatpush1.bf16.msra.mxu0 0
      %1575 = vmatprep.subr.bf16.mxu0 0
      %1576 = vmatpush1.bf16.msra.mxu0 0
      %1577 = vmatprep.subr.bf16.mxu0 0
      %1578 = vmatpush1.bf16.msra.mxu0 0
      %1579 = vmatprep.subr.bf16.mxu0 0
      %1580 = vmatpush1.bf16.msra.mxu0 0
      %1581 = vmatprep.subr.bf16.mxu0 0
      %1582 = vmatpush1.bf16.msra.mxu0 0
      %1583 = vmatprep.subr.bf16.mxu0 0
      %1584 = vmatpush1.bf16.msra.mxu0 0
      %1585 = vmatprep.subr.bf16.mxu0 0
      %1586 = vmatpush1.bf16.msra.mxu0 0
      %1587 = vmatprep.subr.bf16.mxu0 0
      %1588 = vmatpush1.bf16.msra.mxu0 %v1517
      %1589 = vmatprep.subr.bf16.mxu0 0
      %1590 = vmatpush2.bf16.msra.mxu0 0
      %1591 = vmatprep.subr.bf16.mxu0 0
      %1592 = vmatpush2.bf16.msra.mxu0 0
      %1593 = vmatprep.subr.bf16.mxu0 0
      %1594 = vmatpush2.bf16.msra.mxu0 0
      %1595 = vmatprep.subr.bf16.mxu0 0
      %1596 = vmatpush2.bf16.msra.mxu0 0
      %1597 = vmatprep.subr.bf16.mxu0 0
      %1598 = vmatpush2.bf16.msra.mxu0 0
      %1599 = vmatprep.subr.bf16.mxu0 0
      %1600 = vmatpush2.bf16.msra.mxu0 0
      %1601 = vmatprep.subr.bf16.mxu0 0
      %1602 = vmatpush2.bf16.msra.mxu0 0
      %1603 = vmatprep.subr.bf16.mxu0 0
      %1604 = vmatpush2.bf16.msra.mxu0 0
      %1605 = vmatprep.mubr.bf16.mxu0 0
      %1606 = vmatmul.mubr.bf16.gmra.mxu0 %v1520
      %v1607 = vpop.f32.mrf.mxu0
      %v1608 = vadd.f32 0.0, %v1607
      %v1609 = vpop.f32.mrf.mxu0
      %v1610 = vpop.f32.mrf.mxu0
      %v1611 = vadd.f32 0.0, %v1610
      %v1612 = vpop.f32.mrf.mxu0
      %1613 = vmatprep.mubr.bf16.mxu0 0
      %1614 = vmatmul.mubr.bf16.gmra.mxu0 %v1523
      %v1615 = vpop.f32.mrf.mxu0
      %v1616 = vadd.f32 0.0, %v1615
      %v1617 = vpop.f32.mrf.mxu0
      %v1618 = vpop.f32.mrf.mxu0
      %v1619 = vadd.f32 0.0, %v1618
      %v1620 = vpop.f32.mrf.mxu0
      %1621 = vmatprep.mubr.bf16.mxu0 0
      %1622 = vmatmul.mubr.bf16.gmra.mxu0 %v1526
      %v1623 = vpop.f32.mrf.mxu0
      %v1624 = vadd.f32 0.0, %v1623
      %v1625 = vpop.f32.mrf.mxu0
      %v1626 = vpop.f32.mrf.mxu0
      %v1627 = vadd.f32 0.0, %v1626
      %v1628 = vpop.f32.mrf.mxu0
      %1629 = vmatprep.mubr.bf16.mxu0 0
      %1630 = vmatmul.mubr.bf16.gmra.mxu0 %v1529
      %v1631 = vpop.f32.mrf.mxu0
      %v1632 = vadd.f32 0.0, %v1631
      %v1633 = vpop.f32.mrf.mxu0
      %v1634 = vpop.f32.mrf.mxu0
      %v1635 = vadd.f32 0.0, %v1634
      %v1636 = vpop.f32.mrf.mxu0
      %1637 = vmatprep.mubr.bf16.mxu0 0
      %1638 = vmatmul.mubr.bf16.gmra.mxu0 %v1532
      %v1639 = vpop.f32.mrf.mxu0
      %v1640 = vadd.f32 0.0, %v1639
      %v1641 = vpop.f32.mrf.mxu0
      %v1642 = vpop.f32.mrf.mxu0
      %v1643 = vadd.f32 0.0, %v1642
      %v1644 = vpop.f32.mrf.mxu0
      %1645 = vmatprep.mubr.bf16.mxu0 0
      %1646 = vmatmul.mubr.bf16.gmra.mxu0 %v1535
      %v1647 = vpop.f32.mrf.mxu0
      %v1648 = vadd.f32 0.0, %v1647
      %v1649 = vpop.f32.mrf.mxu0
      %v1650 = vpop.f32.mrf.mxu0
      %v1651 = vadd.f32 0.0, %v1650
      %v1652 = vpop.f32.mrf.mxu0
      %1653 = vmatprep.mubr.bf16.mxu0 0
      %1654 = vmatmul.mubr.bf16.gmra.mxu0 %v1538
      %v1655 = vpop.f32.mrf.mxu0
      %v1656 = vadd.f32 0.0, %v1655
      %v1657 = vpop.f32.mrf.mxu0
      %v1658 = vpop.f32.mrf.mxu0
      %v1659 = vadd.f32 0.0, %v1658
      %v1660 = vpop.f32.mrf.mxu0
      %1661 = vmatprep.mubr.bf16.mxu0 0
      %1662 = vmatmul.mubr.bf16.gmra.mxu0 %v1541
      %v1663 = vpop.f32.mrf.mxu0
      %v1664 = vadd.f32 0.0, %v1663
      %v1665 = vpop.f32.mrf.mxu0
      %v1666 = vpop.f32.mrf.mxu0
      %v1667 = vadd.f32 0.0, %v1666
      %v1668 = vpop.f32.mrf.mxu0
      %1669 = vmatprep.mubr.bf16.mxu0 0
      %1670 = vmatmul.mubr.bf16.gmra.mxu0 %v1544
      %v1671 = vpop.f32.mrf.mxu0
      %v1672 = vadd.f32 0.0, %v1671
      %v1673 = vpop.f32.mrf.mxu0
      %v1674 = vpop.f32.mrf.mxu0
      %v1675 = vadd.f32 0.0, %v1674
      %v1676 = vpop.f32.mrf.mxu0
      %1677 = vmatprep.mubr.bf16.mxu0 0
      %1678 = vmatmul.mubr.bf16.gmra.mxu0 %v1547
      %v1679 = vpop.f32.mrf.mxu0
      %v1680 = vadd.f32 0.0, %v1679
      %v1681 = vpop.f32.mrf.mxu0
      %v1682 = vpop.f32.mrf.mxu0
      %v1683 = vadd.f32 0.0, %v1682
      %v1684 = vpop.f32.mrf.mxu0
      %1685 = vmatprep.mubr.bf16.mxu0 0
      %1686 = vmatmul.mubr.bf16.gmra.mxu0 %v1550
      %v1687 = vpop.f32.mrf.mxu0
      %v1688 = vadd.f32 0.0, %v1687
      %v1689 = vpop.f32.mrf.mxu0
      %v1690 = vpop.f32.mrf.mxu0
      %v1691 = vadd.f32 0.0, %v1690
      %v1692 = vpop.f32.mrf.mxu0
      %1693 = vmatprep.mubr.bf16.mxu0 0
      %1694 = vmatmul.mubr.bf16.gmra.mxu0 %v1553
      %v1695 = vpop.f32.mrf.mxu0
      %v1696 = vadd.f32 0.0, %v1695
      %v1697 = vpop.f32.mrf.mxu0
      %v1698 = vpop.f32.mrf.mxu0
      %v1699 = vadd.f32 0.0, %v1698
      %v1700 = vpop.f32.mrf.mxu0
      %1701 = vmatprep.mubr.bf16.mxu0 0
      %1702 = vmatmul.mubr.bf16.gmra.mxu0 %v1556
      %v1703 = vpop.f32.mrf.mxu0
      %v1704 = vadd.f32 0.0, %v1703
      %v1705 = vpop.f32.mrf.mxu0
      %v1706 = vpop.f32.mrf.mxu0
      %v1707 = vadd.f32 0.0, %v1706
      %v1708 = vpop.f32.mrf.mxu0
      %1709 = vmatprep.mubr.bf16.mxu0 0
      %1710 = vmatmul.mubr.bf16.gmra.mxu0 %v1559
      %v1711 = vpop.f32.mrf.mxu0
      %v1712 = vadd.f32 0.0, %v1711
      %v1713 = vpop.f32.mrf.mxu0
      %v1714 = vpop.f32.mrf.mxu0
      %v1715 = vadd.f32 0.0, %v1714
      %v1716 = vpop.f32.mrf.mxu0
      %1717 = vmatprep.mubr.bf16.mxu0 0
      %1718 = vmatmul.mubr.bf16.gmra.mxu0 %v1562
      %v1719 = vpop.f32.mrf.mxu0
      %v1720 = vadd.f32 0.0, %v1719
      %v1721 = vpop.f32.mrf.mxu0
      %v1722 = vpop.f32.mrf.mxu0
      %v1723 = vadd.f32 0.0, %v1722
      %v1724 = vpop.f32.mrf.mxu0
      %1725 = vmatprep.mubr.bf16.mxu0 0
      %1726 = vmatmul.mubr.bf16.gmra.mxu0 %v1565
      %v1727 = vpop.f32.mrf.mxu0
      %v1728 = vadd.f32 0.0, %v1727
      %v1729 = vpop.f32.mrf.mxu0
      %v1730 = vpop.f32.mrf.mxu0
      %v1731 = vadd.f32 0.0, %v1730
      %v1732 = vpop.f32.mrf.mxu0
      %1733 = vmatprep.mubr.bf16.mxu0 0
      %1734 = vmatmul.mubr.bf16.gmra.mxu0 %v1568
      %v1735 = vpop.f32.mrf.mxu0
      %v1736 = vadd.f32 0.0, %v1735
      %v1737 = vpop.f32.mrf.mxu0
      %v1738 = vpop.f32.mrf.mxu0
      %v1739 = vadd.f32 0.0, %v1738
      %v1740 = vpop.f32.mrf.mxu0
      %1741 = vmatprep.mubr.bf16.mxu0 0
      %1742 = vmatmul.mubr.bf16.gmra.mxu0 %v1571
      %v1743 = vpop.f32.mrf.mxu0
      %v1744 = vadd.f32 0.0, %v1743
      %v1745 = vpop.f32.mrf.mxu0
      %v1746 = vpop.f32.mrf.mxu0
      %v1747 = vadd.f32 0.0, %v1746
      %v1748 = vpop.f32.mrf.mxu0
      %1749 = vdwg.mxu0
      %v1750 = vadd.f32 %v1307, %v1608
      %v1751 = vadd.f32 %v1308, %v1611
      %v1752 = vadd.f32 %v1309, %v1616
      %v1753 = vadd.f32 %v1310, %v1619
      %v1754 = vadd.f32 %v1311, %v1624
      %v1755 = vadd.f32 %v1312, %v1627
      %v1756 = vadd.f32 %v1313, %v1632
      %v1757 = vadd.f32 %v1314, %v1635
      %v1758 = vadd.f32 %v1315, %v1640
      %v1759 = vadd.f32 %v1316, %v1643
      %v1760 = vadd.f32 %v1317, %v1648
      %v1761 = vadd.f32 %v1318, %v1651
      %v1762 = vadd.f32 %v1319, %v1656
      %v1763 = vadd.f32 %v1320, %v1659
      %v1764 = vadd.f32 %v1321, %v1664
      %v1765 = vadd.f32 %v1322, %v1667
      %v1766 = vadd.f32 %v1323, %v1672
      %v1767 = vadd.f32 %v1324, %v1675
      %v1768 = vadd.f32 %v1325, %v1680
      %v1769 = vadd.f32 %v1326, %v1683
      %v1770 = vadd.f32 %v1327, %v1688
      %v1771 = vadd.f32 %v1328, %v1691
      %v1772 = vadd.f32 %v1329, %v1696
      %v1773 = vadd.f32 %v1330, %v1699
      %v1774 = vadd.f32 %v1331, %v1704
      %v1775 = vadd.f32 %v1332, %v1707
      %v1776 = vadd.f32 %v1333, %v1712
      %v1777 = vadd.f32 %v1334, %v1715
      %v1778 = vadd.f32 %v1335, %v1720
      %v1779 = vadd.f32 %v1336, %v1723
      %v1780 = vadd.f32 %v1337, %v1728
      %v1781 = vadd.f32 %v1338, %v1731
      %v1782 = vadd.f32 %v1339, %v1736
      %v1783 = vadd.f32 %v1340, %v1739
      %v1784 = vadd.f32 %v1341, %v1744
      %v1785 = vadd.f32 %v1342, %v1747
      %v1786 = vld [vmem:[%s258 + $0x98] sm:$0x3]
      %s1787 = scalar_lea.vmem %s266, 32
      %v1788 = vld [vmem:[%s1787] sm:$0xf]
      %v1789 = vld [vmem:[%s1787 + $0x4] sm:$0xf]
      %v1791 = vunpack.c.l.b16 %v1786
      %v1792 = vpack.c.b16 %v1791, %v1791
      %vm1793 = vsmask.f32 6400
      %v1795 = vshrl.u32 %v1457, 16
      %v1797 = vrot.slane %v1795, 1
      %v1798 = vshll.u32 %v1457, 16
      %v1800 = vrot.slane %v1798, 2
      %v1801 = vor.u32 %v1797, %v1800
      %v1803 = vshrl.u32 %v1458, 16
      %v1805 = vrot.slane %v1803, 1
      %v1806 = vshll.u32 %v1458, 16
      %v1808 = vrot.slane %v1806, 2
      %v1809 = vor.u32 %v1805, %v1808
      %v1810 = vsel %vm1793, %v1801, %v1809
      %v1812 = vshrl.u32 %v1459, 16
      %v1814 = vrot.slane %v1812, 1
      %v1815 = vshll.u32 %v1459, 16
      %v1817 = vrot.slane %v1815, 2
      %v1818 = vor.u32 %v1814, %v1817
      %v1819 = vsel %vm1793, %v1809, %v1818
      %v1821 = vshrl.u32 %v1460, 16
      %v1823 = vrot.slane %v1821, 1
      %v1824 = vshll.u32 %v1460, 16
      %v1826 = vrot.slane %v1824, 2
      %v1827 = vor.u32 %v1823, %v1826
      %v1828 = vsel %vm1793, %v1818, %v1827
      %v1830 = vshrl.u32 %v1461, 16
      %v1832 = vrot.slane %v1830, 1
      %v1833 = vshll.u32 %v1461, 16
      %v1835 = vrot.slane %v1833, 2
      %v1836 = vor.u32 %v1832, %v1835
      %v1837 = vsel %vm1793, %v1827, %v1836
      %v1839 = vshrl.u32 %v1462, 16
      %v1841 = vrot.slane %v1839, 1
      %v1842 = vshll.u32 %v1462, 16
      %v1844 = vrot.slane %v1842, 2
      %v1845 = vor.u32 %v1841, %v1844
      %v1846 = vsel %vm1793, %v1836, %v1845
      %v1848 = vshrl.u32 %v1463, 16
      %v1850 = vrot.slane %v1848, 1
      %v1851 = vshll.u32 %v1463, 16
      %v1853 = vrot.slane %v1851, 2
      %v1854 = vor.u32 %v1850, %v1853
      %v1855 = vsel %vm1793, %v1845, %v1854
      %v1857 = vshrl.u32 %v1464, 16
      %v1859 = vrot.slane %v1857, 1
      %v1860 = vshll.u32 %v1464, 16
      %v1862 = vrot.slane %v1860, 2
      %v1863 = vor.u32 %v1859, %v1862
      %v1864 = vsel %vm1793, %v1854, %v1863
      %v1866 = vshrl.u32 %v1465, 16
      %v1868 = vrot.slane %v1866, 1
      %v1869 = vshll.u32 %v1465, 16
      %v1871 = vrot.slane %v1869, 2
      %v1872 = vor.u32 %v1868, %v1871
      %v1873 = vsel %vm1793, %v1863, %v1872
      %v1875 = vshrl.u32 %v1466, 16
      %v1877 = vrot.slane %v1875, 1
      %v1878 = vshll.u32 %v1466, 16
      %v1880 = vrot.slane %v1878, 2
      %v1881 = vor.u32 %v1877, %v1880
      %v1882 = vsel %vm1793, %v1872, %v1881
      %v1884 = vshrl.u32 %v1467, 16
      %v1886 = vrot.slane %v1884, 1
      %v1887 = vshll.u32 %v1467, 16
      %v1889 = vrot.slane %v1887, 2
      %v1890 = vor.u32 %v1886, %v1889
      %v1891 = vsel %vm1793, %v1881, %v1890
      %v1893 = vshrl.u32 %v1468, 16
      %v1895 = vrot.slane %v1893, 1
      %v1896 = vshll.u32 %v1468, 16
      %v1898 = vrot.slane %v1896, 2
      %v1899 = vor.u32 %v1895, %v1898
      %v1900 = vsel %vm1793, %v1890, %v1899
      %v1902 = vshrl.u32 %v1469, 16
      %v1904 = vrot.slane %v1902, 1
      %v1905 = vshll.u32 %v1469, 16
      %v1907 = vrot.slane %v1905, 2
      %v1908 = vor.u32 %v1904, %v1907
      %v1909 = vsel %vm1793, %v1899, %v1908
      %v1911 = vshrl.u32 %v1470, 16
      %v1913 = vrot.slane %v1911, 1
      %v1914 = vshll.u32 %v1470, 16
      %v1916 = vrot.slane %v1914, 2
      %v1917 = vor.u32 %v1913, %v1916
      %v1918 = vsel %vm1793, %v1908, %v1917
      %v1920 = vshrl.u32 %v1471, 16
      %v1922 = vrot.slane %v1920, 1
      %v1923 = vshll.u32 %v1471, 16
      %v1925 = vrot.slane %v1923, 2
      %v1926 = vor.u32 %v1922, %v1925
      %v1927 = vsel %vm1793, %v1917, %v1926
      %v1929 = vshrl.u32 %v1472, 16
      %v1931 = vrot.slane %v1929, 1
      %v1932 = vshll.u32 %v1472, 16
      %v1934 = vrot.slane %v1932, 2
      %v1935 = vor.u32 %v1931, %v1934
      %v1936 = vsel %vm1793, %v1926, %v1935
      %v1938 = vshrl.u32 %v1473, 16
      %v1940 = vrot.slane %v1938, 1
      %v1941 = vshll.u32 %v1473, 16
      %v1943 = vrot.slane %v1941, 2
      %v1944 = vor.u32 %v1940, %v1943
      %v1945 = vsel %vm1793, %v1935, %v1944
      %v1947 = vshrl.u32 %v1474, 16
      %v1949 = vrot.slane %v1947, 1
      %v1950 = vshll.u32 %v1474, 16
      %v1952 = vrot.slane %v1950, 2
      %v1953 = vor.u32 %v1949, %v1952
      %v1954 = vsel %vm1793, %v1944, %v1953
      %v1956 = vshrl.u32 %v1792, 16
      %v1958 = vrot.slane %v1956, 1
      %v1959 = vshll.u32 %v1792, 16
      %v1961 = vrot.slane %v1959, 2
      %v1962 = vor.u32 %v1958, %v1961
      %v1963 = vsel %vm1793, %v1953, %v1962
      %v1966 = vunpack.c.l.b16 %v1788
      %v1967 = vunpack.c.l.b16 %v1789
      %v1968 = vpack.c.b16 %v1967, %v1966
      %v1971 = vsel %vm574, %v1810, 0
      %v1974 = vsel %vm574, %v1819, 0
      %v1977 = vsel %vm574, %v1828, 0
      %v1980 = vsel %vm574, %v1837, 0
      %v1983 = vsel %vm574, %v1846, 0
      %v1986 = vsel %vm574, %v1855, 0
      %v1989 = vsel %vm574, %v1864, 0
      %v1992 = vsel %vm574, %v1873, 0
      %v1995 = vsel %vm574, %v1882, 0
      %v1998 = vsel %vm574, %v1891, 0
      %v2001 = vsel %vm574, %v1900, 0
      %v2004 = vsel %vm574, %v1909, 0
      %v2007 = vsel %vm574, %v1918, 0
      %v2010 = vsel %vm574, %v1927, 0
      %v2013 = vsel %vm574, %v1936, 0
      %v2016 = vsel %vm574, %v1945, 0
      %v2019 = vsel %vm574, %v1954, 0
      %v2022 = vsel %vm574, %v1963, 0
      %2024 = vmatprep.subr.bf16.mxu0 0
      %2025 = vmatpush1.bf16.msra.mxu0 0
      %2026 = vmatprep.subr.bf16.mxu0 0
      %2027 = vmatpush1.bf16.msra.mxu0 0
      %2028 = vmatprep.subr.bf16.mxu0 0
      %2029 = vmatpush1.bf16.msra.mxu0 0
      %2030 = vmatprep.subr.bf16.mxu0 0
      %2031 = vmatpush1.bf16.msra.mxu0 0
      %2032 = vmatprep.subr.bf16.mxu0 0
      %2033 = vmatpush1.bf16.msra.mxu0 0
      %2034 = vmatprep.subr.bf16.mxu0 0
      %2035 = vmatpush1.bf16.msra.mxu0 0
      %2036 = vmatprep.subr.bf16.mxu0 0
      %2037 = vmatpush1.bf16.msra.mxu0 0
      %2038 = vmatprep.subr.bf16.mxu0 0
      %2039 = vmatpush1.bf16.msra.mxu0 %v1968
      %2040 = vmatprep.subr.bf16.mxu0 0
      %2041 = vmatpush2.bf16.msra.mxu0 0
      %2042 = vmatprep.subr.bf16.mxu0 0
      %2043 = vmatpush2.bf16.msra.mxu0 0
      %2044 = vmatprep.subr.bf16.mxu0 0
      %2045 = vmatpush2.bf16.msra.mxu0 0
      %2046 = vmatprep.subr.bf16.mxu0 0
      %2047 = vmatpush2.bf16.msra.mxu0 0
      %2048 = vmatprep.subr.bf16.mxu0 0
      %2049 = vmatpush2.bf16.msra.mxu0 0
      %2050 = vmatprep.subr.bf16.mxu0 0
      %2051 = vmatpush2.bf16.msra.mxu0 0
      %2052 = vmatprep.subr.bf16.mxu0 0
      %2053 = vmatpush2.bf16.msra.mxu0 0
      %2054 = vmatprep.subr.bf16.mxu0 0
      %2055 = vmatpush2.bf16.msra.mxu0 0
      %2056 = vmatprep.mubr.bf16.mxu0 0
      %2057 = vmatmul.mubr.bf16.gmra.mxu0 %v1971
      %v2058 = vpop.f32.mrf.mxu0
      %v2059 = vadd.f32 0.0, %v2058
      %v2060 = vpop.f32.mrf.mxu0
      %v2061 = vpop.f32.mrf.mxu0
      %v2062 = vadd.f32 0.0, %v2061
      %v2063 = vpop.f32.mrf.mxu0
      %2064 = vmatprep.mubr.bf16.mxu0 0
      %2065 = vmatmul.mubr.bf16.gmra.mxu0 %v1974
      %v2066 = vpop.f32.mrf.mxu0
      %v2067 = vadd.f32 0.0, %v2066
      %v2068 = vpop.f32.mrf.mxu0
      %v2069 = vpop.f32.mrf.mxu0
      %v2070 = vadd.f32 0.0, %v2069
      %v2071 = vpop.f32.mrf.mxu0
      %2072 = vmatprep.mubr.bf16.mxu0 0
      %2073 = vmatmul.mubr.bf16.gmra.mxu0 %v1977
      %v2074 = vpop.f32.mrf.mxu0
      %v2075 = vadd.f32 0.0, %v2074
      %v2076 = vpop.f32.mrf.mxu0
      %v2077 = vpop.f32.mrf.mxu0
      %v2078 = vadd.f32 0.0, %v2077
      %v2079 = vpop.f32.mrf.mxu0
      %2080 = vmatprep.mubr.bf16.mxu0 0
      %2081 = vmatmul.mubr.bf16.gmra.mxu0 %v1980
      %v2082 = vpop.f32.mrf.mxu0
      %v2083 = vadd.f32 0.0, %v2082
      %v2084 = vpop.f32.mrf.mxu0
      %v2085 = vpop.f32.mrf.mxu0
      %v2086 = vadd.f32 0.0, %v2085
      %v2087 = vpop.f32.mrf.mxu0
      %2088 = vmatprep.mubr.bf16.mxu0 0
      %2089 = vmatmul.mubr.bf16.gmra.mxu0 %v1983
      %v2090 = vpop.f32.mrf.mxu0
      %v2091 = vadd.f32 0.0, %v2090
      %v2092 = vpop.f32.mrf.mxu0
      %v2093 = vpop.f32.mrf.mxu0
      %v2094 = vadd.f32 0.0, %v2093
      %v2095 = vpop.f32.mrf.mxu0
      %2096 = vmatprep.mubr.bf16.mxu0 0
      %2097 = vmatmul.mubr.bf16.gmra.mxu0 %v1986
      %v2098 = vpop.f32.mrf.mxu0
      %v2099 = vadd.f32 0.0, %v2098
      %v2100 = vpop.f32.mrf.mxu0
      %v2101 = vpop.f32.mrf.mxu0
      %v2102 = vadd.f32 0.0, %v2101
      %v2103 = vpop.f32.mrf.mxu0
      %2104 = vmatprep.mubr.bf16.mxu0 0
      %2105 = vmatmul.mubr.bf16.gmra.mxu0 %v1989
      %v2106 = vpop.f32.mrf.mxu0
      %v2107 = vadd.f32 0.0, %v2106
      %v2108 = vpop.f32.mrf.mxu0
      %v2109 = vpop.f32.mrf.mxu0
      %v2110 = vadd.f32 0.0, %v2109
      %v2111 = vpop.f32.mrf.mxu0
      %2112 = vmatprep.mubr.bf16.mxu0 0
      %2113 = vmatmul.mubr.bf16.gmra.mxu0 %v1992
      %v2114 = vpop.f32.mrf.mxu0
      %v2115 = vadd.f32 0.0, %v2114
      %v2116 = vpop.f32.mrf.mxu0
      %v2117 = vpop.f32.mrf.mxu0
      %v2118 = vadd.f32 0.0, %v2117
      %v2119 = vpop.f32.mrf.mxu0
      %2120 = vmatprep.mubr.bf16.mxu0 0
      %2121 = vmatmul.mubr.bf16.gmra.mxu0 %v1995
      %v2122 = vpop.f32.mrf.mxu0
      %v2123 = vadd.f32 0.0, %v2122
      %v2124 = vpop.f32.mrf.mxu0
      %v2125 = vpop.f32.mrf.mxu0
      %v2126 = vadd.f32 0.0, %v2125
      %v2127 = vpop.f32.mrf.mxu0
      %2128 = vmatprep.mubr.bf16.mxu0 0
      %2129 = vmatmul.mubr.bf16.gmra.mxu0 %v1998
      %v2130 = vpop.f32.mrf.mxu0
      %v2131 = vadd.f32 0.0, %v2130
      %v2132 = vpop.f32.mrf.mxu0
      %v2133 = vpop.f32.mrf.mxu0
      %v2134 = vadd.f32 0.0, %v2133
      %v2135 = vpop.f32.mrf.mxu0
      %2136 = vmatprep.mubr.bf16.mxu0 0
      %2137 = vmatmul.mubr.bf16.gmra.mxu0 %v2001
      %v2138 = vpop.f32.mrf.mxu0
      %v2139 = vadd.f32 0.0, %v2138
      %v2140 = vpop.f32.mrf.mxu0
      %v2141 = vpop.f32.mrf.mxu0
      %v2142 = vadd.f32 0.0, %v2141
      %v2143 = vpop.f32.mrf.mxu0
      %2144 = vmatprep.mubr.bf16.mxu0 0
      %2145 = vmatmul.mubr.bf16.gmra.mxu0 %v2004
      %v2146 = vpop.f32.mrf.mxu0
      %v2147 = vadd.f32 0.0, %v2146
      %v2148 = vpop.f32.mrf.mxu0
      %v2149 = vpop.f32.mrf.mxu0
      %v2150 = vadd.f32 0.0, %v2149
      %v2151 = vpop.f32.mrf.mxu0
      %2152 = vmatprep.mubr.bf16.mxu0 0
      %2153 = vmatmul.mubr.bf16.gmra.mxu0 %v2007
      %v2154 = vpop.f32.mrf.mxu0
      %v2155 = vadd.f32 0.0, %v2154
      %v2156 = vpop.f32.mrf.mxu0
      %v2157 = vpop.f32.mrf.mxu0
      %v2158 = vadd.f32 0.0, %v2157
      %v2159 = vpop.f32.mrf.mxu0
      %2160 = vmatprep.mubr.bf16.mxu0 0
      %2161 = vmatmul.mubr.bf16.gmra.mxu0 %v2010
      %v2162 = vpop.f32.mrf.mxu0
      %v2163 = vadd.f32 0.0, %v2162
      %v2164 = vpop.f32.mrf.mxu0
      %v2165 = vpop.f32.mrf.mxu0
      %v2166 = vadd.f32 0.0, %v2165
      %v2167 = vpop.f32.mrf.mxu0
      %2168 = vmatprep.mubr.bf16.mxu0 0
      %2169 = vmatmul.mubr.bf16.gmra.mxu0 %v2013
      %v2170 = vpop.f32.mrf.mxu0
      %v2171 = vadd.f32 0.0, %v2170
      %v2172 = vpop.f32.mrf.mxu0
      %v2173 = vpop.f32.mrf.mxu0
      %v2174 = vadd.f32 0.0, %v2173
      %v2175 = vpop.f32.mrf.mxu0
      %2176 = vmatprep.mubr.bf16.mxu0 0
      %2177 = vmatmul.mubr.bf16.gmra.mxu0 %v2016
      %v2178 = vpop.f32.mrf.mxu0
      %v2179 = vadd.f32 0.0, %v2178
      %v2180 = vpop.f32.mrf.mxu0
      %v2181 = vpop.f32.mrf.mxu0
      %v2182 = vadd.f32 0.0, %v2181
      %v2183 = vpop.f32.mrf.mxu0
      %2184 = vmatprep.mubr.bf16.mxu0 0
      %2185 = vmatmul.mubr.bf16.gmra.mxu0 %v2019
      %v2186 = vpop.f32.mrf.mxu0
      %v2187 = vadd.f32 0.0, %v2186
      %v2188 = vpop.f32.mrf.mxu0
      %v2189 = vpop.f32.mrf.mxu0
      %v2190 = vadd.f32 0.0, %v2189
      %v2191 = vpop.f32.mrf.mxu0
      %2192 = vmatprep.mubr.bf16.mxu0 0
      %2193 = vmatmul.mubr.bf16.gmra.mxu0 %v2022
      %v2194 = vpop.f32.mrf.mxu0
      %v2195 = vadd.f32 0.0, %v2194
      %v2196 = vpop.f32.mrf.mxu0
      %v2197 = vpop.f32.mrf.mxu0
      %v2198 = vadd.f32 0.0, %v2197
      %v2199 = vpop.f32.mrf.mxu0
      %2200 = vdwg.mxu0
      %v2201 = vadd.f32 %v1750, %v2059
      %v2202 = vadd.f32 %v1751, %v2062
      %v2203 = vadd.f32 %v1752, %v2067
      %v2204 = vadd.f32 %v1753, %v2070
      %v2205 = vadd.f32 %v1754, %v2075
      %v2206 = vadd.f32 %v1755, %v2078
      %v2207 = vadd.f32 %v1756, %v2083
      %v2208 = vadd.f32 %v1757, %v2086
      %v2209 = vadd.f32 %v1758, %v2091
      %v2210 = vadd.f32 %v1759, %v2094
      %v2211 = vadd.f32 %v1760, %v2099
      %v2212 = vadd.f32 %v1761, %v2102
      %v2213 = vadd.f32 %v1762, %v2107
      %v2214 = vadd.f32 %v1763, %v2110
      %v2215 = vadd.f32 %v1764, %v2115
      %v2216 = vadd.f32 %v1765, %v2118
      %v2217 = vadd.f32 %v1766, %v2123
      %v2218 = vadd.f32 %v1767, %v2126
      %v2219 = vadd.f32 %v1768, %v2131
      %v2220 = vadd.f32 %v1769, %v2134
      %v2221 = vadd.f32 %v1770, %v2139
      %v2222 = vadd.f32 %v1771, %v2142
      %v2223 = vadd.f32 %v1772, %v2147
      %v2224 = vadd.f32 %v1773, %v2150
      %v2225 = vadd.f32 %v1774, %v2155
      %v2226 = vadd.f32 %v1775, %v2158
      %v2227 = vadd.f32 %v1776, %v2163
      %v2228 = vadd.f32 %v1777, %v2166
      %v2229 = vadd.f32 %v1778, %v2171
      %v2230 = vadd.f32 %v1779, %v2174
      %v2231 = vadd.f32 %v1780, %v2179
      %v2232 = vadd.f32 %v1781, %v2182
      %v2233 = vadd.f32 %v1782, %v2187
      %v2234 = vadd.f32 %v1783, %v2190
      %v2235 = vadd.f32 %v1784, %v2195
      %v2236 = vadd.f32 %v1785, %v2198
      %v2237 = vld [vmem:[%s258 + $0x8] sm:$0xc]
      %s2238 = scalar_lea.vmem %s266, 40
      %v2239 = vld [vmem:[%s2238] sm:$0xf]
      %v2240 = vld [vmem:[%s2238 + $0x4] sm:$0xf]
      %v2242 = vunpack.c.l.b16 %v2237
      %v2243 = vpack.c.b16 %v1421, %v2242
      %vm2244 = vcmask 1045504
      %v2245 = vrot.slane %v2243, 2
      %v2246 = vrot.slane %v1458, 2
      %v2247 = vsel %vm2244, %v2245, %v2246
      %v2248 = vrot.slane %v1459, 2
      %v2249 = vsel %vm2244, %v2246, %v2248
      %v2250 = vrot.slane %v1460, 2
      %v2251 = vsel %vm2244, %v2248, %v2250
      %v2252 = vrot.slane %v1461, 2
      %v2253 = vsel %vm2244, %v2250, %v2252
      %v2254 = vrot.slane %v1462, 2
      %v2255 = vsel %vm2244, %v2252, %v2254
      %v2256 = vrot.slane %v1463, 2
      %v2257 = vsel %vm2244, %v2254, %v2256
      %v2258 = vrot.slane %v1464, 2
      %v2259 = vsel %vm2244, %v2256, %v2258
      %v2260 = vrot.slane %v1465, 2
      %v2261 = vsel %vm2244, %v2258, %v2260
      %v2262 = vrot.slane %v1466, 2
      %v2263 = vsel %vm2244, %v2260, %v2262
      %v2264 = vrot.slane %v1467, 2
      %v2265 = vsel %vm2244, %v2262, %v2264
      %v2266 = vrot.slane %v1468, 2
      %v2267 = vsel %vm2244, %v2264, %v2266
      %v2268 = vrot.slane %v1469, 2
      %v2269 = vsel %vm2244, %v2266, %v2268
      %v2270 = vrot.slane %v1470, 2
      %v2271 = vsel %vm2244, %v2268, %v2270
      %v2272 = vrot.slane %v1471, 2
      %v2273 = vsel %vm2244, %v2270, %v2272
      %v2274 = vrot.slane %v1472, 2
      %v2275 = vsel %vm2244, %v2272, %v2274
      %v2276 = vrot.slane %v1473, 2
      %v2277 = vsel %vm2244, %v2274, %v2276
      %v2278 = vrot.slane %v1474, 2
      %v2279 = vsel %vm2244, %v2276, %v2278
      %v2280 = vrot.slane %v1792, 2
      %v2281 = vsel %vm2244, %v2278, %v2280
      %v2284 = vunpack.c.l.b16 %v2239
      %v2285 = vunpack.c.l.b16 %v2240
      %v2286 = vpack.c.b16 %v2285, %v2284
      %v2289 = vsel %vm574, %v2247, 0
      %v2292 = vsel %vm574, %v2249, 0
      %v2295 = vsel %vm574, %v2251, 0
      %v2298 = vsel %vm574, %v2253, 0
      %v2301 = vsel %vm574, %v2255, 0
      %v2304 = vsel %vm574, %v2257, 0
      %v2307 = vsel %vm574, %v2259, 0
      %v2310 = vsel %vm574, %v2261, 0
      %v2313 = vsel %vm574, %v2263, 0
      %v2316 = vsel %vm574, %v2265, 0
      %v2319 = vsel %vm574, %v2267, 0
      %v2322 = vsel %vm574, %v2269, 0
      %v2325 = vsel %vm574, %v2271, 0
      %v2328 = vsel %vm574, %v2273, 0
      %v2331 = vsel %vm574, %v2275, 0
      %v2334 = vsel %vm574, %v2277, 0
      %v2337 = vsel %vm574, %v2279, 0
      %v2340 = vsel %vm574, %v2281, 0
      %2342 = vmatprep.subr.bf16.mxu0 0
      %2343 = vmatpush1.bf16.msra.mxu0 0
      %2344 = vmatprep.subr.bf16.mxu0 0
      %2345 = vmatpush1.bf16.msra.mxu0 0
      %2346 = vmatprep.subr.bf16.mxu0 0
      %2347 = vmatpush1.bf16.msra.mxu0 0
      %2348 = vmatprep.subr.bf16.mxu0 0
      %2349 = vmatpush1.bf16.msra.mxu0 0
      %2350 = vmatprep.subr.bf16.mxu0 0
      %2351 = vmatpush1.bf16.msra.mxu0 0
      %2352 = vmatprep.subr.bf16.mxu0 0
      %2353 = vmatpush1.bf16.msra.mxu0 0
      %2354 = vmatprep.subr.bf16.mxu0 0
      %2355 = vmatpush1.bf16.msra.mxu0 0
      %2356 = vmatprep.subr.bf16.mxu0 0
      %2357 = vmatpush1.bf16.msra.mxu0 %v2286
      %2358 = vmatprep.subr.bf16.mxu0 0
      %2359 = vmatpush2.bf16.msra.mxu0 0
      %2360 = vmatprep.subr.bf16.mxu0 0
      %2361 = vmatpush2.bf16.msra.mxu0 0
      %2362 = vmatprep.subr.bf16.mxu0 0
      %2363 = vmatpush2.bf16.msra.mxu0 0
      %2364 = vmatprep.subr.bf16.mxu0 0
      %2365 = vmatpush2.bf16.msra.mxu0 0
      %2366 = vmatprep.subr.bf16.mxu0 0
      %2367 = vmatpush2.bf16.msra.mxu0 0
      %2368 = vmatprep.subr.bf16.mxu0 0
      %2369 = vmatpush2.bf16.msra.mxu0 0
      %2370 = vmatprep.subr.bf16.mxu0 0
      %2371 = vmatpush2.bf16.msra.mxu0 0
      %2372 = vmatprep.subr.bf16.mxu0 0
      %2373 = vmatpush2.bf16.msra.mxu0 0
      %2374 = vmatprep.mubr.bf16.mxu0 0
      %2375 = vmatmul.mubr.bf16.gmra.mxu0 %v2289
      %v2376 = vpop.f32.mrf.mxu0
      %v2377 = vadd.f32 0.0, %v2376
      %v2378 = vpop.f32.mrf.mxu0
      %v2379 = vpop.f32.mrf.mxu0
      %v2380 = vadd.f32 0.0, %v2379
      %v2381 = vpop.f32.mrf.mxu0
      %2382 = vmatprep.mubr.bf16.mxu0 0
      %2383 = vmatmul.mubr.bf16.gmra.mxu0 %v2292
      %v2384 = vpop.f32.mrf.mxu0
      %v2385 = vadd.f32 0.0, %v2384
      %v2386 = vpop.f32.mrf.mxu0
      %v2387 = vpop.f32.mrf.mxu0
      %v2388 = vadd.f32 0.0, %v2387
      %v2389 = vpop.f32.mrf.mxu0
      %2390 = vmatprep.mubr.bf16.mxu0 0
      %2391 = vmatmul.mubr.bf16.gmra.mxu0 %v2295
      %v2392 = vpop.f32.mrf.mxu0
      %v2393 = vadd.f32 0.0, %v2392
      %v2394 = vpop.f32.mrf.mxu0
      %v2395 = vpop.f32.mrf.mxu0
      %v2396 = vadd.f32 0.0, %v2395
      %v2397 = vpop.f32.mrf.mxu0
      %2398 = vmatprep.mubr.bf16.mxu0 0
      %2399 = vmatmul.mubr.bf16.gmra.mxu0 %v2298
      %v2400 = vpop.f32.mrf.mxu0
      %v2401 = vadd.f32 0.0, %v2400
      %v2402 = vpop.f32.mrf.mxu0
      %v2403 = vpop.f32.mrf.mxu0
      %v2404 = vadd.f32 0.0, %v2403
      %v2405 = vpop.f32.mrf.mxu0
      %2406 = vmatprep.mubr.bf16.mxu0 0
      %2407 = vmatmul.mubr.bf16.gmra.mxu0 %v2301
      %v2408 = vpop.f32.mrf.mxu0
      %v2409 = vadd.f32 0.0, %v2408
      %v2410 = vpop.f32.mrf.mxu0
      %v2411 = vpop.f32.mrf.mxu0
      %v2412 = vadd.f32 0.0, %v2411
      %v2413 = vpop.f32.mrf.mxu0
      %2414 = vmatprep.mubr.bf16.mxu0 0
      %2415 = vmatmul.mubr.bf16.gmra.mxu0 %v2304
      %v2416 = vpop.f32.mrf.mxu0
      %v2417 = vadd.f32 0.0, %v2416
      %v2418 = vpop.f32.mrf.mxu0
      %v2419 = vpop.f32.mrf.mxu0
      %v2420 = vadd.f32 0.0, %v2419
      %v2421 = vpop.f32.mrf.mxu0
      %2422 = vmatprep.mubr.bf16.mxu0 0
      %2423 = vmatmul.mubr.bf16.gmra.mxu0 %v2307
      %v2424 = vpop.f32.mrf.mxu0
      %v2425 = vadd.f32 0.0, %v2424
      %v2426 = vpop.f32.mrf.mxu0
      %v2427 = vpop.f32.mrf.mxu0
      %v2428 = vadd.f32 0.0, %v2427
      %v2429 = vpop.f32.mrf.mxu0
      %2430 = vmatprep.mubr.bf16.mxu0 0
      %2431 = vmatmul.mubr.bf16.gmra.mxu0 %v2310
      %v2432 = vpop.f32.mrf.mxu0
      %v2433 = vadd.f32 0.0, %v2432
      %v2434 = vpop.f32.mrf.mxu0
      %v2435 = vpop.f32.mrf.mxu0
      %v2436 = vadd.f32 0.0, %v2435
      %v2437 = vpop.f32.mrf.mxu0
      %2438 = vmatprep.mubr.bf16.mxu0 0
      %2439 = vmatmul.mubr.bf16.gmra.mxu0 %v2313
      %v2440 = vpop.f32.mrf.mxu0
      %v2441 = vadd.f32 0.0, %v2440
      %v2442 = vpop.f32.mrf.mxu0
      %v2443 = vpop.f32.mrf.mxu0
      %v2444 = vadd.f32 0.0, %v2443
      %v2445 = vpop.f32.mrf.mxu0
      %2446 = vmatprep.mubr.bf16.mxu0 0
      %2447 = vmatmul.mubr.bf16.gmra.mxu0 %v2316
      %v2448 = vpop.f32.mrf.mxu0
      %v2449 = vadd.f32 0.0, %v2448
      %v2450 = vpop.f32.mrf.mxu0
      %v2451 = vpop.f32.mrf.mxu0
      %v2452 = vadd.f32 0.0, %v2451
      %v2453 = vpop.f32.mrf.mxu0
      %2454 = vmatprep.mubr.bf16.mxu0 0
      %2455 = vmatmul.mubr.bf16.gmra.mxu0 %v2319
      %v2456 = vpop.f32.mrf.mxu0
      %v2457 = vadd.f32 0.0, %v2456
      %v2458 = vpop.f32.mrf.mxu0
      %v2459 = vpop.f32.mrf.mxu0
      %v2460 = vadd.f32 0.0, %v2459
      %v2461 = vpop.f32.mrf.mxu0
      %2462 = vmatprep.mubr.bf16.mxu0 0
      %2463 = vmatmul.mubr.bf16.gmra.mxu0 %v2322
      %v2464 = vpop.f32.mrf.mxu0
      %v2465 = vadd.f32 0.0, %v2464
      %v2466 = vpop.f32.mrf.mxu0
      %v2467 = vpop.f32.mrf.mxu0
      %v2468 = vadd.f32 0.0, %v2467
      %v2469 = vpop.f32.mrf.mxu0
      %2470 = vmatprep.mubr.bf16.mxu0 0
      %2471 = vmatmul.mubr.bf16.gmra.mxu0 %v2325
      %v2472 = vpop.f32.mrf.mxu0
      %v2473 = vadd.f32 0.0, %v2472
      %v2474 = vpop.f32.mrf.mxu0
      %v2475 = vpop.f32.mrf.mxu0
      %v2476 = vadd.f32 0.0, %v2475
      %v2477 = vpop.f32.mrf.mxu0
      %2478 = vmatprep.mubr.bf16.mxu0 0
      %2479 = vmatmul.mubr.bf16.gmra.mxu0 %v2328
      %v2480 = vpop.f32.mrf.mxu0
      %v2481 = vadd.f32 0.0, %v2480
      %v2482 = vpop.f32.mrf.mxu0
      %v2483 = vpop.f32.mrf.mxu0
      %v2484 = vadd.f32 0.0, %v2483
      %v2485 = vpop.f32.mrf.mxu0
      %2486 = vmatprep.mubr.bf16.mxu0 0
      %2487 = vmatmul.mubr.bf16.gmra.mxu0 %v2331
      %v2488 = vpop.f32.mrf.mxu0
      %v2489 = vadd.f32 0.0, %v2488
      %v2490 = vpop.f32.mrf.mxu0
      %v2491 = vpop.f32.mrf.mxu0
      %v2492 = vadd.f32 0.0, %v2491
      %v2493 = vpop.f32.mrf.mxu0
      %2494 = vmatprep.mubr.bf16.mxu0 0
      %2495 = vmatmul.mubr.bf16.gmra.mxu0 %v2334
      %v2496 = vpop.f32.mrf.mxu0
      %v2497 = vadd.f32 0.0, %v2496
      %v2498 = vpop.f32.mrf.mxu0
      %v2499 = vpop.f32.mrf.mxu0
      %v2500 = vadd.f32 0.0, %v2499
      %v2501 = vpop.f32.mrf.mxu0
      %2502 = vmatprep.mubr.bf16.mxu0 0
      %2503 = vmatmul.mubr.bf16.gmra.mxu0 %v2337
      %v2504 = vpop.f32.mrf.mxu0
      %v2505 = vadd.f32 0.0, %v2504
      %v2506 = vpop.f32.mrf.mxu0
      %v2507 = vpop.f32.mrf.mxu0
      %v2508 = vadd.f32 0.0, %v2507
      %v2509 = vpop.f32.mrf.mxu0
      %2510 = vmatprep.mubr.bf16.mxu0 0
      %2511 = vmatmul.mubr.bf16.gmra.mxu0 %v2340
      %v2512 = vpop.f32.mrf.mxu0
      %v2513 = vadd.f32 0.0, %v2512
      %v2514 = vpop.f32.mrf.mxu0
      %v2515 = vpop.f32.mrf.mxu0
      %v2516 = vadd.f32 0.0, %v2515
      %v2517 = vpop.f32.mrf.mxu0
      %2518 = vdwg.mxu0
      %v2519 = vadd.f32 %v2201, %v2377
      %v2520 = vadd.f32 %v2202, %v2380
      %v2521 = vadd.f32 %v2203, %v2385
      %v2522 = vadd.f32 %v2204, %v2388
      %v2523 = vadd.f32 %v2205, %v2393
      %v2524 = vadd.f32 %v2206, %v2396
      %v2525 = vadd.f32 %v2207, %v2401
      %v2526 = vadd.f32 %v2208, %v2404
      %v2527 = vadd.f32 %v2209, %v2409
      %v2528 = vadd.f32 %v2210, %v2412
      %v2529 = vadd.f32 %v2211, %v2417
      %v2530 = vadd.f32 %v2212, %v2420
      %v2531 = vadd.f32 %v2213, %v2425
      %v2532 = vadd.f32 %v2214, %v2428
      %v2533 = vadd.f32 %v2215, %v2433
      %v2534 = vadd.f32 %v2216, %v2436
      %v2535 = vadd.f32 %v2217, %v2441
      %v2536 = vadd.f32 %v2218, %v2444
      %v2537 = vadd.f32 %v2219, %v2449
      %v2538 = vadd.f32 %v2220, %v2452
      %v2539 = vadd.f32 %v2221, %v2457
      %v2540 = vadd.f32 %v2222, %v2460
      %v2541 = vadd.f32 %v2223, %v2465
      %v2542 = vadd.f32 %v2224, %v2468
      %v2543 = vadd.f32 %v2225, %v2473
      %v2544 = vadd.f32 %v2226, %v2476
      %v2545 = vadd.f32 %v2227, %v2481
      %v2546 = vadd.f32 %v2228, %v2484
      %v2547 = vadd.f32 %v2229, %v2489
      %v2548 = vadd.f32 %v2230, %v2492
      %v2549 = vadd.f32 %v2231, %v2497
      %v2550 = vadd.f32 %v2232, %v2500
      %v2551 = vadd.f32 %v2233, %v2505
      %v2552 = vadd.f32 %v2234, %v2508
      %v2553 = vadd.f32 %v2235, %v2513
      %v2554 = vadd.f32 %v2236, %v2516
      %v2555 = vld [vmem:[%s258 + $0x10] sm:$0xc]
      %v2556 = vld [vmem:[%s258 + $0x14] sm:$0xf]
      %v2557 = vld [vmem:[%s258 + $0x18] sm:$0xf]
      %v2558 = vld [vmem:[%s258 + $0x1c] sm:$0xf]
      %v2559 = vld [vmem:[%s258 + $0x20] sm:$0xf]
      %v2560 = vld [vmem:[%s258 + $0x24] sm:$0xf]
      %v2561 = vld [vmem:[%s258 + $0x28] sm:$0xf]
      %v2562 = vld [vmem:[%s258 + $0x2c] sm:$0xf]
      %v2563 = vld [vmem:[%s258 + $0x30] sm:$0xf]
      %v2564 = vld [vmem:[%s258 + $0x34] sm:$0xf]
      %v2565 = vld [vmem:[%s258 + $0x38] sm:$0xf]
      %v2566 = vld [vmem:[%s258 + $0x3c] sm:$0xf]
      %v2567 = vld [vmem:[%s258 + $0x40] sm:$0xf]
      %v2568 = vld [vmem:[%s258 + $0x44] sm:$0xf]
      %v2569 = vld [vmem:[%s258 + $0x48] sm:$0xf]
      %v2570 = vld [vmem:[%s258 + $0x4c] sm:$0xf]
      %v2571 = vld [vmem:[%s258 + $0x50] sm:$0xf]
      %v2572 = vld [vmem:[%s258 + $0x54] sm:$0xf]
      %v2573 = vld [vmem:[%s258 + $0x58] sm:$0xf]
      %v2574 = vld [vmem:[%s258 + $0x5c] sm:$0xf]
      %v2575 = vld [vmem:[%s258 + $0x60] sm:$0xf]
      %v2576 = vld [vmem:[%s258 + $0x64] sm:$0xf]
      %v2577 = vld [vmem:[%s258 + $0x68] sm:$0xf]
      %v2578 = vld [vmem:[%s258 + $0x6c] sm:$0xf]
      %v2579 = vld [vmem:[%s258 + $0x70] sm:$0xf]
      %v2580 = vld [vmem:[%s258 + $0x74] sm:$0xf]
      %v2581 = vld [vmem:[%s258 + $0x78] sm:$0xf]
      %v2582 = vld [vmem:[%s258 + $0x7c] sm:$0xf]
      %v2583 = vld [vmem:[%s258 + $0x80] sm:$0xf]
      %v2584 = vld [vmem:[%s258 + $0x84] sm:$0xf]
      %v2585 = vld [vmem:[%s258 + $0x88] sm:$0xf]
      %v2586 = vld [vmem:[%s258 + $0x8c] sm:$0xf]
      %v2587 = vld [vmem:[%s258 + $0x90] sm:$0xf]
      %v2588 = vld [vmem:[%s258 + $0x94] sm:$0xf]
      %v2589 = vld [vmem:[%s258 + $0x98] sm:$0xf]
      %v2590 = vld [vmem:[%s258 + $0x9c] sm:$0xf]
      %v2591 = vld [vmem:[%s258 + $0xa0] sm:$0x3]
      %s2592 = scalar_lea.vmem %s266, 48
      %v2593 = vld [vmem:[%s2592] sm:$0xf]
      %v2594 = vld [vmem:[%s2592 + $0x4] sm:$0xf]
      %v2632 = vunpack.c.l.b16 %v2555
      %v2633 = vunpack.c.l.b16 %v2556
      %v2634 = vunpack.c.l.b16 %v2557
      %v2635 = vunpack.c.l.b16 %v2558
      %v2636 = vunpack.c.l.b16 %v2559
      %v2637 = vunpack.c.l.b16 %v2560
      %v2638 = vunpack.c.l.b16 %v2561
      %v2639 = vunpack.c.l.b16 %v2562
      %v2640 = vunpack.c.l.b16 %v2563
      %v2641 = vunpack.c.l.b16 %v2564
      %v2642 = vunpack.c.l.b16 %v2565
      %v2643 = vunpack.c.l.b16 %v2566
      %v2644 = vunpack.c.l.b16 %v2567
      %v2645 = vunpack.c.l.b16 %v2568
      %v2646 = vunpack.c.l.b16 %v2569
      %v2647 = vunpack.c.l.b16 %v2570
      %v2648 = vunpack.c.l.b16 %v2571
      %v2649 = vunpack.c.l.b16 %v2572
      %v2650 = vunpack.c.l.b16 %v2573
      %v2651 = vunpack.c.l.b16 %v2574
      %v2652 = vunpack.c.l.b16 %v2575
      %v2653 = vunpack.c.l.b16 %v2576
      %v2654 = vunpack.c.l.b16 %v2577
      %v2655 = vunpack.c.l.b16 %v2578
      %v2656 = vunpack.c.l.b16 %v2579
      %v2657 = vunpack.c.l.b16 %v2580
      %v2658 = vunpack.c.l.b16 %v2581
      %v2659 = vunpack.c.l.b16 %v2582
      %v2660 = vunpack.c.l.b16 %v2583
      %v2661 = vunpack.c.l.b16 %v2584
      %v2662 = vunpack.c.l.b16 %v2585
      %v2663 = vunpack.c.l.b16 %v2586
      %v2664 = vunpack.c.l.b16 %v2587
      %v2665 = vunpack.c.l.b16 %v2588
      %v2666 = vunpack.c.l.b16 %v2589
      %v2667 = vunpack.c.l.b16 %v2590
      %v2668 = vunpack.c.l.b16 %v2591
      %v2669 = vpack.c.b16 %v2633, %v2632
      %v2670 = vpack.c.b16 %v2635, %v2634
      %v2671 = vpack.c.b16 %v2637, %v2636
      %v2672 = vpack.c.b16 %v2639, %v2638
      %v2673 = vpack.c.b16 %v2641, %v2640
      %v2674 = vpack.c.b16 %v2643, %v2642
      %v2675 = vpack.c.b16 %v2645, %v2644
      %v2676 = vpack.c.b16 %v2647, %v2646
      %v2677 = vpack.c.b16 %v2649, %v2648
      %v2678 = vpack.c.b16 %v2651, %v2650
      %v2679 = vpack.c.b16 %v2653, %v2652
      %v2680 = vpack.c.b16 %v2655, %v2654
      %v2681 = vpack.c.b16 %v2657, %v2656
      %v2682 = vpack.c.b16 %v2659, %v2658
      %v2683 = vpack.c.b16 %v2661, %v2660
      %v2684 = vpack.c.b16 %v2663, %v2662
      %v2685 = vpack.c.b16 %v2665, %v2664
      %v2686 = vpack.c.b16 %v2667, %v2666
      %v2687 = vpack.c.b16 %v2668, %v2668
      %v2688 = vrot.slane %v2669, 2
      %v2689 = vrot.slane %v2670, 2
      %v2690 = vsel %vm2244, %v2688, %v2689
      %v2691 = vrot.slane %v2671, 2
      %v2692 = vsel %vm2244, %v2689, %v2691
      %v2693 = vrot.slane %v2672, 2
      %v2694 = vsel %vm2244, %v2691, %v2693
      %v2695 = vrot.slane %v2673, 2
      %v2696 = vsel %vm2244, %v2693, %v2695
      %v2697 = vrot.slane %v2674, 2
      %v2698 = vsel %vm2244, %v2695, %v2697
      %v2699 = vrot.slane %v2675, 2
      %v2700 = vsel %vm2244, %v2697, %v2699
      %v2701 = vrot.slane %v2676, 2
      %v2702 = vsel %vm2244, %v2699, %v2701
      %v2703 = vrot.slane %v2677, 2
      %v2704 = vsel %vm2244, %v2701, %v2703
      %v2705 = vrot.slane %v2678, 2
      %v2706 = vsel %vm2244, %v2703, %v2705
      %v2707 = vrot.slane %v2679, 2
      %v2708 = vsel %vm2244, %v2705, %v2707
      %v2709 = vrot.slane %v2680, 2
      %v2710 = vsel %vm2244, %v2707, %v2709
      %v2711 = vrot.slane %v2681, 2
      %v2712 = vsel %vm2244, %v2709, %v2711
      %v2713 = vrot.slane %v2682, 2
      %v2714 = vsel %vm2244, %v2711, %v2713
      %v2715 = vrot.slane %v2683, 2
      %v2716 = vsel %vm2244, %v2713, %v2715
      %v2717 = vrot.slane %v2684, 2
      %v2718 = vsel %vm2244, %v2715, %v2717
      %v2719 = vrot.slane %v2685, 2
      %v2720 = vsel %vm2244, %v2717, %v2719
      %v2721 = vrot.slane %v2686, 2
      %v2722 = vsel %vm2244, %v2719, %v2721
      %v2723 = vrot.slane %v2687, 2
      %v2724 = vsel %vm2244, %v2721, %v2723
      %v2727 = vunpack.c.l.b16 %v2593
      %v2728 = vunpack.c.l.b16 %v2594
      %v2729 = vpack.c.b16 %v2728, %v2727
      %v2732 = vsel %vm574, %v2690, 0
      %v2735 = vsel %vm574, %v2692, 0
      %v2738 = vsel %vm574, %v2694, 0
      %v2741 = vsel %vm574, %v2696, 0
      %v2744 = vsel %vm574, %v2698, 0
      %v2747 = vsel %vm574, %v2700, 0
      %v2750 = vsel %vm574, %v2702, 0
      %v2753 = vsel %vm574, %v2704, 0
      %v2756 = vsel %vm574, %v2706, 0
      %v2759 = vsel %vm574, %v2708, 0
      %v2762 = vsel %vm574, %v2710, 0
      %v2765 = vsel %vm574, %v2712, 0
      %v2768 = vsel %vm574, %v2714, 0
      %v2771 = vsel %vm574, %v2716, 0
      %v2774 = vsel %vm574, %v2718, 0
      %v2777 = vsel %vm574, %v2720, 0
      %v2780 = vsel %vm574, %v2722, 0
      %v2783 = vsel %vm574, %v2724, 0
      %2785 = vmatprep.subr.bf16.mxu0 0
      %2786 = vmatpush1.bf16.msra.mxu0 0
      %2787 = vmatprep.subr.bf16.mxu0 0
      %2788 = vmatpush1.bf16.msra.mxu0 0
      %2789 = vmatprep.subr.bf16.mxu0 0
      %2790 = vmatpush1.bf16.msra.mxu0 0
      %2791 = vmatprep.subr.bf16.mxu0 0
      %2792 = vmatpush1.bf16.msra.mxu0 0
      %2793 = vmatprep.subr.bf16.mxu0 0
      %2794 = vmatpush1.bf16.msra.mxu0 0
      %2795 = vmatprep.subr.bf16.mxu0 0
      %2796 = vmatpush1.bf16.msra.mxu0 0
      %2797 = vmatprep.subr.bf16.mxu0 0
      %2798 = vmatpush1.bf16.msra.mxu0 0
      %2799 = vmatprep.subr.bf16.mxu0 0
      %2800 = vmatpush1.bf16.msra.mxu0 %v2729
      %2801 = vmatprep.subr.bf16.mxu0 0
      %2802 = vmatpush2.bf16.msra.mxu0 0
      %2803 = vmatprep.subr.bf16.mxu0 0
      %2804 = vmatpush2.bf16.msra.mxu0 0
      %2805 = vmatprep.subr.bf16.mxu0 0
      %2806 = vmatpush2.bf16.msra.mxu0 0
      %2807 = vmatprep.subr.bf16.mxu0 0
      %2808 = vmatpush2.bf16.msra.mxu0 0
      %2809 = vmatprep.subr.bf16.mxu0 0
      %2810 = vmatpush2.bf16.msra.mxu0 0
      %2811 = vmatprep.subr.bf16.mxu0 0
      %2812 = vmatpush2.bf16.msra.mxu0 0
      %2813 = vmatprep.subr.bf16.mxu0 0
      %2814 = vmatpush2.bf16.msra.mxu0 0
      %2815 = vmatprep.subr.bf16.mxu0 0
      %2816 = vmatpush2.bf16.msra.mxu0 0
      %2817 = vmatprep.mubr.bf16.mxu0 0
      %2818 = vmatmul.mubr.bf16.gmra.mxu0 %v2732
      %v2819 = vpop.f32.mrf.mxu0
      %v2820 = vadd.f32 0.0, %v2819
      %v2821 = vpop.f32.mrf.mxu0
      %v2822 = vpop.f32.mrf.mxu0
      %v2823 = vadd.f32 0.0, %v2822
      %v2824 = vpop.f32.mrf.mxu0
      %2825 = vmatprep.mubr.bf16.mxu0 0
      %2826 = vmatmul.mubr.bf16.gmra.mxu0 %v2735
      %v2827 = vpop.f32.mrf.mxu0
      %v2828 = vadd.f32 0.0, %v2827
      %v2829 = vpop.f32.mrf.mxu0
      %v2830 = vpop.f32.mrf.mxu0
      %v2831 = vadd.f32 0.0, %v2830
      %v2832 = vpop.f32.mrf.mxu0
      %2833 = vmatprep.mubr.bf16.mxu0 0
      %2834 = vmatmul.mubr.bf16.gmra.mxu0 %v2738
      %v2835 = vpop.f32.mrf.mxu0
      %v2836 = vadd.f32 0.0, %v2835
      %v2837 = vpop.f32.mrf.mxu0
      %v2838 = vpop.f32.mrf.mxu0
      %v2839 = vadd.f32 0.0, %v2838
      %v2840 = vpop.f32.mrf.mxu0
      %2841 = vmatprep.mubr.bf16.mxu0 0
      %2842 = vmatmul.mubr.bf16.gmra.mxu0 %v2741
      %v2843 = vpop.f32.mrf.mxu0
      %v2844 = vadd.f32 0.0, %v2843
      %v2845 = vpop.f32.mrf.mxu0
      %v2846 = vpop.f32.mrf.mxu0
      %v2847 = vadd.f32 0.0, %v2846
      %v2848 = vpop.f32.mrf.mxu0
      %2849 = vmatprep.mubr.bf16.mxu0 0
      %2850 = vmatmul.mubr.bf16.gmra.mxu0 %v2744
      %v2851 = vpop.f32.mrf.mxu0
      %v2852 = vadd.f32 0.0, %v2851
      %v2853 = vpop.f32.mrf.mxu0
      %v2854 = vpop.f32.mrf.mxu0
      %v2855 = vadd.f32 0.0, %v2854
      %v2856 = vpop.f32.mrf.mxu0
      %2857 = vmatprep.mubr.bf16.mxu0 0
      %2858 = vmatmul.mubr.bf16.gmra.mxu0 %v2747
      %v2859 = vpop.f32.mrf.mxu0
      %v2860 = vadd.f32 0.0, %v2859
      %v2861 = vpop.f32.mrf.mxu0
      %v2862 = vpop.f32.mrf.mxu0
      %v2863 = vadd.f32 0.0, %v2862
      %v2864 = vpop.f32.mrf.mxu0
      %2865 = vmatprep.mubr.bf16.mxu0 0
      %2866 = vmatmul.mubr.bf16.gmra.mxu0 %v2750
      %v2867 = vpop.f32.mrf.mxu0
      %v2868 = vadd.f32 0.0, %v2867
      %v2869 = vpop.f32.mrf.mxu0
      %v2870 = vpop.f32.mrf.mxu0
      %v2871 = vadd.f32 0.0, %v2870
      %v2872 = vpop.f32.mrf.mxu0
      %2873 = vmatprep.mubr.bf16.mxu0 0
      %2874 = vmatmul.mubr.bf16.gmra.mxu0 %v2753
      %v2875 = vpop.f32.mrf.mxu0
      %v2876 = vadd.f32 0.0, %v2875
      %v2877 = vpop.f32.mrf.mxu0
      %v2878 = vpop.f32.mrf.mxu0
      %v2879 = vadd.f32 0.0, %v2878
      %v2880 = vpop.f32.mrf.mxu0
      %2881 = vmatprep.mubr.bf16.mxu0 0
      %2882 = vmatmul.mubr.bf16.gmra.mxu0 %v2756
      %v2883 = vpop.f32.mrf.mxu0
      %v2884 = vadd.f32 0.0, %v2883
      %v2885 = vpop.f32.mrf.mxu0
      %v2886 = vpop.f32.mrf.mxu0
      %v2887 = vadd.f32 0.0, %v2886
      %v2888 = vpop.f32.mrf.mxu0
      %2889 = vmatprep.mubr.bf16.mxu0 0
      %2890 = vmatmul.mubr.bf16.gmra.mxu0 %v2759
      %v2891 = vpop.f32.mrf.mxu0
      %v2892 = vadd.f32 0.0, %v2891
      %v2893 = vpop.f32.mrf.mxu0
      %v2894 = vpop.f32.mrf.mxu0
      %v2895 = vadd.f32 0.0, %v2894
      %v2896 = vpop.f32.mrf.mxu0
      %2897 = vmatprep.mubr.bf16.mxu0 0
      %2898 = vmatmul.mubr.bf16.gmra.mxu0 %v2762
      %v2899 = vpop.f32.mrf.mxu0
      %v2900 = vadd.f32 0.0, %v2899
      %v2901 = vpop.f32.mrf.mxu0
      %v2902 = vpop.f32.mrf.mxu0
      %v2903 = vadd.f32 0.0, %v2902
      %v2904 = vpop.f32.mrf.mxu0
      %2905 = vmatprep.mubr.bf16.mxu0 0
      %2906 = vmatmul.mubr.bf16.gmra.mxu0 %v2765
      %v2907 = vpop.f32.mrf.mxu0
      %v2908 = vadd.f32 0.0, %v2907
      %v2909 = vpop.f32.mrf.mxu0
      %v2910 = vpop.f32.mrf.mxu0
      %v2911 = vadd.f32 0.0, %v2910
      %v2912 = vpop.f32.mrf.mxu0
      %2913 = vmatprep.mubr.bf16.mxu0 0
      %2914 = vmatmul.mubr.bf16.gmra.mxu0 %v2768
      %v2915 = vpop.f32.mrf.mxu0
      %v2916 = vadd.f32 0.0, %v2915
      %v2917 = vpop.f32.mrf.mxu0
      %v2918 = vpop.f32.mrf.mxu0
      %v2919 = vadd.f32 0.0, %v2918
      %v2920 = vpop.f32.mrf.mxu0
      %2921 = vmatprep.mubr.bf16.mxu0 0
      %2922 = vmatmul.mubr.bf16.gmra.mxu0 %v2771
      %v2923 = vpop.f32.mrf.mxu0
      %v2924 = vadd.f32 0.0, %v2923
      %v2925 = vpop.f32.mrf.mxu0
      %v2926 = vpop.f32.mrf.mxu0
      %v2927 = vadd.f32 0.0, %v2926
      %v2928 = vpop.f32.mrf.mxu0
      %2929 = vmatprep.mubr.bf16.mxu0 0
      %2930 = vmatmul.mubr.bf16.gmra.mxu0 %v2774
      %v2931 = vpop.f32.mrf.mxu0
      %v2932 = vadd.f32 0.0, %v2931
      %v2933 = vpop.f32.mrf.mxu0
      %v2934 = vpop.f32.mrf.mxu0
      %v2935 = vadd.f32 0.0, %v2934
      %v2936 = vpop.f32.mrf.mxu0
      %2937 = vmatprep.mubr.bf16.mxu0 0
      %2938 = vmatmul.mubr.bf16.gmra.mxu0 %v2777
      %v2939 = vpop.f32.mrf.mxu0
      %v2940 = vadd.f32 0.0, %v2939
      %v2941 = vpop.f32.mrf.mxu0
      %v2942 = vpop.f32.mrf.mxu0
      %v2943 = vadd.f32 0.0, %v2942
      %v2944 = vpop.f32.mrf.mxu0
      %2945 = vmatprep.mubr.bf16.mxu0 0
      %2946 = vmatmul.mubr.bf16.gmra.mxu0 %v2780
      %v2947 = vpop.f32.mrf.mxu0
      %v2948 = vadd.f32 0.0, %v2947
      %v2949 = vpop.f32.mrf.mxu0
      %v2950 = vpop.f32.mrf.mxu0
      %v2951 = vadd.f32 0.0, %v2950
      %v2952 = vpop.f32.mrf.mxu0
      %2953 = vmatprep.mubr.bf16.mxu0 0
      %2954 = vmatmul.mubr.bf16.gmra.mxu0 %v2783
      %v2955 = vpop.f32.mrf.mxu0
      %v2956 = vadd.f32 0.0, %v2955
      %v2957 = vpop.f32.mrf.mxu0
      %v2958 = vpop.f32.mrf.mxu0
      %v2959 = vadd.f32 0.0, %v2958
      %v2960 = vpop.f32.mrf.mxu0
      %2961 = vdwg.mxu0
      %v2962 = vadd.f32 %v2519, %v2820
      %v2963 = vadd.f32 %v2520, %v2823
      %v2964 = vadd.f32 %v2521, %v2828
      %v2965 = vadd.f32 %v2522, %v2831
      %v2966 = vadd.f32 %v2523, %v2836
      %v2967 = vadd.f32 %v2524, %v2839
      %v2968 = vadd.f32 %v2525, %v2844
      %v2969 = vadd.f32 %v2526, %v2847
      %v2970 = vadd.f32 %v2527, %v2852
      %v2971 = vadd.f32 %v2528, %v2855
      %v2972 = vadd.f32 %v2529, %v2860
      %v2973 = vadd.f32 %v2530, %v2863
      %v2974 = vadd.f32 %v2531, %v2868
      %v2975 = vadd.f32 %v2532, %v2871
      %v2976 = vadd.f32 %v2533, %v2876
      %v2977 = vadd.f32 %v2534, %v2879
      %v2978 = vadd.f32 %v2535, %v2884
      %v2979 = vadd.f32 %v2536, %v2887
      %v2980 = vadd.f32 %v2537, %v2892
      %v2981 = vadd.f32 %v2538, %v2895
      %v2982 = vadd.f32 %v2539, %v2900
      %v2983 = vadd.f32 %v2540, %v2903
      %v2984 = vadd.f32 %v2541, %v2908
      %v2985 = vadd.f32 %v2542, %v2911
      %v2986 = vadd.f32 %v2543, %v2916
      %v2987 = vadd.f32 %v2544, %v2919
      %v2988 = vadd.f32 %v2545, %v2924
      %v2989 = vadd.f32 %v2546, %v2927
      %v2990 = vadd.f32 %v2547, %v2932
      %v2991 = vadd.f32 %v2548, %v2935
      %v2992 = vadd.f32 %v2549, %v2940
      %v2993 = vadd.f32 %v2550, %v2943
      %v2994 = vadd.f32 %v2551, %v2948
      %v2995 = vadd.f32 %v2552, %v2951
      %v2996 = vadd.f32 %v2553, %v2956
      %v2997 = vadd.f32 %v2554, %v2959
      %v2998 = vld [vmem:[%s258 + $0xa0] sm:$0x7]
      %s2999 = scalar_lea.vmem %s266, 56
      %v3000 = vld [vmem:[%s2999] sm:$0xf]
      %v3001 = vld [vmem:[%s2999 + $0x4] sm:$0xf]
      %v3003 = vunpack.c.l.b16 %v2998
      %v3004 = vpack.c.b16 %v3003, %v3003
      %vm3005 = vsmask.f32 5376
      %v3007 = vshrl.u32 %v2669, 16
      %v3009 = vrot.slane %v3007, 2
      %v3010 = vshll.u32 %v2669, 16
      %v3012 = vrot.slane %v3010, 3
      %v3013 = vor.u32 %v3009, %v3012
      %v3015 = vshrl.u32 %v2670, 16
      %v3017 = vrot.slane %v3015, 2
      %v3018 = vshll.u32 %v2670, 16
      %v3020 = vrot.slane %v3018, 3
      %v3021 = vor.u32 %v3017, %v3020
      %v3022 = vsel %vm3005, %v3013, %v3021
      %v3024 = vshrl.u32 %v2671, 16
      %v3026 = vrot.slane %v3024, 2
      %v3027 = vshll.u32 %v2671, 16
      %v3029 = vrot.slane %v3027, 3
      %v3030 = vor.u32 %v3026, %v3029
      %v3031 = vsel %vm3005, %v3021, %v3030
      %v3033 = vshrl.u32 %v2672, 16
      %v3035 = vrot.slane %v3033, 2
      %v3036 = vshll.u32 %v2672, 16
      %v3038 = vrot.slane %v3036, 3
      %v3039 = vor.u32 %v3035, %v3038
      %v3040 = vsel %vm3005, %v3030, %v3039
      %v3042 = vshrl.u32 %v2673, 16
      %v3044 = vrot.slane %v3042, 2
      %v3045 = vshll.u32 %v2673, 16
      %v3047 = vrot.slane %v3045, 3
      %v3048 = vor.u32 %v3044, %v3047
      %v3049 = vsel %vm3005, %v3039, %v3048
      %v3051 = vshrl.u32 %v2674, 16
      %v3053 = vrot.slane %v3051, 2
      %v3054 = vshll.u32 %v2674, 16
      %v3056 = vrot.slane %v3054, 3
      %v3057 = vor.u32 %v3053, %v3056
      %v3058 = vsel %vm3005, %v3048, %v3057
      %v3060 = vshrl.u32 %v2675, 16
      %v3062 = vrot.slane %v3060, 2
      %v3063 = vshll.u32 %v2675, 16
      %v3065 = vrot.slane %v3063, 3
      %v3066 = vor.u32 %v3062, %v3065
      %v3067 = vsel %vm3005, %v3057, %v3066
      %v3069 = vshrl.u32 %v2676, 16
      %v3071 = vrot.slane %v3069, 2
      %v3072 = vshll.u32 %v2676, 16
      %v3074 = vrot.slane %v3072, 3
      %v3075 = vor.u32 %v3071, %v3074
      %v3076 = vsel %vm3005, %v3066, %v3075
      %v3078 = vshrl.u32 %v2677, 16
      %v3080 = vrot.slane %v3078, 2
      %v3081 = vshll.u32 %v2677, 16
      %v3083 = vrot.slane %v3081, 3
      %v3084 = vor.u32 %v3080, %v3083
      %v3085 = vsel %vm3005, %v3075, %v3084
      %v3087 = vshrl.u32 %v2678, 16
      %v3089 = vrot.slane %v3087, 2
      %v3090 = vshll.u32 %v2678, 16
      %v3092 = vrot.slane %v3090, 3
      %v3093 = vor.u32 %v3089, %v3092
      %v3094 = vsel %vm3005, %v3084, %v3093
      %v3096 = vshrl.u32 %v2679, 16
      %v3098 = vrot.slane %v3096, 2
      %v3099 = vshll.u32 %v2679, 16
      %v3101 = vrot.slane %v3099, 3
      %v3102 = vor.u32 %v3098, %v3101
      %v3103 = vsel %vm3005, %v3093, %v3102
      %v3105 = vshrl.u32 %v2680, 16
      %v3107 = vrot.slane %v3105, 2
      %v3108 = vshll.u32 %v2680, 16
      %v3110 = vrot.slane %v3108, 3
      %v3111 = vor.u32 %v3107, %v3110
      %v3112 = vsel %vm3005, %v3102, %v3111
      %v3114 = vshrl.u32 %v2681, 16
      %v3116 = vrot.slane %v3114, 2
      %v3117 = vshll.u32 %v2681, 16
      %v3119 = vrot.slane %v3117, 3
      %v3120 = vor.u32 %v3116, %v3119
      %v3121 = vsel %vm3005, %v3111, %v3120
      %v3123 = vshrl.u32 %v2682, 16
      %v3125 = vrot.slane %v3123, 2
      %v3126 = vshll.u32 %v2682, 16
      %v3128 = vrot.slane %v3126, 3
      %v3129 = vor.u32 %v3125, %v3128
      %v3130 = vsel %vm3005, %v3120, %v3129
      %v3132 = vshrl.u32 %v2683, 16
      %v3134 = vrot.slane %v3132, 2
      %v3135 = vshll.u32 %v2683, 16
      %v3137 = vrot.slane %v3135, 3
      %v3138 = vor.u32 %v3134, %v3137
      %v3139 = vsel %vm3005, %v3129, %v3138
      %v3141 = vshrl.u32 %v2684, 16
      %v3143 = vrot.slane %v3141, 2
      %v3144 = vshll.u32 %v2684, 16
      %v3146 = vrot.slane %v3144, 3
      %v3147 = vor.u32 %v3143, %v3146
      %v3148 = vsel %vm3005, %v3138, %v3147
      %v3150 = vshrl.u32 %v2685, 16
      %v3152 = vrot.slane %v3150, 2
      %v3153 = vshll.u32 %v2685, 16
      %v3155 = vrot.slane %v3153, 3
      %v3156 = vor.u32 %v3152, %v3155
      %v3157 = vsel %vm3005, %v3147, %v3156
      %v3159 = vshrl.u32 %v2686, 16
      %v3161 = vrot.slane %v3159, 2
      %v3162 = vshll.u32 %v2686, 16
      %v3164 = vrot.slane %v3162, 3
      %v3165 = vor.u32 %v3161, %v3164
      %v3166 = vsel %vm3005, %v3156, %v3165
      %v3168 = vshrl.u32 %v3004, 16
      %v3170 = vrot.slane %v3168, 2
      %v3171 = vshll.u32 %v3004, 16
      %v3173 = vrot.slane %v3171, 3
      %v3174 = vor.u32 %v3170, %v3173
      %v3175 = vsel %vm3005, %v3165, %v3174
      %v3178 = vunpack.c.l.b16 %v3000
      %v3179 = vunpack.c.l.b16 %v3001
      %v3180 = vpack.c.b16 %v3179, %v3178
      %v3183 = vsel %vm574, %v3022, 0
      %v3186 = vsel %vm574, %v3031, 0
      %v3189 = vsel %vm574, %v3040, 0
      %v3192 = vsel %vm574, %v3049, 0
      %v3195 = vsel %vm574, %v3058, 0
      %v3198 = vsel %vm574, %v3067, 0
      %v3201 = vsel %vm574, %v3076, 0
      %v3204 = vsel %vm574, %v3085, 0
      %v3207 = vsel %vm574, %v3094, 0
      %v3210 = vsel %vm574, %v3103, 0
      %v3213 = vsel %vm574, %v3112, 0
      %v3216 = vsel %vm574, %v3121, 0
      %v3219 = vsel %vm574, %v3130, 0
      %v3222 = vsel %vm574, %v3139, 0
      %v3225 = vsel %vm574, %v3148, 0
      %v3228 = vsel %vm574, %v3157, 0
      %v3231 = vsel %vm574, %v3166, 0
      %v3234 = vsel %vm574, %v3175, 0
      %3236 = vmatprep.subr.bf16.mxu0 0
      %3237 = vmatpush1.bf16.msra.mxu0 0
      %3238 = vmatprep.subr.bf16.mxu0 0
      %3239 = vmatpush1.bf16.msra.mxu0 0
      %3240 = vmatprep.subr.bf16.mxu0 0
      %3241 = vmatpush1.bf16.msra.mxu0 0
      %3242 = vmatprep.subr.bf16.mxu0 0
      %3243 = vmatpush1.bf16.msra.mxu0 0
      %3244 = vmatprep.subr.bf16.mxu0 0
      %3245 = vmatpush1.bf16.msra.mxu0 0
      %3246 = vmatprep.subr.bf16.mxu0 0
      %3247 = vmatpush1.bf16.msra.mxu0 0
      %3248 = vmatprep.subr.bf16.mxu0 0
      %3249 = vmatpush1.bf16.msra.mxu0 0
      %3250 = vmatprep.subr.bf16.mxu0 0
      %3251 = vmatpush1.bf16.msra.mxu0 %v3180
      %3252 = vmatprep.subr.bf16.mxu0 0
      %3253 = vmatpush2.bf16.msra.mxu0 0
      %3254 = vmatprep.subr.bf16.mxu0 0
      %3255 = vmatpush2.bf16.msra.mxu0 0
      %3256 = vmatprep.subr.bf16.mxu0 0
      %3257 = vmatpush2.bf16.msra.mxu0 0
      %3258 = vmatprep.subr.bf16.mxu0 0
      %3259 = vmatpush2.bf16.msra.mxu0 0
      %3260 = vmatprep.subr.bf16.mxu0 0
      %3261 = vmatpush2.bf16.msra.mxu0 0
      %3262 = vmatprep.subr.bf16.mxu0 0
      %3263 = vmatpush2.bf16.msra.mxu0 0
      %3264 = vmatprep.subr.bf16.mxu0 0
      %3265 = vmatpush2.bf16.msra.mxu0 0
      %3266 = vmatprep.subr.bf16.mxu0 0
      %3267 = vmatpush2.bf16.msra.mxu0 0
      %3268 = vmatprep.mubr.bf16.mxu0 0
      %3269 = vmatmul.mubr.bf16.gmra.mxu0 %v3183
      %v3270 = vpop.f32.mrf.mxu0
      %v3271 = vadd.f32 0.0, %v3270
      %v3272 = vpop.f32.mrf.mxu0
      %v3273 = vpop.f32.mrf.mxu0
      %v3274 = vadd.f32 0.0, %v3273
      %v3275 = vpop.f32.mrf.mxu0
      %3276 = vmatprep.mubr.bf16.mxu0 0
      %3277 = vmatmul.mubr.bf16.gmra.mxu0 %v3186
      %v3278 = vpop.f32.mrf.mxu0
      %v3279 = vadd.f32 0.0, %v3278
      %v3280 = vpop.f32.mrf.mxu0
      %v3281 = vpop.f32.mrf.mxu0
      %v3282 = vadd.f32 0.0, %v3281
      %v3283 = vpop.f32.mrf.mxu0
      %3284 = vmatprep.mubr.bf16.mxu0 0
      %3285 = vmatmul.mubr.bf16.gmra.mxu0 %v3189
      %v3286 = vpop.f32.mrf.mxu0
      %v3287 = vadd.f32 0.0, %v3286
      %v3288 = vpop.f32.mrf.mxu0
      %v3289 = vpop.f32.mrf.mxu0
      %v3290 = vadd.f32 0.0, %v3289
      %v3291 = vpop.f32.mrf.mxu0
      %3292 = vmatprep.mubr.bf16.mxu0 0
      %3293 = vmatmul.mubr.bf16.gmra.mxu0 %v3192
      %v3294 = vpop.f32.mrf.mxu0
      %v3295 = vadd.f32 0.0, %v3294
      %v3296 = vpop.f32.mrf.mxu0
      %v3297 = vpop.f32.mrf.mxu0
      %v3298 = vadd.f32 0.0, %v3297
      %v3299 = vpop.f32.mrf.mxu0
      %3300 = vmatprep.mubr.bf16.mxu0 0
      %3301 = vmatmul.mubr.bf16.gmra.mxu0 %v3195
      %v3302 = vpop.f32.mrf.mxu0
      %v3303 = vadd.f32 0.0, %v3302
      %v3304 = vpop.f32.mrf.mxu0
      %v3305 = vpop.f32.mrf.mxu0
      %v3306 = vadd.f32 0.0, %v3305
      %v3307 = vpop.f32.mrf.mxu0
      %3308 = vmatprep.mubr.bf16.mxu0 0
      %3309 = vmatmul.mubr.bf16.gmra.mxu0 %v3198
      %v3310 = vpop.f32.mrf.mxu0
      %v3311 = vadd.f32 0.0, %v3310
      %v3312 = vpop.f32.mrf.mxu0
      %v3313 = vpop.f32.mrf.mxu0
      %v3314 = vadd.f32 0.0, %v3313
      %v3315 = vpop.f32.mrf.mxu0
      %3316 = vmatprep.mubr.bf16.mxu0 0
      %3317 = vmatmul.mubr.bf16.gmra.mxu0 %v3201
      %v3318 = vpop.f32.mrf.mxu0
      %v3319 = vadd.f32 0.0, %v3318
      %v3320 = vpop.f32.mrf.mxu0
      %v3321 = vpop.f32.mrf.mxu0
      %v3322 = vadd.f32 0.0, %v3321
      %v3323 = vpop.f32.mrf.mxu0
      %3324 = vmatprep.mubr.bf16.mxu0 0
      %3325 = vmatmul.mubr.bf16.gmra.mxu0 %v3204
      %v3326 = vpop.f32.mrf.mxu0
      %v3327 = vadd.f32 0.0, %v3326
      %v3328 = vpop.f32.mrf.mxu0
      %v3329 = vpop.f32.mrf.mxu0
      %v3330 = vadd.f32 0.0, %v3329
      %v3331 = vpop.f32.mrf.mxu0
      %3332 = vmatprep.mubr.bf16.mxu0 0
      %3333 = vmatmul.mubr.bf16.gmra.mxu0 %v3207
      %v3334 = vpop.f32.mrf.mxu0
      %v3335 = vadd.f32 0.0, %v3334
      %v3336 = vpop.f32.mrf.mxu0
      %v3337 = vpop.f32.mrf.mxu0
      %v3338 = vadd.f32 0.0, %v3337
      %v3339 = vpop.f32.mrf.mxu0
      %3340 = vmatprep.mubr.bf16.mxu0 0
      %3341 = vmatmul.mubr.bf16.gmra.mxu0 %v3210
      %v3342 = vpop.f32.mrf.mxu0
      %v3343 = vadd.f32 0.0, %v3342
      %v3344 = vpop.f32.mrf.mxu0
      %v3345 = vpop.f32.mrf.mxu0
      %v3346 = vadd.f32 0.0, %v3345
      %v3347 = vpop.f32.mrf.mxu0
      %3348 = vmatprep.mubr.bf16.mxu0 0
      %3349 = vmatmul.mubr.bf16.gmra.mxu0 %v3213
      %v3350 = vpop.f32.mrf.mxu0
      %v3351 = vadd.f32 0.0, %v3350
      %v3352 = vpop.f32.mrf.mxu0
      %v3353 = vpop.f32.mrf.mxu0
      %v3354 = vadd.f32 0.0, %v3353
      %v3355 = vpop.f32.mrf.mxu0
      %3356 = vmatprep.mubr.bf16.mxu0 0
      %3357 = vmatmul.mubr.bf16.gmra.mxu0 %v3216
      %v3358 = vpop.f32.mrf.mxu0
      %v3359 = vadd.f32 0.0, %v3358
      %v3360 = vpop.f32.mrf.mxu0
      %v3361 = vpop.f32.mrf.mxu0
      %v3362 = vadd.f32 0.0, %v3361
      %v3363 = vpop.f32.mrf.mxu0
      %3364 = vmatprep.mubr.bf16.mxu0 0
      %3365 = vmatmul.mubr.bf16.gmra.mxu0 %v3219
      %v3366 = vpop.f32.mrf.mxu0
      %v3367 = vadd.f32 0.0, %v3366
      %v3368 = vpop.f32.mrf.mxu0
      %v3369 = vpop.f32.mrf.mxu0
      %v3370 = vadd.f32 0.0, %v3369
      %v3371 = vpop.f32.mrf.mxu0
      %3372 = vmatprep.mubr.bf16.mxu0 0
      %3373 = vmatmul.mubr.bf16.gmra.mxu0 %v3222
      %v3374 = vpop.f32.mrf.mxu0
      %v3375 = vadd.f32 0.0, %v3374
      %v3376 = vpop.f32.mrf.mxu0
      %v3377 = vpop.f32.mrf.mxu0
      %v3378 = vadd.f32 0.0, %v3377
      %v3379 = vpop.f32.mrf.mxu0
      %3380 = vmatprep.mubr.bf16.mxu0 0
      %3381 = vmatmul.mubr.bf16.gmra.mxu0 %v3225
      %v3382 = vpop.f32.mrf.mxu0
      %v3383 = vadd.f32 0.0, %v3382
      %v3384 = vpop.f32.mrf.mxu0
      %v3385 = vpop.f32.mrf.mxu0
      %v3386 = vadd.f32 0.0, %v3385
      %v3387 = vpop.f32.mrf.mxu0
      %3388 = vmatprep.mubr.bf16.mxu0 0
      %3389 = vmatmul.mubr.bf16.gmra.mxu0 %v3228
      %v3390 = vpop.f32.mrf.mxu0
      %v3391 = vadd.f32 0.0, %v3390
      %v3392 = vpop.f32.mrf.mxu0
      %v3393 = vpop.f32.mrf.mxu0
      %v3394 = vadd.f32 0.0, %v3393
      %v3395 = vpop.f32.mrf.mxu0
      %3396 = vmatprep.mubr.bf16.mxu0 0
      %3397 = vmatmul.mubr.bf16.gmra.mxu0 %v3231
      %v3398 = vpop.f32.mrf.mxu0
      %v3399 = vadd.f32 0.0, %v3398
      %v3400 = vpop.f32.mrf.mxu0
      %v3401 = vpop.f32.mrf.mxu0
      %v3402 = vadd.f32 0.0, %v3401
      %v3403 = vpop.f32.mrf.mxu0
      %3404 = vmatprep.mubr.bf16.mxu0 0
      %3405 = vmatmul.mubr.bf16.gmra.mxu0 %v3234
      %v3406 = vpop.f32.mrf.mxu0
      %v3407 = vadd.f32 0.0, %v3406
      %v3408 = vpop.f32.mrf.mxu0
      %v3409 = vpop.f32.mrf.mxu0
      %v3410 = vadd.f32 0.0, %v3409
      %v3411 = vpop.f32.mrf.mxu0
      %3412 = vdwg.mxu0
      %v3413 = vadd.f32 %v2962, %v3271
      %v3414 = vadd.f32 %v2963, %v3274
      %v3415 = vadd.f32 %v2964, %v3279
      %v3416 = vadd.f32 %v2965, %v3282
      %v3417 = vadd.f32 %v2966, %v3287
      %v3418 = vadd.f32 %v2967, %v3290
      %v3419 = vadd.f32 %v2968, %v3295
      %v3420 = vadd.f32 %v2969, %v3298
      %v3421 = vadd.f32 %v2970, %v3303
      %v3422 = vadd.f32 %v2971, %v3306
      %v3423 = vadd.f32 %v2972, %v3311
      %v3424 = vadd.f32 %v2973, %v3314
      %v3425 = vadd.f32 %v2974, %v3319
      %v3426 = vadd.f32 %v2975, %v3322
      %v3427 = vadd.f32 %v2976, %v3327
      %v3428 = vadd.f32 %v2977, %v3330
      %v3429 = vadd.f32 %v2978, %v3335
      %v3430 = vadd.f32 %v2979, %v3338
      %v3431 = vadd.f32 %v2980, %v3343
      %v3432 = vadd.f32 %v2981, %v3346
      %v3433 = vadd.f32 %v2982, %v3351
      %v3434 = vadd.f32 %v2983, %v3354
      %v3435 = vadd.f32 %v2984, %v3359
      %v3436 = vadd.f32 %v2985, %v3362
      %v3437 = vadd.f32 %v2986, %v3367
      %v3438 = vadd.f32 %v2987, %v3370
      %v3439 = vadd.f32 %v2988, %v3375
      %v3440 = vadd.f32 %v2989, %v3378
      %v3441 = vadd.f32 %v2990, %v3383
      %v3442 = vadd.f32 %v2991, %v3386
      %v3443 = vadd.f32 %v2992, %v3391
      %v3444 = vadd.f32 %v2993, %v3394
      %v3445 = vadd.f32 %v2994, %v3399
      %v3446 = vadd.f32 %v2995, %v3402
      %v3447 = vadd.f32 %v2996, %v3407
      %v3448 = vadd.f32 %v2997, %v3410
      %v3449 = vld [vmem:[%s258 + $0x10] sm:$0x8]
      %s3450 = scalar_lea.vmem %s266, 64
      %v3451 = vld [vmem:[%s3450] sm:$0xf]
      %v3452 = vld [vmem:[%s3450 + $0x4] sm:$0xf]
      %v3454 = vunpack.c.l.b16 %v3449
      %v3455 = vpack.c.b16 %v2633, %v3454
      %vm3456 = vcmask 1044480
      %v3457 = vrot.slane %v3455, 3
      %v3458 = vrot.slane %v2670, 3
      %v3459 = vsel %vm3456, %v3457, %v3458
      %v3460 = vrot.slane %v2671, 3
      %v3461 = vsel %vm3456, %v3458, %v3460
      %v3462 = vrot.slane %v2672, 3
      %v3463 = vsel %vm3456, %v3460, %v3462
      %v3464 = vrot.slane %v2673, 3
      %v3465 = vsel %vm3456, %v3462, %v3464
      %v3466 = vrot.slane %v2674, 3
      %v3467 = vsel %vm3456, %v3464, %v3466
      %v3468 = vrot.slane %v2675, 3
      %v3469 = vsel %vm3456, %v3466, %v3468
      %v3470 = vrot.slane %v2676, 3
      %v3471 = vsel %vm3456, %v3468, %v3470
      %v3472 = vrot.slane %v2677, 3
      %v3473 = vsel %vm3456, %v3470, %v3472
      %v3474 = vrot.slane %v2678, 3
      %v3475 = vsel %vm3456, %v3472, %v3474
      %v3476 = vrot.slane %v2679, 3
      %v3477 = vsel %vm3456, %v3474, %v3476
      %v3478 = vrot.slane %v2680, 3
      %v3479 = vsel %vm3456, %v3476, %v3478
      %v3480 = vrot.slane %v2681, 3
      %v3481 = vsel %vm3456, %v3478, %v3480
      %v3482 = vrot.slane %v2682, 3
      %v3483 = vsel %vm3456, %v3480, %v3482
      %v3484 = vrot.slane %v2683, 3
      %v3485 = vsel %vm3456, %v3482, %v3484
      %v3486 = vrot.slane %v2684, 3
      %v3487 = vsel %vm3456, %v3484, %v3486
      %v3488 = vrot.slane %v2685, 3
      %v3489 = vsel %vm3456, %v3486, %v3488
      %v3490 = vrot.slane %v2686, 3
      %v3491 = vsel %vm3456, %v3488, %v3490
      %v3492 = vrot.slane %v3004, 3
      %v3493 = vsel %vm3456, %v3490, %v3492
      %v3496 = vunpack.c.l.b16 %v3451
      %v3497 = vunpack.c.l.b16 %v3452
      %v3498 = vpack.c.b16 %v3497, %v3496
      %v3501 = vsel %vm574, %v3459, 0
      %v3504 = vsel %vm574, %v3461, 0
      %v3507 = vsel %vm574, %v3463, 0
      %v3510 = vsel %vm574, %v3465, 0
      %v3513 = vsel %vm574, %v3467, 0
      %v3516 = vsel %vm574, %v3469, 0
      %v3519 = vsel %vm574, %v3471, 0
      %v3522 = vsel %vm574, %v3473, 0
      %v3525 = vsel %vm574, %v3475, 0
      %v3528 = vsel %vm574, %v3477, 0
      %v3531 = vsel %vm574, %v3479, 0
      %v3534 = vsel %vm574, %v3481, 0
      %v3537 = vsel %vm574, %v3483, 0
      %v3540 = vsel %vm574, %v3485, 0
      %v3543 = vsel %vm574, %v3487, 0
      %v3546 = vsel %vm574, %v3489, 0
      %v3549 = vsel %vm574, %v3491, 0
      %v3552 = vsel %vm574, %v3493, 0
      %3554 = vmatprep.subr.bf16.mxu0 0
      %3555 = vmatpush1.bf16.msra.mxu0 0
      %3556 = vmatprep.subr.bf16.mxu0 0
      %3557 = vmatpush1.bf16.msra.mxu0 0
      %3558 = vmatprep.subr.bf16.mxu0 0
      %3559 = vmatpush1.bf16.msra.mxu0 0
      %3560 = vmatprep.subr.bf16.mxu0 0
      %3561 = vmatpush1.bf16.msra.mxu0 0
      %3562 = vmatprep.subr.bf16.mxu0 0
      %3563 = vmatpush1.bf16.msra.mxu0 0
      %3564 = vmatprep.subr.bf16.mxu0 0
      %3565 = vmatpush1.bf16.msra.mxu0 0
      %3566 = vmatprep.subr.bf16.mxu0 0
      %3567 = vmatpush1.bf16.msra.mxu0 0
      %3568 = vmatprep.subr.bf16.mxu0 0
      %3569 = vmatpush1.bf16.msra.mxu0 %v3498
      %3570 = vmatprep.subr.bf16.mxu0 0
      %3571 = vmatpush2.bf16.msra.mxu0 0
      %3572 = vmatprep.subr.bf16.mxu0 0
      %3573 = vmatpush2.bf16.msra.mxu0 0
      %3574 = vmatprep.subr.bf16.mxu0 0
      %3575 = vmatpush2.bf16.msra.mxu0 0
      %3576 = vmatprep.subr.bf16.mxu0 0
      %3577 = vmatpush2.bf16.msra.mxu0 0
      %3578 = vmatprep.subr.bf16.mxu0 0
      %3579 = vmatpush2.bf16.msra.mxu0 0
      %3580 = vmatprep.subr.bf16.mxu0 0
      %3581 = vmatpush2.bf16.msra.mxu0 0
      %3582 = vmatprep.subr.bf16.mxu0 0
      %3583 = vmatpush2.bf16.msra.mxu0 0
      %3584 = vmatprep.subr.bf16.mxu0 0
      %3585 = vmatpush2.bf16.msra.mxu0 0
      %3586 = vmatprep.mubr.bf16.mxu0 0
      %3587 = vmatmul.mubr.bf16.gmra.mxu0 %v3501
      %v3588 = vpop.f32.mrf.mxu0
      %v3589 = vadd.f32 0.0, %v3588
      %v3590 = vpop.f32.mrf.mxu0
      %v3591 = vpop.f32.mrf.mxu0
      %v3592 = vadd.f32 0.0, %v3591
      %v3593 = vpop.f32.mrf.mxu0
      %3594 = vmatprep.mubr.bf16.mxu0 0
      %3595 = vmatmul.mubr.bf16.gmra.mxu0 %v3504
      %v3596 = vpop.f32.mrf.mxu0
      %v3597 = vadd.f32 0.0, %v3596
      %v3598 = vpop.f32.mrf.mxu0
      %v3599 = vpop.f32.mrf.mxu0
      %v3600 = vadd.f32 0.0, %v3599
      %v3601 = vpop.f32.mrf.mxu0
      %3602 = vmatprep.mubr.bf16.mxu0 0
      %3603 = vmatmul.mubr.bf16.gmra.mxu0 %v3507
      %v3604 = vpop.f32.mrf.mxu0
      %v3605 = vadd.f32 0.0, %v3604
      %v3606 = vpop.f32.mrf.mxu0
      %v3607 = vpop.f32.mrf.mxu0
      %v3608 = vadd.f32 0.0, %v3607
      %v3609 = vpop.f32.mrf.mxu0
      %3610 = vmatprep.mubr.bf16.mxu0 0
      %3611 = vmatmul.mubr.bf16.gmra.mxu0 %v3510
      %v3612 = vpop.f32.mrf.mxu0
      %v3613 = vadd.f32 0.0, %v3612
      %v3614 = vpop.f32.mrf.mxu0
      %v3615 = vpop.f32.mrf.mxu0
      %v3616 = vadd.f32 0.0, %v3615
      %v3617 = vpop.f32.mrf.mxu0
      %3618 = vmatprep.mubr.bf16.mxu0 0
      %3619 = vmatmul.mubr.bf16.gmra.mxu0 %v3513
      %v3620 = vpop.f32.mrf.mxu0
      %v3621 = vadd.f32 0.0, %v3620
      %v3622 = vpop.f32.mrf.mxu0
      %v3623 = vpop.f32.mrf.mxu0
      %v3624 = vadd.f32 0.0, %v3623
      %v3625 = vpop.f32.mrf.mxu0
      %3626 = vmatprep.mubr.bf16.mxu0 0
      %3627 = vmatmul.mubr.bf16.gmra.mxu0 %v3516
      %v3628 = vpop.f32.mrf.mxu0
      %v3629 = vadd.f32 0.0, %v3628
      %v3630 = vpop.f32.mrf.mxu0
      %v3631 = vpop.f32.mrf.mxu0
      %v3632 = vadd.f32 0.0, %v3631
      %v3633 = vpop.f32.mrf.mxu0
      %3634 = vmatprep.mubr.bf16.mxu0 0
      %3635 = vmatmul.mubr.bf16.gmra.mxu0 %v3519
      %v3636 = vpop.f32.mrf.mxu0
      %v3637 = vadd.f32 0.0, %v3636
      %v3638 = vpop.f32.mrf.mxu0
      %v3639 = vpop.f32.mrf.mxu0
      %v3640 = vadd.f32 0.0, %v3639
      %v3641 = vpop.f32.mrf.mxu0
      %3642 = vmatprep.mubr.bf16.mxu0 0
      %3643 = vmatmul.mubr.bf16.gmra.mxu0 %v3522
      %v3644 = vpop.f32.mrf.mxu0
      %v3645 = vadd.f32 0.0, %v3644
      %v3646 = vpop.f32.mrf.mxu0
      %v3647 = vpop.f32.mrf.mxu0
      %v3648 = vadd.f32 0.0, %v3647
      %v3649 = vpop.f32.mrf.mxu0
      %3650 = vmatprep.mubr.bf16.mxu0 0
      %3651 = vmatmul.mubr.bf16.gmra.mxu0 %v3525
      %v3652 = vpop.f32.mrf.mxu0
      %v3653 = vadd.f32 0.0, %v3652
      %v3654 = vpop.f32.mrf.mxu0
      %v3655 = vpop.f32.mrf.mxu0
      %v3656 = vadd.f32 0.0, %v3655
      %v3657 = vpop.f32.mrf.mxu0
      %3658 = vmatprep.mubr.bf16.mxu0 0
      %3659 = vmatmul.mubr.bf16.gmra.mxu0 %v3528
      %v3660 = vpop.f32.mrf.mxu0
      %v3661 = vadd.f32 0.0, %v3660
      %v3662 = vpop.f32.mrf.mxu0
      %v3663 = vpop.f32.mrf.mxu0
      %v3664 = vadd.f32 0.0, %v3663
      %v3665 = vpop.f32.mrf.mxu0
      %3666 = vmatprep.mubr.bf16.mxu0 0
      %3667 = vmatmul.mubr.bf16.gmra.mxu0 %v3531
      %v3668 = vpop.f32.mrf.mxu0
      %v3669 = vadd.f32 0.0, %v3668
      %v3670 = vpop.f32.mrf.mxu0
      %v3671 = vpop.f32.mrf.mxu0
      %v3672 = vadd.f32 0.0, %v3671
      %v3673 = vpop.f32.mrf.mxu0
      %3674 = vmatprep.mubr.bf16.mxu0 0
      %3675 = vmatmul.mubr.bf16.gmra.mxu0 %v3534
      %v3676 = vpop.f32.mrf.mxu0
      %v3677 = vadd.f32 0.0, %v3676
      %v3678 = vpop.f32.mrf.mxu0
      %v3679 = vpop.f32.mrf.mxu0
      %v3680 = vadd.f32 0.0, %v3679
      %v3681 = vpop.f32.mrf.mxu0
      %3682 = vmatprep.mubr.bf16.mxu0 0
      %3683 = vmatmul.mubr.bf16.gmra.mxu0 %v3537
      %v3684 = vpop.f32.mrf.mxu0
      %v3685 = vadd.f32 0.0, %v3684
      %v3686 = vpop.f32.mrf.mxu0
      %v3687 = vpop.f32.mrf.mxu0
      %v3688 = vadd.f32 0.0, %v3687
      %v3689 = vpop.f32.mrf.mxu0
      %3690 = vmatprep.mubr.bf16.mxu0 0
      %3691 = vmatmul.mubr.bf16.gmra.mxu0 %v3540
      %v3692 = vpop.f32.mrf.mxu0
      %v3693 = vadd.f32 0.0, %v3692
      %v3694 = vpop.f32.mrf.mxu0
      %v3695 = vpop.f32.mrf.mxu0
      %v3696 = vadd.f32 0.0, %v3695
      %v3697 = vpop.f32.mrf.mxu0
      %3698 = vmatprep.mubr.bf16.mxu0 0
      %3699 = vmatmul.mubr.bf16.gmra.mxu0 %v3543
      %v3700 = vpop.f32.mrf.mxu0
      %v3701 = vadd.f32 0.0, %v3700
      %v3702 = vpop.f32.mrf.mxu0
      %v3703 = vpop.f32.mrf.mxu0
      %v3704 = vadd.f32 0.0, %v3703
      %v3705 = vpop.f32.mrf.mxu0
      %3706 = vmatprep.mubr.bf16.mxu0 0
      %3707 = vmatmul.mubr.bf16.gmra.mxu0 %v3546
      %v3708 = vpop.f32.mrf.mxu0
      %v3709 = vadd.f32 0.0, %v3708
      %v3710 = vpop.f32.mrf.mxu0
      %v3711 = vpop.f32.mrf.mxu0
      %v3712 = vadd.f32 0.0, %v3711
      %v3713 = vpop.f32.mrf.mxu0
      %3714 = vmatprep.mubr.bf16.mxu0 0
      %3715 = vmatmul.mubr.bf16.gmra.mxu0 %v3549
      %v3716 = vpop.f32.mrf.mxu0
      %v3717 = vadd.f32 0.0, %v3716
      %v3718 = vpop.f32.mrf.mxu0
      %v3719 = vpop.f32.mrf.mxu0
      %v3720 = vadd.f32 0.0, %v3719
      %v3721 = vpop.f32.mrf.mxu0
      %3722 = vmatprep.mubr.bf16.mxu0 0
      %3723 = vmatmul.mubr.bf16.gmra.mxu0 %v3552
      %v3724 = vpop.f32.mrf.mxu0
      %v3725 = vadd.f32 0.0, %v3724
      %v3726 = vpop.f32.mrf.mxu0
      %v3727 = vpop.f32.mrf.mxu0
      %v3728 = vadd.f32 0.0, %v3727
      %v3729 = vpop.f32.mrf.mxu0
      %3730 = vdwg.mxu0
      %v3731 = vadd.f32 %v3413, %v3589
      %v3732 = vadd.f32 %v3414, %v3592
      %v3733 = vadd.f32 %v3415, %v3597
      %v3734 = vadd.f32 %v3416, %v3600
      %v3735 = vadd.f32 %v3417, %v3605
      %v3736 = vadd.f32 %v3418, %v3608
      %v3737 = vadd.f32 %v3419, %v3613
      %v3738 = vadd.f32 %v3420, %v3616
      %v3739 = vadd.f32 %v3421, %v3621
      %v3740 = vadd.f32 %v3422, %v3624
      %v3741 = vadd.f32 %v3423, %v3629
      %v3742 = vadd.f32 %v3424, %v3632
      %v3743 = vadd.f32 %v3425, %v3637
      %v3744 = vadd.f32 %v3426, %v3640
      %v3745 = vadd.f32 %v3427, %v3645
      %v3746 = vadd.f32 %v3428, %v3648
      %v3747 = vadd.f32 %v3429, %v3653
      %v3748 = vadd.f32 %v3430, %v3656
      %v3749 = vadd.f32 %v3431, %v3661
      %v3750 = vadd.f32 %v3432, %v3664
      %v3751 = vadd.f32 %v3433, %v3669
      %v3752 = vadd.f32 %v3434, %v3672
      %v3753 = vadd.f32 %v3435, %v3677
      %v3754 = vadd.f32 %v3436, %v3680
      %v3755 = vadd.f32 %v3437, %v3685
      %v3756 = vadd.f32 %v3438, %v3688
      %v3757 = vadd.f32 %v3439, %v3693
      %v3758 = vadd.f32 %v3440, %v3696
      %v3759 = vadd.f32 %v3441, %v3701
      %v3760 = vadd.f32 %v3442, %v3704
      %v3761 = vadd.f32 %v3443, %v3709
      %v3762 = vadd.f32 %v3444, %v3712
      %v3763 = vadd.f32 %v3445, %v3717
      %v3764 = vadd.f32 %v3446, %v3720
      %v3765 = vadd.f32 %v3447, %v3725
      %v3766 = vadd.f32 %v3448, %v3728
      %v3767 = vld [vmem:[%s271] sm:$0xff]
      %v3768 = vld [vmem:[%s271 + $0x8] sm:$0xff]
      %v3769 = vld [vmem:[%s271 + $0x10] sm:$0xff]
      %v3770 = vld [vmem:[%s271 + $0x18] sm:$0xff]
      %v3771 = vld [vmem:[%s271 + $0x20] sm:$0xff]
      %v3772 = vld [vmem:[%s271 + $0x28] sm:$0xff]
      %v3773 = vld [vmem:[%s271 + $0x30] sm:$0xff]
      %v3774 = vld [vmem:[%s271 + $0x38] sm:$0xff]
      %v3775 = vld [vmem:[%s271 + $0x40] sm:$0xff]
      %v3776 = vld [vmem:[%s271 + $0x48] sm:$0xff]
      %v3777 = vld [vmem:[%s271 + $0x50] sm:$0xff]
      %v3778 = vld [vmem:[%s271 + $0x58] sm:$0xff]
      %v3779 = vld [vmem:[%s271 + $0x60] sm:$0xff]
      %v3780 = vld [vmem:[%s271 + $0x68] sm:$0xff]
      %v3781 = vld [vmem:[%s271 + $0x70] sm:$0xff]
      %v3782 = vld [vmem:[%s271 + $0x78] sm:$0xff]
      %v3783 = vld [vmem:[%s271 + $0x80] sm:$0xff]
      %v3784 = vld [vmem:[%s271 + $0x88] sm:$0xff]
      %v3785 = vld [vmem:[%s271 + $0x90] sm:$0xff]
      %v3786 = vld [vmem:[%s271 + $0x98] sm:$0xff]
      %v3787 = vld [vmem:[%s271 + $0xa0] sm:$0xff]
      %v3788 = vld [vmem:[%s271 + $0xa8] sm:$0xff]
      %v3789 = vld [vmem:[%s271 + $0xb0] sm:$0xff]
      %v3790 = vld [vmem:[%s271 + $0xb8] sm:$0xff]
      %v3791 = vld [vmem:[%s271 + $0xc0] sm:$0xff]
      %v3792 = vld [vmem:[%s271 + $0xc8] sm:$0xff]
      %v3793 = vld [vmem:[%s271 + $0xd0] sm:$0xff]
      %v3794 = vld [vmem:[%s271 + $0xd8] sm:$0xff]
      %v3795 = vld [vmem:[%s271 + $0xe0] sm:$0xff]
      %v3796 = vld [vmem:[%s271 + $0xe8] sm:$0xff]
      %v3797 = vld [vmem:[%s271 + $0xf0] sm:$0xff]
      %v3798 = vld [vmem:[%s271 + $0xf8] sm:$0xff]
      %v3799 = vld [vmem:[%s271 + $0x100] sm:$0xff]
      %v3800 = vld [vmem:[%s271 + $0x108] sm:$0xff]
      %v3801 = vld [vmem:[%s271 + $0x110] sm:$0xff]
      %v3802 = vld [vmem:[%s271 + $0x118] sm:$0xff]
      %3804 = vset.pattern.permute.xlu0 0
      %3805 = vperm.xlu0 %3804, %v3767
      %v3806 = vpop.permute.xlu0 %3805
      %3809 = vset.pattern.permute.xlu0 0
      %3810 = vperm.xlu0 %3809, %v3768
      %v3811 = vpop.permute.xlu0 %3810
      %3814 = vset.pattern.permute.xlu0 0
      %3815 = vperm.xlu0 %3814, %v3769
      %v3816 = vpop.permute.xlu0 %3815
      %3819 = vset.pattern.permute.xlu0 0
      %3820 = vperm.xlu0 %3819, %v3770
      %v3821 = vpop.permute.xlu0 %3820
      %3824 = vset.pattern.permute.xlu0 0
      %3825 = vperm.xlu0 %3824, %v3771
      %v3826 = vpop.permute.xlu0 %3825
      %3829 = vset.pattern.permute.xlu0 0
      %3830 = vperm.xlu0 %3829, %v3772
      %v3831 = vpop.permute.xlu0 %3830
      %3834 = vset.pattern.permute.xlu0 0
      %3835 = vperm.xlu0 %3834, %v3773
      %v3836 = vpop.permute.xlu0 %3835
      %3839 = vset.pattern.permute.xlu0 0
      %3840 = vperm.xlu0 %3839, %v3774
      %v3841 = vpop.permute.xlu0 %3840
      %3844 = vset.pattern.permute.xlu0 0
      %3845 = vperm.xlu0 %3844, %v3775
      %v3846 = vpop.permute.xlu0 %3845
      %3849 = vset.pattern.permute.xlu0 0
      %3850 = vperm.xlu0 %3849, %v3776
      %v3851 = vpop.permute.xlu0 %3850
      %3854 = vset.pattern.permute.xlu0 0
      %3855 = vperm.xlu0 %3854, %v3777
      %v3856 = vpop.permute.xlu0 %3855
      %3859 = vset.pattern.permute.xlu0 0
      %3860 = vperm.xlu0 %3859, %v3778
      %v3861 = vpop.permute.xlu0 %3860
      %3864 = vset.pattern.permute.xlu0 0
      %3865 = vperm.xlu0 %3864, %v3779
      %v3866 = vpop.permute.xlu0 %3865
      %3869 = vset.pattern.permute.xlu0 0
      %3870 = vperm.xlu0 %3869, %v3780
      %v3871 = vpop.permute.xlu0 %3870
      %3874 = vset.pattern.permute.xlu0 0
      %3875 = vperm.xlu0 %3874, %v3781
      %v3876 = vpop.permute.xlu0 %3875
      %3879 = vset.pattern.permute.xlu0 0
      %3880 = vperm.xlu0 %3879, %v3782
      %v3881 = vpop.permute.xlu0 %3880
      %3884 = vset.pattern.permute.xlu0 0
      %3885 = vperm.xlu0 %3884, %v3783
      %v3886 = vpop.permute.xlu0 %3885
      %3889 = vset.pattern.permute.xlu0 0
      %3890 = vperm.xlu0 %3889, %v3784
      %v3891 = vpop.permute.xlu0 %3890
      %3894 = vset.pattern.permute.xlu0 0
      %3895 = vperm.xlu0 %3894, %v3785
      %v3896 = vpop.permute.xlu0 %3895
      %3899 = vset.pattern.permute.xlu0 0
      %3900 = vperm.xlu0 %3899, %v3786
      %v3901 = vpop.permute.xlu0 %3900
      %3904 = vset.pattern.permute.xlu0 0
      %3905 = vperm.xlu0 %3904, %v3787
      %v3906 = vpop.permute.xlu0 %3905
      %3909 = vset.pattern.permute.xlu0 0
      %3910 = vperm.xlu0 %3909, %v3788
      %v3911 = vpop.permute.xlu0 %3910
      %3914 = vset.pattern.permute.xlu0 0
      %3915 = vperm.xlu0 %3914, %v3789
      %v3916 = vpop.permute.xlu0 %3915
      %3919 = vset.pattern.permute.xlu0 0
      %3920 = vperm.xlu0 %3919, %v3790
      %v3921 = vpop.permute.xlu0 %3920
      %3924 = vset.pattern.permute.xlu0 0
      %3925 = vperm.xlu0 %3924, %v3791
      %v3926 = vpop.permute.xlu0 %3925
      %3929 = vset.pattern.permute.xlu0 0
      %3930 = vperm.xlu0 %3929, %v3792
      %v3931 = vpop.permute.xlu0 %3930
      %3934 = vset.pattern.permute.xlu0 0
      %3935 = vperm.xlu0 %3934, %v3793
      %v3936 = vpop.permute.xlu0 %3935
      %3939 = vset.pattern.permute.xlu0 0
      %3940 = vperm.xlu0 %3939, %v3794
      %v3941 = vpop.permute.xlu0 %3940
      %3944 = vset.pattern.permute.xlu0 0
      %3945 = vperm.xlu0 %3944, %v3795
      %v3946 = vpop.permute.xlu0 %3945
      %3949 = vset.pattern.permute.xlu0 0
      %3950 = vperm.xlu0 %3949, %v3796
      %v3951 = vpop.permute.xlu0 %3950
      %3954 = vset.pattern.permute.xlu0 0
      %3955 = vperm.xlu0 %3954, %v3797
      %v3956 = vpop.permute.xlu0 %3955
      %3959 = vset.pattern.permute.xlu0 0
      %3960 = vperm.xlu0 %3959, %v3798
      %v3961 = vpop.permute.xlu0 %3960
      %3964 = vset.pattern.permute.xlu0 0
      %3965 = vperm.xlu0 %3964, %v3799
      %v3966 = vpop.permute.xlu0 %3965
      %3969 = vset.pattern.permute.xlu0 0
      %3970 = vperm.xlu0 %3969, %v3800
      %v3971 = vpop.permute.xlu0 %3970
      %3974 = vset.pattern.permute.xlu0 0
      %3975 = vperm.xlu0 %3974, %v3801
      %v3976 = vpop.permute.xlu0 %3975
      %3979 = vset.pattern.permute.xlu0 0
      %3980 = vperm.xlu0 %3979, %v3802
      %v3981 = vpop.permute.xlu0 %3980
      %v3983 = vadd.f32 %v3731, %v3806
      %v3984 = vadd.f32 %v3732, %v3811
      %v3985 = vadd.f32 %v3733, %v3816
      %v3986 = vadd.f32 %v3734, %v3821
      %v3987 = vadd.f32 %v3735, %v3826
      %v3988 = vadd.f32 %v3736, %v3831
      %v3989 = vadd.f32 %v3737, %v3836
      %v3990 = vadd.f32 %v3738, %v3841
      %v3991 = vadd.f32 %v3739, %v3846
      %v3992 = vadd.f32 %v3740, %v3851
      %v3993 = vadd.f32 %v3741, %v3856
      %v3994 = vadd.f32 %v3742, %v3861
      %v3995 = vadd.f32 %v3743, %v3866
      %v3996 = vadd.f32 %v3744, %v3871
      %v3997 = vadd.f32 %v3745, %v3876
      %v3998 = vadd.f32 %v3746, %v3881
      %v3999 = vadd.f32 %v3747, %v3886
      %v4000 = vadd.f32 %v3748, %v3891
      %v4001 = vadd.f32 %v3749, %v3896
      %v4002 = vadd.f32 %v3750, %v3901
      %v4003 = vadd.f32 %v3751, %v3906
      %v4004 = vadd.f32 %v3752, %v3911
      %v4005 = vadd.f32 %v3753, %v3916
      %v4006 = vadd.f32 %v3754, %v3921
      %v4007 = vadd.f32 %v3755, %v3926
      %v4008 = vadd.f32 %v3756, %v3931
      %v4009 = vadd.f32 %v3757, %v3936
      %v4010 = vadd.f32 %v3758, %v3941
      %v4011 = vadd.f32 %v3759, %v3946
      %v4012 = vadd.f32 %v3760, %v3951
      %v4013 = vadd.f32 %v3761, %v3956
      %v4014 = vadd.f32 %v3762, %v3961
      %v4015 = vadd.f32 %v3763, %v3966
      %v4016 = vadd.f32 %v3764, %v3971
      %v4017 = vadd.f32 %v3765, %v3976
      %v4018 = vadd.f32 %v3766, %v3981
      %v4019 = vld [vmem:[%s274] sm:$0x1]
      %v4021 = vlaneseq
      %v4022 = vshrl.u32 %v4021, 7
      %v4023 = vsub.s32 0, %v4022
      %v4024 = vrot.slane %v4019, %v4023
      %v4026 = vadd.f32 %v3983, %v4024
      %v4027 = vadd.f32 %v3984, %v4024
      %v4028 = vadd.f32 %v3985, %v4024
      %v4029 = vadd.f32 %v3986, %v4024
      %v4030 = vadd.f32 %v3987, %v4024
      %v4031 = vadd.f32 %v3988, %v4024
      %v4032 = vadd.f32 %v3989, %v4024
      %v4033 = vadd.f32 %v3990, %v4024
      %v4034 = vadd.f32 %v3991, %v4024
      %v4035 = vadd.f32 %v3992, %v4024
      %v4036 = vadd.f32 %v3993, %v4024
      %v4037 = vadd.f32 %v3994, %v4024
      %v4038 = vadd.f32 %v3995, %v4024
      %v4039 = vadd.f32 %v3996, %v4024
      %v4040 = vadd.f32 %v3997, %v4024
      %v4041 = vadd.f32 %v3998, %v4024
      %v4042 = vadd.f32 %v3999, %v4024
      %v4043 = vadd.f32 %v4000, %v4024
      %v4044 = vadd.f32 %v4001, %v4024
      %v4045 = vadd.f32 %v4002, %v4024
      %v4046 = vadd.f32 %v4003, %v4024
      %v4047 = vadd.f32 %v4004, %v4024
      %v4048 = vadd.f32 %v4005, %v4024
      %v4049 = vadd.f32 %v4006, %v4024
      %v4050 = vadd.f32 %v4007, %v4024
      %v4051 = vadd.f32 %v4008, %v4024
      %v4052 = vadd.f32 %v4009, %v4024
      %v4053 = vadd.f32 %v4010, %v4024
      %v4054 = vadd.f32 %v4011, %v4024
      %v4055 = vadd.f32 %v4012, %v4024
      %v4056 = vadd.f32 %v4013, %v4024
      %v4057 = vadd.f32 %v4014, %v4024
      %v4058 = vadd.f32 %v4015, %v4024
      %v4059 = vadd.f32 %v4016, %v4024
      %v4060 = vadd.f32 %v4017, %v4024
      %v4061 = vadd.f32 %v4018, %v4024
      %vm4062 = vcmp.ge.f32.partialorder %v4026, 0.0
      %vm4063 = vcmp.ge.f32.partialorder %v4027, 0.0
      %vm4064 = vcmp.ge.f32.partialorder %v4028, 0.0
      %vm4065 = vcmp.ge.f32.partialorder %v4029, 0.0
      %vm4066 = vcmp.ge.f32.partialorder %v4030, 0.0
      %vm4067 = vcmp.ge.f32.partialorder %v4031, 0.0
      %vm4068 = vcmp.ge.f32.partialorder %v4032, 0.0
      %vm4069 = vcmp.ge.f32.partialorder %v4033, 0.0
      %vm4070 = vcmp.ge.f32.partialorder %v4034, 0.0
      %vm4071 = vcmp.ge.f32.partialorder %v4035, 0.0
      %vm4072 = vcmp.ge.f32.partialorder %v4036, 0.0
      %vm4073 = vcmp.ge.f32.partialorder %v4037, 0.0
      %vm4074 = vcmp.ge.f32.partialorder %v4038, 0.0
      %vm4075 = vcmp.ge.f32.partialorder %v4039, 0.0
      %vm4076 = vcmp.ge.f32.partialorder %v4040, 0.0
      %vm4077 = vcmp.ge.f32.partialorder %v4041, 0.0
      %vm4078 = vcmp.ge.f32.partialorder %v4042, 0.0
      %vm4079 = vcmp.ge.f32.partialorder %v4043, 0.0
      %vm4080 = vcmp.ge.f32.partialorder %v4044, 0.0
      %vm4081 = vcmp.ge.f32.partialorder %v4045, 0.0
      %vm4082 = vcmp.ge.f32.partialorder %v4046, 0.0
      %vm4083 = vcmp.ge.f32.partialorder %v4047, 0.0
      %vm4084 = vcmp.ge.f32.partialorder %v4048, 0.0
      %vm4085 = vcmp.ge.f32.partialorder %v4049, 0.0
      %vm4086 = vcmp.ge.f32.partialorder %v4050, 0.0
      %vm4087 = vcmp.ge.f32.partialorder %v4051, 0.0
      %vm4088 = vcmp.ge.f32.partialorder %v4052, 0.0
      %vm4089 = vcmp.ge.f32.partialorder %v4053, 0.0
      %vm4090 = vcmp.ge.f32.partialorder %v4054, 0.0
      %vm4091 = vcmp.ge.f32.partialorder %v4055, 0.0
      %vm4092 = vcmp.ge.f32.partialorder %v4056, 0.0
      %vm4093 = vcmp.ge.f32.partialorder %v4057, 0.0
      %vm4094 = vcmp.ge.f32.partialorder %v4058, 0.0
      %vm4095 = vcmp.ge.f32.partialorder %v4059, 0.0
      %vm4096 = vcmp.ge.f32.partialorder %v4060, 0.0
      %vm4097 = vcmp.ge.f32.partialorder %v4061, 0.0
      %v4098 = vmul.f32 %v4026, 0.2
      %v4099 = vmul.f32 %v4027, 0.2
      %v4100 = vmul.f32 %v4028, 0.2
      %v4101 = vmul.f32 %v4029, 0.2
      %v4102 = vmul.f32 %v4030, 0.2
      %v4103 = vmul.f32 %v4031, 0.2
      %v4104 = vmul.f32 %v4032, 0.2
      %v4105 = vmul.f32 %v4033, 0.2
      %v4106 = vmul.f32 %v4034, 0.2
      %v4107 = vmul.f32 %v4035, 0.2
      %v4108 = vmul.f32 %v4036, 0.2
      %v4109 = vmul.f32 %v4037, 0.2
      %v4110 = vmul.f32 %v4038, 0.2
      %v4111 = vmul.f32 %v4039, 0.2
      %v4112 = vmul.f32 %v4040, 0.2
      %v4113 = vmul.f32 %v4041, 0.2
      %v4114 = vmul.f32 %v4042, 0.2
      %v4115 = vmul.f32 %v4043, 0.2
      %v4116 = vmul.f32 %v4044, 0.2
      %v4117 = vmul.f32 %v4045, 0.2
      %v4118 = vmul.f32 %v4046, 0.2
      %v4119 = vmul.f32 %v4047, 0.2
      %v4120 = vmul.f32 %v4048, 0.2
      %v4121 = vmul.f32 %v4049, 0.2
      %v4122 = vmul.f32 %v4050, 0.2
      %v4123 = vmul.f32 %v4051, 0.2
      %v4124 = vmul.f32 %v4052, 0.2
      %v4125 = vmul.f32 %v4053, 0.2
      %v4126 = vmul.f32 %v4054, 0.2
      %v4127 = vmul.f32 %v4055, 0.2
      %v4128 = vmul.f32 %v4056, 0.2
      %v4129 = vmul.f32 %v4057, 0.2
      %v4130 = vmul.f32 %v4058, 0.2
      %v4131 = vmul.f32 %v4059, 0.2
      %v4132 = vmul.f32 %v4060, 0.2
      %v4133 = vmul.f32 %v4061, 0.2
      %v4134 = vsel %vm4062, %v4026, %v4098
      %v4135 = vsel %vm4063, %v4027, %v4099
      %v4136 = vsel %vm4064, %v4028, %v4100
      %v4137 = vsel %vm4065, %v4029, %v4101
      %v4138 = vsel %vm4066, %v4030, %v4102
      %v4139 = vsel %vm4067, %v4031, %v4103
      %v4140 = vsel %vm4068, %v4032, %v4104
      %v4141 = vsel %vm4069, %v4033, %v4105
      %v4142 = vsel %vm4070, %v4034, %v4106
      %v4143 = vsel %vm4071, %v4035, %v4107
      %v4144 = vsel %vm4072, %v4036, %v4108
      %v4145 = vsel %vm4073, %v4037, %v4109
      %v4146 = vsel %vm4074, %v4038, %v4110
      %v4147 = vsel %vm4075, %v4039, %v4111
      %v4148 = vsel %vm4076, %v4040, %v4112
      %v4149 = vsel %vm4077, %v4041, %v4113
      %v4150 = vsel %vm4078, %v4042, %v4114
      %v4151 = vsel %vm4079, %v4043, %v4115
      %v4152 = vsel %vm4080, %v4044, %v4116
      %v4153 = vsel %vm4081, %v4045, %v4117
      %v4154 = vsel %vm4082, %v4046, %v4118
      %v4155 = vsel %vm4083, %v4047, %v4119
      %v4156 = vsel %vm4084, %v4048, %v4120
      %v4157 = vsel %vm4085, %v4049, %v4121
      %v4158 = vsel %vm4086, %v4050, %v4122
      %v4159 = vsel %vm4087, %v4051, %v4123
      %v4160 = vsel %vm4088, %v4052, %v4124
      %v4161 = vsel %vm4089, %v4053, %v4125
      %v4162 = vsel %vm4090, %v4054, %v4126
      %v4163 = vsel %vm4091, %v4055, %v4127
      %v4164 = vsel %vm4092, %v4056, %v4128
      %v4165 = vsel %vm4093, %v4057, %v4129
      %v4166 = vsel %vm4094, %v4058, %v4130
      %v4167 = vsel %vm4095, %v4059, %v4131
      %v4168 = vsel %vm4096, %v4060, %v4132
      %v4169 = vsel %vm4097, %v4061, %v4133
      %v4170 = vmul.f32 %v4134, 1.4142135
      %v4171 = vmul.f32 %v4135, 1.4142135
      %v4172 = vmul.f32 %v4136, 1.4142135
      %v4173 = vmul.f32 %v4137, 1.4142135
      %v4174 = vmul.f32 %v4138, 1.4142135
      %v4175 = vmul.f32 %v4139, 1.4142135
      %v4176 = vmul.f32 %v4140, 1.4142135
      %v4177 = vmul.f32 %v4141, 1.4142135
      %v4178 = vmul.f32 %v4142, 1.4142135
      %v4179 = vmul.f32 %v4143, 1.4142135
      %v4180 = vmul.f32 %v4144, 1.4142135
      %v4181 = vmul.f32 %v4145, 1.4142135
      %v4182 = vmul.f32 %v4146, 1.4142135
      %v4183 = vmul.f32 %v4147, 1.4142135
      %v4184 = vmul.f32 %v4148, 1.4142135
      %v4185 = vmul.f32 %v4149, 1.4142135
      %v4186 = vmul.f32 %v4150, 1.4142135
      %v4187 = vmul.f32 %v4151, 1.4142135
      %v4188 = vmul.f32 %v4152, 1.4142135
      %v4189 = vmul.f32 %v4153, 1.4142135
      %v4190 = vmul.f32 %v4154, 1.4142135
      %v4191 = vmul.f32 %v4155, 1.4142135
      %v4192 = vmul.f32 %v4156, 1.4142135
      %v4193 = vmul.f32 %v4157, 1.4142135
      %v4194 = vmul.f32 %v4158, 1.4142135
      %v4195 = vmul.f32 %v4159, 1.4142135
      %v4196 = vmul.f32 %v4160, 1.4142135
      %v4197 = vmul.f32 %v4161, 1.4142135
      %v4198 = vmul.f32 %v4162, 1.4142135
      %v4199 = vmul.f32 %v4163, 1.4142135
      %v4200 = vmul.f32 %v4164, 1.4142135
      %v4201 = vmul.f32 %v4165, 1.4142135
      %v4202 = vmul.f32 %v4166, 1.4142135
      %v4203 = vmul.f32 %v4167, 1.4142135
      %v4204 = vmul.f32 %v4168, 1.4142135
      %v4205 = vmul.f32 %v4169, 1.4142135
      %4206 = vst.msk [vmem:[%s282] sm:$0xff] %vm574, %v4170
      %4207 = vst.msk [vmem:[%s282 + $0x8] sm:$0xff] %vm574, %v4171
      %4208 = vst.msk [vmem:[%s282 + $0x10] sm:$0xff] %vm574, %v4172
      %4209 = vst.msk [vmem:[%s282 + $0x18] sm:$0xff] %vm574, %v4173
      %4210 = vst.msk [vmem:[%s282 + $0x20] sm:$0xff] %vm574, %v4174
      %4211 = vst.msk [vmem:[%s282 + $0x28] sm:$0xff] %vm574, %v4175
      %4212 = vst.msk [vmem:[%s282 + $0x30] sm:$0xff] %vm574, %v4176
      %4213 = vst.msk [vmem:[%s282 + $0x38] sm:$0xff] %vm574, %v4177
      %4214 = vst.msk [vmem:[%s282 + $0x40] sm:$0xff] %vm574, %v4178
      %4215 = vst.msk [vmem:[%s282 + $0x48] sm:$0xff] %vm574, %v4179
      %4216 = vst.msk [vmem:[%s282 + $0x50] sm:$0xff] %vm574, %v4180
      %4217 = vst.msk [vmem:[%s282 + $0x58] sm:$0xff] %vm574, %v4181
      %4218 = vst.msk [vmem:[%s282 + $0x60] sm:$0xff] %vm574, %v4182
      %4219 = vst.msk [vmem:[%s282 + $0x68] sm:$0xff] %vm574, %v4183
      %4220 = vst.msk [vmem:[%s282 + $0x70] sm:$0xff] %vm574, %v4184
      %4221 = vst.msk [vmem:[%s282 + $0x78] sm:$0xff] %vm574, %v4185
      %4222 = vst.msk [vmem:[%s282 + $0x80] sm:$0xff] %vm574, %v4186
      %4223 = vst.msk [vmem:[%s282 + $0x88] sm:$0xff] %vm574, %v4187
      %4224 = vst.msk [vmem:[%s282 + $0x90] sm:$0xff] %vm574, %v4188
      %4225 = vst.msk [vmem:[%s282 + $0x98] sm:$0xff] %vm574, %v4189
      %4226 = vst.msk [vmem:[%s282 + $0xa0] sm:$0xff] %vm574, %v4190
      %4227 = vst.msk [vmem:[%s282 + $0xa8] sm:$0xff] %vm574, %v4191
      %4228 = vst.msk [vmem:[%s282 + $0xb0] sm:$0xff] %vm574, %v4192
      %4229 = vst.msk [vmem:[%s282 + $0xb8] sm:$0xff] %vm574, %v4193
      %4230 = vst.msk [vmem:[%s282 + $0xc0] sm:$0xff] %vm574, %v4194
      %4231 = vst.msk [vmem:[%s282 + $0xc8] sm:$0xff] %vm574, %v4195
      %4232 = vst.msk [vmem:[%s282 + $0xd0] sm:$0xff] %vm574, %v4196
      %4233 = vst.msk [vmem:[%s282 + $0xd8] sm:$0xff] %vm574, %v4197
      %4234 = vst.msk [vmem:[%s282 + $0xe0] sm:$0xff] %vm574, %v4198
      %4235 = vst.msk [vmem:[%s282 + $0xe8] sm:$0xff] %vm574, %v4199
      %4236 = vst.msk [vmem:[%s282 + $0xf0] sm:$0xff] %vm574, %v4200
      %4237 = vst.msk [vmem:[%s282 + $0xf8] sm:$0xff] %vm574, %v4201
      %4238 = vst.msk [vmem:[%s282 + $0x100] sm:$0xff] %vm574, %v4202
      %4239 = vst.msk [vmem:[%s282 + $0x108] sm:$0xff] %vm574, %v4203
      %4240 = vst.msk [vmem:[%s282 + $0x110] sm:$0xff] %vm574, %v4204
      %4241 = vst.msk [vmem:[%s282 + $0x118] sm:$0xff] %vm574, %v4205
      %p4242 = scmp.lt.s32.totalorder %s19, 1
      %s4243 = scalar_select %p4242, %s19, 1
      %p4244 = scmp.lt.s32.totalorder %s20, 0
      %s4245 = scalar_select %p4244, %s20, 0
      %s4246 = smul.addr %s4243, 36
      %s4247 = sadd.s32 %s4245, %s4246
      %s4248 = smul.addr %s4247, 8
      %s4249 = scalar_lea.vmem %s4, %s4248
      // Predicated region
      $region37: #{synthesis_block_forward.4} parent=35 // pred_check
        %p4250 = pneg %p153
      $region38: #{synthesis_block_forward.4} parent=35 // pred_check_branch
        %4252 = sbr.rel (%p4250) target = $region40
      $region39: #{synthesis_block_forward.4} parent=35 // pred_region
        _
      $region40: #{synthesis_block_forward.4} parent=35 // pred_fallthru
        _
    $region36: #{synthesis_block_forward.4} parent=5 // pred_fallthru
      _
    %p4253 = scmp.le.s32.totalorder 2, %s10
    // Predicated region
    $region41: #{synthesis_block_forward.4} parent=5 // pred_check
      %p4254 = pneg %p4253
    $region42: #{synthesis_block_forward.4} parent=5 // pred_check_branch
      %4256 = sbr.rel (%p4254) target = $region44
    $region43: #{synthesis_block_forward.4} parent=5 // pred_region
      %s4257 = ssub.s32 %s10, 2
      // Predicated region
      $region45: #{synthesis_block_forward.4} parent=43 // pred_check
        %p4258 = pneg %p159
      $region46: #{synthesis_block_forward.4} parent=43 // pred_check_branch
        %4260 = sbr.rel (%p4258) target = $region48
      $region47: #{synthesis_block_forward.4} parent=43 // pred_region
        %p4261 = scmp.lt.s32.totalorder %s21, 1
        %s4262 = scalar_select %p4261, %s21, 1
        %p4263 = scmp.lt.s32.totalorder %s22, 0
        %s4264 = scalar_select %p4263, %s22, 0
        %s4265 = smul.addr %s4262, 36
        %s4266 = sadd.s32 %s4264, %s4265
        %s4267 = smul.addr %s4266, 8
        %s4268 = scalar_lea.vmem %s4, %s4267
      $region48: #{synthesis_block_forward.4} parent=43 // pred_fallthru
        _
    $region44: #{synthesis_block_forward.4} parent=5 // pred_fallthru
      _
  $region6: #{synthesis_block_forward.4} parent=0 // loop_footer
    %s14 = sadd.s32 1, %s10
  $region7: #{synthesis_block_forward.4} parent=0 // loop_footer_branch
    %9 = sbr.rel target = $region3
  $region8: #{synthesis_block_forward.4} parent=0 // loop_exit
    _

</llo_original>
